<compile_context>
chip_gen: v7x
topology: tpu7x:2x2x1
jax: 0.10.0
libtpu: 0.0.40
codegen_flags: <defaults>
</compile_context>

<pallas_src>
import functools

import jax
import jax.numpy as jnp
from jax.experimental import pallas as pl
from jax.experimental.pallas import tpu as pltpu

_SQRT_HALF = 0.7071067811865476

# matmul-operand / inter-kernel activation dtype (accumulation stays f32)
_MM_DTYPE = jnp.bfloat16

_VMEM_LIMIT = 64 * 1024 * 1024


def _cp(*sem):
    return pltpu.CompilerParams(dimension_semantics=tuple(sem),
                                vmem_limit_bytes=_VMEM_LIMIT)


def _round_up(x, m):
    return ((x + m - 1) // m) * m


def _row_tile(m, target):
    """Row tile: multiple of 8, capped at `target`, chosen so the grid has >= 2 steps
    (keeps both v7x TensorCores busy and the block pipeline alive).  Trailing partial
    blocks are handled by Pallas (masked writes; all row-wise math stays row-local)."""
    if m <= 8:
        return m
    tm = min(target, _round_up(pl.cdiv(m, 2), 8))
    return max(8, (tm // 8) * 8)


# ------------------- kernel 1: fused LayerNorm + Linear (QKV projection) -------------------

def _ln_linear_kernel(x_ref, g_ref, b_ln_ref, w_ref, b_ref, o_ref, *, eps):
    x = x_ref[...].astype(jnp.float32)
    mu = jnp.mean(x, axis=-1, keepdims=True)
    var = jnp.mean(jnp.square(x - mu), axis=-1, keepdims=True)
    xn = (x - mu) * jax.lax.rsqrt(var + eps)
    xn = xn * g_ref[...] + b_ln_ref[...]
    acc = jnp.dot(xn.astype(w_ref.dtype), w_ref[...], preferred_element_type=jnp.float32)
    o_ref[...] = (acc + b_ref[...]).astype(o_ref.dtype)


def ln_linear(x2d, ln_w, ln_b, w, b, *, eps, out_dtype, block_m=256):
    M, C = x2d.shape
    Cout = w.shape[1]
    tm = _row_tile(M, block_m)
    return pl.pallas_call(
        functools.partial(_ln_linear_kernel, eps=eps),
        out_shape=jax.ShapeDtypeStruct((M, Cout), out_dtype),
        grid=(pl.cdiv(M, tm),),
        in_specs=[pl.BlockSpec((tm, C), lambda i: (i, 0)),
                  pl.BlockSpec((1, C), lambda i: (0, 0)),
                  pl.BlockSpec((1, C), lambda i: (0, 0)),
                  pl.BlockSpec((C, Cout), lambda i: (0, 0)),
                  pl.BlockSpec((1, Cout), lambda i: (0, 0))],
        out_specs=pl.BlockSpec((tm, Cout), lambda i: (i, 0)),
        compiler_params=_cp("parallel"),
    )(x2d, ln_w.reshape(1, C), ln_b.reshape(1, C),
      w.astype(_MM_DTYPE), b.reshape(1, Cout))


# ------------- kernel 2: divided space-time attention (cls + groups, per owner) -------------

def _divided_attn_kernel(qkv_ref, o_ref, *, f, n, scale, temporal):
    # qkv_ref block: (3, 1, N, dh) -- this owner's (batch, head) full q/k/v.
    q = qkv_ref[0, 0].astype(jnp.float32) * scale          # (N, dh)
    k = qkv_ref[1, 0].astype(jnp.float32)
    v = qkv_ref[2, 0].astype(jnp.float32)
    dh = q.shape[-1]

    # ---- cls token attends over the FULL sequence (matches reference forward_partial) ----
    cls_q = q[0:1, :]                                       # (1, dh)
    s_cls = jnp.einsum('qd,kd->qk', cls_q, k,
                       preferred_element_type=jnp.float32)  # (1, N)
    s_cls = s_cls - jnp.max(s_cls, axis=-1, keepdims=True)
    p_cls = jnp.exp(s_cls)
    p_cls = p_cls / jnp.sum(p_cls, axis=-1, keepdims=True)
    cls_out = jnp.dot(p_cls, v, preferred_element_type=jnp.float32)   # (1, dh)

    # ---- patch tokens: divided (temporal / spatial) attention with the cls key/value column ----
    ck = k[0:1, :].reshape(1, 1, dh)
    cv = v[0:1, :].reshape(1, 1, dh)
    qp = q[1:, :].reshape(f, n, dh)
    kp = k[1:, :].reshape(f, n, dh)
    vp = v[1:, :].reshape(f, n, dh)
    if temporal:                        # groups = patches, each attends over its f frames
        qp = jnp.swapaxes(qp, 0, 1)     # (n, f, dh)
        kp = jnp.swapaxes(kp, 0, 1)
        vp = jnp.swapaxes(vp, 0, 1)
    # else: spatial -- groups = frames, each attends over its n patches; layout already (f, n, dh)

    s = jnp.einsum('gld,gmd->glm', qp, kp, preferred_element_type=jnp.float32)  # (G, L, L)
    s0 = jnp.sum(qp * ck, axis=-1, keepdims=True)                               # (G, L, 1) cls col
    m = jnp.maximum(jnp.max(s, axis=-1, keepdims=True), s0)
    p = jnp.exp(s - m)
    p0 = jnp.exp(s0 - m)
    og = jnp.einsum('glm,gmd->gld', p, vp, preferred_element_type=jnp.float32) + p0 * cv
    og = og / (jnp.sum(p, axis=-1, keepdims=True) + p0)     # exact normalization

    if temporal:
        og = jnp.swapaxes(og, 0, 1)                         # back to (f, n, dh) frame-major order

    out = jnp.concatenate([cls_out, og.reshape(f * n, dh)], axis=0)   # (N, dh), token order
    o_ref[0] = out.astype(o_ref.dtype)


def divided_attention(qkv, *, f, n, scale, temporal):
    """qkv: (3, B*h, N, dh).  One grid step per (batch, head) owner; the owner's whole
    sequence (cls + f*n patches) is resident, so cls attention and group attention are
    produced in the same pass.  Output: (B*h, N, dh) in original token order."""
    _, G, N, dh = qkv.shape
    return pl.pallas_call(
        functools.partial(_divided_attn_kernel, f=f, n=n, scale=scale, temporal=temporal),
        out_shape=jax.ShapeDtypeStruct((G, N, dh), qkv.dtype),
        grid=(G,),
        in_specs=[pl.BlockSpec((3, 1, N, dh), lambda i: (0, i, 0, 0))],
        out_specs=pl.BlockSpec((1, N, dh), lambda i: (i, 0, 0)),
        compiler_params=_cp("parallel"),
    )(qkv)


# ------------- kernel 3: fused head-merge + output projection + residual add -------------

def _merge_proj_residual_kernel(a_ref, w_ref, b_ref, r_ref, o_ref):
    # a_ref: (h, N, dh) one batch, all heads.  w_ref: (h, dh, C).  r/o: (1, N, C).
    h = a_ref.shape[0]
    acc = jnp.dot(a_ref[0], w_ref[0], preferred_element_type=jnp.float32)
    for j in range(1, h):        # static unrolled loop; avoids an HBM head-merge transpose
        acc = acc + jnp.dot(a_ref[j], w_ref[j], preferred_element_type=jnp.float32)
    o_ref[0] = (r_ref[0].astype(jnp.float32) + acc + b_ref[...]).astype(o_ref.dtype)


def merge_proj_residual(attn_out, w, b, x_res, *, num_heads):
    B, N, C = x_res.shape
    h = num_heads
    dh = C // h
    w_h = w.reshape(h, dh, C).astype(_MM_DTYPE)
    return pl.pallas_call(
        _merge_proj_residual_kernel,
        out_shape=jax.ShapeDtypeStruct((B, N, C), x_res.dtype),
        grid=(B,),
        in_specs=[pl.BlockSpec((h, N, dh), lambda bi: (bi, 0, 0)),
                  pl.BlockSpec((h, dh, C), lambda bi: (0, 0, 0)),
                  pl.BlockSpec((1, C), lambda bi: (0, 0)),
                  pl.BlockSpec((1, N, C), lambda bi: (bi, 0, 0))],
        out_specs=pl.BlockSpec((1, N, C), lambda bi: (bi, 0, 0)),
        compiler_params=_cp("parallel"),
    )(attn_out, w_h, b.reshape(1, C), x_res)


# ------------- kernel 4: fused LayerNorm + FFN (exact GELU) + residual add -------------

def _ln_ffn_residual_kernel(x_ref, g_ref, b_ln_ref, w1_ref, b1_ref, w2_ref, b2_ref,
                            o_ref, *, eps):
    x = x_ref[...].astype(jnp.float32)
    mu = jnp.mean(x, axis=-1, keepdims=True)
    var = jnp.mean(jnp.square(x - mu), axis=-1, keepdims=True)
    xn = (x - mu) * jax.lax.rsqrt(var + eps)
    xn = xn * g_ref[...] + b_ln_ref[...]
    hid = jnp.dot(xn.astype(w1_ref.dtype), w1_ref[...],
                  preferred_element_type=jnp.float32) + b1_ref[...]
    # exact (erf-based) GELU in f32, matching torch.nn.GELU
    hid = 0.5 * hid * (1.0 + jax.lax.erf(hid * _SQRT_HALF))
    y = jnp.dot(hid.astype(w2_ref.dtype), w2_ref[...],
                preferred_element_type=jnp.float32) + b2_ref[...]
    o_ref[...] = (x + y).astype(o_ref.dtype)


def ln_ffn_residual(x2d, ln_w, ln_b, w1, b1, w2, b2, *, eps, block_m=256):
    M, C = x2d.shape
    Ch = w1.shape[1]
    tm = _row_tile(M, block_m)
    return pl.pallas_call(
        functools.partial(_ln_ffn_residual_kernel, eps=eps),
        out_shape=jax.ShapeDtypeStruct((M, C), x2d.dtype),
        grid=(pl.cdiv(M, tm),),
        in_specs=[pl.BlockSpec((tm, C), lambda i: (i, 0)),
                  pl.BlockSpec((1, C), lambda i: (0, 0)),
                  pl.BlockSpec((1, C), lambda i: (0, 0)),
                  pl.BlockSpec((C, Ch), lambda i: (0, 0)),
                  pl.BlockSpec((1, Ch), lambda i: (0, 0)),
                  pl.BlockSpec((Ch, C), lambda i: (0, 0)),
                  pl.BlockSpec((1, C), lambda i: (0, 0))],
        out_specs=pl.BlockSpec((tm, C), lambda i: (i, 0)),
        compiler_params=_cp("parallel"),
    )(x2d, ln_w.reshape(1, C), ln_b.reshape(1, C),
      w1.astype(_MM_DTYPE), b1.reshape(1, Ch), w2.astype(_MM_DTYPE), b2.reshape(1, C))


# --------------------------- model (JAX glue + kernels) --------------------------

def attention_branch(x, ln_w, ln_b, p, *, num_heads, f, n, temporal, eps=1e-6):
    """x + proj(divided_space_time_attention(LayerNorm(x)))."""
    B, N, C = x.shape
    h = num_heads
    dh = C // h
    scale = dh ** (-0.5)
    x2d = x.reshape(B * N, C)

    # fused LayerNorm + QKV projection (bf16 activations out -> half HBM traffic downstream)
    qkv = ln_linear(x2d, ln_w, ln_b, p["w_qkv"], p["b_qkv"], eps=eps, out_dtype=_MM_DTYPE)

    # the single remaining XLA activation transpose: head split to (3, B*h, N, dh)
    qkv = qkv.reshape(B, N, 3, h, dh).transpose(2, 0, 3, 1, 4).reshape(3, B * h, N, dh)

    # cls + divided attention fused in one kernel, output already in token order
    attn_out = divided_attention(qkv, f=f, n=n, scale=scale, temporal=temporal)   # (B*h, N, dh)

    # fused head-merge + output projection + residual add
    return merge_proj_residual(attn_out, p["w_proj"], p["b_proj"], x, num_heads=h)


def timesformer_layer(x, params, *, num_heads, f, n, eps=1e-6):
    # temporal attention branch
    x = attention_branch(x, params["ln_t_w"], params["ln_t_b"], params["attn_t"],
                         num_heads=num_heads, f=f, n=n, temporal=True, eps=eps)
    # spatial attention branch
    x = attention_branch(x, params["ln_s_w"], params["ln_s_b"], params["attn_s"],
                         num_heads=num_heads, f=f, n=n, temporal=False, eps=eps)
    # feed-forward branch (LN + FFN + residual fused)
    B, N, C = x.shape
    ffn = params["ffn"]
    x = ln_ffn_residual(x.reshape(B * N, C), params["ln_f_w"], params["ln_f_b"],
                        ffn["w1"], ffn["b1"], ffn["w2"], ffn["b2"], eps=eps).reshape(B, N, C)
    return x


# ------------------------------------ parameters ---------------------------------

def init_params(key, dim, mult=4):
    ks = jax.random.split(key, 10)

    def w(k, shape):
        return (jax.random.normal(k, shape, jnp.float32) * 0.02).astype(jnp.float32)

    def attn_params(k1, k2, k3, k4):
        return {
            "w_qkv": w(k1, (dim, 3 * dim)),
            "b_qkv": w(k2, (3 * dim,)),
            "w_proj": w(k3, (dim, dim)),
            "b_proj": w(k4, (dim,)),
        }

    return {
        "ln_t_w": jnp.ones((dim,), jnp.float32), "ln_t_b": jnp.zeros((dim,), jnp.float32),
        "ln_s_w": jnp.ones((dim,), jnp.float32), "ln_s_b": jnp.zeros((dim,), jnp.float32),
        "ln_f_w": jnp.ones((dim,), jnp.float32), "ln_f_b": jnp.zeros((dim,), jnp.float32),
        "attn_t": attn_params(ks[0], ks[1], ks[2], ks[3]),
        "attn_s": attn_params(ks[4], ks[5], ks[6], ks[7]),
        "ffn": {
            "w1": w(ks[8], (dim, dim * mult)), "b1": jnp.zeros((dim * mult,), jnp.float32),
            "w2": w(ks[9], (dim * mult, dim)), "b2": jnp.zeros((dim,), jnp.float32),
        },
    }


# --------------------------------------- main ------------------------------------

if __name__ == "__main__":
    # small config: 16 patches, 4 frames, dim 32, 4 heads, batch 2
    B, num_frames, num_patches, dim, num_heads = 2, 4, 16, 32, 4
    N = 1 + num_frames * num_patches   # cls token + f*n patch tokens

    key = jax.random.PRNGKey(0)
    kx, kp = jax.random.split(key)
    x = jax.random.normal(kx, (B, N, dim), jnp.float32)
    params = init_params(kp, dim)

    fwd = jax.jit(functools.partial(timesformer_layer,
                                    num_heads=num_heads, f=num_frames, n=num_patches))
    out = jax.block_until_ready(fwd(x, params))

    assert out.shape == (B, N, dim)
    assert bool(jnp.all(jnp.isfinite(out)))
    print("KERNEL_OK")
</pallas_src>

<mosaic_0001>
module attributes {stable_mosaic.version = 11 : i64} {
  func.func @_ln_linear_kernel(%arg0: i32, %arg1: memref<72x32xf32, #tpu.memory_space<vmem>>, %arg2: memref<1x32xf32, #tpu.memory_space<vmem>>, %arg3: memref<1x32xf32, #tpu.memory_space<vmem>>, %arg4: memref<32x96xbf16, #tpu.memory_space<vmem>>, %arg5: memref<1x96xf32, #tpu.memory_space<vmem>>, %arg6: memref<72x96xbf16, #tpu.memory_space<vmem>>) attributes {dimension_semantics = [#tpu.dimension_semantics<parallel>], iteration_bounds = array<i64: 2>, scalar_prefetch = 0 : i64, scratch_operands = 0 : i64, tpu.core_type = #tpu.core_type<tc>, window_params = [{transform_indices = @transform_0, window_bounds = array<i64: 72, 32>}, {pipeline_mode = #tpu.pipeline_mode<synchronous>, transform_indices = @transform_1, window_bounds = array<i64: 1, 32>}, {pipeline_mode = #tpu.pipeline_mode<synchronous>, transform_indices = @transform_2, window_bounds = array<i64: 1, 32>}, {pipeline_mode = #tpu.pipeline_mode<synchronous>, transform_indices = @transform_3, window_bounds = array<i64: 32, 96>}, {pipeline_mode = #tpu.pipeline_mode<synchronous>, transform_indices = @transform_4, window_bounds = array<i64: 1, 96>}, {transform_indices = @transform_5, window_bounds = array<i64: 72, 96>}]} {
    %c0 = arith.constant 0 : index
    %c0_0 = arith.constant 0 : index
    %0 = vector.load %arg1[%c0, %c0_0] : memref<72x32xf32, #tpu.memory_space<vmem>>, vector<72x32xf32>
    %cst = arith.constant dense<0.000000e+00> : vector<72xf32>
    %1 = vector.multi_reduction <add>, %0, %cst [1] : vector<72x32xf32> to vector<72xf32>
    %2 = vector.shape_cast %1 : vector<72xf32> to vector<72x1xf32>
    %cst_1 = arith.constant 3.200000e+01 : f32
    %3 = vector.broadcast %cst_1 : f32 to vector<72x1xf32>
    %4 = arith.divf %2, %3 : vector<72x1xf32>
    %5 = vector.broadcast %4 : vector<72x1xf32> to vector<72x32xf32>
    %6 = arith.subf %0, %5 : vector<72x32xf32>
    %7 = arith.mulf %6, %6 : vector<72x32xf32>
    %cst_2 = arith.constant dense<0.000000e+00> : vector<72xf32>
    %8 = vector.multi_reduction <add>, %7, %cst_2 [1] : vector<72x32xf32> to vector<72xf32>
    %9 = vector.shape_cast %8 : vector<72xf32> to vector<72x1xf32>
    %cst_3 = arith.constant 3.200000e+01 : f32
    %10 = vector.broadcast %cst_3 : f32 to vector<72x1xf32>
    %11 = arith.divf %9, %10 : vector<72x1xf32>
    %12 = vector.broadcast %4 : vector<72x1xf32> to vector<72x32xf32>
    %13 = arith.subf %0, %12 : vector<72x32xf32>
    %cst_4 = arith.constant 9.99999997E-7 : f32
    %14 = vector.broadcast %cst_4 : f32 to vector<72x1xf32>
    %15 = arith.addf %11, %14 : vector<72x1xf32>
    %16 = math.rsqrt %15 : vector<72x1xf32>
    %17 = vector.broadcast %16 : vector<72x1xf32> to vector<72x32xf32>
    %18 = arith.mulf %13, %17 : vector<72x32xf32>
    %c0_5 = arith.constant 0 : index
    %c0_6 = arith.constant 0 : index
    %19 = vector.load %arg2[%c0_5, %c0_6] : memref<1x32xf32, #tpu.memory_space<vmem>>, vector<1x32xf32>
    %20 = vector.broadcast %19 : vector<1x32xf32> to vector<72x32xf32>
    %21 = arith.mulf %18, %20 : vector<72x32xf32>
    %c0_7 = arith.constant 0 : index
    %c0_8 = arith.constant 0 : index
    %22 = vector.load %arg3[%c0_7, %c0_8] : memref<1x32xf32, #tpu.memory_space<vmem>>, vector<1x32xf32>
    %23 = vector.broadcast %22 : vector<1x32xf32> to vector<72x32xf32>
    %24 = arith.addf %21, %23 : vector<72x32xf32>
    %25 = arith.truncf %24 : vector<72x32xf32> to vector<72x32xbf16>
    %c0_9 = arith.constant 0 : index
    %c0_10 = arith.constant 0 : index
    %26 = vector.load %arg4[%c0_9, %c0_10] : memref<32x96xbf16, #tpu.memory_space<vmem>>, vector<32x96xbf16>
    %cst_11 = arith.constant dense<0.000000e+00> : vector<72x96xf32>
    %27 = tpu.matmul %25, %26, %cst_11 {dimension_numbers = #tpu.dot_dimension_numbers<[1], [0], [0], [1], [0, 0, 1, 1], [], []>} : vector<72x32xbf16>, vector<32x96xbf16>, vector<72x96xf32> -> vector<72x96xf32>
    %c0_12 = arith.constant 0 : index
    %c0_13 = arith.constant 0 : index
    %28 = vector.load %arg5[%c0_12, %c0_13] : memref<1x96xf32, #tpu.memory_space<vmem>>, vector<1x96xf32>
    %29 = vector.broadcast %28 : vector<1x96xf32> to vector<72x96xf32>
    %30 = arith.addf %27, %29 : vector<72x96xf32>
    %31 = arith.truncf %30 : vector<72x96xf32> to vector<72x96xbf16>
    %c0_14 = arith.constant 0 : index
    %c0_15 = arith.constant 0 : index
    %32 = vector.load %arg6[%c0_14, %c0_15] : memref<72x96xbf16, #tpu.memory_space<vmem>>, vector<72x96xbf16>
    tpu.vector_store %arg6[%c0_14, %c0_15], %31 {strides = array<i32>} : memref<72x96xbf16, #tpu.memory_space<vmem>>, vector<72x96xbf16>,
    return
  }
  func.func @transform_0(%arg0: i32) -> (i32, i32) {
    %c0_i32 = arith.constant 0 : i32
    %c0_i32_0 = arith.constant 0 : i32
    return %arg0, %c0_i32 : i32, i32
  }
  func.func @transform_1(%arg0: i32) -> (i32, i32) {
    %c0_i32 = arith.constant 0 : i32
    %c0_i32_0 = arith.constant 0 : i32
    %c0_i32_1 = arith.constant 0 : i32
    return %c0_i32, %c0_i32_0 : i32, i32
  }
  func.func @transform_2(%arg0: i32) -> (i32, i32) {
    %c0_i32 = arith.constant 0 : i32
    %c0_i32_0 = arith.constant 0 : i32
    %c0_i32_1 = arith.constant 0 : i32
    return %c0_i32, %c0_i32_0 : i32, i32
  }
  func.func @transform_3(%arg0: i32) -> (i32, i32) {
    %c0_i32 = arith.constant 0 : i32
    %c0_i32_0 = arith.constant 0 : i32
    %c0_i32_1 = arith.constant 0 : i32
    return %c0_i32, %c0_i32_0 : i32, i32
  }
  func.func @transform_4(%arg0: i32) -> (i32, i32) {
    %c0_i32 = arith.constant 0 : i32
    %c0_i32_0 = arith.constant 0 : i32
    %c0_i32_1 = arith.constant 0 : i32
    return %c0_i32, %c0_i32_0 : i32, i32
  }
  func.func @transform_5(%arg0: i32) -> (i32, i32) {
    %c0_i32 = arith.constant 0 : i32
    %c0_i32_0 = arith.constant 0 : i32
    return %arg0, %c0_i32 : i32, i32
  }
}

module attributes {stable_mosaic.version = 11 : i64} {
  func.func @_divided_attn_kernel(%arg0: i32, %arg1: memref<3x1x65x8xbf16, #tpu.memory_space<vmem>>, %arg2: memref<1x65x8xbf16, #tpu.memory_space<vmem>>) attributes {dimension_semantics = [#tpu.dimension_semantics<parallel>], iteration_bounds = array<i64: 8>, scalar_prefetch = 0 : i64, scratch_operands = 0 : i64, tpu.core_type = #tpu.core_type<tc>, window_params = [{transform_indices = @transform_0, window_bounds = array<i64: 3, 1, 65, 8>}, {transform_indices = @transform_1, window_bounds = array<i64: 1, 65, 8>}]} {
    %c0 = arith.constant 0 : index
    %c0_0 = arith.constant 0 : index
    %c0_1 = arith.constant 0 : index
    %c0_2 = arith.constant 0 : index
    %0 = vector.load %arg1[%c0, %c0_0, %c0_1, %c0_2] : memref<3x1x65x8xbf16, #tpu.memory_space<vmem>>, vector<1x1x65x8xbf16>
    %1 = vector.shape_cast %0 : vector<1x1x65x8xbf16> to vector<65x8xbf16>
    %2 = arith.extf %1 : vector<65x8xbf16> to vector<65x8xf32>
    %cst = arith.constant 0.353553385 : f32
    %3 = vector.broadcast %cst : f32 to vector<65x8xf32>
    %4 = arith.mulf %2, %3 : vector<65x8xf32>
    %c1 = arith.constant 1 : index
    %c0_3 = arith.constant 0 : index
    %c0_4 = arith.constant 0 : index
    %c0_5 = arith.constant 0 : index
    %5 = vector.load %arg1[%c1, %c0_3, %c0_4, %c0_5] : memref<3x1x65x8xbf16, #tpu.memory_space<vmem>>, vector<1x1x65x8xbf16>
    %6 = vector.shape_cast %5 : vector<1x1x65x8xbf16> to vector<65x8xbf16>
    %7 = arith.extf %6 : vector<65x8xbf16> to vector<65x8xf32>
    %c2 = arith.constant 2 : index
    %c0_6 = arith.constant 0 : index
    %c0_7 = arith.constant 0 : index
    %c0_8 = arith.constant 0 : index
    %8 = vector.load %arg1[%c2, %c0_6, %c0_7, %c0_8] : memref<3x1x65x8xbf16, #tpu.memory_space<vmem>>, vector<1x1x65x8xbf16>
    %9 = vector.shape_cast %8 : vector<1x1x65x8xbf16> to vector<65x8xbf16>
    %10 = arith.extf %9 : vector<65x8xbf16> to vector<65x8xf32>
    %11 = vector.extract_strided_slice %4 {offsets = [0, 0], sizes = [1, 8], strides = [1, 1]} : vector<65x8xf32> to vector<1x8xf32>
    "tpu.trace_start"() <{level = 10 : i32, message = "qd,kd->qk"}> : () -> ()
    %cst_9 = arith.constant dense<0.000000e+00> : vector<1x65xf32>
    %12 = tpu.matmul %11, %7, %cst_9 {dimension_numbers = #tpu.dot_dimension_numbers<[1], [1], [0], [0], [0, 0, 1, 0], [], []>} : vector<1x8xf32>, vector<65x8xf32>, vector<1x65xf32> -> vector<1x65xf32>
    "tpu.trace_stop"() : () -> ()
    %cst_10 = arith.constant dense<0xFF800000> : vector<1xf32>
    %13 = vector.multi_reduction <maximumf>, %12, %cst_10 [1] : vector<1x65xf32> to vector<1xf32>
    %14 = vector.shape_cast %13 : vector<1xf32> to vector<1x1xf32>
    %15 = vector.broadcast %14 : vector<1x1xf32> to vector<1x65xf32>
    %16 = arith.subf %12, %15 : vector<1x65xf32>
    %17 = math.exp %16 : vector<1x65xf32>
    %cst_11 = arith.constant dense<0.000000e+00> : vector<1xf32>
    %18 = vector.multi_reduction <add>, %17, %cst_11 [1] : vector<1x65xf32> to vector<1xf32>
    %19 = vector.shape_cast %18 : vector<1xf32> to vector<1x1xf32>
    %20 = vector.broadcast %19 : vector<1x1xf32> to vector<1x65xf32>
    %21 = arith.divf %17, %20 : vector<1x65xf32>
    %cst_12 = arith.constant dense<0.000000e+00> : vector<1x8xf32>
    %22 = tpu.matmul %21, %10, %cst_12 {dimension_numbers = #tpu.dot_dimension_numbers<[1], [0], [0], [1], [0, 0, 1, 1], [], []>} : vector<1x65xf32>, vector<65x8xf32>, vector<1x8xf32> -> vector<1x8xf32>
    %23 = vector.extract_strided_slice %7 {offsets = [0, 0], sizes = [1, 8], strides = [1, 1]} : vector<65x8xf32> to vector<1x8xf32>
    %24 = vector.shape_cast %23 : vector<1x8xf32> to vector<1x1x8xf32>
    %25 = vector.extract_strided_slice %10 {offsets = [0, 0], sizes = [1, 8], strides = [1, 1]} : vector<65x8xf32> to vector<1x8xf32>
    %26 = vector.shape_cast %25 : vector<1x8xf32> to vector<1x1x8xf32>
    %27 = vector.extract_strided_slice %4 {offsets = [1, 0], sizes = [64, 8], strides = [1, 1]} : vector<65x8xf32> to vector<64x8xf32>
    %28 = vector.shape_cast %27 : vector<64x8xf32> to vector<4x16x8xf32>
    %29 = vector.extract_strided_slice %7 {offsets = [1, 0], sizes = [64, 8], strides = [1, 1]} : vector<65x8xf32> to vector<64x8xf32>
    %30 = vector.shape_cast %29 : vector<64x8xf32> to vector<4x16x8xf32>
    %31 = vector.extract_strided_slice %10 {offsets = [1, 0], sizes = [64, 8], strides = [1, 1]} : vector<65x8xf32> to vector<64x8xf32>
    %32 = vector.shape_cast %31 : vector<64x8xf32> to vector<4x16x8xf32>
    %33 = tpu.transpose %28, [1, 0, 2] : vector<4x16x8xf32> -> vector<16x4x8xf32>
    %34 = tpu.transpose %30, [1, 0, 2] : vector<4x16x8xf32> -> vector<16x4x8xf32>
    %35 = tpu.transpose %32, [1, 0, 2] : vector<4x16x8xf32> -> vector<16x4x8xf32>
    "tpu.trace_start"() <{level = 10 : i32, message = "gld,gmd->glm"}> : () -> ()
    %cst_13 = arith.constant dense<0.000000e+00> : vector<16x4x4xf32>
    %36 = tpu.matmul %33, %34, %cst_13 {dimension_numbers = #tpu.dot_dimension_numbers<[2], [2], [1], [1], [0, 0, 0, 1, 1, 1], [0], [0]>} : vector<16x4x8xf32>, vector<16x4x8xf32>, vector<16x4x4xf32> -> vector<16x4x4xf32>
    "tpu.trace_stop"() : () -> ()
    %37 = vector.broadcast %24 : vector<1x1x8xf32> to vector<16x4x8xf32>
    %38 = arith.mulf %33, %37 : vector<16x4x8xf32>
    %cst_14 = arith.constant dense<0.000000e+00> : vector<16x4xf32>
    %39 = vector.multi_reduction <add>, %38, %cst_14 [2] : vector<16x4x8xf32> to vector<16x4xf32>
    %40 = vector.shape_cast %39 : vector<16x4xf32> to vector<16x4x1xf32>
    %cst_15 = arith.constant dense<0xFF800000> : vector<16x4xf32>
    %41 = vector.multi_reduction <maximumf>, %36, %cst_15 [2] : vector<16x4x4xf32> to vector<16x4xf32>
    %42 = vector.shape_cast %41 : vector<16x4xf32> to vector<16x4x1xf32>
    %43 = arith.maximumf %42, %40 : vector<16x4x1xf32>
    %44 = vector.broadcast %43 : vector<16x4x1xf32> to vector<16x4x4xf32>
    %45 = arith.subf %36, %44 : vector<16x4x4xf32>
    %46 = math.exp %45 : vector<16x4x4xf32>
    %47 = arith.subf %40, %43 : vector<16x4x1xf32>
    %48 = math.exp %47 : vector<16x4x1xf32>
    "tpu.trace_start"() <{level = 10 : i32, message = "glm,gmd->gld"}> : () -> ()
    %cst_16 = arith.constant dense<0.000000e+00> : vector<16x4x8xf32>
    %49 = tpu.matmul %46, %35, %cst_16 {dimension_numbers = #tpu.dot_dimension_numbers<[2], [1], [1], [2], [0, 0, 0, 1, 1, 2], [0], [0]>} : vector<16x4x4xf32>, vector<16x4x8xf32>, vector<16x4x8xf32> -> vector<16x4x8xf32>
    "tpu.trace_stop"() : () -> ()
    %50 = vector.broadcast %48 : vector<16x4x1xf32> to vector<16x4x8xf32>
    %51 = vector.broadcast %26 : vector<1x1x8xf32> to vector<16x4x8xf32>
    %52 = arith.mulf %50, %51 : vector<16x4x8xf32>
    %53 = arith.addf %49, %52 : vector<16x4x8xf32>
    %cst_17 = arith.constant dense<0.000000e+00> : vector<16x4xf32>
    %54 = vector.multi_reduction <add>, %46, %cst_17 [2] : vector<16x4x4xf32> to vector<16x4xf32>
    %55 = vector.shape_cast %54 : vector<16x4xf32> to vector<16x4x1xf32>
    %56 = arith.addf %55, %48 : vector<16x4x1xf32>
    %57 = vector.broadcast %56 : vector<16x4x1xf32> to vector<16x4x8xf32>
    %58 = arith.divf %53, %57 : vector<16x4x8xf32>
    %59 = tpu.transpose %58, [1, 0, 2] : vector<16x4x8xf32> -> vector<4x16x8xf32>
    %60 = vector.shape_cast %59 : vector<4x16x8xf32> to vector<64x8xf32>
    %61 = tpu.concatenate %22, %60 in 0 : vector<1x8xf32>, vector<64x8xf32> -> vector<65x8xf32>
    %62 = arith.truncf %61 : vector<65x8xf32> to vector<65x8xbf16>
    %c0_18 = arith.constant 0 : index
    %c0_19 = arith.constant 0 : index
    %c0_20 = arith.constant 0 : index
    %63 = vector.load %arg2[%c0_18, %c0_19, %c0_20] : memref<1x65x8xbf16, #tpu.memory_space<vmem>>, vector<1x65x8xbf16>
    %64 = vector.shape_cast %63 : vector<1x65x8xbf16> to vector<65x8xbf16>
    %65 = vector.shape_cast %62 : vector<65x8xbf16> to vector<1x65x8xbf16>
    tpu.vector_store %arg2[%c0_18, %c0_19, %c0_20], %65 {strides = array<i32>} : memref<1x65x8xbf16, #tpu.memory_space<vmem>>, vector<1x65x8xbf16>,
    return
  }
  func.func @transform_0(%arg0: i32) -> (i32, i32, i32, i32) {
    %c0_i32 = arith.constant 0 : i32
    %c0_i32_0 = arith.constant 0 : i32
    %c0_i32_1 = arith.constant 0 : i32
    %c0_i32_2 = arith.constant 0 : i32
    return %c0_i32, %arg0, %c0_i32_0, %c0_i32_1 : i32, i32, i32, i32
  }
  func.func @transform_1(%arg0: i32) -> (i32, i32, i32) {
    %c0_i32 = arith.constant 0 : i32
    %c0_i32_0 = arith.constant 0 : i32
    %c0_i32_1 = arith.constant 0 : i32
    return %arg0, %c0_i32, %c0_i32_0 : i32, i32, i32
  }
}

module attributes {stable_mosaic.version = 11 : i64} {
  func.func @_merge_proj_residual_kernel(%arg0: i32, %arg1: memref<4x65x8xbf16, #tpu.memory_space<vmem>>, %arg2: memref<4x8x32xbf16, #tpu.memory_space<vmem>>, %arg3: memref<1x32xf32, #tpu.memory_space<vmem>>, %arg4: memref<1x65x32xf32, #tpu.memory_space<vmem>>, %arg5: memref<1x65x32xf32, #tpu.memory_space<vmem>>) attributes {dimension_semantics = [#tpu.dimension_semantics<parallel>], iteration_bounds = array<i64: 2>, scalar_prefetch = 0 : i64, scratch_operands = 0 : i64, tpu.core_type = #tpu.core_type<tc>, window_params = [{transform_indices = @transform_0, window_bounds = array<i64: 4, 65, 8>}, {pipeline_mode = #tpu.pipeline_mode<synchronous>, transform_indices = @transform_1, window_bounds = array<i64: 4, 8, 32>}, {pipeline_mode = #tpu.pipeline_mode<synchronous>, transform_indices = @transform_2, window_bounds = array<i64: 1, 32>}, {transform_indices = @transform_3, window_bounds = array<i64: 1, 65, 32>}, {transform_indices = @transform_4, window_bounds = array<i64: 1, 65, 32>}]} {
    %c0 = arith.constant 0 : index
    %c0_0 = arith.constant 0 : index
    %c0_1 = arith.constant 0 : index
    %0 = vector.load %arg1[%c0, %c0_0, %c0_1] : memref<4x65x8xbf16, #tpu.memory_space<vmem>>, vector<1x65x8xbf16>
    %1 = vector.shape_cast %0 : vector<1x65x8xbf16> to vector<65x8xbf16>
    %c0_2 = arith.constant 0 : index
    %c0_3 = arith.constant 0 : index
    %c0_4 = arith.constant 0 : index
    %2 = vector.load %arg2[%c0_2, %c0_3, %c0_4] : memref<4x8x32xbf16, #tpu.memory_space<vmem>>, vector<1x8x32xbf16>
    %3 = vector.shape_cast %2 : vector<1x8x32xbf16> to vector<8x32xbf16>
    %cst = arith.constant dense<0.000000e+00> : vector<65x32xf32>
    %4 = tpu.matmul %1, %3, %cst {dimension_numbers = #tpu.dot_dimension_numbers<[1], [0], [0], [1], [0, 0, 1, 1], [], []>} : vector<65x8xbf16>, vector<8x32xbf16>, vector<65x32xf32> -> vector<65x32xf32>
    %c1 = arith.constant 1 : index
    %c0_5 = arith.constant 0 : index
    %c0_6 = arith.constant 0 : index
    %5 = vector.load %arg1[%c1, %c0_5, %c0_6] : memref<4x65x8xbf16, #tpu.memory_space<vmem>>, vector<1x65x8xbf16>
    %6 = vector.shape_cast %5 : vector<1x65x8xbf16> to vector<65x8xbf16>
    %c1_7 = arith.constant 1 : index
    %c0_8 = arith.constant 0 : index
    %c0_9 = arith.constant 0 : index
    %7 = vector.load %arg2[%c1_7, %c0_8, %c0_9] : memref<4x8x32xbf16, #tpu.memory_space<vmem>>, vector<1x8x32xbf16>
    %8 = vector.shape_cast %7 : vector<1x8x32xbf16> to vector<8x32xbf16>
    %cst_10 = arith.constant dense<0.000000e+00> : vector<65x32xf32>
    %9 = tpu.matmul %6, %8, %cst_10 {dimension_numbers = #tpu.dot_dimension_numbers<[1], [0], [0], [1], [0, 0, 1, 1], [], []>} : vector<65x8xbf16>, vector<8x32xbf16>, vector<65x32xf32> -> vector<65x32xf32>
    %10 = arith.addf %4, %9 : vector<65x32xf32>
    %c2 = arith.constant 2 : index
    %c0_11 = arith.constant 0 : index
    %c0_12 = arith.constant 0 : index
    %11 = vector.load %arg1[%c2, %c0_11, %c0_12] : memref<4x65x8xbf16, #tpu.memory_space<vmem>>, vector<1x65x8xbf16>
    %12 = vector.shape_cast %11 : vector<1x65x8xbf16> to vector<65x8xbf16>
    %c2_13 = arith.constant 2 : index
    %c0_14 = arith.constant 0 : index
    %c0_15 = arith.constant 0 : index
    %13 = vector.load %arg2[%c2_13, %c0_14, %c0_15] : memref<4x8x32xbf16, #tpu.memory_space<vmem>>, vector<1x8x32xbf16>
    %14 = vector.shape_cast %13 : vector<1x8x32xbf16> to vector<8x32xbf16>
    %cst_16 = arith.constant dense<0.000000e+00> : vector<65x32xf32>
    %15 = tpu.matmul %12, %14, %cst_16 {dimension_numbers = #tpu.dot_dimension_numbers<[1], [0], [0], [1], [0, 0, 1, 1], [], []>} : vector<65x8xbf16>, vector<8x32xbf16>, vector<65x32xf32> -> vector<65x32xf32>
    %16 = arith.addf %10, %15 : vector<65x32xf32>
    %c3 = arith.constant 3 : index
    %c0_17 = arith.constant 0 : index
    %c0_18 = arith.constant 0 : index
    %17 = vector.load %arg1[%c3, %c0_17, %c0_18] : memref<4x65x8xbf16, #tpu.memory_space<vmem>>, vector<1x65x8xbf16>
    %18 = vector.shape_cast %17 : vector<1x65x8xbf16> to vector<65x8xbf16>
    %c3_19 = arith.constant 3 : index
    %c0_20 = arith.constant 0 : index
    %c0_21 = arith.constant 0 : index
    %19 = vector.load %arg2[%c3_19, %c0_20, %c0_21] : memref<4x8x32xbf16, #tpu.memory_space<vmem>>, vector<1x8x32xbf16>
    %20 = vector.shape_cast %19 : vector<1x8x32xbf16> to vector<8x32xbf16>
    %cst_22 = arith.constant dense<0.000000e+00> : vector<65x32xf32>
    %21 = tpu.matmul %18, %20, %cst_22 {dimension_numbers = #tpu.dot_dimension_numbers<[1], [0], [0], [1], [0, 0, 1, 1], [], []>} : vector<65x8xbf16>, vector<8x32xbf16>, vector<65x32xf32> -> vector<65x32xf32>
    %22 = arith.addf %16, %21 : vector<65x32xf32>
    %c0_23 = arith.constant 0 : index
    %c0_24 = arith.constant 0 : index
    %c0_25 = arith.constant 0 : index
    %23 = vector.load %arg4[%c0_23, %c0_24, %c0_25] : memref<1x65x32xf32, #tpu.memory_space<vmem>>, vector<1x65x32xf32>
    %24 = vector.shape_cast %23 : vector<1x65x32xf32> to vector<65x32xf32>
    %25 = arith.addf %24, %22 : vector<65x32xf32>
    %c0_26 = arith.constant 0 : index
    %c0_27 = arith.constant 0 : index
    %26 = vector.load %arg3[%c0_26, %c0_27] : memref<1x32xf32, #tpu.memory_space<vmem>>, vector<1x32xf32>
    %27 = vector.broadcast %26 : vector<1x32xf32> to vector<65x32xf32>
    %28 = arith.addf %25, %27 : vector<65x32xf32>
    %c0_28 = arith.constant 0 : index
    %c0_29 = arith.constant 0 : index
    %c0_30 = arith.constant 0 : index
    %29 = vector.load %arg5[%c0_28, %c0_29, %c0_30] : memref<1x65x32xf32, #tpu.memory_space<vmem>>, vector<1x65x32xf32>
    %30 = vector.shape_cast %29 : vector<1x65x32xf32> to vector<65x32xf32>
    %31 = vector.shape_cast %28 : vector<65x32xf32> to vector<1x65x32xf32>
    tpu.vector_store %arg5[%c0_28, %c0_29, %c0_30], %31 {strides = array<i32>} : memref<1x65x32xf32, #tpu.memory_space<vmem>>, vector<1x65x32xf32>,
    return
  }
  func.func @transform_0(%arg0: i32) -> (i32, i32, i32) {
    %c0_i32 = arith.constant 0 : i32
    %c0_i32_0 = arith.constant 0 : i32
    %c0_i32_1 = arith.constant 0 : i32
    return %arg0, %c0_i32, %c0_i32_0 : i32, i32, i32
  }
  func.func @transform_1(%arg0: i32) -> (i32, i32, i32) {
    %c0_i32 = arith.constant 0 : i32
    %c0_i32_0 = arith.constant 0 : i32
    %c0_i32_1 = arith.constant 0 : i32
    %c0_i32_2 = arith.constant 0 : i32
    return %c0_i32, %c0_i32_0, %c0_i32_1 : i32, i32, i32
  }
  func.func @transform_2(%arg0: i32) -> (i32, i32) {
    %c0_i32 = arith.constant 0 : i32
    %c0_i32_0 = arith.constant 0 : i32
    %c0_i32_1 = arith.constant 0 : i32
    return %c0_i32, %c0_i32_0 : i32, i32
  }
  func.func @transform_3(%arg0: i32) -> (i32, i32, i32) {
    %c0_i32 = arith.constant 0 : i32
    %c0_i32_0 = arith.constant 0 : i32
    %c0_i32_1 = arith.constant 0 : i32
    return %arg0, %c0_i32, %c0_i32_0 : i32, i32, i32
  }
  func.func @transform_4(%arg0: i32) -> (i32, i32, i32) {
    %c0_i32 = arith.constant 0 : i32
    %c0_i32_0 = arith.constant 0 : i32
    %c0_i32_1 = arith.constant 0 : i32
    return %arg0, %c0_i32, %c0_i32_0 : i32, i32, i32
  }
}

module attributes {stable_mosaic.version = 11 : i64} {
  func.func @_divided_attn_kernel(%arg0: i32, %arg1: memref<3x1x65x8xbf16, #tpu.memory_space<vmem>>, %arg2: memref<1x65x8xbf16, #tpu.memory_space<vmem>>) attributes {dimension_semantics = [#tpu.dimension_semantics<parallel>], iteration_bounds = array<i64: 8>, scalar_prefetch = 0 : i64, scratch_operands = 0 : i64, tpu.core_type = #tpu.core_type<tc>, window_params = [{transform_indices = @transform_0, window_bounds = array<i64: 3, 1, 65, 8>}, {transform_indices = @transform_1, window_bounds = array<i64: 1, 65, 8>}]} {
    %c0 = arith.constant 0 : index
    %c0_0 = arith.constant 0 : index
    %c0_1 = arith.constant 0 : index
    %c0_2 = arith.constant 0 : index
    %0 = vector.load %arg1[%c0, %c0_0, %c0_1, %c0_2] : memref<3x1x65x8xbf16, #tpu.memory_space<vmem>>, vector<1x1x65x8xbf16>
    %1 = vector.shape_cast %0 : vector<1x1x65x8xbf16> to vector<65x8xbf16>
    %2 = arith.extf %1 : vector<65x8xbf16> to vector<65x8xf32>
    %cst = arith.constant 0.353553385 : f32
    %3 = vector.broadcast %cst : f32 to vector<65x8xf32>
    %4 = arith.mulf %2, %3 : vector<65x8xf32>
    %c1 = arith.constant 1 : index
    %c0_3 = arith.constant 0 : index
    %c0_4 = arith.constant 0 : index
    %c0_5 = arith.constant 0 : index
    %5 = vector.load %arg1[%c1, %c0_3, %c0_4, %c0_5] : memref<3x1x65x8xbf16, #tpu.memory_space<vmem>>, vector<1x1x65x8xbf16>
    %6 = vector.shape_cast %5 : vector<1x1x65x8xbf16> to vector<65x8xbf16>
    %7 = arith.extf %6 : vector<65x8xbf16> to vector<65x8xf32>
    %c2 = arith.constant 2 : index
    %c0_6 = arith.constant 0 : index
    %c0_7 = arith.constant 0 : index
    %c0_8 = arith.constant 0 : index
    %8 = vector.load %arg1[%c2, %c0_6, %c0_7, %c0_8] : memref<3x1x65x8xbf16, #tpu.memory_space<vmem>>, vector<1x1x65x8xbf16>
    %9 = vector.shape_cast %8 : vector<1x1x65x8xbf16> to vector<65x8xbf16>
    %10 = arith.extf %9 : vector<65x8xbf16> to vector<65x8xf32>
    %11 = vector.extract_strided_slice %4 {offsets = [0, 0], sizes = [1, 8], strides = [1, 1]} : vector<65x8xf32> to vector<1x8xf32>
    "tpu.trace_start"() <{level = 10 : i32, message = "qd,kd->qk"}> : () -> ()
    %cst_9 = arith.constant dense<0.000000e+00> : vector<1x65xf32>
    %12 = tpu.matmul %11, %7, %cst_9 {dimension_numbers = #tpu.dot_dimension_numbers<[1], [1], [0], [0], [0, 0, 1, 0], [], []>} : vector<1x8xf32>, vector<65x8xf32>, vector<1x65xf32> -> vector<1x65xf32>
    "tpu.trace_stop"() : () -> ()
    %cst_10 = arith.constant dense<0xFF800000> : vector<1xf32>
    %13 = vector.multi_reduction <maximumf>, %12, %cst_10 [1] : vector<1x65xf32> to vector<1xf32>
    %14 = vector.shape_cast %13 : vector<1xf32> to vector<1x1xf32>
    %15 = vector.broadcast %14 : vector<1x1xf32> to vector<1x65xf32>
    %16 = arith.subf %12, %15 : vector<1x65xf32>
    %17 = math.exp %16 : vector<1x65xf32>
    %cst_11 = arith.constant dense<0.000000e+00> : vector<1xf32>
    %18 = vector.multi_reduction <add>, %17, %cst_11 [1] : vector<1x65xf32> to vector<1xf32>
    %19 = vector.shape_cast %18 : vector<1xf32> to vector<1x1xf32>
    %20 = vector.broadcast %19 : vector<1x1xf32> to vector<1x65xf32>
    %21 = arith.divf %17, %20 : vector<1x65xf32>
    %cst_12 = arith.constant dense<0.000000e+00> : vector<1x8xf32>
    %22 = tpu.matmul %21, %10, %cst_12 {dimension_numbers = #tpu.dot_dimension_numbers<[1], [0], [0], [1], [0, 0, 1, 1], [], []>} : vector<1x65xf32>, vector<65x8xf32>, vector<1x8xf32> -> vector<1x8xf32>
    %23 = vector.extract_strided_slice %7 {offsets = [0, 0], sizes = [1, 8], strides = [1, 1]} : vector<65x8xf32> to vector<1x8xf32>
    %24 = vector.shape_cast %23 : vector<1x8xf32> to vector<1x1x8xf32>
    %25 = vector.extract_strided_slice %10 {offsets = [0, 0], sizes = [1, 8], strides = [1, 1]} : vector<65x8xf32> to vector<1x8xf32>
    %26 = vector.shape_cast %25 : vector<1x8xf32> to vector<1x1x8xf32>
    %27 = vector.extract_strided_slice %4 {offsets = [1, 0], sizes = [64, 8], strides = [1, 1]} : vector<65x8xf32> to vector<64x8xf32>
    %28 = vector.shape_cast %27 : vector<64x8xf32> to vector<4x16x8xf32>
    %29 = vector.extract_strided_slice %7 {offsets = [1, 0], sizes = [64, 8], strides = [1, 1]} : vector<65x8xf32> to vector<64x8xf32>
    %30 = vector.shape_cast %29 : vector<64x8xf32> to vector<4x16x8xf32>
    %31 = vector.extract_strided_slice %10 {offsets = [1, 0], sizes = [64, 8], strides = [1, 1]} : vector<65x8xf32> to vector<64x8xf32>
    %32 = vector.shape_cast %31 : vector<64x8xf32> to vector<4x16x8xf32>
    "tpu.trace_start"() <{level = 10 : i32, message = "gld,gmd->glm"}> : () -> ()
    %cst_13 = arith.constant dense<0.000000e+00> : vector<4x16x16xf32>
    %33 = tpu.matmul %28, %30, %cst_13 {dimension_numbers = #tpu.dot_dimension_numbers<[2], [2], [1], [1], [0, 0, 0, 1, 1, 1], [0], [0]>} : vector<4x16x8xf32>, vector<4x16x8xf32>, vector<4x16x16xf32> -> vector<4x16x16xf32>
    "tpu.trace_stop"() : () -> ()
    %34 = vector.broadcast %24 : vector<1x1x8xf32> to vector<4x16x8xf32>
    %35 = arith.mulf %28, %34 : vector<4x16x8xf32>
    %cst_14 = arith.constant dense<0.000000e+00> : vector<4x16xf32>
    %36 = vector.multi_reduction <add>, %35, %cst_14 [2] : vector<4x16x8xf32> to vector<4x16xf32>
    %37 = vector.shape_cast %36 : vector<4x16xf32> to vector<4x16x1xf32>
    %cst_15 = arith.constant dense<0xFF800000> : vector<4x16xf32>
    %38 = vector.multi_reduction <maximumf>, %33, %cst_15 [2] : vector<4x16x16xf32> to vector<4x16xf32>
    %39 = vector.shape_cast %38 : vector<4x16xf32> to vector<4x16x1xf32>
    %40 = arith.maximumf %39, %37 : vector<4x16x1xf32>
    %41 = vector.broadcast %40 : vector<4x16x1xf32> to vector<4x16x16xf32>
    %42 = arith.subf %33, %41 : vector<4x16x16xf32>
    %43 = math.exp %42 : vector<4x16x16xf32>
    %44 = arith.subf %37, %40 : vector<4x16x1xf32>
    %45 = math.exp %44 : vector<4x16x1xf32>
    "tpu.trace_start"() <{level = 10 : i32, message = "glm,gmd->gld"}> : () -> ()
    %cst_16 = arith.constant dense<0.000000e+00> : vector<4x16x8xf32>
    %46 = tpu.matmul %43, %32, %cst_16 {dimension_numbers = #tpu.dot_dimension_numbers<[2], [1], [1], [2], [0, 0, 0, 1, 1, 2], [0], [0]>} : vector<4x16x16xf32>, vector<4x16x8xf32>, vector<4x16x8xf32> -> vector<4x16x8xf32>
    "tpu.trace_stop"() : () -> ()
    %47 = vector.broadcast %45 : vector<4x16x1xf32> to vector<4x16x8xf32>
    %48 = vector.broadcast %26 : vector<1x1x8xf32> to vector<4x16x8xf32>
    %49 = arith.mulf %47, %48 : vector<4x16x8xf32>
    %50 = arith.addf %46, %49 : vector<4x16x8xf32>
    %cst_17 = arith.constant dense<0.000000e+00> : vector<4x16xf32>
    %51 = vector.multi_reduction <add>, %43, %cst_17 [2] : vector<4x16x16xf32> to vector<4x16xf32>
    %52 = vector.shape_cast %51 : vector<4x16xf32> to vector<4x16x1xf32>
    %53 = arith.addf %52, %45 : vector<4x16x1xf32>
    %54 = vector.broadcast %53 : vector<4x16x1xf32> to vector<4x16x8xf32>
    %55 = arith.divf %50, %54 : vector<4x16x8xf32>
    %56 = vector.shape_cast %55 : vector<4x16x8xf32> to vector<64x8xf32>
    %57 = tpu.concatenate %22, %56 in 0 : vector<1x8xf32>, vector<64x8xf32> -> vector<65x8xf32>
    %58 = arith.truncf %57 : vector<65x8xf32> to vector<65x8xbf16>
    %c0_18 = arith.constant 0 : index
    %c0_19 = arith.constant 0 : index
    %c0_20 = arith.constant 0 : index
    %59 = vector.load %arg2[%c0_18, %c0_19, %c0_20] : memref<1x65x8xbf16, #tpu.memory_space<vmem>>, vector<1x65x8xbf16>
    %60 = vector.shape_cast %59 : vector<1x65x8xbf16> to vector<65x8xbf16>
    %61 = vector.shape_cast %58 : vector<65x8xbf16> to vector<1x65x8xbf16>
    tpu.vector_store %arg2[%c0_18, %c0_19, %c0_20], %61 {strides = array<i32>} : memref<1x65x8xbf16, #tpu.memory_space<vmem>>, vector<1x65x8xbf16>,
    return
  }
  func.func @transform_0(%arg0: i32) -> (i32, i32, i32, i32) {
    %c0_i32 = arith.constant 0 : i32
    %c0_i32_0 = arith.constant 0 : i32
    %c0_i32_1 = arith.constant 0 : i32
    %c0_i32_2 = arith.constant 0 : i32
    return %c0_i32, %arg0, %c0_i32_0, %c0_i32_1 : i32, i32, i32, i32
  }
  func.func @transform_1(%arg0: i32) -> (i32, i32, i32) {
    %c0_i32 = arith.constant 0 : i32
    %c0_i32_0 = arith.constant 0 : i32
    %c0_i32_1 = arith.constant 0 : i32
    return %arg0, %c0_i32, %c0_i32_0 : i32, i32, i32
  }
}

module attributes {stable_mosaic.version = 11 : i64} {
  func.func @_ln_ffn_residual_kernel(%arg0: i32, %arg1: memref<72x32xf32, #tpu.memory_space<vmem>>, %arg2: memref<1x32xf32, #tpu.memory_space<vmem>>, %arg3: memref<1x32xf32, #tpu.memory_space<vmem>>, %arg4: memref<32x128xbf16, #tpu.memory_space<vmem>>, %arg5: memref<1x128xf32, #tpu.memory_space<vmem>>, %arg6: memref<128x32xbf16, #tpu.memory_space<vmem>>, %arg7: memref<1x32xf32, #tpu.memory_space<vmem>>, %arg8: memref<72x32xf32, #tpu.memory_space<vmem>>) attributes {dimension_semantics = [#tpu.dimension_semantics<parallel>], iteration_bounds = array<i64: 2>, scalar_prefetch = 0 : i64, scratch_operands = 0 : i64, tpu.core_type = #tpu.core_type<tc>, window_params = [{transform_indices = @transform_0, window_bounds = array<i64: 72, 32>}, {pipeline_mode = #tpu.pipeline_mode<synchronous>, transform_indices = @transform_1, window_bounds = array<i64: 1, 32>}, {pipeline_mode = #tpu.pipeline_mode<synchronous>, transform_indices = @transform_2, window_bounds = array<i64: 1, 32>}, {pipeline_mode = #tpu.pipeline_mode<synchronous>, transform_indices = @transform_3, window_bounds = array<i64: 32, 128>}, {pipeline_mode = #tpu.pipeline_mode<synchronous>, transform_indices = @transform_4, window_bounds = array<i64: 1, 128>}, {pipeline_mode = #tpu.pipeline_mode<synchronous>, transform_indices = @transform_5, window_bounds = array<i64: 128, 32>}, {pipeline_mode = #tpu.pipeline_mode<synchronous>, transform_indices = @transform_6, window_bounds = array<i64: 1, 32>}, {transform_indices = @transform_7, window_bounds = array<i64: 72, 32>}]} {
    %c0 = arith.constant 0 : index
    %c0_0 = arith.constant 0 : index
    %0 = vector.load %arg1[%c0, %c0_0] : memref<72x32xf32, #tpu.memory_space<vmem>>, vector<72x32xf32>
    %cst = arith.constant dense<0.000000e+00> : vector<72xf32>
    %1 = vector.multi_reduction <add>, %0, %cst [1] : vector<72x32xf32> to vector<72xf32>
    %2 = vector.shape_cast %1 : vector<72xf32> to vector<72x1xf32>
    %cst_1 = arith.constant 3.200000e+01 : f32
    %3 = vector.broadcast %cst_1 : f32 to vector<72x1xf32>
    %4 = arith.divf %2, %3 : vector<72x1xf32>
    %5 = vector.broadcast %4 : vector<72x1xf32> to vector<72x32xf32>
    %6 = arith.subf %0, %5 : vector<72x32xf32>
    %7 = arith.mulf %6, %6 : vector<72x32xf32>
    %cst_2 = arith.constant dense<0.000000e+00> : vector<72xf32>
    %8 = vector.multi_reduction <add>, %7, %cst_2 [1] : vector<72x32xf32> to vector<72xf32>
    %9 = vector.shape_cast %8 : vector<72xf32> to vector<72x1xf32>
    %cst_3 = arith.constant 3.200000e+01 : f32
    %10 = vector.broadcast %cst_3 : f32 to vector<72x1xf32>
    %11 = arith.divf %9, %10 : vector<72x1xf32>
    %12 = vector.broadcast %4 : vector<72x1xf32> to vector<72x32xf32>
    %13 = arith.subf %0, %12 : vector<72x32xf32>
    %cst_4 = arith.constant 9.99999997E-7 : f32
    %14 = vector.broadcast %cst_4 : f32 to vector<72x1xf32>
    %15 = arith.addf %11, %14 : vector<72x1xf32>
    %16 = math.rsqrt %15 : vector<72x1xf32>
    %17 = vector.broadcast %16 : vector<72x1xf32> to vector<72x32xf32>
    %18 = arith.mulf %13, %17 : vector<72x32xf32>
    %c0_5 = arith.constant 0 : index
    %c0_6 = arith.constant 0 : index
    %19 = vector.load %arg2[%c0_5, %c0_6] : memref<1x32xf32, #tpu.memory_space<vmem>>, vector<1x32xf32>
    %20 = vector.broadcast %19 : vector<1x32xf32> to vector<72x32xf32>
    %21 = arith.mulf %18, %20 : vector<72x32xf32>
    %c0_7 = arith.constant 0 : index
    %c0_8 = arith.constant 0 : index
    %22 = vector.load %arg3[%c0_7, %c0_8] : memref<1x32xf32, #tpu.memory_space<vmem>>, vector<1x32xf32>
    %23 = vector.broadcast %22 : vector<1x32xf32> to vector<72x32xf32>
    %24 = arith.addf %21, %23 : vector<72x32xf32>
    %25 = arith.truncf %24 : vector<72x32xf32> to vector<72x32xbf16>
    %c0_9 = arith.constant 0 : index
    %c0_10 = arith.constant 0 : index
    %26 = vector.load %arg4[%c0_9, %c0_10] : memref<32x128xbf16, #tpu.memory_space<vmem>>, vector<32x128xbf16>
    %cst_11 = arith.constant dense<0.000000e+00> : vector<72x128xf32>
    %27 = tpu.matmul %25, %26, %cst_11 {dimension_numbers = #tpu.dot_dimension_numbers<[1], [0], [0], [1], [0, 0, 1, 1], [], []>} : vector<72x32xbf16>, vector<32x128xbf16>, vector<72x128xf32> -> vector<72x128xf32>
    %c0_12 = arith.constant 0 : index
    %c0_13 = arith.constant 0 : index
    %28 = vector.load %arg5[%c0_12, %c0_13] : memref<1x128xf32, #tpu.memory_space<vmem>>, vector<1x128xf32>
    %29 = vector.broadcast %28 : vector<1x128xf32> to vector<72x128xf32>
    %30 = arith.addf %27, %29 : vector<72x128xf32>
    %cst_14 = arith.constant 5.000000e-01 : f32
    %31 = vector.broadcast %cst_14 : f32 to vector<72x128xf32>
    %32 = arith.mulf %31, %30 : vector<72x128xf32>
    %cst_15 = arith.constant 0.707106769 : f32
    %33 = vector.broadcast %cst_15 : f32 to vector<72x128xf32>
    %34 = arith.mulf %30, %33 : vector<72x128xf32>
    %35 = math.erf %34 : vector<72x128xf32>
    %cst_16 = arith.constant 1.000000e+00 : f32
    %36 = vector.broadcast %cst_16 : f32 to vector<72x128xf32>
    %37 = arith.addf %36, %35 : vector<72x128xf32>
    %38 = arith.mulf %32, %37 : vector<72x128xf32>
    %39 = arith.truncf %38 : vector<72x128xf32> to vector<72x128xbf16>
    %c0_17 = arith.constant 0 : index
    %c0_18 = arith.constant 0 : index
    %40 = vector.load %arg6[%c0_17, %c0_18] : memref<128x32xbf16, #tpu.memory_space<vmem>>, vector<128x32xbf16>
    %cst_19 = arith.constant dense<0.000000e+00> : vector<72x32xf32>
    %41 = tpu.matmul %39, %40, %cst_19 {dimension_numbers = #tpu.dot_dimension_numbers<[1], [0], [0], [1], [0, 0, 1, 1], [], []>} : vector<72x128xbf16>, vector<128x32xbf16>, vector<72x32xf32> -> vector<72x32xf32>
    %c0_20 = arith.constant 0 : index
    %c0_21 = arith.constant 0 : index
    %42 = vector.load %arg7[%c0_20, %c0_21] : memref<1x32xf32, #tpu.memory_space<vmem>>, vector<1x32xf32>
    %43 = vector.broadcast %42 : vector<1x32xf32> to vector<72x32xf32>
    %44 = arith.addf %41, %43 : vector<72x32xf32>
    %45 = arith.addf %0, %44 : vector<72x32xf32>
    %c0_22 = arith.constant 0 : index
    %c0_23 = arith.constant 0 : index
    %46 = vector.load %arg8[%c0_22, %c0_23] : memref<72x32xf32, #tpu.memory_space<vmem>>, vector<72x32xf32>
    tpu.vector_store %arg8[%c0_22, %c0_23], %45 {strides = array<i32>} : memref<72x32xf32, #tpu.memory_space<vmem>>, vector<72x32xf32>,
    return
  }
  func.func @transform_0(%arg0: i32) -> (i32, i32) {
    %c0_i32 = arith.constant 0 : i32
    %c0_i32_0 = arith.constant 0 : i32
    return %arg0, %c0_i32 : i32, i32
  }
  func.func @transform_1(%arg0: i32) -> (i32, i32) {
    %c0_i32 = arith.constant 0 : i32
    %c0_i32_0 = arith.constant 0 : i32
    %c0_i32_1 = arith.constant 0 : i32
    return %c0_i32, %c0_i32_0 : i32, i32
  }
  func.func @transform_2(%arg0: i32) -> (i32, i32) {
    %c0_i32 = arith.constant 0 : i32
    %c0_i32_0 = arith.constant 0 : i32
    %c0_i32_1 = arith.constant 0 : i32
    return %c0_i32, %c0_i32_0 : i32, i32
  }
  func.func @transform_3(%arg0: i32) -> (i32, i32) {
    %c0_i32 = arith.constant 0 : i32
    %c0_i32_0 = arith.constant 0 : i32
    %c0_i32_1 = arith.constant 0 : i32
    return %c0_i32, %c0_i32_0 : i32, i32
  }
  func.func @transform_4(%arg0: i32) -> (i32, i32) {
    %c0_i32 = arith.constant 0 : i32
    %c0_i32_0 = arith.constant 0 : i32
    %c0_i32_1 = arith.constant 0 : i32
    return %c0_i32, %c0_i32_0 : i32, i32
  }
  func.func @transform_5(%arg0: i32) -> (i32, i32) {
    %c0_i32 = arith.constant 0 : i32
    %c0_i32_0 = arith.constant 0 : i32
    %c0_i32_1 = arith.constant 0 : i32
    return %c0_i32, %c0_i32_0 : i32, i32
  }
  func.func @transform_6(%arg0: i32) -> (i32, i32) {
    %c0_i32 = arith.constant 0 : i32
    %c0_i32_0 = arith.constant 0 : i32
    %c0_i32_1 = arith.constant 0 : i32
    return %c0_i32, %c0_i32_0 : i32, i32
  }
  func.func @transform_7(%arg0: i32) -> (i32, i32) {
    %c0_i32 = arith.constant 0 : i32
    %c0_i32_0 = arith.constant 0 : i32
    return %arg0, %c0_i32 : i32, i32
  }
}

</mosaic_0001>

<llo_original>
// kernel: timesformer_layer.7
$region0: #{timesformer_layer.7}
  #allocation0 [shape = 'u32[]', space=smem, size = 0x4, offset = 0x4, fixed_abs, tag = 'smem constant byte address 0x4 - core index']
  #allocation1 [shape = 'u32[144,128]{1,0:T(1,128)}', space=vmem, size = 0x12000, scoped, tag = 'internal scratch']
  %s0 = inlined_call_operand.hbm [shape: f32[130,32], index: 0, kind: input, shape index: {}]
  %s1 = inlined_call_operand.hbm [shape: f32[1,32], index: 1, kind: input, shape index: {}]
  %s2 = inlined_call_operand.hbm [shape: f32[1,32], index: 2, kind: input, shape index: {}]
  %s3 = inlined_call_operand.hbm [shape: bf16[32,96], index: 3, kind: input, shape index: {}]
  %s4 = inlined_call_operand.hbm [shape: f32[1,96], index: 4, kind: input, shape index: {}]
  %s5 = inlined_call_operand.hbm [shape: bf16[130,96], index: 5, kind: output, shape index: {}]
  %s6 = sld [smem:[#allocation0]]
  $region73: #{timesformer_layer.7} parent=0
    _
  %s8 = ssub.s32 1, %s6
  %s9 = scalar_select 0, %s8, %s6
  $region1: #{timesformer_layer.7} parent=0
    #allocation2 [shape = 'u8[73728]{0}', space=vmem, size = 0x12000, scoped, tag = 'input window, operand 0']
    #allocation3 [shape = 's32[2]{0}', space=sflag, size = 0x8, scoped, tag = 'scoped memory for timesformer_layer.7']
    #allocation4 [shape = 's32[2]{0}', space=sflag, size = 0x8, scoped, tag = 'scoped memory for timesformer_layer.7']
    #allocation5 [shape = 'u8[512]{0}', space=vmem, size = 0x400, scoped, tag = 'input window, operand 1, single buffered']
    #allocation6 [shape = 's32[1]{0}', space=sflag, size = 0x4, scoped, tag = 'scoped memory for timesformer_layer.7']
    #allocation7 [shape = 'u8[512]{0}', space=vmem, size = 0x400, scoped, tag = 'input window, operand 2, single buffered']
    #allocation8 [shape = 'u8[8192]{0}', space=vmem, size = 0x2000, scoped, tag = 'input window, operand 3, single buffered']
    #allocation9 [shape = 's32[1]{0}', space=sflag, size = 0x4, scoped, tag = 'scoped memory for timesformer_layer.7']
    #allocation10 [shape = 'u8[512]{0}', space=vmem, size = 0x400, scoped, tag = 'input window, operand 4, single buffered']
    #allocation11 [shape = 'u8[36864]{0}', space=vmem, size = 0x9000, scoped, tag = 'output window, operand 0']
    %10 = vsyncpa [#allocation3], 0
    %s11 = scalar_lea.sflag [#allocation3], 1
    %12 = vsyncpa %s11, 0
    %13 = vsyncpa [#allocation6], 0
    %14 = vsyncpa [#allocation9], 0
    %15 = vsyncpa [#allocation4], 0
    %s16 = scalar_lea.sflag [#allocation4], 1
    %17 = vsyncpa %s16, 0
    loop: start=0, step=1, limit=4
    $region2: #{timesformer_layer.7} parent=1 // loop_pre_header
      _
    $region3: #{timesformer_layer.7} parent=1 // loop_header
      %s19 = sphi 0, %s23
      %p20 = scmp.ge.s32.totalorder %s19, 4
      %s29 = sphi 0, %s31
      %s32 = sphi 0, %s29
      %s33 = sphi 0, %s32
      %s49 = sphi 0, %s33
      %s53 = sphi 0, %s53
      %s55 = sphi 0, %s53
      %s56 = sphi 0, %s55
      %s70 = sphi 0, %s56
      %s74 = sphi 0, %s74
      %s76 = sphi 0, %s74
      %s77 = sphi 0, %s76
      %s91 = sphi 0, %s77
      %s95 = sphi 0, %s95
      %s97 = sphi 0, %s95
      %s98 = sphi 0, %s97
      %s112 = sphi 0, %s98
      %s116 = sphi 0, %s116
      %s118 = sphi 0, %s116
      %s119 = sphi 0, %s118
      %s133 = sphi 0, %s119
      %s139 = sphi 0, %s141
      %s142 = sphi 0, %s139
      %s143 = sphi 0, %s142
      %s159 = sphi 0, %s143
    $region4: #{timesformer_layer.7} parent=1 // loop_header_branch
      %22 = sbr.rel (%p20) target = $region8
    $region5: #{timesformer_layer.7} parent=1 // loop_body
      %s24 = ssub.s32 %s19, 1
      %s25 = ssub.s32 %s19, 2
      %s26 = sadd.s32 %s19, 1
      %s27 = ssub.s32 %s19, %s26
      %p28 = scmp.eq.s32.totalorder %s27, 0
      %s30 = sadd.s32 %s29, 1
      %s31 = scalar_select %p28, %s29, %s30
      %p34 = pneg %p28
      %p35 = scmp.eq.s32.totalorder %s19, 1
      %p36 = por %p34, %p35
      %p37 = scmp.ne.s32.totalorder %s29, %s32
      %p38 = scmp.eq.s32.totalorder %s19, 0
      %p39 = por %p37, %p38
      %p40 = scmp.ne.s32.totalorder %s29, %s32
      %p41 = scmp.eq.s32.totalorder %s24, 1
      %p42 = por %p40, %p41
      %p43 = scmp.ne.s32.totalorder %s32, %s33
      %p44 = scmp.eq.s32.totalorder %s24, 0
      %p45 = por %p43, %p44
      %p46 = scmp.ne.s32.totalorder %s32, %s33
      %p47 = scmp.eq.s32.totalorder %s25, 1
      %p48 = por %p46, %p47
      %p50 = scmp.ne.s32.totalorder %s33, %s49
      %p51 = scmp.eq.s32.totalorder %s25, 0
      %p52 = por %p50, %p51
      %s54 = sadd.s32 %s53, 1
      %p57 = scmp.eq.s32.totalorder %s19, 1
      %p58 = scmp.ne.s32.totalorder %s53, %s55
      %p59 = scmp.eq.s32.totalorder %s19, 0
      %p60 = por %p58, %p59
      %p61 = scmp.ne.s32.totalorder %s53, %s55
      %p62 = scmp.eq.s32.totalorder %s24, 1
      %p63 = por %p61, %p62
      %p64 = scmp.ne.s32.totalorder %s55, %s56
      %p65 = scmp.eq.s32.totalorder %s24, 0
      %p66 = por %p64, %p65
      %p67 = scmp.ne.s32.totalorder %s55, %s56
      %p68 = scmp.eq.s32.totalorder %s25, 1
      %p69 = por %p67, %p68
      %p71 = scmp.ne.s32.totalorder %s56, %s70
      %p72 = scmp.eq.s32.totalorder %s25, 0
      %p73 = por %p71, %p72
      %s75 = sadd.s32 %s74, 1
      %p78 = scmp.eq.s32.totalorder %s19, 1
      %p79 = scmp.ne.s32.totalorder %s74, %s76
      %p80 = scmp.eq.s32.totalorder %s19, 0
      %p81 = por %p79, %p80
      %p82 = scmp.ne.s32.totalorder %s74, %s76
      %p83 = scmp.eq.s32.totalorder %s24, 1
      %p84 = por %p82, %p83
      %p85 = scmp.ne.s32.totalorder %s76, %s77
      %p86 = scmp.eq.s32.totalorder %s24, 0
      %p87 = por %p85, %p86
      %p88 = scmp.ne.s32.totalorder %s76, %s77
      %p89 = scmp.eq.s32.totalorder %s25, 1
      %p90 = por %p88, %p89
      %p92 = scmp.ne.s32.totalorder %s77, %s91
      %p93 = scmp.eq.s32.totalorder %s25, 0
      %p94 = por %p92, %p93
      %s96 = sadd.s32 %s95, 1
      %p99 = scmp.eq.s32.totalorder %s19, 1
      %p100 = scmp.ne.s32.totalorder %s95, %s97
      %p101 = scmp.eq.s32.totalorder %s19, 0
      %p102 = por %p100, %p101
      %p103 = scmp.ne.s32.totalorder %s95, %s97
      %p104 = scmp.eq.s32.totalorder %s24, 1
      %p105 = por %p103, %p104
      %p106 = scmp.ne.s32.totalorder %s97, %s98
      %p107 = scmp.eq.s32.totalorder %s24, 0
      %p108 = por %p106, %p107
      %p109 = scmp.ne.s32.totalorder %s97, %s98
      %p110 = scmp.eq.s32.totalorder %s25, 1
      %p111 = por %p109, %p110
      %p113 = scmp.ne.s32.totalorder %s98, %s112
      %p114 = scmp.eq.s32.totalorder %s25, 0
      %p115 = por %p113, %p114
      %s117 = sadd.s32 %s116, 1
      %p120 = scmp.eq.s32.totalorder %s19, 1
      %p121 = scmp.ne.s32.totalorder %s116, %s118
      %p122 = scmp.eq.s32.totalorder %s19, 0
      %p123 = por %p121, %p122
      %p124 = scmp.ne.s32.totalorder %s116, %s118
      %p125 = scmp.eq.s32.totalorder %s24, 1
      %p126 = por %p124, %p125
      %p127 = scmp.ne.s32.totalorder %s118, %s119
      %p128 = scmp.eq.s32.totalorder %s24, 0
      %p129 = por %p127, %p128
      %p130 = scmp.ne.s32.totalorder %s118, %s119
      %p131 = scmp.eq.s32.totalorder %s25, 1
      %p132 = por %p130, %p131
      %p134 = scmp.ne.s32.totalorder %s119, %s133
      %p135 = scmp.eq.s32.totalorder %s25, 0
      %p136 = por %p134, %p135
      %s137 = ssub.s32 %s19, %s26
      %p138 = scmp.eq.s32.totalorder %s137, 0
      %s140 = sadd.s32 %s139, 1
      %s141 = scalar_select %p138, %s139, %s140
      %p144 = pneg %p138
      %p145 = scmp.eq.s32.totalorder %s19, 1
      %p146 = por %p144, %p145
      %p147 = scmp.ne.s32.totalorder %s139, %s142
      %p148 = scmp.eq.s32.totalorder %s19, 0
      %p149 = por %p147, %p148
      %p150 = scmp.ne.s32.totalorder %s139, %s142
      %p151 = scmp.eq.s32.totalorder %s24, 1
      %p152 = por %p150, %p151
      %p153 = scmp.ne.s32.totalorder %s142, %s143
      %p154 = scmp.eq.s32.totalorder %s24, 0
      %p155 = por %p153, %p154
      %p156 = scmp.ne.s32.totalorder %s142, %s143
      %p157 = scmp.eq.s32.totalorder %s25, 1
      %p158 = por %p156, %p157
      %p160 = scmp.ne.s32.totalorder %s143, %s159
      %p161 = scmp.eq.s32.totalorder %s25, 0
      %p162 = por %p160, %p161
      %p163 = scmp.le.s32.totalorder 1, %s19
      %p164 = scmp.lt.s32.totalorder %s19, 3
      %p165 = pnand %p163, %p164
      %p166 = pneg %p165
      // Predicated region
      $region9: #{timesformer_layer.7} parent=5 // pred_check
        _
      $region10: #{timesformer_layer.7} parent=5 // pred_check_branch
        %168 = sbr.rel (%p165) target = $region12
      $region11: #{timesformer_layer.7} parent=5 // pred_region
        %s169 = ssub.s32 %s19, 1
        // Predicated region
        $region13: #{timesformer_layer.7} parent=11 // pred_check
          %p170 = pneg %p66
        $region14: #{timesformer_layer.7} parent=11 // pred_check_branch
          %172 = sbr.rel (%p170) target = $region16
        $region15: #{timesformer_layer.7} parent=11 // pred_region
          %s174 = ssub.s32 16, 16
          %175 = vsyncadd [#allocation6], %s174
          %s177 = sshll.u32 [#allocation5], 4
          %s178 = int_to_ptr.vmem [resolvable:$true] %s177
          %180 = dma.hbm_to_vmem [thread:$0]  %s1, 16, %s178, [#allocation6]
        $region16: #{timesformer_layer.7} parent=11 // pred_fallthru
          _
        // Predicated region
        $region17: #{timesformer_layer.7} parent=11 // pred_check
          %p181 = pneg %p87
        $region18: #{timesformer_layer.7} parent=11 // pred_check_branch
          %183 = sbr.rel (%p181) target = $region20
        $region19: #{timesformer_layer.7} parent=11 // pred_region
          %s185 = ssub.s32 16, 16
          %186 = vsyncadd [#allocation6], %s185
          %s188 = sshll.u32 [#allocation7], 4
          %s189 = int_to_ptr.vmem [resolvable:$true] %s188
          %191 = dma.hbm_to_vmem [thread:$0]  %s2, 16, %s189, [#allocation6]
        $region20: #{timesformer_layer.7} parent=11 // pred_fallthru
          _
        // Predicated region
        $region21: #{timesformer_layer.7} parent=11 // pred_check
          %p192 = pneg %p108
        $region22: #{timesformer_layer.7} parent=11 // pred_check_branch
          %194 = sbr.rel (%p192) target = $region24
        $region23: #{timesformer_layer.7} parent=11 // pred_region
          %s196 = ssub.s32 256, 256
          %197 = vsyncadd [#allocation9], %s196
          %s198 = sshll.u32 [#allocation8], 4
          %s199 = int_to_ptr.vmem [resolvable:$true] %s198
          %204 = dma.hbm_to_vmem [thread:$0]  %s3, 256, %s199, [#allocation9], 64, 64, 4
        $region24: #{timesformer_layer.7} parent=11 // pred_fallthru
          _
        // Predicated region
        $region25: #{timesformer_layer.7} parent=11 // pred_check
          %p205 = pneg %p129
        $region26: #{timesformer_layer.7} parent=11 // pred_check_branch
          %207 = sbr.rel (%p205) target = $region28
        $region27: #{timesformer_layer.7} parent=11 // pred_region
          %s209 = ssub.s32 16, 16
          %210 = vsyncadd [#allocation9], %s209
          %s212 = sshll.u32 [#allocation10], 4
          %s213 = int_to_ptr.vmem [resolvable:$true] %s212
          %215 = dma.hbm_to_vmem [thread:$0]  %s4, 16, %s213, [#allocation9]
        $region28: #{timesformer_layer.7} parent=11 // pred_fallthru
          _
      $region12: #{timesformer_layer.7} parent=5 // pred_fallthru
        _
      %p216 = scmp.lt.s32.totalorder %s19, 2
      // Predicated region
      $region29: #{timesformer_layer.7} parent=5 // pred_check
        %p217 = pneg %p216
      $region30: #{timesformer_layer.7} parent=5 // pred_check_branch
        %219 = sbr.rel (%p217) target = $region32
      $region31: #{timesformer_layer.7} parent=5 // pred_region
        // Predicated region
        $region33: #{timesformer_layer.7} parent=31 // pred_check
          %p220 = pneg %p39
        $region34: #{timesformer_layer.7} parent=31 // pred_check_branch
          %222 = sbr.rel (%p220) target = $region36
        $region35: #{timesformer_layer.7} parent=31 // pred_region
          %s223 = sand.u32 %s29, 1
          %s224 = scalar_lea.sflag [#allocation3], %s223
          %s225 = sand.u32 %s29, 1
          %s226 = smul.addr %s225, 72
          %s227 = scalar_lea.vmem [#allocation2], %s226
          %s228 = smul.u32 9, %s19
          %s229 = ssub.s32 17, %s228
          %p230 = scmp.lt.s32.totalorder %s229, 9
          %s231 = scalar_select %p230, %s229, 9
          %s232 = smul.u32 128, %s231
          %s234 = ssub.s32 1152, %s232
          %235 = vsyncadd %s224, %s234
          %p236 = scmp.ne.s32.totalorder 0, %s232
          %s237 = smul.addr %s228, 128
          %s238 = scalar_lea.hbm %s0, %s237
          %s239 = smul.u32 8, %s231
          %s240 = sshll.u32 %s227, 4
          %s241 = int_to_ptr.vmem [resolvable:$true] %s240
          %s242 = sshll.u32 %s239, 4
          %246 = dma.hbm_to_vmem [thread:$0]  (%p236), %s238, %s242, %s241, %s224, 128, 128, 8
        $region36: #{timesformer_layer.7} parent=31 // pred_fallthru
          _
      $region32: #{timesformer_layer.7} parent=5 // pred_fallthru
        _
      %p247 = scmp.le.s32.totalorder 1, %s19
      %p248 = scmp.lt.s32.totalorder %s19, 3
      %p249 = pnand %p247, %p248
      %p250 = pneg %p249
      // Predicated region
      $region37: #{timesformer_layer.7} parent=5 // pred_check
        _
      $region38: #{timesformer_layer.7} parent=5 // pred_check_branch
        %252 = sbr.rel (%p249) target = $region40
      $region39: #{timesformer_layer.7} parent=5 // pred_region
        %s253 = ssub.s32 %s19, 1
        %s254 = sand.u32 %s32, 1
        %s255 = scalar_lea.sflag [#allocation3], %s254
        %s256 = sand.u32 %s32, 1
        %s257 = smul.addr %s256, 72
        %s258 = scalar_lea.vmem [#allocation2], %s257
        // Predicated region
        $region41: #{timesformer_layer.7} parent=39 // pred_check
          %p259 = pneg %p45
        $region42: #{timesformer_layer.7} parent=39 // pred_check_branch
          %261 = sbr.rel (%p259) target = $region44
        $region43: #{timesformer_layer.7} parent=39 // pred_region
          %262 = dma.done %s255, 1152
        $region44: #{timesformer_layer.7} parent=39 // pred_fallthru
          _
        // Predicated region
        $region45: #{timesformer_layer.7} parent=39 // pred_check
          %p263 = pneg %p66
        $region46: #{timesformer_layer.7} parent=39 // pred_check_branch
          %265 = sbr.rel (%p263) target = $region48
        $region47: #{timesformer_layer.7} parent=39 // pred_region
          %266 = dma.done [#allocation6], 16
        $region48: #{timesformer_layer.7} parent=39 // pred_fallthru
          _
        // Predicated region
        $region49: #{timesformer_layer.7} parent=39 // pred_check
          %p267 = pneg %p87
        $region50: #{timesformer_layer.7} parent=39 // pred_check_branch
          %269 = sbr.rel (%p267) target = $region52
        $region51: #{timesformer_layer.7} parent=39 // pred_region
          %270 = dma.done [#allocation6], 16
        $region52: #{timesformer_layer.7} parent=39 // pred_fallthru
          _
        // Predicated region
        $region53: #{timesformer_layer.7} parent=39 // pred_check
          %p271 = pneg %p108
        $region54: #{timesformer_layer.7} parent=39 // pred_check_branch
          %273 = sbr.rel (%p271) target = $region56
        $region55: #{timesformer_layer.7} parent=39 // pred_region
          %274 = dma.done [#allocation9], 256
        $region56: #{timesformer_layer.7} parent=39 // pred_fallthru
          _
        // Predicated region
        $region57: #{timesformer_layer.7} parent=39 // pred_check
          %p275 = pneg %p129
        $region58: #{timesformer_layer.7} parent=39 // pred_check_branch
          %277 = sbr.rel (%p275) target = $region60
        $region59: #{timesformer_layer.7} parent=39 // pred_region
          %278 = dma.done [#allocation9], 16
        $region60: #{timesformer_layer.7} parent=39 // pred_fallthru
          _
        %s279 = sand.u32 %s32, 1
        %s280 = scalar_lea.sflag [#allocation3], %s279
        %s281 = sand.u32 %s32, 1
        %s282 = smul.addr %s281, 72
        %s283 = scalar_lea.vmem [#allocation2], %s282
        %p284 = pneg %p45
        %p285 = pneg %p42
        %p286 = pneg %p66
        %p287 = pneg %p63
        %p288 = pneg %p87
        %p289 = pneg %p84
        %p290 = pneg %p108
        %p291 = pneg %p105
        %p292 = pneg %p129
        %p293 = pneg %p126
        %p294 = pneg %p155
        %p295 = pneg %p152
        %s296 = sand.u32 %s142, 1
        %s297 = scalar_lea.sflag [#allocation4], %s296
        %s298 = sand.u32 %s142, 1
        %s299 = smul.addr %s298, 36
        %s300 = scalar_lea.vmem [#allocation11], %s299
        %s301 = smul.u32 9, %s24
        %s302 = ssub.s32 17, %s301
        %p303 = scmp.lt.s32.totalorder %s302, 9
        %s304 = scalar_select %p303, %s302, 9
        %s305 = smul.u32 128, %s304
        %s306 = smul.u32 9, %s24
        %s307 = ssub.s32 17, %s306
        %p308 = scmp.lt.s32.totalorder %s307, 9
        %s309 = scalar_select %p308, %s307, 9
        %s310 = smul.u32 64, %s309
        %v312 = vld [vmem:[%s258] sm:$0xff]
        %v313 = vld [vmem:[%s258 + $0x8] sm:$0xff]
        %v314 = vld [vmem:[%s258 + $0x10] sm:$0xff]
        %v315 = vld [vmem:[%s258 + $0x18] sm:$0xff]
        %v316 = vld [vmem:[%s258 + $0x20] sm:$0xff]
        %v317 = vld [vmem:[%s258 + $0x28] sm:$0xff]
        %v318 = vld [vmem:[%s258 + $0x30] sm:$0xff]
        %v319 = vld [vmem:[%s258 + $0x38] sm:$0xff]
        %v320 = vld [vmem:[%s258 + $0x40] sm:$0xff]
        %vm321 = vcmask 261120
        %v322 = vsel %vm321, %v312, 0.0
        %323 = vadd.xlane.f32.xlu0 %v322
        %v324 = vpop.xlane.xlu0 %323
        %v325 = vsel %vm321, %v313, 0.0
        %326 = vadd.xlane.f32.xlu0 %v325
        %v327 = vpop.xlane.xlu0 %326
        %v328 = vsel %vm321, %v314, 0.0
        %329 = vadd.xlane.f32.xlu0 %v328
        %v330 = vpop.xlane.xlu0 %329
        %v331 = vsel %vm321, %v315, 0.0
        %332 = vadd.xlane.f32.xlu0 %v331
        %v333 = vpop.xlane.xlu0 %332
        %v334 = vsel %vm321, %v316, 0.0
        %335 = vadd.xlane.f32.xlu0 %v334
        %v336 = vpop.xlane.xlu0 %335
        %v337 = vsel %vm321, %v317, 0.0
        %338 = vadd.xlane.f32.xlu0 %v337
        %v339 = vpop.xlane.xlu0 %338
        %v340 = vsel %vm321, %v318, 0.0
        %341 = vadd.xlane.f32.xlu0 %v340
        %v342 = vpop.xlane.xlu0 %341
        %v343 = vsel %vm321, %v319, 0.0
        %344 = vadd.xlane.f32.xlu0 %v343
        %v345 = vpop.xlane.xlu0 %344
        %v346 = vsel %vm321, %v320, 0.0
        %347 = vadd.xlane.f32.xlu0 %v346
        %v348 = vpop.xlane.xlu0 %347
        %v349 = vrcp.pop 32.0
        %v350 = vmul.f32 %v324, %v349
        %v351 = vmul.f32 %v327, %v349
        %v352 = vmul.f32 %v330, %v349
        %v353 = vmul.f32 %v333, %v349
        %v354 = vmul.f32 %v336, %v349
        %v355 = vmul.f32 %v339, %v349
        %v356 = vmul.f32 %v342, %v349
        %v357 = vmul.f32 %v345, %v349
        %v358 = vmul.f32 %v348, %v349
        %v359 = vsub.f32 %v312, %v350
        %v360 = vsub.f32 %v313, %v351
        %v361 = vsub.f32 %v314, %v352
        %v362 = vsub.f32 %v315, %v353
        %v363 = vsub.f32 %v316, %v354
        %v364 = vsub.f32 %v317, %v355
        %v365 = vsub.f32 %v318, %v356
        %v366 = vsub.f32 %v319, %v357
        %v367 = vsub.f32 %v320, %v358
        %v368 = vmul.f32 %v359, %v359
        %v369 = vmul.f32 %v360, %v360
        %v370 = vmul.f32 %v361, %v361
        %v371 = vmul.f32 %v362, %v362
        %v372 = vmul.f32 %v363, %v363
        %v373 = vmul.f32 %v364, %v364
        %v374 = vmul.f32 %v365, %v365
        %v375 = vmul.f32 %v366, %v366
        %v376 = vmul.f32 %v367, %v367
        %v377 = vsel %vm321, %v368, 0.0
        %378 = vadd.xlane.f32.xlu0 %v377
        %v379 = vpop.xlane.xlu0 %378
        %v380 = vsel %vm321, %v369, 0.0
        %381 = vadd.xlane.f32.xlu0 %v380
        %v382 = vpop.xlane.xlu0 %381
        %v383 = vsel %vm321, %v370, 0.0
        %384 = vadd.xlane.f32.xlu0 %v383
        %v385 = vpop.xlane.xlu0 %384
        %v386 = vsel %vm321, %v371, 0.0
        %387 = vadd.xlane.f32.xlu0 %v386
        %v388 = vpop.xlane.xlu0 %387
        %v389 = vsel %vm321, %v372, 0.0
        %390 = vadd.xlane.f32.xlu0 %v389
        %v391 = vpop.xlane.xlu0 %390
        %v392 = vsel %vm321, %v373, 0.0
        %393 = vadd.xlane.f32.xlu0 %v392
        %v394 = vpop.xlane.xlu0 %393
        %v395 = vsel %vm321, %v374, 0.0
        %396 = vadd.xlane.f32.xlu0 %v395
        %v397 = vpop.xlane.xlu0 %396
        %v398 = vsel %vm321, %v375, 0.0
        %399 = vadd.xlane.f32.xlu0 %v398
        %v400 = vpop.xlane.xlu0 %399
        %v401 = vsel %vm321, %v376, 0.0
        %402 = vadd.xlane.f32.xlu0 %v401
        %v403 = vpop.xlane.xlu0 %402
        %v404 = vmul.f32 %v379, %v349
        %v405 = vmul.f32 %v382, %v349
        %v406 = vmul.f32 %v385, %v349
        %v407 = vmul.f32 %v388, %v349
        %v408 = vmul.f32 %v391, %v349
        %v409 = vmul.f32 %v394, %v349
        %v410 = vmul.f32 %v397, %v349
        %v411 = vmul.f32 %v400, %v349
        %v412 = vmul.f32 %v403, %v349
        %v413 = vadd.f32 %v404, 1e-06
        %v414 = vadd.f32 %v405, 1e-06
        %v415 = vadd.f32 %v406, 1e-06
        %v416 = vadd.f32 %v407, 1e-06
        %v417 = vadd.f32 %v408, 1e-06
        %v418 = vadd.f32 %v409, 1e-06
        %v419 = vadd.f32 %v410, 1e-06
        %v420 = vadd.f32 %v411, 1e-06
        %v421 = vadd.f32 %v412, 1e-06
        %v422 = vrsqrt.pop %v413
        %v423 = vrsqrt.pop %v414
        %v424 = vrsqrt.pop %v415
        %v425 = vrsqrt.pop %v416
        %v426 = vrsqrt.pop %v417
        %v427 = vrsqrt.pop %v418
        %v428 = vrsqrt.pop %v419
        %v429 = vrsqrt.pop %v420
        %v430 = vrsqrt.pop %v421
        %v431 = vmul.f32 %v359, %v422
        %v432 = vmul.f32 %v360, %v423
        %v433 = vmul.f32 %v361, %v424
        %v434 = vmul.f32 %v362, %v425
        %v435 = vmul.f32 %v363, %v426
        %v436 = vmul.f32 %v364, %v427
        %v437 = vmul.f32 %v365, %v428
        %v438 = vmul.f32 %v366, %v429
        %v439 = vmul.f32 %v367, %v430
        %v440 = vld [vmem:[#allocation5] sm:$0x1]
        %v442 = vlaneseq
        %v443 = vshrl.u32 %v442, 7
        %v444 = vsub.s32 0, %v443
        %v445 = vrot.slane %v440, %v444
        %v447 = vmul.f32 %v431, %v445
        %v448 = vmul.f32 %v432, %v445
        %v449 = vmul.f32 %v433, %v445
        %v450 = vmul.f32 %v434, %v445
        %v451 = vmul.f32 %v435, %v445
        %v452 = vmul.f32 %v436, %v445
        %v453 = vmul.f32 %v437, %v445
        %v454 = vmul.f32 %v438, %v445
        %v455 = vmul.f32 %v439, %v445
        %v456 = vld [vmem:[#allocation7] sm:$0x1]
        %v458 = vlaneseq
        %v459 = vshrl.u32 %v458, 7
        %v460 = vsub.s32 0, %v459
        %v461 = vrot.slane %v456, %v460
        %v463 = vadd.f32 %v447, %v461
        %v464 = vadd.f32 %v448, %v461
        %v465 = vadd.f32 %v449, %v461
        %v466 = vadd.f32 %v450, %v461
        %v467 = vadd.f32 %v451, %v461
        %v468 = vadd.f32 %v452, %v461
        %v469 = vadd.f32 %v453, %v461
        %v470 = vadd.f32 %v454, %v461
        %v471 = vadd.f32 %v455, %v461
        %v472 = vpack.c.bf16 %v464, %v463
        %v473 = vpack.c.bf16 %v466, %v465
        %v474 = vpack.c.bf16 %v468, %v467
        %v475 = vpack.c.bf16 %v470, %v469
        %v476 = vpack.c.bf16 %v471, %v471
        %v477 = vld [vmem:[#allocation8] sm:$0xf]
        %v478 = vld [vmem:[#allocation8 + $0x4] sm:$0xf]
        %v479 = vld [vmem:[#allocation8 + $0x8] sm:$0xf]
        %v480 = vld [vmem:[#allocation8 + $0xc] sm:$0xf]
        %v481 = vld [vmem:[#allocation10] sm:$0x1]
        %v483 = vlaneseq
        %v484 = vshrl.u32 %v483, 7
        %v485 = vsub.s32 0, %v484
        %v486 = vrot.slane %v481, %v485
        %v492 = vunpack.c.l.b16 %v477
        %v493 = vunpack.c.l.b16 %v478
        %v494 = vunpack.c.l.b16 %v479
        %v495 = vunpack.c.l.b16 %v480
        %v496 = vpack.c.b16 %v493, %v492
        %v497 = vpack.c.b16 %v495, %v494
        %v501 = vsel %vm321, %v472, 0
        %v504 = vsel %vm321, %v473, 0
        %v507 = vsel %vm321, %v474, 0
        %v510 = vsel %vm321, %v475, 0
        %v513 = vsel %vm321, %v476, 0
        %515 = vmatprep.subr.bf16.mxu0 0
        %516 = vmatpush1.bf16.msra.mxu0 %v496
        %517 = vmatprep.subr.bf16.mxu0 0
        %518 = vmatpush1.bf16.msra.mxu0 %v497
        %519 = vmatprep.subr.bf16.mxu0 0
        %520 = vmatpush1.bf16.msra.mxu0 0
        %521 = vmatprep.subr.bf16.mxu0 0
        %522 = vmatpush1.bf16.msra.mxu0 0
        %523 = vmatprep.subr.bf16.mxu0 0
        %524 = vmatpush1.bf16.msra.mxu0 0
        %525 = vmatprep.subr.bf16.mxu0 0
        %526 = vmatpush1.bf16.msra.mxu0 0
        %527 = vmatprep.subr.bf16.mxu0 0
        %528 = vmatpush1.bf16.msra.mxu0 0
        %529 = vmatprep.subr.bf16.mxu0 0
        %530 = vmatpush1.bf16.msra.mxu0 0
        %531 = vmatprep.subr.bf16.mxu0 0
        %532 = vmatpush1.bf16.msra.mxu0 0
        %533 = vmatprep.subr.bf16.mxu0 0
        %534 = vmatpush1.bf16.msra.mxu0 0
        %535 = vmatprep.subr.bf16.mxu0 0
        %536 = vmatpush1.bf16.msra.mxu0 0
        %537 = vmatprep.subr.bf16.mxu0 0
        %538 = vmatpush1.bf16.msra.mxu0 0
        %539 = vmatprep.subr.bf16.mxu0 0
        %540 = vmatpush1.bf16.msra.mxu0 0
        %541 = vmatprep.subr.bf16.mxu0 0
        %542 = vmatpush1.bf16.msra.mxu0 0
        %543 = vmatprep.subr.bf16.mxu0 0
        %544 = vmatpush1.bf16.msra.mxu0 0
        %545 = vmatprep.subr.bf16.mxu0 0
        %546 = vmatpush1.bf16.msra.mxu0 0
        %547 = vmatprep.mubr.bf16.mxu0 0
        %548 = vmatmul.mubr.bf16.gmra.mrb[0].mxu0 %v501
        %v549 = vpop.f32.mrb[0].mxu0
        %v550 = vadd.f32 %v486, %v549
        %v551 = vpop.f32.mrb[0].mxu0
        %v552 = vpop.f32.mrb[0].mxu0
        %v553 = vadd.f32 %v486, %v552
        %v554 = vpop.f32.mrb[0].mxu0
        %555 = vmatprep.mubr.bf16.mxu0 0
        %556 = vmatmul.mubr.bf16.gmra.mrb[0].mxu0 %v504
        %v557 = vpop.f32.mrb[0].mxu0
        %v558 = vadd.f32 %v486, %v557
        %v559 = vpop.f32.mrb[0].mxu0
        %v560 = vpop.f32.mrb[0].mxu0
        %v561 = vadd.f32 %v486, %v560
        %v562 = vpop.f32.mrb[0].mxu0
        %563 = vmatprep.mubr.bf16.mxu0 0
        %564 = vmatmul.mubr.bf16.gmra.mrb[0].mxu0 %v507
        %v565 = vpop.f32.mrb[0].mxu0
        %v566 = vadd.f32 %v486, %v565
        %v567 = vpop.f32.mrb[0].mxu0
        %v568 = vpop.f32.mrb[0].mxu0
        %v569 = vadd.f32 %v486, %v568
        %v570 = vpop.f32.mrb[0].mxu0
        %571 = vmatprep.mubr.bf16.mxu0 0
        %572 = vmatmul.mubr.bf16.gmra.mrb[0].mxu0 %v510
        %v573 = vpop.f32.mrb[0].mxu0
        %v574 = vadd.f32 %v486, %v573
        %v575 = vpop.f32.mrb[0].mxu0
        %v576 = vpop.f32.mrb[0].mxu0
        %v577 = vadd.f32 %v486, %v576
        %v578 = vpop.f32.mrb[0].mxu0
        %579 = vmatprep.mubr.bf16.mxu0 0
        %580 = vmatmul.mubr.bf16.gmra.mrb[0].mxu0 %v513
        %v581 = vpop.f32.mrb[0].mxu0
        %v582 = vadd.f32 %v486, %v581
        %v583 = vpop.f32.mrb[0].mxu0
        %v584 = vpop.f32.mrb[0].mxu0
        %v585 = vpop.f32.mrb[0].mxu0
        %586 = vdwg.mxu0
        %v587 = vpack.c.bf16 %v553, %v550
        %v588 = vpack.c.bf16 %v561, %v558
        %v589 = vpack.c.bf16 %v569, %v566
        %v590 = vpack.c.bf16 %v577, %v574
        %v591 = vpack.c.bf16 %v582, %v582
        %v597 = vunpack.c.l.b16 %v587
        %v598 = vunpack.c.h.b16 %v587
        %v599 = vunpack.c.l.b16 %v588
        %v600 = vunpack.c.h.b16 %v588
        %v601 = vunpack.c.l.b16 %v589
        %v602 = vunpack.c.h.b16 %v589
        %v603 = vunpack.c.l.b16 %v590
        %v604 = vunpack.c.h.b16 %v590
        %v605 = vunpack.c.l.b16 %v591
        %v606 = vpack.c.b16 %v597, %v597
        %v607 = vpack.c.b16 %v598, %v598
        %v608 = vpack.c.b16 %v599, %v599
        %v609 = vpack.c.b16 %v600, %v600
        %v610 = vpack.c.b16 %v601, %v601
        %v611 = vpack.c.b16 %v602, %v602
        %v612 = vpack.c.b16 %v603, %v603
        %v613 = vpack.c.b16 %v604, %v604
        %v614 = vpack.c.b16 %v605, %v605
        %vm624 = vcmask 781312
        %625 = vst.msk [vmem:[%s300] sm:$0xf] %vm624, %v606
        %626 = vst.msk [vmem:[%s300 + $0x4] sm:$0xf] %vm624, %v607
        %627 = vst.msk [vmem:[%s300 + $0x8] sm:$0xf] %vm624, %v608
        %628 = vst.msk [vmem:[%s300 + $0xc] sm:$0xf] %vm624, %v609
        %629 = vst.msk [vmem:[%s300 + $0x10] sm:$0xf] %vm624, %v610
        %630 = vst.msk [vmem:[%s300 + $0x14] sm:$0xf] %vm624, %v611
        %631 = vst.msk [vmem:[%s300 + $0x18] sm:$0xf] %vm624, %v612
        %632 = vst.msk [vmem:[%s300 + $0x1c] sm:$0xf] %vm624, %v613
        %633 = vst.msk [vmem:[%s300 + $0x20] sm:$0xf] %vm624, %v614
        %s634 = sand.u32 %s142, 1
        %s635 = scalar_lea.sflag [#allocation4], %s634
        %s636 = sand.u32 %s142, 1
        %s637 = smul.addr %s636, 36
        %s638 = scalar_lea.vmem [#allocation11], %s637
        // Predicated region
        $region61: #{timesformer_layer.7} parent=39 // pred_check
          %p639 = pneg %p152
        $region62: #{timesformer_layer.7} parent=39 // pred_check_branch
          %641 = sbr.rel (%p639) target = $region64
        $region63: #{timesformer_layer.7} parent=39 // pred_region
          %s642 = smul.u32 9, %s24
          %s643 = ssub.s32 17, %s642
          %p644 = scmp.lt.s32.totalorder %s643, 9
          %s645 = scalar_select %p644, %s643, 9
          %s646 = smul.u32 64, %s645
          %s648 = ssub.s32 576, %s646
          %649 = vsyncadd %s635, %s648
          %p650 = scmp.ne.s32.totalorder 0, %s646
          %s651 = smul.addr %s642, 64
          %s652 = scalar_lea.hbm %s5, %s651
          %s653 = smul.u32 4, %s645
          %s654 = sshll.u32 %s638, 4
          %s655 = int_to_ptr.vmem [resolvable:$true] %s654
          %s656 = sshll.u32 %s653, 4
          %660 = dma.vmem_to_hbm [thread:$0]  (%p650), %s655, %s656, %s652, %s635, 64, 64, 4
        $region64: #{timesformer_layer.7} parent=39 // pred_fallthru
          _
      $region40: #{timesformer_layer.7} parent=5 // pred_fallthru
        _
      %p661 = scmp.le.s32.totalorder 2, %s19
      // Predicated region
      $region65: #{timesformer_layer.7} parent=5 // pred_check
        %p662 = pneg %p661
      $region66: #{timesformer_layer.7} parent=5 // pred_check_branch
        %664 = sbr.rel (%p662) target = $region68
      $region67: #{timesformer_layer.7} parent=5 // pred_region
        %s665 = ssub.s32 %s19, 2
        // Predicated region
        $region69: #{timesformer_layer.7} parent=67 // pred_check
          %p666 = pneg %p158
        $region70: #{timesformer_layer.7} parent=67 // pred_check_branch
          %668 = sbr.rel (%p666) target = $region72
        $region71: #{timesformer_layer.7} parent=67 // pred_region
          %s669 = sand.u32 %s143, 1
          %s670 = scalar_lea.sflag [#allocation4], %s669
          %s671 = sand.u32 %s143, 1
          %s672 = smul.addr %s671, 36
          %s673 = scalar_lea.vmem [#allocation11], %s672
          %674 = dma.done %s670, 576
        $region72: #{timesformer_layer.7} parent=67 // pred_fallthru
          _
      $region68: #{timesformer_layer.7} parent=5 // pred_fallthru
        _
    $region6: #{timesformer_layer.7} parent=1 // loop_footer
      %s23 = sadd.s32 1, %s19
    $region7: #{timesformer_layer.7} parent=1 // loop_footer_branch
      %18 = sbr.rel target = $region3
    $region8: #{timesformer_layer.7} parent=1 // loop_exit
      _
    %675 = vsyncpa [#allocation3], 1
    %s676 = scalar_lea.sflag [#allocation3], 1
    %677 = vsyncpa %s676, 1
    %678 = vsyncpa [#allocation6], 1
    %679 = vsyncpa [#allocation9], 1
    %680 = vsyncpa [#allocation4], 1
    %s681 = scalar_lea.sflag [#allocation4], 1
    %682 = vsyncpa %s681, 1

// kernel: timesformer_layer.9
$region0: #{timesformer_layer.9}
  #allocation0 [shape = 'u32[]', space=smem, size = 0x4, offset = 0x4, fixed_abs, tag = 'smem constant byte address 0x4 - core index']
  #allocation1 [shape = 'u32[144,128]{1,0:T(1,128)}', space=vmem, size = 0x12000, scoped, tag = 'internal scratch']
  %s0 = inlined_call_operand.hbm [shape: bf16[8,65,8], index: 0, kind: input, shape index: {}]
  %s1 = inlined_call_operand.hbm [shape: bf16[4,8,32], index: 1, kind: input, shape index: {}]
  %s2 = inlined_call_operand.hbm [shape: f32[1,32], index: 2, kind: input, shape index: {}]
  %s3 = inlined_call_operand.hbm [shape: f32[2,65,32], index: 3, kind: input, shape index: {}]
  %s4 = inlined_call_operand.hbm [shape: f32[2,65,32], index: 4, kind: output, shape index: {}]
  %s5 = sld [smem:[#allocation0]]
  $region65: #{timesformer_layer.9} parent=0
    _
  %s7 = ssub.s32 1, %s5
  %s8 = scalar_select 0, %s7, %s5
  $region1: #{timesformer_layer.9} parent=0
    #allocation2 [shape = 'u8[147456]{0}', space=vmem, size = 0x24000, scoped, tag = 'input window, operand 0']
    #allocation3 [shape = 's32[2]{0}', space=sflag, size = 0x8, scoped, tag = 'scoped memory for timesformer_layer.9']
    #allocation4 [shape = 's32[2]{0}', space=sflag, size = 0x8, scoped, tag = 'scoped memory for timesformer_layer.9']
    #allocation5 [shape = 'u8[8192]{0}', space=vmem, size = 0x2000, scoped, tag = 'input window, operand 1, single buffered']
    #allocation6 [shape = 's32[1]{0}', space=sflag, size = 0x4, scoped, tag = 'scoped memory for timesformer_layer.9']
    #allocation7 [shape = 'u8[512]{0}', space=vmem, size = 0x400, scoped, tag = 'input window, operand 2, single buffered']
    #allocation8 [shape = 'u8[73728]{0}', space=vmem, size = 0x12000, scoped, tag = 'input window, operand 3']
    #allocation9 [shape = 's32[2]{0}', space=sflag, size = 0x8, scoped, tag = 'scoped memory for timesformer_layer.9']
    #allocation10 [shape = 'u8[73728]{0}', space=vmem, size = 0x12000, scoped, tag = 'output window, operand 0']
    %9 = vsyncpa [#allocation3], 0
    %s10 = scalar_lea.sflag [#allocation3], 1
    %11 = vsyncpa %s10, 0
    %12 = vsyncpa [#allocation6], 0
    %13 = vsyncpa [#allocation9], 0
    %s14 = scalar_lea.sflag [#allocation9], 1
    %15 = vsyncpa %s14, 0
    %16 = vsyncpa [#allocation4], 0
    %s17 = scalar_lea.sflag [#allocation4], 1
    %18 = vsyncpa %s17, 0
    loop: start=0, step=1, limit=4
    $region2: #{timesformer_layer.9} parent=1 // loop_pre_header
      _
    $region3: #{timesformer_layer.9} parent=1 // loop_header
      %s20 = sphi 0, %s24
      %p21 = scmp.ge.s32.totalorder %s20, 4
      %s30 = sphi 0, %s32
      %s33 = sphi 0, %s30
      %s34 = sphi 0, %s33
      %s50 = sphi 0, %s34
      %s54 = sphi 0, %s54
      %s56 = sphi 0, %s54
      %s57 = sphi 0, %s56
      %s71 = sphi 0, %s57
      %s75 = sphi 0, %s75
      %s77 = sphi 0, %s75
      %s78 = sphi 0, %s77
      %s92 = sphi 0, %s78
      %s98 = sphi 0, %s100
      %s101 = sphi 0, %s98
      %s102 = sphi 0, %s101
      %s118 = sphi 0, %s102
      %s124 = sphi 0, %s126
      %s127 = sphi 0, %s124
      %s128 = sphi 0, %s127
      %s144 = sphi 0, %s128
    $region4: #{timesformer_layer.9} parent=1 // loop_header_branch
      %23 = sbr.rel (%p21) target = $region8
    $region5: #{timesformer_layer.9} parent=1 // loop_body
      %s25 = ssub.s32 %s20, 1
      %s26 = ssub.s32 %s20, 2
      %s27 = sadd.s32 %s20, 1
      %s28 = ssub.s32 %s20, %s27
      %p29 = scmp.eq.s32.totalorder %s28, 0
      %s31 = sadd.s32 %s30, 1
      %s32 = scalar_select %p29, %s30, %s31
      %p35 = pneg %p29
      %p36 = scmp.eq.s32.totalorder %s20, 1
      %p37 = por %p35, %p36
      %p38 = scmp.ne.s32.totalorder %s30, %s33
      %p39 = scmp.eq.s32.totalorder %s20, 0
      %p40 = por %p38, %p39
      %p41 = scmp.ne.s32.totalorder %s30, %s33
      %p42 = scmp.eq.s32.totalorder %s25, 1
      %p43 = por %p41, %p42
      %p44 = scmp.ne.s32.totalorder %s33, %s34
      %p45 = scmp.eq.s32.totalorder %s25, 0
      %p46 = por %p44, %p45
      %p47 = scmp.ne.s32.totalorder %s33, %s34
      %p48 = scmp.eq.s32.totalorder %s26, 1
      %p49 = por %p47, %p48
      %p51 = scmp.ne.s32.totalorder %s34, %s50
      %p52 = scmp.eq.s32.totalorder %s26, 0
      %p53 = por %p51, %p52
      %s55 = sadd.s32 %s54, 1
      %p58 = scmp.eq.s32.totalorder %s20, 1
      %p59 = scmp.ne.s32.totalorder %s54, %s56
      %p60 = scmp.eq.s32.totalorder %s20, 0
      %p61 = por %p59, %p60
      %p62 = scmp.ne.s32.totalorder %s54, %s56
      %p63 = scmp.eq.s32.totalorder %s25, 1
      %p64 = por %p62, %p63
      %p65 = scmp.ne.s32.totalorder %s56, %s57
      %p66 = scmp.eq.s32.totalorder %s25, 0
      %p67 = por %p65, %p66
      %p68 = scmp.ne.s32.totalorder %s56, %s57
      %p69 = scmp.eq.s32.totalorder %s26, 1
      %p70 = por %p68, %p69
      %p72 = scmp.ne.s32.totalorder %s57, %s71
      %p73 = scmp.eq.s32.totalorder %s26, 0
      %p74 = por %p72, %p73
      %s76 = sadd.s32 %s75, 1
      %p79 = scmp.eq.s32.totalorder %s20, 1
      %p80 = scmp.ne.s32.totalorder %s75, %s77
      %p81 = scmp.eq.s32.totalorder %s20, 0
      %p82 = por %p80, %p81
      %p83 = scmp.ne.s32.totalorder %s75, %s77
      %p84 = scmp.eq.s32.totalorder %s25, 1
      %p85 = por %p83, %p84
      %p86 = scmp.ne.s32.totalorder %s77, %s78
      %p87 = scmp.eq.s32.totalorder %s25, 0
      %p88 = por %p86, %p87
      %p89 = scmp.ne.s32.totalorder %s77, %s78
      %p90 = scmp.eq.s32.totalorder %s26, 1
      %p91 = por %p89, %p90
      %p93 = scmp.ne.s32.totalorder %s78, %s92
      %p94 = scmp.eq.s32.totalorder %s26, 0
      %p95 = por %p93, %p94
      %s96 = ssub.s32 %s20, %s27
      %p97 = scmp.eq.s32.totalorder %s96, 0
      %s99 = sadd.s32 %s98, 1
      %s100 = scalar_select %p97, %s98, %s99
      %p103 = pneg %p97
      %p104 = scmp.eq.s32.totalorder %s20, 1
      %p105 = por %p103, %p104
      %p106 = scmp.ne.s32.totalorder %s98, %s101
      %p107 = scmp.eq.s32.totalorder %s20, 0
      %p108 = por %p106, %p107
      %p109 = scmp.ne.s32.totalorder %s98, %s101
      %p110 = scmp.eq.s32.totalorder %s25, 1
      %p111 = por %p109, %p110
      %p112 = scmp.ne.s32.totalorder %s101, %s102
      %p113 = scmp.eq.s32.totalorder %s25, 0
      %p114 = por %p112, %p113
      %p115 = scmp.ne.s32.totalorder %s101, %s102
      %p116 = scmp.eq.s32.totalorder %s26, 1
      %p117 = por %p115, %p116
      %p119 = scmp.ne.s32.totalorder %s102, %s118
      %p120 = scmp.eq.s32.totalorder %s26, 0
      %p121 = por %p119, %p120
      %s122 = ssub.s32 %s20, %s27
      %p123 = scmp.eq.s32.totalorder %s122, 0
      %s125 = sadd.s32 %s124, 1
      %s126 = scalar_select %p123, %s124, %s125
      %p129 = pneg %p123
      %p130 = scmp.eq.s32.totalorder %s20, 1
      %p131 = por %p129, %p130
      %p132 = scmp.ne.s32.totalorder %s124, %s127
      %p133 = scmp.eq.s32.totalorder %s20, 0
      %p134 = por %p132, %p133
      %p135 = scmp.ne.s32.totalorder %s124, %s127
      %p136 = scmp.eq.s32.totalorder %s25, 1
      %p137 = por %p135, %p136
      %p138 = scmp.ne.s32.totalorder %s127, %s128
      %p139 = scmp.eq.s32.totalorder %s25, 0
      %p140 = por %p138, %p139
      %p141 = scmp.ne.s32.totalorder %s127, %s128
      %p142 = scmp.eq.s32.totalorder %s26, 1
      %p143 = por %p141, %p142
      %p145 = scmp.ne.s32.totalorder %s128, %s144
      %p146 = scmp.eq.s32.totalorder %s26, 0
      %p147 = por %p145, %p146
      %p148 = scmp.le.s32.totalorder 1, %s20
      %p149 = scmp.lt.s32.totalorder %s20, 3
      %p150 = pnand %p148, %p149
      %p151 = pneg %p150
      // Predicated region
      $region9: #{timesformer_layer.9} parent=5 // pred_check
        _
      $region10: #{timesformer_layer.9} parent=5 // pred_check_branch
        %153 = sbr.rel (%p150) target = $region12
      $region11: #{timesformer_layer.9} parent=5 // pred_region
        %s154 = ssub.s32 %s20, 1
        // Predicated region
        $region13: #{timesformer_layer.9} parent=11 // pred_check
          %p155 = pneg %p67
        $region14: #{timesformer_layer.9} parent=11 // pred_check_branch
          %157 = sbr.rel (%p155) target = $region16
        $region15: #{timesformer_layer.9} parent=11 // pred_region
          %s159 = ssub.s32 256, 256
          %160 = vsyncadd [#allocation6], %s159
          %s161 = sshll.u32 [#allocation5], 4
          %s162 = int_to_ptr.vmem [resolvable:$true] %s161
          %167 = dma.hbm_to_vmem [thread:$0]  %s1, 256, %s162, [#allocation6], 64, 64, 4
        $region16: #{timesformer_layer.9} parent=11 // pred_fallthru
          _
        // Predicated region
        $region17: #{timesformer_layer.9} parent=11 // pred_check
          %p168 = pneg %p88
        $region18: #{timesformer_layer.9} parent=11 // pred_check_branch
          %170 = sbr.rel (%p168) target = $region20
        $region19: #{timesformer_layer.9} parent=11 // pred_region
          %s172 = ssub.s32 16, 16
          %173 = vsyncadd [#allocation6], %s172
          %s175 = sshll.u32 [#allocation7], 4
          %s176 = int_to_ptr.vmem [resolvable:$true] %s175
          %178 = dma.hbm_to_vmem [thread:$0]  %s2, 16, %s176, [#allocation6]
        $region20: #{timesformer_layer.9} parent=11 // pred_fallthru
          _
      $region12: #{timesformer_layer.9} parent=5 // pred_fallthru
        _
      %p179 = scmp.lt.s32.totalorder %s20, 2
      // Predicated region
      $region21: #{timesformer_layer.9} parent=5 // pred_check
        %p180 = pneg %p179
      $region22: #{timesformer_layer.9} parent=5 // pred_check_branch
        %182 = sbr.rel (%p180) target = $region24
      $region23: #{timesformer_layer.9} parent=5 // pred_region
        // Predicated region
        $region25: #{timesformer_layer.9} parent=23 // pred_check
          %p183 = pneg %p40
        $region26: #{timesformer_layer.9} parent=23 // pred_check_branch
          %185 = sbr.rel (%p183) target = $region28
        $region27: #{timesformer_layer.9} parent=23 // pred_region
          %s186 = sand.u32 %s30, 1
          %s187 = scalar_lea.sflag [#allocation3], %s186
          %s188 = sand.u32 %s30, 1
          %s189 = smul.addr %s188, 144
          %s190 = scalar_lea.vmem [#allocation2], %s189
          %s191 = smul.u32 4, %s20
          %s193 = ssub.s32 2304, 2304
          %194 = vsyncadd %s187, %s193
          %s195 = smul.addr %s191, 9
          %s196 = smul.addr %s195, 64
          %s197 = scalar_lea.hbm %s0, %s196
          %s198 = sshll.u32 %s190, 4
          %s199 = int_to_ptr.vmem [resolvable:$true] %s198
          %204 = dma.hbm_to_vmem [thread:$0]  %s197, 2304, %s199, %s187, 64, 64, 4
        $region28: #{timesformer_layer.9} parent=23 // pred_fallthru
          _
        // Predicated region
        $region29: #{timesformer_layer.9} parent=23 // pred_check
          %p205 = pneg %p108
        $region30: #{timesformer_layer.9} parent=23 // pred_check_branch
          %207 = sbr.rel (%p205) target = $region32
        $region31: #{timesformer_layer.9} parent=23 // pred_region
          %s208 = sand.u32 %s98, 1
          %s209 = scalar_lea.sflag [#allocation9], %s208
          %s210 = sand.u32 %s98, 1
          %s211 = smul.addr %s210, 72
          %s212 = scalar_lea.vmem [#allocation8], %s211
          %s214 = ssub.s32 1152, 1152
          %215 = vsyncadd %s209, %s214
          %s216 = smul.addr %s20, 9
          %s217 = smul.addr %s216, 128
          %s218 = scalar_lea.hbm %s3, %s217
          %s219 = sshll.u32 %s212, 4
          %s220 = int_to_ptr.vmem [resolvable:$true] %s219
          %225 = dma.hbm_to_vmem [thread:$0]  %s218, 1152, %s220, %s209, 128, 128, 8
        $region32: #{timesformer_layer.9} parent=23 // pred_fallthru
          _
      $region24: #{timesformer_layer.9} parent=5 // pred_fallthru
        _
      %p226 = scmp.le.s32.totalorder 1, %s20
      %p227 = scmp.lt.s32.totalorder %s20, 3
      %p228 = pnand %p226, %p227
      %p229 = pneg %p228
      // Predicated region
      $region33: #{timesformer_layer.9} parent=5 // pred_check
        _
      $region34: #{timesformer_layer.9} parent=5 // pred_check_branch
        %231 = sbr.rel (%p228) target = $region36
      $region35: #{timesformer_layer.9} parent=5 // pred_region
        %s232 = ssub.s32 %s20, 1
        %s233 = sand.u32 %s33, 1
        %s234 = scalar_lea.sflag [#allocation3], %s233
        %s235 = sand.u32 %s33, 1
        %s236 = smul.addr %s235, 144
        %s237 = scalar_lea.vmem [#allocation2], %s236
        // Predicated region
        $region37: #{timesformer_layer.9} parent=35 // pred_check
          %p238 = pneg %p46
        $region38: #{timesformer_layer.9} parent=35 // pred_check_branch
          %240 = sbr.rel (%p238) target = $region40
        $region39: #{timesformer_layer.9} parent=35 // pred_region
          %241 = dma.done %s234, 2304
        $region40: #{timesformer_layer.9} parent=35 // pred_fallthru
          _
        // Predicated region
        $region41: #{timesformer_layer.9} parent=35 // pred_check
          %p242 = pneg %p67
        $region42: #{timesformer_layer.9} parent=35 // pred_check_branch
          %244 = sbr.rel (%p242) target = $region44
        $region43: #{timesformer_layer.9} parent=35 // pred_region
          %245 = dma.done [#allocation6], 256
        $region44: #{timesformer_layer.9} parent=35 // pred_fallthru
          _
        // Predicated region
        $region45: #{timesformer_layer.9} parent=35 // pred_check
          %p246 = pneg %p88
        $region46: #{timesformer_layer.9} parent=35 // pred_check_branch
          %248 = sbr.rel (%p246) target = $region48
        $region47: #{timesformer_layer.9} parent=35 // pred_region
          %249 = dma.done [#allocation6], 16
        $region48: #{timesformer_layer.9} parent=35 // pred_fallthru
          _
        %s250 = sand.u32 %s101, 1
        %s251 = scalar_lea.sflag [#allocation9], %s250
        %s252 = sand.u32 %s101, 1
        %s253 = smul.addr %s252, 72
        %s254 = scalar_lea.vmem [#allocation8], %s253
        // Predicated region
        $region49: #{timesformer_layer.9} parent=35 // pred_check
          %p255 = pneg %p114
        $region50: #{timesformer_layer.9} parent=35 // pred_check_branch
          %257 = sbr.rel (%p255) target = $region52
        $region51: #{timesformer_layer.9} parent=35 // pred_region
          %258 = dma.done %s251, 1152
        $region52: #{timesformer_layer.9} parent=35 // pred_fallthru
          _
        %s259 = sand.u32 %s33, 1
        %s260 = scalar_lea.sflag [#allocation3], %s259
        %s261 = sand.u32 %s33, 1
        %s262 = smul.addr %s261, 144
        %s263 = scalar_lea.vmem [#allocation2], %s262
        %p264 = pneg %p46
        %p265 = pneg %p43
        %p266 = pneg %p67
        %p267 = pneg %p64
        %p268 = pneg %p88
        %p269 = pneg %p85
        %s270 = sand.u32 %s101, 1
        %s271 = scalar_lea.sflag [#allocation9], %s270
        %s272 = sand.u32 %s101, 1
        %s273 = smul.addr %s272, 72
        %s274 = scalar_lea.vmem [#allocation8], %s273
        %p275 = pneg %p114
        %p276 = pneg %p111
        %p277 = pneg %p140
        %p278 = pneg %p137
        %s279 = sand.u32 %s127, 1
        %s280 = scalar_lea.sflag [#allocation4], %s279
        %s281 = sand.u32 %s127, 1
        %s282 = smul.addr %s281, 72
        %s283 = scalar_lea.vmem [#allocation10], %s282
        %s284 = smul.u32 4, %s25
        %v286 = vld [vmem:[%s237] sm:$0xf]
        %v287 = vld [vmem:[%s237 + $0x4] sm:$0xf]
        %v288 = vld [vmem:[%s237 + $0x8] sm:$0xf]
        %v289 = vld [vmem:[%s237 + $0xc] sm:$0xf]
        %v290 = vld [vmem:[%s237 + $0x10] sm:$0xf]
        %v291 = vld [vmem:[%s237 + $0x14] sm:$0xf]
        %v292 = vld [vmem:[%s237 + $0x18] sm:$0xf]
        %v293 = vld [vmem:[%s237 + $0x1c] sm:$0xf]
        %v294 = vld [vmem:[%s237 + $0x20] sm:$0x1]
        %v295 = vld [vmem:[#allocation5] sm:$0xf]
        %s296 = scalar_lea.vmem %s237, 36 [#allocation2]
        %v297 = vld [vmem:[%s296] sm:$0xf]
        %v298 = vld [vmem:[%s296 + $0x4] sm:$0xf]
        %v299 = vld [vmem:[%s296 + $0x8] sm:$0xf]
        %v300 = vld [vmem:[%s296 + $0xc] sm:$0xf]
        %v301 = vld [vmem:[%s296 + $0x10] sm:$0xf]
        %v302 = vld [vmem:[%s296 + $0x14] sm:$0xf]
        %v303 = vld [vmem:[%s296 + $0x18] sm:$0xf]
        %v304 = vld [vmem:[%s296 + $0x1c] sm:$0xf]
        %v305 = vld [vmem:[%s296 + $0x20] sm:$0x1]
        %s306 = scalar_lea.vmem [#allocation5], 4
        %v307 = vld [vmem:[%s306] sm:$0xf]
        %v317 = vunpack.c.l.b16 %v297
        %v318 = vunpack.c.l.b16 %v298
        %v319 = vunpack.c.l.b16 %v299
        %v320 = vunpack.c.l.b16 %v300
        %v321 = vunpack.c.l.b16 %v301
        %v322 = vunpack.c.l.b16 %v302
        %v323 = vunpack.c.l.b16 %v303
        %v324 = vunpack.c.l.b16 %v304
        %v325 = vunpack.c.l.b16 %v305
        %v326 = vpack.c.b16 %v318, %v317
        %v327 = vpack.c.b16 %v320, %v319
        %v328 = vpack.c.b16 %v322, %v321
        %v329 = vpack.c.b16 %v324, %v323
        %v330 = vpack.c.b16 %v325, %v325
        %vm331 = vcmask 64512
        %v333 = vsel %vm331, %v326, 0
        %v336 = vsel %vm331, %v327, 0
        %v339 = vsel %vm331, %v328, 0
        %v342 = vsel %vm331, %v329, 0
        %v345 = vsel %vm331, %v330, 0
        %vm347 = vcmask 1043456
        %v349 = vsel %vm347, %v307, 0
        %351 = vmatprep.subr.bf16.mxu0 0
        %352 = vmatpush1.bf16.msra.mxu0 %v349
        %353 = vmatprep.subr.bf16.mxu0 0
        %354 = vmatpush1.bf16.msra.mxu0 0
        %355 = vmatprep.subr.bf16.mxu0 0
        %356 = vmatpush1.bf16.msra.mxu0 0
        %357 = vmatprep.subr.bf16.mxu0 0
        %358 = vmatpush1.bf16.msra.mxu0 0
        %359 = vmatprep.subr.bf16.mxu0 0
        %360 = vmatpush1.bf16.msra.mxu0 0
        %361 = vmatprep.subr.bf16.mxu0 0
        %362 = vmatpush1.bf16.msra.mxu0 0
        %363 = vmatprep.subr.bf16.mxu0 0
        %364 = vmatpush1.bf16.msra.mxu0 0
        %365 = vmatprep.subr.bf16.mxu0 0
        %366 = vmatpush1.bf16.msra.mxu0 0
        %367 = vmatprep.subr.bf16.mxu0 0
        %368 = vmatpush1.bf16.msra.mxu0 0
        %369 = vmatprep.subr.bf16.mxu0 0
        %370 = vmatpush1.bf16.msra.mxu0 0
        %371 = vmatprep.subr.bf16.mxu0 0
        %372 = vmatpush1.bf16.msra.mxu0 0
        %373 = vmatprep.subr.bf16.mxu0 0
        %374 = vmatpush1.bf16.msra.mxu0 0
        %375 = vmatprep.subr.bf16.mxu0 0
        %376 = vmatpush1.bf16.msra.mxu0 0
        %377 = vmatprep.subr.bf16.mxu0 0
        %378 = vmatpush1.bf16.msra.mxu0 0
        %379 = vmatprep.subr.bf16.mxu0 0
        %380 = vmatpush1.bf16.msra.mxu0 0
        %381 = vmatprep.subr.bf16.mxu0 0
        %382 = vmatpush1.bf16.msra.mxu0 0
        %383 = vmatprep.mubr.bf16.mxu0 0
        %384 = vmatmul.mubr.bf16.gmra.mrb[0].mxu0 %v333
        %v385 = vpop.f32.mrb[0].mxu0
        %v386 = vadd.f32 0.0, %v385
        %v387 = vpop.f32.mrb[0].mxu0
        %v388 = vpop.f32.mrb[0].mxu0
        %v389 = vadd.f32 0.0, %v388
        %v390 = vpop.f32.mrb[0].mxu0
        %391 = vmatprep.mubr.bf16.mxu0 0
        %392 = vmatmul.mubr.bf16.gmra.mrb[0].mxu0 %v336
        %v393 = vpop.f32.mrb[0].mxu0
        %v394 = vadd.f32 0.0, %v393
        %v395 = vpop.f32.mrb[0].mxu0
        %v396 = vpop.f32.mrb[0].mxu0
        %v397 = vadd.f32 0.0, %v396
        %v398 = vpop.f32.mrb[0].mxu0
        %399 = vmatprep.mubr.bf16.mxu0 0
        %400 = vmatmul.mubr.bf16.gmra.mrb[0].mxu0 %v339
        %v401 = vpop.f32.mrb[0].mxu0
        %v402 = vadd.f32 0.0, %v401
        %v403 = vpop.f32.mrb[0].mxu0
        %v404 = vpop.f32.mrb[0].mxu0
        %v405 = vadd.f32 0.0, %v404
        %v406 = vpop.f32.mrb[0].mxu0
        %407 = vmatprep.mubr.bf16.mxu0 0
        %408 = vmatmul.mubr.bf16.gmra.mrb[0].mxu0 %v342
        %v409 = vpop.f32.mrb[0].mxu0
        %v410 = vadd.f32 0.0, %v409
        %v411 = vpop.f32.mrb[0].mxu0
        %v412 = vpop.f32.mrb[0].mxu0
        %v413 = vadd.f32 0.0, %v412
        %v414 = vpop.f32.mrb[0].mxu0
        %415 = vmatprep.mubr.bf16.mxu0 0
        %416 = vmatmul.mubr.bf16.gmra.mrb[0].mxu0 %v345
        %v417 = vpop.f32.mrb[0].mxu0
        %v418 = vadd.f32 0.0, %v417
        %v419 = vpop.f32.mrb[0].mxu0
        %v420 = vpop.f32.mrb[0].mxu0
        %v421 = vpop.f32.mrb[0].mxu0
        %422 = vdwg.mxu0
        %v432 = vunpack.c.l.b16 %v286
        %v433 = vunpack.c.l.b16 %v287
        %v434 = vunpack.c.l.b16 %v288
        %v435 = vunpack.c.l.b16 %v289
        %v436 = vunpack.c.l.b16 %v290
        %v437 = vunpack.c.l.b16 %v291
        %v438 = vunpack.c.l.b16 %v292
        %v439 = vunpack.c.l.b16 %v293
        %v440 = vunpack.c.l.b16 %v294
        %v441 = vpack.c.b16 %v433, %v432
        %v442 = vpack.c.b16 %v435, %v434
        %v443 = vpack.c.b16 %v437, %v436
        %v444 = vpack.c.b16 %v439, %v438
        %v445 = vpack.c.b16 %v440, %v440
        %v447 = vsel %vm331, %v441, 0
        %v450 = vsel %vm331, %v442, 0
        %v453 = vsel %vm331, %v443, 0
        %v456 = vsel %vm331, %v444, 0
        %v459 = vsel %vm331, %v445, 0
        %v462 = vsel %vm347, %v295, 0
        %464 = vmatprep.subr.bf16.mxu0 0
        %465 = vmatpush1.bf16.msra.mxu0 %v462
        %466 = vmatprep.subr.bf16.mxu0 0
        %467 = vmatpush1.bf16.msra.mxu0 0
        %468 = vmatprep.subr.bf16.mxu0 0
        %469 = vmatpush1.bf16.msra.mxu0 0
        %470 = vmatprep.subr.bf16.mxu0 0
        %471 = vmatpush1.bf16.msra.mxu0 0
        %472 = vmatprep.subr.bf16.mxu0 0
        %473 = vmatpush1.bf16.msra.mxu0 0
        %474 = vmatprep.subr.bf16.mxu0 0
        %475 = vmatpush1.bf16.msra.mxu0 0
        %476 = vmatprep.subr.bf16.mxu0 0
        %477 = vmatpush1.bf16.msra.mxu0 0
        %478 = vmatprep.subr.bf16.mxu0 0
        %479 = vmatpush1.bf16.msra.mxu0 0
        %480 = vmatprep.subr.bf16.mxu0 0
        %481 = vmatpush1.bf16.msra.mxu0 0
        %482 = vmatprep.subr.bf16.mxu0 0
        %483 = vmatpush1.bf16.msra.mxu0 0
        %484 = vmatprep.subr.bf16.mxu0 0
        %485 = vmatpush1.bf16.msra.mxu0 0
        %486 = vmatprep.subr.bf16.mxu0 0
        %487 = vmatpush1.bf16.msra.mxu0 0
        %488 = vmatprep.subr.bf16.mxu0 0
        %489 = vmatpush1.bf16.msra.mxu0 0
        %490 = vmatprep.subr.bf16.mxu0 0
        %491 = vmatpush1.bf16.msra.mxu0 0
        %492 = vmatprep.subr.bf16.mxu0 0
        %493 = vmatpush1.bf16.msra.mxu0 0
        %494 = vmatprep.subr.bf16.mxu0 0
        %495 = vmatpush1.bf16.msra.mxu0 0
        %496 = vmatprep.mubr.bf16.mxu0 0
        %497 = vmatmul.mubr.bf16.gmra.mrb[0].mxu0 %v447
        %v498 = vpop.f32.mrb[0].mxu0
        %v499 = vadd.f32 %v386, %v498
        %v500 = vpop.f32.mrb[0].mxu0
        %v501 = vpop.f32.mrb[0].mxu0
        %v502 = vadd.f32 %v389, %v501
        %v503 = vpop.f32.mrb[0].mxu0
        %504 = vmatprep.mubr.bf16.mxu0 0
        %505 = vmatmul.mubr.bf16.gmra.mrb[0].mxu0 %v450
        %v506 = vpop.f32.mrb[0].mxu0
        %v507 = vadd.f32 %v394, %v506
        %v508 = vpop.f32.mrb[0].mxu0
        %v509 = vpop.f32.mrb[0].mxu0
        %v510 = vadd.f32 %v397, %v509
        %v511 = vpop.f32.mrb[0].mxu0
        %512 = vmatprep.mubr.bf16.mxu0 0
        %513 = vmatmul.mubr.bf16.gmra.mrb[0].mxu0 %v453
        %v514 = vpop.f32.mrb[0].mxu0
        %v515 = vadd.f32 %v402, %v514
        %v516 = vpop.f32.mrb[0].mxu0
        %v517 = vpop.f32.mrb[0].mxu0
        %v518 = vadd.f32 %v405, %v517
        %v519 = vpop.f32.mrb[0].mxu0
        %520 = vmatprep.mubr.bf16.mxu0 0
        %521 = vmatmul.mubr.bf16.gmra.mrb[0].mxu0 %v456
        %v522 = vpop.f32.mrb[0].mxu0
        %v523 = vadd.f32 %v410, %v522
        %v524 = vpop.f32.mrb[0].mxu0
        %v525 = vpop.f32.mrb[0].mxu0
        %v526 = vadd.f32 %v413, %v525
        %v527 = vpop.f32.mrb[0].mxu0
        %528 = vmatprep.mubr.bf16.mxu0 0
        %529 = vmatmul.mubr.bf16.gmra.mrb[0].mxu0 %v459
        %v530 = vpop.f32.mrb[0].mxu0
        %v531 = vadd.f32 %v418, %v530
        %v532 = vpop.f32.mrb[0].mxu0
        %v533 = vpop.f32.mrb[0].mxu0
        %v534 = vpop.f32.mrb[0].mxu0
        %535 = vdwg.mxu0
        %s536 = scalar_lea.vmem %s237, 72 [#allocation2]
        %v537 = vld [vmem:[%s536] sm:$0xf]
        %v538 = vld [vmem:[%s536 + $0x4] sm:$0xf]
        %v539 = vld [vmem:[%s536 + $0x8] sm:$0xf]
        %v540 = vld [vmem:[%s536 + $0xc] sm:$0xf]
        %v541 = vld [vmem:[%s536 + $0x10] sm:$0xf]
        %v542 = vld [vmem:[%s536 + $0x14] sm:$0xf]
        %v543 = vld [vmem:[%s536 + $0x18] sm:$0xf]
        %v544 = vld [vmem:[%s536 + $0x1c] sm:$0xf]
        %v545 = vld [vmem:[%s536 + $0x20] sm:$0x1]
        %s546 = scalar_lea.vmem [#allocation5], 8
        %v547 = vld [vmem:[%s546] sm:$0xf]
        %v557 = vunpack.c.l.b16 %v537
        %v558 = vunpack.c.l.b16 %v538
        %v559 = vunpack.c.l.b16 %v539
        %v560 = vunpack.c.l.b16 %v540
        %v561 = vunpack.c.l.b16 %v541
        %v562 = vunpack.c.l.b16 %v542
        %v563 = vunpack.c.l.b16 %v543
        %v564 = vunpack.c.l.b16 %v544
        %v565 = vunpack.c.l.b16 %v545
        %v566 = vpack.c.b16 %v558, %v557
        %v567 = vpack.c.b16 %v560, %v559
        %v568 = vpack.c.b16 %v562, %v561
        %v569 = vpack.c.b16 %v564, %v563
        %v570 = vpack.c.b16 %v565, %v565
        %v572 = vsel %vm331, %v566, 0
        %v575 = vsel %vm331, %v567, 0
        %v578 = vsel %vm331, %v568, 0
        %v581 = vsel %vm331, %v569, 0
        %v584 = vsel %vm331, %v570, 0
        %v587 = vsel %vm347, %v547, 0
        %589 = vmatprep.subr.bf16.mxu0 0
        %590 = vmatpush1.bf16.msra.mxu0 %v587
        %591 = vmatprep.subr.bf16.mxu0 0
        %592 = vmatpush1.bf16.msra.mxu0 0
        %593 = vmatprep.subr.bf16.mxu0 0
        %594 = vmatpush1.bf16.msra.mxu0 0
        %595 = vmatprep.subr.bf16.mxu0 0
        %596 = vmatpush1.bf16.msra.mxu0 0
        %597 = vmatprep.subr.bf16.mxu0 0
        %598 = vmatpush1.bf16.msra.mxu0 0
        %599 = vmatprep.subr.bf16.mxu0 0
        %600 = vmatpush1.bf16.msra.mxu0 0
        %601 = vmatprep.subr.bf16.mxu0 0
        %602 = vmatpush1.bf16.msra.mxu0 0
        %603 = vmatprep.subr.bf16.mxu0 0
        %604 = vmatpush1.bf16.msra.mxu0 0
        %605 = vmatprep.subr.bf16.mxu0 0
        %606 = vmatpush1.bf16.msra.mxu0 0
        %607 = vmatprep.subr.bf16.mxu0 0
        %608 = vmatpush1.bf16.msra.mxu0 0
        %609 = vmatprep.subr.bf16.mxu0 0
        %610 = vmatpush1.bf16.msra.mxu0 0
        %611 = vmatprep.subr.bf16.mxu0 0
        %612 = vmatpush1.bf16.msra.mxu0 0
        %613 = vmatprep.subr.bf16.mxu0 0
        %614 = vmatpush1.bf16.msra.mxu0 0
        %615 = vmatprep.subr.bf16.mxu0 0
        %616 = vmatpush1.bf16.msra.mxu0 0
        %617 = vmatprep.subr.bf16.mxu0 0
        %618 = vmatpush1.bf16.msra.mxu0 0
        %619 = vmatprep.subr.bf16.mxu0 0
        %620 = vmatpush1.bf16.msra.mxu0 0
        %621 = vmatprep.mubr.bf16.mxu0 0
        %622 = vmatmul.mubr.bf16.gmra.mrb[0].mxu0 %v572
        %v623 = vpop.f32.mrb[0].mxu0
        %v624 = vadd.f32 0.0, %v623
        %v625 = vpop.f32.mrb[0].mxu0
        %v626 = vpop.f32.mrb[0].mxu0
        %v627 = vadd.f32 0.0, %v626
        %v628 = vpop.f32.mrb[0].mxu0
        %629 = vmatprep.mubr.bf16.mxu0 0
        %630 = vmatmul.mubr.bf16.gmra.mrb[0].mxu0 %v575
        %v631 = vpop.f32.mrb[0].mxu0
        %v632 = vadd.f32 0.0, %v631
        %v633 = vpop.f32.mrb[0].mxu0
        %v634 = vpop.f32.mrb[0].mxu0
        %v635 = vadd.f32 0.0, %v634
        %v636 = vpop.f32.mrb[0].mxu0
        %637 = vmatprep.mubr.bf16.mxu0 0
        %638 = vmatmul.mubr.bf16.gmra.mrb[0].mxu0 %v578
        %v639 = vpop.f32.mrb[0].mxu0
        %v640 = vadd.f32 0.0, %v639
        %v641 = vpop.f32.mrb[0].mxu0
        %v642 = vpop.f32.mrb[0].mxu0
        %v643 = vadd.f32 0.0, %v642
        %v644 = vpop.f32.mrb[0].mxu0
        %645 = vmatprep.mubr.bf16.mxu0 0
        %646 = vmatmul.mubr.bf16.gmra.mrb[0].mxu0 %v581
        %v647 = vpop.f32.mrb[0].mxu0
        %v648 = vadd.f32 0.0, %v647
        %v649 = vpop.f32.mrb[0].mxu0
        %v650 = vpop.f32.mrb[0].mxu0
        %v651 = vadd.f32 0.0, %v650
        %v652 = vpop.f32.mrb[0].mxu0
        %653 = vmatprep.mubr.bf16.mxu0 0
        %654 = vmatmul.mubr.bf16.gmra.mrb[0].mxu0 %v584
        %v655 = vpop.f32.mrb[0].mxu0
        %v656 = vadd.f32 0.0, %v655
        %v657 = vpop.f32.mrb[0].mxu0
        %v658 = vpop.f32.mrb[0].mxu0
        %v659 = vpop.f32.mrb[0].mxu0
        %660 = vdwg.mxu0
        %v661 = vadd.f32 %v499, %v624
        %v662 = vadd.f32 %v502, %v627
        %v663 = vadd.f32 %v507, %v632
        %v664 = vadd.f32 %v510, %v635
        %v665 = vadd.f32 %v515, %v640
        %v666 = vadd.f32 %v518, %v643
        %v667 = vadd.f32 %v523, %v648
        %v668 = vadd.f32 %v526, %v651
        %v669 = vadd.f32 %v531, %v656
        %s670 = scalar_lea.vmem %s237, 108 [#allocation2]
        %v671 = vld [vmem:[%s670] sm:$0xf]
        %v672 = vld [vmem:[%s670 + $0x4] sm:$0xf]
        %v673 = vld [vmem:[%s670 + $0x8] sm:$0xf]
        %v674 = vld [vmem:[%s670 + $0xc] sm:$0xf]
        %v675 = vld [vmem:[%s670 + $0x10] sm:$0xf]
        %v676 = vld [vmem:[%s670 + $0x14] sm:$0xf]
        %v677 = vld [vmem:[%s670 + $0x18] sm:$0xf]
        %v678 = vld [vmem:[%s670 + $0x1c] sm:$0xf]
        %v679 = vld [vmem:[%s670 + $0x20] sm:$0x1]
        %s680 = scalar_lea.vmem [#allocation5], 12
        %v681 = vld [vmem:[%s680] sm:$0xf]
        %v691 = vunpack.c.l.b16 %v671
        %v692 = vunpack.c.l.b16 %v672
        %v693 = vunpack.c.l.b16 %v673
        %v694 = vunpack.c.l.b16 %v674
        %v695 = vunpack.c.l.b16 %v675
        %v696 = vunpack.c.l.b16 %v676
        %v697 = vunpack.c.l.b16 %v677
        %v698 = vunpack.c.l.b16 %v678
        %v699 = vunpack.c.l.b16 %v679
        %v700 = vpack.c.b16 %v692, %v691
        %v701 = vpack.c.b16 %v694, %v693
        %v702 = vpack.c.b16 %v696, %v695
        %v703 = vpack.c.b16 %v698, %v697
        %v704 = vpack.c.b16 %v699, %v699
        %v706 = vsel %vm331, %v700, 0
        %v709 = vsel %vm331, %v701, 0
        %v712 = vsel %vm331, %v702, 0
        %v715 = vsel %vm331, %v703, 0
        %v718 = vsel %vm331, %v704, 0
        %v721 = vsel %vm347, %v681, 0
        %723 = vmatprep.subr.bf16.mxu0 0
        %724 = vmatpush1.bf16.msra.mxu0 %v721
        %725 = vmatprep.subr.bf16.mxu0 0
        %726 = vmatpush1.bf16.msra.mxu0 0
        %727 = vmatprep.subr.bf16.mxu0 0
        %728 = vmatpush1.bf16.msra.mxu0 0
        %729 = vmatprep.subr.bf16.mxu0 0
        %730 = vmatpush1.bf16.msra.mxu0 0
        %731 = vmatprep.subr.bf16.mxu0 0
        %732 = vmatpush1.bf16.msra.mxu0 0
        %733 = vmatprep.subr.bf16.mxu0 0
        %734 = vmatpush1.bf16.msra.mxu0 0
        %735 = vmatprep.subr.bf16.mxu0 0
        %736 = vmatpush1.bf16.msra.mxu0 0
        %737 = vmatprep.subr.bf16.mxu0 0
        %738 = vmatpush1.bf16.msra.mxu0 0
        %739 = vmatprep.subr.bf16.mxu0 0
        %740 = vmatpush1.bf16.msra.mxu0 0
        %741 = vmatprep.subr.bf16.mxu0 0
        %742 = vmatpush1.bf16.msra.mxu0 0
        %743 = vmatprep.subr.bf16.mxu0 0
        %744 = vmatpush1.bf16.msra.mxu0 0
        %745 = vmatprep.subr.bf16.mxu0 0
        %746 = vmatpush1.bf16.msra.mxu0 0
        %747 = vmatprep.subr.bf16.mxu0 0
        %748 = vmatpush1.bf16.msra.mxu0 0
        %749 = vmatprep.subr.bf16.mxu0 0
        %750 = vmatpush1.bf16.msra.mxu0 0
        %751 = vmatprep.subr.bf16.mxu0 0
        %752 = vmatpush1.bf16.msra.mxu0 0
        %753 = vmatprep.subr.bf16.mxu0 0
        %754 = vmatpush1.bf16.msra.mxu0 0
        %755 = vmatprep.mubr.bf16.mxu0 0
        %756 = vmatmul.mubr.bf16.gmra.mrb[0].mxu0 %v706
        %v757 = vpop.f32.mrb[0].mxu0
        %v758 = vadd.f32 0.0, %v757
        %v759 = vpop.f32.mrb[0].mxu0
        %v760 = vpop.f32.mrb[0].mxu0
        %v761 = vadd.f32 0.0, %v760
        %v762 = vpop.f32.mrb[0].mxu0
        %763 = vmatprep.mubr.bf16.mxu0 0
        %764 = vmatmul.mubr.bf16.gmra.mrb[0].mxu0 %v709
        %v765 = vpop.f32.mrb[0].mxu0
        %v766 = vadd.f32 0.0, %v765
        %v767 = vpop.f32.mrb[0].mxu0
        %v768 = vpop.f32.mrb[0].mxu0
        %v769 = vadd.f32 0.0, %v768
        %v770 = vpop.f32.mrb[0].mxu0
        %771 = vmatprep.mubr.bf16.mxu0 0
        %772 = vmatmul.mubr.bf16.gmra.mrb[0].mxu0 %v712
        %v773 = vpop.f32.mrb[0].mxu0
        %v774 = vadd.f32 0.0, %v773
        %v775 = vpop.f32.mrb[0].mxu0
        %v776 = vpop.f32.mrb[0].mxu0
        %v777 = vadd.f32 0.0, %v776
        %v778 = vpop.f32.mrb[0].mxu0
        %779 = vmatprep.mubr.bf16.mxu0 0
        %780 = vmatmul.mubr.bf16.gmra.mrb[0].mxu0 %v715
        %v781 = vpop.f32.mrb[0].mxu0
        %v782 = vadd.f32 0.0, %v781
        %v783 = vpop.f32.mrb[0].mxu0
        %v784 = vpop.f32.mrb[0].mxu0
        %v785 = vadd.f32 0.0, %v784
        %v786 = vpop.f32.mrb[0].mxu0
        %787 = vmatprep.mubr.bf16.mxu0 0
        %788 = vmatmul.mubr.bf16.gmra.mrb[0].mxu0 %v718
        %v789 = vpop.f32.mrb[0].mxu0
        %v790 = vadd.f32 0.0, %v789
        %v791 = vpop.f32.mrb[0].mxu0
        %v792 = vpop.f32.mrb[0].mxu0
        %v793 = vpop.f32.mrb[0].mxu0
        %794 = vdwg.mxu0
        %v795 = vadd.f32 %v661, %v758
        %v796 = vadd.f32 %v662, %v761
        %v797 = vadd.f32 %v663, %v766
        %v798 = vadd.f32 %v664, %v769
        %v799 = vadd.f32 %v665, %v774
        %v800 = vadd.f32 %v666, %v777
        %v801 = vadd.f32 %v667, %v782
        %v802 = vadd.f32 %v668, %v785
        %v803 = vadd.f32 %v669, %v790
        %v804 = vld [vmem:[%s254] sm:$0xff]
        %v805 = vld [vmem:[%s254 + $0x8] sm:$0xff]
        %v806 = vld [vmem:[%s254 + $0x10] sm:$0xff]
        %v807 = vld [vmem:[%s254 + $0x18] sm:$0xff]
        %v808 = vld [vmem:[%s254 + $0x20] sm:$0xff]
        %v809 = vld [vmem:[%s254 + $0x28] sm:$0xff]
        %v810 = vld [vmem:[%s254 + $0x30] sm:$0xff]
        %v811 = vld [vmem:[%s254 + $0x38] sm:$0xff]
        %v812 = vld [vmem:[%s254 + $0x40] sm:$0x1]
        %v813 = vadd.f32 %v804, %v795
        %v814 = vadd.f32 %v805, %v796
        %v815 = vadd.f32 %v806, %v797
        %v816 = vadd.f32 %v807, %v798
        %v817 = vadd.f32 %v808, %v799
        %v818 = vadd.f32 %v809, %v800
        %v819 = vadd.f32 %v810, %v801
        %v820 = vadd.f32 %v811, %v802
        %v821 = vadd.f32 %v812, %v803
        %v822 = vld [vmem:[#allocation7] sm:$0x1]
        %v824 = vlaneseq
        %v825 = vshrl.u32 %v824, 7
        %v826 = vsub.s32 0, %v825
        %v827 = vrot.slane %v822, %v826
        %v829 = vadd.f32 %v813, %v827
        %v830 = vadd.f32 %v814, %v827
        %v831 = vadd.f32 %v815, %v827
        %v832 = vadd.f32 %v816, %v827
        %v833 = vadd.f32 %v817, %v827
        %v834 = vadd.f32 %v818, %v827
        %v835 = vadd.f32 %v819, %v827
        %v836 = vadd.f32 %v820, %v827
        %v837 = vadd.f32 %v821, %v827
        %vm838 = vcmask 261120
        %839 = vst.msk [vmem:[%s283] sm:$0xff] %vm838, %v829
        %840 = vst.msk [vmem:[%s283 + $0x8] sm:$0xff] %vm838, %v830
        %841 = vst.msk [vmem:[%s283 + $0x10] sm:$0xff] %vm838, %v831
        %842 = vst.msk [vmem:[%s283 + $0x18] sm:$0xff] %vm838, %v832
        %843 = vst.msk [vmem:[%s283 + $0x20] sm:$0xff] %vm838, %v833
        %844 = vst.msk [vmem:[%s283 + $0x28] sm:$0xff] %vm838, %v834
        %845 = vst.msk [vmem:[%s283 + $0x30] sm:$0xff] %vm838, %v835
        %846 = vst.msk [vmem:[%s283 + $0x38] sm:$0xff] %vm838, %v836
        %vm847 = vcmask 253952
        %848 = vst.msk [vmem:[%s283 + $0x40] sm:$0x1] %vm847, %v837
        %s849 = sand.u32 %s127, 1
        %s850 = scalar_lea.sflag [#allocation4], %s849
        %s851 = sand.u32 %s127, 1
        %s852 = smul.addr %s851, 72
        %s853 = scalar_lea.vmem [#allocation10], %s852
        // Predicated region
        $region53: #{timesformer_layer.9} parent=35 // pred_check
          %p854 = pneg %p137
        $region54: #{timesformer_layer.9} parent=35 // pred_check_branch
          %856 = sbr.rel (%p854) target = $region56
        $region55: #{timesformer_layer.9} parent=35 // pred_region
          %s858 = ssub.s32 1152, 1152
          %859 = vsyncadd %s850, %s858
          %s860 = smul.addr %s25, 9
          %s861 = smul.addr %s860, 128
          %s862 = scalar_lea.hbm %s4, %s861
          %s863 = sshll.u32 %s853, 4
          %s864 = int_to_ptr.vmem [resolvable:$true] %s863
          %869 = dma.vmem_to_hbm [thread:$0]  %s864, 1152, %s862, %s850, 128, 128, 8
        $region56: #{timesformer_layer.9} parent=35 // pred_fallthru
          _
      $region36: #{timesformer_layer.9} parent=5 // pred_fallthru
        _
      %p870 = scmp.le.s32.totalorder 2, %s20
      // Predicated region
      $region57: #{timesformer_layer.9} parent=5 // pred_check
        %p871 = pneg %p870
      $region58: #{timesformer_layer.9} parent=5 // pred_check_branch
        %873 = sbr.rel (%p871) target = $region60
      $region59: #{timesformer_layer.9} parent=5 // pred_region
        %s874 = ssub.s32 %s20, 2
        // Predicated region
        $region61: #{timesformer_layer.9} parent=59 // pred_check
          %p875 = pneg %p143
        $region62: #{timesformer_layer.9} parent=59 // pred_check_branch
          %877 = sbr.rel (%p875) target = $region64
        $region63: #{timesformer_layer.9} parent=59 // pred_region
          %s878 = sand.u32 %s128, 1
          %s879 = scalar_lea.sflag [#allocation4], %s878
          %s880 = sand.u32 %s128, 1
          %s881 = smul.addr %s880, 72
          %s882 = scalar_lea.vmem [#allocation10], %s881
          %883 = dma.done %s879, 1152
        $region64: #{timesformer_layer.9} parent=59 // pred_fallthru
          _
      $region60: #{timesformer_layer.9} parent=5 // pred_fallthru
        _
    $region6: #{timesformer_layer.9} parent=1 // loop_footer
      %s24 = sadd.s32 1, %s20
    $region7: #{timesformer_layer.9} parent=1 // loop_footer_branch
      %19 = sbr.rel target = $region3
    $region8: #{timesformer_layer.9} parent=1 // loop_exit
      _
    %884 = vsyncpa [#allocation3], 1
    %s885 = scalar_lea.sflag [#allocation3], 1
    %886 = vsyncpa %s885, 1
    %887 = vsyncpa [#allocation6], 1
    %888 = vsyncpa [#allocation9], 1
    %s889 = scalar_lea.sflag [#allocation9], 1
    %890 = vsyncpa %s889, 1
    %891 = vsyncpa [#allocation4], 1
    %s892 = scalar_lea.sflag [#allocation4], 1
    %893 = vsyncpa %s892, 1

// kernel: timesformer_layer.8
$region0: #{timesformer_layer.8}
  #allocation0 [shape = 'u32[]', space=smem, size = 0x4, offset = 0x4, fixed_abs, tag = 'smem constant byte address 0x4 - core index']
  #allocation1 [shape = 'u32[144,128]{1,0:T(1,128)}', space=vmem, size = 0x12000, scoped, tag = 'internal scratch']
  #allocation6 [shape = 's32[]', space=sflag, size = 0x4, offset = 0, fixed_abs, tag = 'sflag constant byte address 0x0 - dummy sync flag']
  %s0 = inlined_call_operand.hbm [shape: bf16[3,8,65,8], index: 0, kind: input, shape index: {}]
  %s1 = inlined_call_operand.hbm [shape: bf16[8,65,8], index: 1, kind: output, shape index: {}]
  %s2 = sld [smem:[#allocation0]]
  $region41: #{timesformer_layer.8} parent=0
    _
  %s4 = ssub.s32 1, %s2
  %s5 = scalar_select 0, %s4, %s2
  $region1: #{timesformer_layer.8} parent=0
    #allocation2 [shape = 'u8[110592]{0}', space=vmem, size = 0x1b000, scoped, tag = 'input window, operand 0']
    #allocation3 [shape = 's32[2]{0}', space=sflag, size = 0x8, scoped, tag = 'scoped memory for timesformer_layer.8']
    #allocation4 [shape = 's32[2]{0}', space=sflag, size = 0x8, scoped, tag = 'scoped memory for timesformer_layer.8']
    #allocation5 [shape = 'u8[36864]{0}', space=vmem, size = 0x9000, scoped, tag = 'output window, operand 0']
    %6 = vsyncpa [#allocation3], 0
    %s7 = scalar_lea.sflag [#allocation3], 1
    %8 = vsyncpa %s7, 0
    %9 = vsyncpa [#allocation4], 0
    %s10 = scalar_lea.sflag [#allocation4], 1
    %11 = vsyncpa %s10, 0
    loop: start=0, step=1, limit=10
    $region2: #{timesformer_layer.8} parent=1 // loop_pre_header
      _
    $region3: #{timesformer_layer.8} parent=1 // loop_header
      %s13 = sphi 0, %s17
      %p14 = scmp.ge.s32.totalorder %s13, 10
      %s23 = sphi 0, %s25
      %s26 = sphi 0, %s23
      %s27 = sphi 0, %s26
      %s43 = sphi 0, %s27
      %s49 = sphi 0, %s51
      %s52 = sphi 0, %s49
      %s53 = sphi 0, %s52
      %s69 = sphi 0, %s53
    $region4: #{timesformer_layer.8} parent=1 // loop_header_branch
      %16 = sbr.rel (%p14) target = $region8
    $region5: #{timesformer_layer.8} parent=1 // loop_body
      %s18 = ssub.s32 %s13, 1
      %s19 = ssub.s32 %s13, 2
      %s20 = sadd.s32 %s13, 1
      %s21 = ssub.s32 %s13, %s20
      %p22 = scmp.eq.s32.totalorder %s21, 0
      %s24 = sadd.s32 %s23, 1
      %s25 = scalar_select %p22, %s23, %s24
      %p28 = pneg %p22
      %p29 = scmp.eq.s32.totalorder %s13, 7
      %p30 = por %p28, %p29
      %p31 = scmp.ne.s32.totalorder %s23, %s26
      %p32 = scmp.eq.s32.totalorder %s13, 0
      %p33 = por %p31, %p32
      %p34 = scmp.ne.s32.totalorder %s23, %s26
      %p35 = scmp.eq.s32.totalorder %s18, 7
      %p36 = por %p34, %p35
      %p37 = scmp.ne.s32.totalorder %s26, %s27
      %p38 = scmp.eq.s32.totalorder %s18, 0
      %p39 = por %p37, %p38
      %p40 = scmp.ne.s32.totalorder %s26, %s27
      %p41 = scmp.eq.s32.totalorder %s19, 7
      %p42 = por %p40, %p41
      %p44 = scmp.ne.s32.totalorder %s27, %s43
      %p45 = scmp.eq.s32.totalorder %s19, 0
      %p46 = por %p44, %p45
      %s47 = ssub.s32 %s13, %s20
      %p48 = scmp.eq.s32.totalorder %s47, 0
      %s50 = sadd.s32 %s49, 1
      %s51 = scalar_select %p48, %s49, %s50
      %p54 = pneg %p48
      %p55 = scmp.eq.s32.totalorder %s13, 7
      %p56 = por %p54, %p55
      %p57 = scmp.ne.s32.totalorder %s49, %s52
      %p58 = scmp.eq.s32.totalorder %s13, 0
      %p59 = por %p57, %p58
      %p60 = scmp.ne.s32.totalorder %s49, %s52
      %p61 = scmp.eq.s32.totalorder %s18, 7
      %p62 = por %p60, %p61
      %p63 = scmp.ne.s32.totalorder %s52, %s53
      %p64 = scmp.eq.s32.totalorder %s18, 0
      %p65 = por %p63, %p64
      %p66 = scmp.ne.s32.totalorder %s52, %s53
      %p67 = scmp.eq.s32.totalorder %s19, 7
      %p68 = por %p66, %p67
      %p70 = scmp.ne.s32.totalorder %s53, %s69
      %p71 = scmp.eq.s32.totalorder %s19, 0
      %p72 = por %p70, %p71
      %p73 = scmp.le.s32.totalorder 1, %s13
      %p74 = scmp.lt.s32.totalorder %s13, 9
      %p75 = pnand %p73, %p74
      %p76 = pneg %p75
      // Predicated region
      $region9: #{timesformer_layer.8} parent=5 // pred_check
        _
      $region10: #{timesformer_layer.8} parent=5 // pred_check_branch
        %78 = sbr.rel (%p75) target = $region12
      $region11: #{timesformer_layer.8} parent=5 // pred_region
        %s79 = ssub.s32 %s13, 1
      $region12: #{timesformer_layer.8} parent=5 // pred_fallthru
        _
      %p80 = scmp.lt.s32.totalorder %s13, 8
      // Predicated region
      $region13: #{timesformer_layer.8} parent=5 // pred_check
        %p81 = pneg %p80
      $region14: #{timesformer_layer.8} parent=5 // pred_check_branch
        %83 = sbr.rel (%p81) target = $region16
      $region15: #{timesformer_layer.8} parent=5 // pred_region
        // Predicated region
        $region17: #{timesformer_layer.8} parent=15 // pred_check
          %p84 = pneg %p33
        $region18: #{timesformer_layer.8} parent=15 // pred_check_branch
          %86 = sbr.rel (%p84) target = $region20
        $region19: #{timesformer_layer.8} parent=15 // pred_region
          #allocation7 [shape = 'u32[6]{0}', space=smem, size = 0x18, scoped, tag = 'DMA stride descriptor']
          %s87 = sand.u32 %s23, 1
          %s88 = scalar_lea.sflag [#allocation3], %s87
          %s89 = sand.u32 %s23, 1
          %s90 = smul.addr %s89, 108
          %s91 = scalar_lea.vmem [#allocation2], %s90
          %s93 = ssub.s32 1728, 1728
          %94 = vsyncadd %s88, %s93
          %s95 = smul.addr %s13, 9
          %s96 = smul.addr %s95, 64
          %s97 = scalar_lea.hbm %s0, %s96
          %s99 = sshll.u32 1, 14
          %s100 = sxor.u32 4294967295, %s99
          %s102 = sld [smem:[#allocation0]]
          %s103 = sadd.s32 2, %s102
          %s105 = sshll.u32 7, 26
          %s106 = sxor.u32 4294967295, %s105
          %s107 = sand.u32 0, %s106
          %s108 = sshll.u32 %s103, 26
          %s109 = sor.u32 %s107, %s108
          %s110 = sshll.u32 %s91, 4
          %s111 = int_to_ptr.vmem [resolvable:$true] %s110
          %117 = sst [smem:[#allocation7]] 4608
          %s118 = scalar_lea.smem [#allocation7], 1
          %119 = sst [smem:[%s118]] 576
          %s120 = scalar_lea.smem [#allocation7], 2
          %121 = sst [smem:[%s120]] 9
          %s122 = scalar_lea.smem [#allocation7], 3
          %123 = sst [smem:[%s122]] 64
          %s124 = scalar_lea.smem [#allocation7], 4
          %125 = sst [smem:[%s124]] 64
          %s126 = scalar_lea.smem [#allocation7], 5
          %127 = sst [smem:[%s126]] 4
          %129 = dma.general %s97, 1728, %s111, %s88, [#allocation6], [#allocation7], %s109, 0
        $region20: #{timesformer_layer.8} parent=15 // pred_fallthru
          _
      $region16: #{timesformer_layer.8} parent=5 // pred_fallthru
        _
      %p130 = scmp.le.s32.totalorder 1, %s13
      %p131 = scmp.lt.s32.totalorder %s13, 9
      %p132 = pnand %p130, %p131
      %p133 = pneg %p132
      // Predicated region
      $region21: #{timesformer_layer.8} parent=5 // pred_check
        _
      $region22: #{timesformer_layer.8} parent=5 // pred_check_branch
        %135 = sbr.rel (%p132) target = $region24
      $region23: #{timesformer_layer.8} parent=5 // pred_region
        %s136 = ssub.s32 %s13, 1
        %s137 = sand.u32 %s26, 1
        %s138 = scalar_lea.sflag [#allocation3], %s137
        %s139 = sand.u32 %s26, 1
        %s140 = smul.addr %s139, 108
        %s141 = scalar_lea.vmem [#allocation2], %s140
        // Predicated region
        $region25: #{timesformer_layer.8} parent=23 // pred_check
          %p142 = pneg %p39
        $region26: #{timesformer_layer.8} parent=23 // pred_check_branch
          %144 = sbr.rel (%p142) target = $region28
        $region27: #{timesformer_layer.8} parent=23 // pred_region
          %145 = dma.done %s138, 1728
        $region28: #{timesformer_layer.8} parent=23 // pred_fallthru
          _
        %s146 = sand.u32 %s26, 1
        %s147 = scalar_lea.sflag [#allocation3], %s146
        %s148 = sand.u32 %s26, 1
        %s149 = smul.addr %s148, 108
        %s150 = scalar_lea.vmem [#allocation2], %s149
        %p151 = pneg %p39
        %p152 = pneg %p36
        %p153 = pneg %p65
        %p154 = pneg %p62
        %s155 = sand.u32 %s52, 1
        %s156 = scalar_lea.sflag [#allocation4], %s155
        %s157 = sand.u32 %s52, 1
        %s158 = smul.addr %s157, 36
        %s159 = scalar_lea.vmem [#allocation5], %s158
        %v160 = vld [vmem:[%s141] sm:$0xf]
        %v161 = vld [vmem:[%s141 + $0x4] sm:$0xf]
        %v162 = vld [vmem:[%s141 + $0x8] sm:$0xf]
        %v163 = vld [vmem:[%s141 + $0xc] sm:$0xf]
        %v164 = vld [vmem:[%s141 + $0x10] sm:$0xf]
        %v165 = vld [vmem:[%s141 + $0x14] sm:$0xf]
        %v166 = vld [vmem:[%s141 + $0x18] sm:$0xf]
        %v167 = vld [vmem:[%s141 + $0x1c] sm:$0xf]
        %v168 = vld [vmem:[%s141 + $0x20] sm:$0x1]
        %v169 = vunpack.c.l.bf16 %v160
        %v170 = vunpack.c.l.bf16 %v161
        %v171 = vunpack.c.l.bf16 %v162
        %v172 = vunpack.c.l.bf16 %v163
        %v173 = vunpack.c.l.bf16 %v164
        %v174 = vunpack.c.l.bf16 %v165
        %v175 = vunpack.c.l.bf16 %v166
        %v176 = vunpack.c.l.bf16 %v167
        %v177 = vunpack.c.l.bf16 %v168
        %v178 = vmul.f32 %v169, 0.35355338
        %v179 = vmul.f32 %v170, 0.35355338
        %v180 = vmul.f32 %v171, 0.35355338
        %v181 = vmul.f32 %v172, 0.35355338
        %v182 = vmul.f32 %v173, 0.35355338
        %v183 = vmul.f32 %v174, 0.35355338
        %v184 = vmul.f32 %v175, 0.35355338
        %v185 = vmul.f32 %v176, 0.35355338
        %v186 = vmul.f32 %v177, 0.35355338
        %s187 = scalar_lea.vmem %s141, 36 [#allocation2]
        %v188 = vld [vmem:[%s187] sm:$0xf]
        %v189 = vld [vmem:[%s187 + $0x4] sm:$0xf]
        %v190 = vld [vmem:[%s187 + $0x8] sm:$0xf]
        %v191 = vld [vmem:[%s187 + $0xc] sm:$0xf]
        %v192 = vld [vmem:[%s187 + $0x10] sm:$0xf]
        %v193 = vld [vmem:[%s187 + $0x14] sm:$0xf]
        %v194 = vld [vmem:[%s187 + $0x18] sm:$0xf]
        %v195 = vld [vmem:[%s187 + $0x1c] sm:$0xf]
        %v196 = vld [vmem:[%s187 + $0x20] sm:$0x1]
        %v197 = vunpack.c.l.bf16 %v188
        %v198 = vunpack.c.l.bf16 %v189
        %v199 = vunpack.c.l.bf16 %v190
        %v200 = vunpack.c.l.bf16 %v191
        %v201 = vunpack.c.l.bf16 %v192
        %v202 = vunpack.c.l.bf16 %v193
        %v203 = vunpack.c.l.bf16 %v194
        %v204 = vunpack.c.l.bf16 %v195
        %v205 = vunpack.c.l.bf16 %v196
        %s206 = scalar_lea.vmem %s141, 72 [#allocation2]
        %v207 = vld [vmem:[%s206] sm:$0xf]
        %v208 = vld [vmem:[%s206 + $0x4] sm:$0xf]
        %v209 = vld [vmem:[%s206 + $0x8] sm:$0xf]
        %v210 = vld [vmem:[%s206 + $0xc] sm:$0xf]
        %v211 = vld [vmem:[%s206 + $0x10] sm:$0xf]
        %v212 = vld [vmem:[%s206 + $0x14] sm:$0xf]
        %v213 = vld [vmem:[%s206 + $0x18] sm:$0xf]
        %v214 = vld [vmem:[%s206 + $0x1c] sm:$0xf]
        %v215 = vld [vmem:[%s206 + $0x20] sm:$0x1]
        %v216 = vunpack.c.l.bf16 %v207
        %v217 = vunpack.c.l.bf16 %v208
        %v218 = vunpack.c.l.bf16 %v209
        %v219 = vunpack.c.l.bf16 %v210
        %v220 = vunpack.c.l.bf16 %v211
        %v221 = vunpack.c.l.bf16 %v212
        %v222 = vunpack.c.l.bf16 %v213
        %v223 = vunpack.c.l.bf16 %v214
        %v224 = vunpack.c.l.bf16 %v215
        %vm225 = vcmask 64512
        %v227 = vsel %vm225, %v178, 0
        %v230 = vsel %vm225, %v197, 0
        %v233 = vsel %vm225, %v198, 0
        %v236 = vsel %vm225, %v199, 0
        %v239 = vsel %vm225, %v200, 0
        %v242 = vsel %vm225, %v201, 0
        %v245 = vsel %vm225, %v202, 0
        %v248 = vsel %vm225, %v203, 0
        %v251 = vsel %vm225, %v204, 0
        %v254 = vsel %vm225, %v205, 0
        %256 = vmatprep.subr.mxu0 0.0
        %257 = vmatpush1.xpose.msra.mxu0 %v230
        %258 = vmatprep.subr.mxu0 0.0
        %259 = vmatpush1.xpose.msra.mxu0 %v233
        %260 = vmatprep.subr.mxu0 0.0
        %261 = vmatpush1.xpose.msra.mxu0 %v236
        %262 = vmatprep.subr.mxu0 0.0
        %263 = vmatpush1.xpose.msra.mxu0 %v239
        %264 = vmatprep.subr.mxu0 0.0
        %265 = vmatpush1.xpose.msra.mxu0 %v242
        %266 = vmatprep.subr.mxu0 0.0
        %267 = vmatpush1.xpose.msra.mxu0 %v245
        %268 = vmatprep.subr.mxu0 0.0
        %269 = vmatpush1.xpose.msra.mxu0 %v248
        %270 = vmatprep.subr.mxu0 0.0
        %271 = vmatpush1.xpose.msra.mxu0 %v251
        %272 = vmatprep.subr.mxu0 0.0
        %273 = vmatpush1.xpose.msra.mxu0 %v254
        %274 = vmatprep.subr.mxu0 0.0
        %275 = vmatpush1.xpose.msra.mxu0 0.0
        %276 = vmatprep.subr.mxu0 0.0
        %277 = vmatpush1.xpose.msra.mxu0 0.0
        %278 = vmatprep.subr.mxu0 0.0
        %279 = vmatpush1.xpose.msra.mxu0 0.0
        %280 = vmatprep.subr.mxu0 0.0
        %281 = vmatpush1.xpose.msra.mxu0 0.0
        %282 = vmatprep.subr.mxu0 0.0
        %283 = vmatpush1.xpose.msra.mxu0 0.0
        %284 = vmatprep.subr.mxu0 0.0
        %285 = vmatpush1.xpose.msra.mxu0 0.0
        %286 = vmatprep.subr.mxu0 0.0
        %287 = vmatpush1.xpose.msra.mxu0 0.0
        %288 = vmatprep.subr.mxu0 0.0
        %289 = vmatpush1.xpose.msra.mxu0 0.0
        %290 = vmatprep.subr.mxu0 0.0
        %291 = vmatpush1.xpose.msra.mxu0 0.0
        %292 = vmatprep.subr.mxu0 0.0
        %293 = vmatpush1.xpose.msra.mxu0 0.0
        %294 = vmatprep.subr.mxu0 0.0
        %295 = vmatpush1.xpose.msra.mxu0 0.0
        %296 = vmatprep.subr.mxu0 0.0
        %297 = vmatpush1.xpose.msra.mxu0 0.0
        %298 = vmatprep.subr.mxu0 0.0
        %299 = vmatpush1.xpose.msra.mxu0 0.0
        %300 = vmatprep.subr.mxu0 0.0
        %301 = vmatpush1.xpose.msra.mxu0 0.0
        %302 = vmatprep.subr.mxu0 0.0
        %303 = vmatpush1.xpose.msra.mxu0 0.0
        %304 = vmatprep.subr.mxu0 0.0
        %305 = vmatpush1.xpose.msra.mxu0 0.0
        %306 = vmatprep.subr.mxu0 0.0
        %307 = vmatpush1.xpose.msra.mxu0 0.0
        %308 = vmatprep.subr.mxu0 0.0
        %309 = vmatpush1.xpose.msra.mxu0 0.0
        %310 = vmatprep.subr.mxu0 0.0
        %311 = vmatpush1.xpose.msra.mxu0 0.0
        %312 = vmatprep.subr.mxu0 0.0
        %313 = vmatpush1.xpose.msra.mxu0 0.0
        %314 = vmatprep.subr.mxu0 0.0
        %315 = vmatpush1.xpose.msra.mxu0 0.0
        %316 = vmatprep.subr.mxu0 0.0
        %317 = vmatpush1.xpose.msra.mxu0 0.0
        %318 = vmatprep.subr.mxu0 0.0
        %319 = vmatpush1.xpose.msra.mxu0 0.0
        %320 = vmatprep.mubr.f32.mxu0 0.0
        %321 = vmatmul.mubr.f32.gmra.mrb[0].mxu0 %v227
        %v322 = vpop.f32.mrb[0].mxu0
        %v323 = vadd.f32 0.0, %v322
        %v324 = vpop.f32.mrb[0].mxu0
        %325 = vdwg.mxu0
        %vm326 = vcmask 524288
        %v327 = vsel %vm326, %v323, -inf
        %328 = vmax.xlane.f32.xlu0 %v327
        %v329 = vpop.xlane.xlu0 %328
        %v330 = vsub.f32 %v323, %v329
        %v331 = vmul.f32 %v330, 1.442695
        %v332 = vpow.pop %v331
        %v333 = vsel %vm326, %v332, 0.0
        %334 = vadd.xlane.f32.xlu0 %v333
        %v335 = vpop.xlane.xlu0 %334
        %v336 = vrcp.pop %v335
        %v337 = vmul.f32 %v332, %v336
        %vm338 = vcmask 531456
        %v340 = vsel %vm338, %v337, 0
        %vm342 = vcmask 1040384
        %v344 = vsel %vm342, %v224, 0
        %346 = vmatprep.subr.mxu0 0.0
        %347 = vmatpush1.msra.mxu0 %v216
        %348 = vmatprep.subr.mxu0 0.0
        %349 = vmatpush1.msra.mxu0 %v217
        %350 = vmatprep.subr.mxu0 0.0
        %351 = vmatpush1.msra.mxu0 %v218
        %352 = vmatprep.subr.mxu0 0.0
        %353 = vmatpush1.msra.mxu0 %v219
        %354 = vmatprep.subr.mxu0 0.0
        %355 = vmatpush1.msra.mxu0 %v220
        %356 = vmatprep.subr.mxu0 0.0
        %357 = vmatpush1.msra.mxu0 %v221
        %358 = vmatprep.subr.mxu0 0.0
        %359 = vmatpush1.msra.mxu0 %v222
        %360 = vmatprep.subr.mxu0 0.0
        %361 = vmatpush1.msra.mxu0 %v223
        %362 = vmatprep.subr.mxu0 0.0
        %363 = vmatpush1.msra.mxu0 %v344
        %364 = vmatprep.subr.mxu0 0.0
        %365 = vmatpush1.msra.mxu0 0.0
        %366 = vmatprep.subr.mxu0 0.0
        %367 = vmatpush1.msra.mxu0 0.0
        %368 = vmatprep.subr.mxu0 0.0
        %369 = vmatpush1.msra.mxu0 0.0
        %370 = vmatprep.subr.mxu0 0.0
        %371 = vmatpush1.msra.mxu0 0.0
        %372 = vmatprep.subr.mxu0 0.0
        %373 = vmatpush1.msra.mxu0 0.0
        %374 = vmatprep.subr.mxu0 0.0
        %375 = vmatpush1.msra.mxu0 0.0
        %376 = vmatprep.subr.mxu0 0.0
        %377 = vmatpush1.msra.mxu0 0.0
        %378 = vmatprep.subr.mxu0 0.0
        %379 = vmatpush1.msra.mxu0 0.0
        %380 = vmatprep.subr.mxu0 0.0
        %381 = vmatpush1.msra.mxu0 0.0
        %382 = vmatprep.subr.mxu0 0.0
        %383 = vmatpush1.msra.mxu0 0.0
        %384 = vmatprep.subr.mxu0 0.0
        %385 = vmatpush1.msra.mxu0 0.0
        %386 = vmatprep.subr.mxu0 0.0
        %387 = vmatpush1.msra.mxu0 0.0
        %388 = vmatprep.subr.mxu0 0.0
        %389 = vmatpush1.msra.mxu0 0.0
        %390 = vmatprep.subr.mxu0 0.0
        %391 = vmatpush1.msra.mxu0 0.0
        %392 = vmatprep.subr.mxu0 0.0
        %393 = vmatpush1.msra.mxu0 0.0
        %394 = vmatprep.subr.mxu0 0.0
        %395 = vmatpush1.msra.mxu0 0.0
        %396 = vmatprep.subr.mxu0 0.0
        %397 = vmatpush1.msra.mxu0 0.0
        %398 = vmatprep.subr.mxu0 0.0
        %399 = vmatpush1.msra.mxu0 0.0
        %400 = vmatprep.subr.mxu0 0.0
        %401 = vmatpush1.msra.mxu0 0.0
        %402 = vmatprep.subr.mxu0 0.0
        %403 = vmatpush1.msra.mxu0 0.0
        %404 = vmatprep.subr.mxu0 0.0
        %405 = vmatpush1.msra.mxu0 0.0
        %406 = vmatprep.subr.mxu0 0.0
        %407 = vmatpush1.msra.mxu0 0.0
        %408 = vmatprep.subr.mxu0 0.0
        %409 = vmatpush1.msra.mxu0 0.0
        %410 = vmatprep.mubr.f32.mxu0 0.0
        %411 = vmatmul.mubr.f32.gmra.mrb[0].mxu0 %v340
        %v412 = vpop.f32.mrb[0].mxu0
        %v413 = vadd.f32 0.0, %v412
        %v414 = vpop.f32.mrb[0].mxu0
        %415 = vdwg.mxu0
        %vm424 = vcmask 1046528
        %v425 = vrot.slane %v178, 1
        %v426 = vrot.slane %v179, 1
        %v427 = vsel %vm424, %v425, %v426
        %v428 = vrot.slane %v180, 1
        %v429 = vsel %vm424, %v426, %v428
        %v430 = vrot.slane %v181, 1
        %v431 = vsel %vm424, %v428, %v430
        %v432 = vrot.slane %v182, 1
        %v433 = vsel %vm424, %v430, %v432
        %v434 = vrot.slane %v183, 1
        %v435 = vsel %vm424, %v432, %v434
        %v436 = vrot.slane %v184, 1
        %v437 = vsel %vm424, %v434, %v436
        %v438 = vrot.slane %v185, 1
        %v439 = vsel %vm424, %v436, %v438
        %v440 = vrot.slane %v186, 1
        %v441 = vsel %vm424, %v438, %v440
        %v450 = vrot.slane %v197, 1
        %v451 = vrot.slane %v198, 1
        %v452 = vsel %vm424, %v450, %v451
        %v453 = vrot.slane %v199, 1
        %v454 = vsel %vm424, %v451, %v453
        %v455 = vrot.slane %v200, 1
        %v456 = vsel %vm424, %v453, %v455
        %v457 = vrot.slane %v201, 1
        %v458 = vsel %vm424, %v455, %v457
        %v459 = vrot.slane %v202, 1
        %v460 = vsel %vm424, %v457, %v459
        %v461 = vrot.slane %v203, 1
        %v462 = vsel %vm424, %v459, %v461
        %v463 = vrot.slane %v204, 1
        %v464 = vsel %vm424, %v461, %v463
        %v465 = vrot.slane %v205, 1
        %v466 = vsel %vm424, %v463, %v465
        %v483 = vrot.slane %v216, 1
        %v484 = vrot.slane %v217, 1
        %v485 = vsel %vm424, %v483, %v484
        %v486 = vrot.slane %v218, 1
        %v487 = vsel %vm424, %v484, %v486
        %v488 = vrot.slane %v219, 1
        %v489 = vsel %vm424, %v486, %v488
        %v490 = vrot.slane %v220, 1
        %v491 = vsel %vm424, %v488, %v490
        %v492 = vrot.slane %v221, 1
        %v493 = vsel %vm424, %v490, %v492
        %v494 = vrot.slane %v222, 1
        %v495 = vsel %vm424, %v492, %v494
        %v496 = vrot.slane %v223, 1
        %v497 = vsel %vm424, %v494, %v496
        %v498 = vrot.slane %v224, 1
        %v499 = vsel %vm424, %v496, %v498
        %v508 = vcombine.low %v427, %v435
        %v509 = vcombine.high %v427, %v435
        %v511 = vunpack.c.l.s4 1983009808
        %v512 = vunpack.c.0.s8 %v511
        %v513 = vlaneseq
        %v514 = vshrl.u32 %v513, 7
        %v515 = vsub.s32 %v512, %v514
        %v516 = vrot.slane %v508, %v515
        %v518 = vunpack.c.l.s4 1983009808
        %v519 = vunpack.c.0.s8 %v518
        %v520 = vlaneseq
        %v521 = vshrl.u32 %v520, 7
        %v522 = vsub.s32 %v519, %v521
        %v523 = vrot.slane %v509, %v522
        %v524 = vcombine.low %v431, %v439
        %v525 = vcombine.high %v431, %v439
        %v527 = vunpack.c.l.s4 1983009808
        %v528 = vunpack.c.0.s8 %v527
        %v529 = vlaneseq
        %v530 = vshrl.u32 %v529, 7
        %v531 = vsub.s32 %v528, %v530
        %v532 = vrot.slane %v524, %v531
        %v534 = vunpack.c.l.s4 1983009808
        %v535 = vunpack.c.0.s8 %v534
        %v536 = vlaneseq
        %v537 = vshrl.u32 %v536, 7
        %v538 = vsub.s32 %v535, %v537
        %v539 = vrot.slane %v525, %v538
        %v540 = vcombine.low %v516, %v532
        %v541 = vcombine.high %v516, %v532
        %v543 = vunpack.c.l.s4 1934713408
        %v544 = vunpack.c.0.s8 %v543
        %v545 = vlaneseq
        %v546 = vshrl.u32 %v545, 7
        %v547 = vsub.s32 %v544, %v546
        %v548 = vrot.slane %v540, %v547
        %v550 = vunpack.c.l.s4 1934713408
        %v551 = vunpack.c.0.s8 %v550
        %v552 = vlaneseq
        %v553 = vshrl.u32 %v552, 7
        %v554 = vsub.s32 %v551, %v553
        %v555 = vrot.slane %v541, %v554
        %v556 = vcombine.low %v523, %v539
        %v557 = vcombine.high %v523, %v539
        %v559 = vunpack.c.l.s4 1934713408
        %v560 = vunpack.c.0.s8 %v559
        %v561 = vlaneseq
        %v562 = vshrl.u32 %v561, 7
        %v563 = vsub.s32 %v560, %v562
        %v564 = vrot.slane %v556, %v563
        %v566 = vunpack.c.l.s4 1934713408
        %v567 = vunpack.c.0.s8 %v566
        %v568 = vlaneseq
        %v569 = vshrl.u32 %v568, 7
        %v570 = vsub.s32 %v567, %v569
        %v571 = vrot.slane %v557, %v570
        %v572 = vcombine.high %v548, 0.0
        %v573 = vcombine.high %v555, 0.0
        %v574 = vcombine.high %v564, 0.0
        %v575 = vcombine.high %v571, 0.0
        %v576 = vcombine.low %v429, %v437
        %v577 = vcombine.high %v429, %v437
        %v579 = vunpack.c.l.s4 1983009808
        %v580 = vunpack.c.0.s8 %v579
        %v581 = vlaneseq
        %v582 = vshrl.u32 %v581, 7
        %v583 = vsub.s32 %v580, %v582
        %v584 = vrot.slane %v576, %v583
        %v586 = vunpack.c.l.s4 1983009808
        %v587 = vunpack.c.0.s8 %v586
        %v588 = vlaneseq
        %v589 = vshrl.u32 %v588, 7
        %v590 = vsub.s32 %v587, %v589
        %v591 = vrot.slane %v577, %v590
        %v592 = vcombine.low %v433, %v441
        %v593 = vcombine.high %v433, %v441
        %v595 = vunpack.c.l.s4 1983009808
        %v596 = vunpack.c.0.s8 %v595
        %v597 = vlaneseq
        %v598 = vshrl.u32 %v597, 7
        %v599 = vsub.s32 %v596, %v598
        %v600 = vrot.slane %v592, %v599
        %v602 = vunpack.c.l.s4 1983009808
        %v603 = vunpack.c.0.s8 %v602
        %v604 = vlaneseq
        %v605 = vshrl.u32 %v604, 7
        %v606 = vsub.s32 %v603, %v605
        %v607 = vrot.slane %v593, %v606
        %v608 = vcombine.low %v584, %v600
        %v609 = vcombine.high %v584, %v600
        %v611 = vunpack.c.l.s4 1934713408
        %v612 = vunpack.c.0.s8 %v611
        %v613 = vlaneseq
        %v614 = vshrl.u32 %v613, 7
        %v615 = vsub.s32 %v612, %v614
        %v616 = vrot.slane %v608, %v615
        %v618 = vunpack.c.l.s4 1934713408
        %v619 = vunpack.c.0.s8 %v618
        %v620 = vlaneseq
        %v621 = vshrl.u32 %v620, 7
        %v622 = vsub.s32 %v619, %v621
        %v623 = vrot.slane %v609, %v622
        %v624 = vcombine.low %v591, %v607
        %v625 = vcombine.high %v591, %v607
        %v627 = vunpack.c.l.s4 1934713408
        %v628 = vunpack.c.0.s8 %v627
        %v629 = vlaneseq
        %v630 = vshrl.u32 %v629, 7
        %v631 = vsub.s32 %v628, %v630
        %v632 = vrot.slane %v624, %v631
        %v634 = vunpack.c.l.s4 1934713408
        %v635 = vunpack.c.0.s8 %v634
        %v636 = vlaneseq
        %v637 = vshrl.u32 %v636, 7
        %v638 = vsub.s32 %v635, %v637
        %v639 = vrot.slane %v625, %v638
        %v640 = vcombine.high %v616, 0.0
        %v641 = vcombine.high %v623, 0.0
        %v642 = vcombine.high %v632, 0.0
        %v643 = vcombine.high %v639, 0.0
        %v644 = vcombine.low %v452, %v460
        %v645 = vcombine.high %v452, %v460
        %v647 = vunpack.c.l.s4 1983009808
        %v648 = vunpack.c.0.s8 %v647
        %v649 = vlaneseq
        %v650 = vshrl.u32 %v649, 7
        %v651 = vsub.s32 %v648, %v650
        %v652 = vrot.slane %v644, %v651
        %v654 = vunpack.c.l.s4 1983009808
        %v655 = vunpack.c.0.s8 %v654
        %v656 = vlaneseq
        %v657 = vshrl.u32 %v656, 7
        %v658 = vsub.s32 %v655, %v657
        %v659 = vrot.slane %v645, %v658
        %v660 = vcombine.low %v456, %v464
        %v661 = vcombine.high %v456, %v464
        %v663 = vunpack.c.l.s4 1983009808
        %v664 = vunpack.c.0.s8 %v663
        %v665 = vlaneseq
        %v666 = vshrl.u32 %v665, 7
        %v667 = vsub.s32 %v664, %v666
        %v668 = vrot.slane %v660, %v667
        %v670 = vunpack.c.l.s4 1983009808
        %v671 = vunpack.c.0.s8 %v670
        %v672 = vlaneseq
        %v673 = vshrl.u32 %v672, 7
        %v674 = vsub.s32 %v671, %v673
        %v675 = vrot.slane %v661, %v674
        %v676 = vcombine.low %v652, %v668
        %v677 = vcombine.high %v652, %v668
        %v679 = vunpack.c.l.s4 1934713408
        %v680 = vunpack.c.0.s8 %v679
        %v681 = vlaneseq
        %v682 = vshrl.u32 %v681, 7
        %v683 = vsub.s32 %v680, %v682
        %v684 = vrot.slane %v676, %v683
        %v686 = vunpack.c.l.s4 1934713408
        %v687 = vunpack.c.0.s8 %v686
        %v688 = vlaneseq
        %v689 = vshrl.u32 %v688, 7
        %v690 = vsub.s32 %v687, %v689
        %v691 = vrot.slane %v677, %v690
        %v692 = vcombine.low %v659, %v675
        %v693 = vcombine.high %v659, %v675
        %v695 = vunpack.c.l.s4 1934713408
        %v696 = vunpack.c.0.s8 %v695
        %v697 = vlaneseq
        %v698 = vshrl.u32 %v697, 7
        %v699 = vsub.s32 %v696, %v698
        %v700 = vrot.slane %v692, %v699
        %v702 = vunpack.c.l.s4 1934713408
        %v703 = vunpack.c.0.s8 %v702
        %v704 = vlaneseq
        %v705 = vshrl.u32 %v704, 7
        %v706 = vsub.s32 %v703, %v705
        %v707 = vrot.slane %v693, %v706
        %v708 = vcombine.high %v684, 0.0
        %v709 = vcombine.high %v691, 0.0
        %v710 = vcombine.high %v700, 0.0
        %v711 = vcombine.high %v707, 0.0
        %v712 = vcombine.low %v454, %v462
        %v713 = vcombine.high %v454, %v462
        %v715 = vunpack.c.l.s4 1983009808
        %v716 = vunpack.c.0.s8 %v715
        %v717 = vlaneseq
        %v718 = vshrl.u32 %v717, 7
        %v719 = vsub.s32 %v716, %v718
        %v720 = vrot.slane %v712, %v719
        %v722 = vunpack.c.l.s4 1983009808
        %v723 = vunpack.c.0.s8 %v722
        %v724 = vlaneseq
        %v725 = vshrl.u32 %v724, 7
        %v726 = vsub.s32 %v723, %v725
        %v727 = vrot.slane %v713, %v726
        %v728 = vcombine.low %v458, %v466
        %v729 = vcombine.high %v458, %v466
        %v731 = vunpack.c.l.s4 1983009808
        %v732 = vunpack.c.0.s8 %v731
        %v733 = vlaneseq
        %v734 = vshrl.u32 %v733, 7
        %v735 = vsub.s32 %v732, %v734
        %v736 = vrot.slane %v728, %v735
        %v738 = vunpack.c.l.s4 1983009808
        %v739 = vunpack.c.0.s8 %v738
        %v740 = vlaneseq
        %v741 = vshrl.u32 %v740, 7
        %v742 = vsub.s32 %v739, %v741
        %v743 = vrot.slane %v729, %v742
        %v744 = vcombine.low %v720, %v736
        %v745 = vcombine.high %v720, %v736
        %v747 = vunpack.c.l.s4 1934713408
        %v748 = vunpack.c.0.s8 %v747
        %v749 = vlaneseq
        %v750 = vshrl.u32 %v749, 7
        %v751 = vsub.s32 %v748, %v750
        %v752 = vrot.slane %v744, %v751
        %v754 = vunpack.c.l.s4 1934713408
        %v755 = vunpack.c.0.s8 %v754
        %v756 = vlaneseq
        %v757 = vshrl.u32 %v756, 7
        %v758 = vsub.s32 %v755, %v757
        %v759 = vrot.slane %v745, %v758
        %v760 = vcombine.low %v727, %v743
        %v761 = vcombine.high %v727, %v743
        %v763 = vunpack.c.l.s4 1934713408
        %v764 = vunpack.c.0.s8 %v763
        %v765 = vlaneseq
        %v766 = vshrl.u32 %v765, 7
        %v767 = vsub.s32 %v764, %v766
        %v768 = vrot.slane %v760, %v767
        %v770 = vunpack.c.l.s4 1934713408
        %v771 = vunpack.c.0.s8 %v770
        %v772 = vlaneseq
        %v773 = vshrl.u32 %v772, 7
        %v774 = vsub.s32 %v771, %v773
        %v775 = vrot.slane %v761, %v774
        %v776 = vcombine.high %v752, 0.0
        %v777 = vcombine.high %v759, 0.0
        %v778 = vcombine.high %v768, 0.0
        %v779 = vcombine.high %v775, 0.0
        %v780 = vcombine.low %v485, %v493
        %v781 = vcombine.high %v485, %v493
        %v783 = vunpack.c.l.s4 1983009808
        %v784 = vunpack.c.0.s8 %v783
        %v785 = vlaneseq
        %v786 = vshrl.u32 %v785, 7
        %v787 = vsub.s32 %v784, %v786
        %v788 = vrot.slane %v780, %v787
        %v790 = vunpack.c.l.s4 1983009808
        %v791 = vunpack.c.0.s8 %v790
        %v792 = vlaneseq
        %v793 = vshrl.u32 %v792, 7
        %v794 = vsub.s32 %v791, %v793
        %v795 = vrot.slane %v781, %v794
        %v796 = vcombine.low %v489, %v497
        %v797 = vcombine.high %v489, %v497
        %v799 = vunpack.c.l.s4 1983009808
        %v800 = vunpack.c.0.s8 %v799
        %v801 = vlaneseq
        %v802 = vshrl.u32 %v801, 7
        %v803 = vsub.s32 %v800, %v802
        %v804 = vrot.slane %v796, %v803
        %v806 = vunpack.c.l.s4 1983009808
        %v807 = vunpack.c.0.s8 %v806
        %v808 = vlaneseq
        %v809 = vshrl.u32 %v808, 7
        %v810 = vsub.s32 %v807, %v809
        %v811 = vrot.slane %v797, %v810
        %v812 = vcombine.low %v788, %v804
        %v813 = vcombine.high %v788, %v804
        %v815 = vunpack.c.l.s4 1934713408
        %v816 = vunpack.c.0.s8 %v815
        %v817 = vlaneseq
        %v818 = vshrl.u32 %v817, 7
        %v819 = vsub.s32 %v816, %v818
        %v820 = vrot.slane %v812, %v819
        %v822 = vunpack.c.l.s4 1934713408
        %v823 = vunpack.c.0.s8 %v822
        %v824 = vlaneseq
        %v825 = vshrl.u32 %v824, 7
        %v826 = vsub.s32 %v823, %v825
        %v827 = vrot.slane %v813, %v826
        %v828 = vcombine.low %v795, %v811
        %v829 = vcombine.high %v795, %v811
        %v831 = vunpack.c.l.s4 1934713408
        %v832 = vunpack.c.0.s8 %v831
        %v833 = vlaneseq
        %v834 = vshrl.u32 %v833, 7
        %v835 = vsub.s32 %v832, %v834
        %v836 = vrot.slane %v828, %v835
        %v838 = vunpack.c.l.s4 1934713408
        %v839 = vunpack.c.0.s8 %v838
        %v840 = vlaneseq
        %v841 = vshrl.u32 %v840, 7
        %v842 = vsub.s32 %v839, %v841
        %v843 = vrot.slane %v829, %v842
        %v844 = vcombine.high %v820, 0.0
        %v845 = vcombine.high %v827, 0.0
        %v846 = vcombine.high %v836, 0.0
        %v847 = vcombine.high %v843, 0.0
        %v848 = vcombine.low %v487, %v495
        %v849 = vcombine.high %v487, %v495
        %v851 = vunpack.c.l.s4 1983009808
        %v852 = vunpack.c.0.s8 %v851
        %v853 = vlaneseq
        %v854 = vshrl.u32 %v853, 7
        %v855 = vsub.s32 %v852, %v854
        %v856 = vrot.slane %v848, %v855
        %v858 = vunpack.c.l.s4 1983009808
        %v859 = vunpack.c.0.s8 %v858
        %v860 = vlaneseq
        %v861 = vshrl.u32 %v860, 7
        %v862 = vsub.s32 %v859, %v861
        %v863 = vrot.slane %v849, %v862
        %v864 = vcombine.low %v491, %v499
        %v865 = vcombine.high %v491, %v499
        %v867 = vunpack.c.l.s4 1983009808
        %v868 = vunpack.c.0.s8 %v867
        %v869 = vlaneseq
        %v870 = vshrl.u32 %v869, 7
        %v871 = vsub.s32 %v868, %v870
        %v872 = vrot.slane %v864, %v871
        %v874 = vunpack.c.l.s4 1983009808
        %v875 = vunpack.c.0.s8 %v874
        %v876 = vlaneseq
        %v877 = vshrl.u32 %v876, 7
        %v878 = vsub.s32 %v875, %v877
        %v879 = vrot.slane %v865, %v878
        %v880 = vcombine.low %v856, %v872
        %v881 = vcombine.high %v856, %v872
        %v883 = vunpack.c.l.s4 1934713408
        %v884 = vunpack.c.0.s8 %v883
        %v885 = vlaneseq
        %v886 = vshrl.u32 %v885, 7
        %v887 = vsub.s32 %v884, %v886
        %v888 = vrot.slane %v880, %v887
        %v890 = vunpack.c.l.s4 1934713408
        %v891 = vunpack.c.0.s8 %v890
        %v892 = vlaneseq
        %v893 = vshrl.u32 %v892, 7
        %v894 = vsub.s32 %v891, %v893
        %v895 = vrot.slane %v881, %v894
        %v896 = vcombine.low %v863, %v879
        %v897 = vcombine.high %v863, %v879
        %v899 = vunpack.c.l.s4 1934713408
        %v900 = vunpack.c.0.s8 %v899
        %v901 = vlaneseq
        %v902 = vshrl.u32 %v901, 7
        %v903 = vsub.s32 %v900, %v902
        %v904 = vrot.slane %v896, %v903
        %v906 = vunpack.c.l.s4 1934713408
        %v907 = vunpack.c.0.s8 %v906
        %v908 = vlaneseq
        %v909 = vshrl.u32 %v908, 7
        %v910 = vsub.s32 %v907, %v909
        %v911 = vrot.slane %v897, %v910
        %v912 = vcombine.high %v888, 0.0
        %v913 = vcombine.high %v895, 0.0
        %v914 = vcombine.high %v904, 0.0
        %v915 = vcombine.high %v911, 0.0
        %v917 = vsel %vm225, %v548, 0
        %v920 = vsel %vm225, %v684, 0
        %922 = vmatprep.subr.mxu0 0.0
        %923 = vmatpush1.xpose.msra.mxu0 %v920
        %924 = vmatprep.subr.mxu0 0.0
        %925 = vmatpush1.xpose.msra.mxu0 0.0
        %926 = vmatprep.subr.mxu0 0.0
        %927 = vmatpush1.xpose.msra.mxu0 0.0
        %928 = vmatprep.subr.mxu0 0.0
        %929 = vmatpush1.xpose.msra.mxu0 0.0
        %930 = vmatprep.subr.mxu0 0.0
        %931 = vmatpush1.xpose.msra.mxu0 0.0
        %932 = vmatprep.subr.mxu0 0.0
        %933 = vmatpush1.xpose.msra.mxu0 0.0
        %934 = vmatprep.subr.mxu0 0.0
        %935 = vmatpush1.xpose.msra.mxu0 0.0
        %936 = vmatprep.subr.mxu0 0.0
        %937 = vmatpush1.xpose.msra.mxu0 0.0
        %938 = vmatprep.subr.mxu0 0.0
        %939 = vmatpush1.xpose.msra.mxu0 0.0
        %940 = vmatprep.subr.mxu0 0.0
        %941 = vmatpush1.xpose.msra.mxu0 0.0
        %942 = vmatprep.subr.mxu0 0.0
        %943 = vmatpush1.xpose.msra.mxu0 0.0
        %944 = vmatprep.subr.mxu0 0.0
        %945 = vmatpush1.xpose.msra.mxu0 0.0
        %946 = vmatprep.subr.mxu0 0.0
        %947 = vmatpush1.xpose.msra.mxu0 0.0
        %948 = vmatprep.subr.mxu0 0.0
        %949 = vmatpush1.xpose.msra.mxu0 0.0
        %950 = vmatprep.subr.mxu0 0.0
        %951 = vmatpush1.xpose.msra.mxu0 0.0
        %952 = vmatprep.subr.mxu0 0.0
        %953 = vmatpush1.xpose.msra.mxu0 0.0
        %954 = vmatprep.subr.mxu0 0.0
        %955 = vmatpush1.xpose.msra.mxu0 0.0
        %956 = vmatprep.subr.mxu0 0.0
        %957 = vmatpush1.xpose.msra.mxu0 0.0
        %958 = vmatprep.subr.mxu0 0.0
        %959 = vmatpush1.xpose.msra.mxu0 0.0
        %960 = vmatprep.subr.mxu0 0.0
        %961 = vmatpush1.xpose.msra.mxu0 0.0
        %962 = vmatprep.subr.mxu0 0.0
        %963 = vmatpush1.xpose.msra.mxu0 0.0
        %964 = vmatprep.subr.mxu0 0.0
        %965 = vmatpush1.xpose.msra.mxu0 0.0
        %966 = vmatprep.subr.mxu0 0.0
        %967 = vmatpush1.xpose.msra.mxu0 0.0
        %968 = vmatprep.subr.mxu0 0.0
        %969 = vmatpush1.xpose.msra.mxu0 0.0
        %970 = vmatprep.subr.mxu0 0.0
        %971 = vmatpush1.xpose.msra.mxu0 0.0
        %972 = vmatprep.subr.mxu0 0.0
        %973 = vmatpush1.xpose.msra.mxu0 0.0
        %974 = vmatprep.subr.mxu0 0.0
        %975 = vmatpush1.xpose.msra.mxu0 0.0
        %976 = vmatprep.subr.mxu0 0.0
        %977 = vmatpush1.xpose.msra.mxu0 0.0
        %978 = vmatprep.subr.mxu0 0.0
        %979 = vmatpush1.xpose.msra.mxu0 0.0
        %980 = vmatprep.subr.mxu0 0.0
        %981 = vmatpush1.xpose.msra.mxu0 0.0
        %982 = vmatprep.subr.mxu0 0.0
        %983 = vmatpush1.xpose.msra.mxu0 0.0
        %984 = vmatprep.subr.mxu0 0.0
        %985 = vmatpush1.xpose.msra.mxu0 0.0
        %986 = vmatprep.mubr.f32.mxu0 0.0
        %987 = vmatmul.mubr.f32.gmra.mrb[0].mxu0 %v917
        %v988 = vpop.f32.mrb[0].mxu0
        %v989 = vadd.f32 0.0, %v988
        %v990 = vpop.f32.mrb[0].mxu0
        %991 = vdwg.mxu0
        %v993 = vsel %vm225, %v572, 0
        %v996 = vsel %vm225, %v708, 0
        %998 = vmatprep.subr.mxu0 0.0
        %999 = vmatpush1.xpose.msra.mxu0 %v996
        %1000 = vmatprep.subr.mxu0 0.0
        %1001 = vmatpush1.xpose.msra.mxu0 0.0
        %1002 = vmatprep.subr.mxu0 0.0
        %1003 = vmatpush1.xpose.msra.mxu0 0.0
        %1004 = vmatprep.subr.mxu0 0.0
        %1005 = vmatpush1.xpose.msra.mxu0 0.0
        %1006 = vmatprep.subr.mxu0 0.0
        %1007 = vmatpush1.xpose.msra.mxu0 0.0
        %1008 = vmatprep.subr.mxu0 0.0
        %1009 = vmatpush1.xpose.msra.mxu0 0.0
        %1010 = vmatprep.subr.mxu0 0.0
        %1011 = vmatpush1.xpose.msra.mxu0 0.0
        %1012 = vmatprep.subr.mxu0 0.0
        %1013 = vmatpush1.xpose.msra.mxu0 0.0
        %1014 = vmatprep.subr.mxu0 0.0
        %1015 = vmatpush1.xpose.msra.mxu0 0.0
        %1016 = vmatprep.subr.mxu0 0.0
        %1017 = vmatpush1.xpose.msra.mxu0 0.0
        %1018 = vmatprep.subr.mxu0 0.0
        %1019 = vmatpush1.xpose.msra.mxu0 0.0
        %1020 = vmatprep.subr.mxu0 0.0
        %1021 = vmatpush1.xpose.msra.mxu0 0.0
        %1022 = vmatprep.subr.mxu0 0.0
        %1023 = vmatpush1.xpose.msra.mxu0 0.0
        %1024 = vmatprep.subr.mxu0 0.0
        %1025 = vmatpush1.xpose.msra.mxu0 0.0
        %1026 = vmatprep.subr.mxu0 0.0
        %1027 = vmatpush1.xpose.msra.mxu0 0.0
        %1028 = vmatprep.subr.mxu0 0.0
        %1029 = vmatpush1.xpose.msra.mxu0 0.0
        %1030 = vmatprep.subr.mxu0 0.0
        %1031 = vmatpush1.xpose.msra.mxu0 0.0
        %1032 = vmatprep.subr.mxu0 0.0
        %1033 = vmatpush1.xpose.msra.mxu0 0.0
        %1034 = vmatprep.subr.mxu0 0.0
        %1035 = vmatpush1.xpose.msra.mxu0 0.0
        %1036 = vmatprep.subr.mxu0 0.0
        %1037 = vmatpush1.xpose.msra.mxu0 0.0
        %1038 = vmatprep.subr.mxu0 0.0
        %1039 = vmatpush1.xpose.msra.mxu0 0.0
        %1040 = vmatprep.subr.mxu0 0.0
        %1041 = vmatpush1.xpose.msra.mxu0 0.0
        %1042 = vmatprep.subr.mxu0 0.0
        %1043 = vmatpush1.xpose.msra.mxu0 0.0
        %1044 = vmatprep.subr.mxu0 0.0
        %1045 = vmatpush1.xpose.msra.mxu0 0.0
        %1046 = vmatprep.subr.mxu0 0.0
        %1047 = vmatpush1.xpose.msra.mxu0 0.0
        %1048 = vmatprep.subr.mxu0 0.0
        %1049 = vmatpush1.xpose.msra.mxu0 0.0
        %1050 = vmatprep.subr.mxu0 0.0
        %1051 = vmatpush1.xpose.msra.mxu0 0.0
        %1052 = vmatprep.subr.mxu0 0.0
        %1053 = vmatpush1.xpose.msra.mxu0 0.0
        %1054 = vmatprep.subr.mxu0 0.0
        %1055 = vmatpush1.xpose.msra.mxu0 0.0
        %1056 = vmatprep.subr.mxu0 0.0
        %1057 = vmatpush1.xpose.msra.mxu0 0.0
        %1058 = vmatprep.subr.mxu0 0.0
        %1059 = vmatpush1.xpose.msra.mxu0 0.0
        %1060 = vmatprep.subr.mxu0 0.0
        %1061 = vmatpush1.xpose.msra.mxu0 0.0
        %1062 = vmatprep.mubr.f32.mxu0 0.0
        %1063 = vmatmul.mubr.f32.gmra.mrb[0].mxu0 %v993
        %v1064 = vpop.f32.mrb[0].mxu0
        %v1065 = vadd.f32 0.0, %v1064
        %v1066 = vpop.f32.mrb[0].mxu0
        %1067 = vdwg.mxu0
        %v1069 = vsel %vm225, %v555, 0
        %v1072 = vsel %vm225, %v691, 0
        %1074 = vmatprep.subr.mxu0 0.0
        %1075 = vmatpush1.xpose.msra.mxu0 %v1072
        %1076 = vmatprep.subr.mxu0 0.0
        %1077 = vmatpush1.xpose.msra.mxu0 0.0
        %1078 = vmatprep.subr.mxu0 0.0
        %1079 = vmatpush1.xpose.msra.mxu0 0.0
        %1080 = vmatprep.subr.mxu0 0.0
        %1081 = vmatpush1.xpose.msra.mxu0 0.0
        %1082 = vmatprep.subr.mxu0 0.0
        %1083 = vmatpush1.xpose.msra.mxu0 0.0
        %1084 = vmatprep.subr.mxu0 0.0
        %1085 = vmatpush1.xpose.msra.mxu0 0.0
        %1086 = vmatprep.subr.mxu0 0.0
        %1087 = vmatpush1.xpose.msra.mxu0 0.0
        %1088 = vmatprep.subr.mxu0 0.0
        %1089 = vmatpush1.xpose.msra.mxu0 0.0
        %1090 = vmatprep.subr.mxu0 0.0
        %1091 = vmatpush1.xpose.msra.mxu0 0.0
        %1092 = vmatprep.subr.mxu0 0.0
        %1093 = vmatpush1.xpose.msra.mxu0 0.0
        %1094 = vmatprep.subr.mxu0 0.0
        %1095 = vmatpush1.xpose.msra.mxu0 0.0
        %1096 = vmatprep.subr.mxu0 0.0
        %1097 = vmatpush1.xpose.msra.mxu0 0.0
        %1098 = vmatprep.subr.mxu0 0.0
        %1099 = vmatpush1.xpose.msra.mxu0 0.0
        %1100 = vmatprep.subr.mxu0 0.0
        %1101 = vmatpush1.xpose.msra.mxu0 0.0
        %1102 = vmatprep.subr.mxu0 0.0
        %1103 = vmatpush1.xpose.msra.mxu0 0.0
        %1104 = vmatprep.subr.mxu0 0.0
        %1105 = vmatpush1.xpose.msra.mxu0 0.0
        %1106 = vmatprep.subr.mxu0 0.0
        %1107 = vmatpush1.xpose.msra.mxu0 0.0
        %1108 = vmatprep.subr.mxu0 0.0
        %1109 = vmatpush1.xpose.msra.mxu0 0.0
        %1110 = vmatprep.subr.mxu0 0.0
        %1111 = vmatpush1.xpose.msra.mxu0 0.0
        %1112 = vmatprep.subr.mxu0 0.0
        %1113 = vmatpush1.xpose.msra.mxu0 0.0
        %1114 = vmatprep.subr.mxu0 0.0
        %1115 = vmatpush1.xpose.msra.mxu0 0.0
        %1116 = vmatprep.subr.mxu0 0.0
        %1117 = vmatpush1.xpose.msra.mxu0 0.0
        %1118 = vmatprep.subr.mxu0 0.0
        %1119 = vmatpush1.xpose.msra.mxu0 0.0
        %1120 = vmatprep.subr.mxu0 0.0
        %1121 = vmatpush1.xpose.msra.mxu0 0.0
        %1122 = vmatprep.subr.mxu0 0.0
        %1123 = vmatpush1.xpose.msra.mxu0 0.0
        %1124 = vmatprep.subr.mxu0 0.0
        %1125 = vmatpush1.xpose.msra.mxu0 0.0
        %1126 = vmatprep.subr.mxu0 0.0
        %1127 = vmatpush1.xpose.msra.mxu0 0.0
        %1128 = vmatprep.subr.mxu0 0.0
        %1129 = vmatpush1.xpose.msra.mxu0 0.0
        %1130 = vmatprep.subr.mxu0 0.0
        %1131 = vmatpush1.xpose.msra.mxu0 0.0
        %1132 = vmatprep.subr.mxu0 0.0
        %1133 = vmatpush1.xpose.msra.mxu0 0.0
        %1134 = vmatprep.subr.mxu0 0.0
        %1135 = vmatpush1.xpose.msra.mxu0 0.0
        %1136 = vmatprep.subr.mxu0 0.0
        %1137 = vmatpush1.xpose.msra.mxu0 0.0
        %1138 = vmatprep.mubr.f32.mxu0 0.0
        %1139 = vmatmul.mubr.f32.gmra.mrb[0].mxu0 %v1069
        %v1140 = vpop.f32.mrb[0].mxu0
        %v1141 = vadd.f32 0.0, %v1140
        %v1142 = vpop.f32.mrb[0].mxu0
        %1143 = vdwg.mxu0
        %v1145 = vsel %vm225, %v573, 0
        %v1148 = vsel %vm225, %v709, 0
        %1150 = vmatprep.subr.mxu0 0.0
        %1151 = vmatpush1.xpose.msra.mxu0 %v1148
        %1152 = vmatprep.subr.mxu0 0.0
        %1153 = vmatpush1.xpose.msra.mxu0 0.0
        %1154 = vmatprep.subr.mxu0 0.0
        %1155 = vmatpush1.xpose.msra.mxu0 0.0
        %1156 = vmatprep.subr.mxu0 0.0
        %1157 = vmatpush1.xpose.msra.mxu0 0.0
        %1158 = vmatprep.subr.mxu0 0.0
        %1159 = vmatpush1.xpose.msra.mxu0 0.0
        %1160 = vmatprep.subr.mxu0 0.0
        %1161 = vmatpush1.xpose.msra.mxu0 0.0
        %1162 = vmatprep.subr.mxu0 0.0
        %1163 = vmatpush1.xpose.msra.mxu0 0.0
        %1164 = vmatprep.subr.mxu0 0.0
        %1165 = vmatpush1.xpose.msra.mxu0 0.0
        %1166 = vmatprep.subr.mxu0 0.0
        %1167 = vmatpush1.xpose.msra.mxu0 0.0
        %1168 = vmatprep.subr.mxu0 0.0
        %1169 = vmatpush1.xpose.msra.mxu0 0.0
        %1170 = vmatprep.subr.mxu0 0.0
        %1171 = vmatpush1.xpose.msra.mxu0 0.0
        %1172 = vmatprep.subr.mxu0 0.0
        %1173 = vmatpush1.xpose.msra.mxu0 0.0
        %1174 = vmatprep.subr.mxu0 0.0
        %1175 = vmatpush1.xpose.msra.mxu0 0.0
        %1176 = vmatprep.subr.mxu0 0.0
        %1177 = vmatpush1.xpose.msra.mxu0 0.0
        %1178 = vmatprep.subr.mxu0 0.0
        %1179 = vmatpush1.xpose.msra.mxu0 0.0
        %1180 = vmatprep.subr.mxu0 0.0
        %1181 = vmatpush1.xpose.msra.mxu0 0.0
        %1182 = vmatprep.subr.mxu0 0.0
        %1183 = vmatpush1.xpose.msra.mxu0 0.0
        %1184 = vmatprep.subr.mxu0 0.0
        %1185 = vmatpush1.xpose.msra.mxu0 0.0
        %1186 = vmatprep.subr.mxu0 0.0
        %1187 = vmatpush1.xpose.msra.mxu0 0.0
        %1188 = vmatprep.subr.mxu0 0.0
        %1189 = vmatpush1.xpose.msra.mxu0 0.0
        %1190 = vmatprep.subr.mxu0 0.0
        %1191 = vmatpush1.xpose.msra.mxu0 0.0
        %1192 = vmatprep.subr.mxu0 0.0
        %1193 = vmatpush1.xpose.msra.mxu0 0.0
        %1194 = vmatprep.subr.mxu0 0.0
        %1195 = vmatpush1.xpose.msra.mxu0 0.0
        %1196 = vmatprep.subr.mxu0 0.0
        %1197 = vmatpush1.xpose.msra.mxu0 0.0
        %1198 = vmatprep.subr.mxu0 0.0
        %1199 = vmatpush1.xpose.msra.mxu0 0.0
        %1200 = vmatprep.subr.mxu0 0.0
        %1201 = vmatpush1.xpose.msra.mxu0 0.0
        %1202 = vmatprep.subr.mxu0 0.0
        %1203 = vmatpush1.xpose.msra.mxu0 0.0
        %1204 = vmatprep.subr.mxu0 0.0
        %1205 = vmatpush1.xpose.msra.mxu0 0.0
        %1206 = vmatprep.subr.mxu0 0.0
        %1207 = vmatpush1.xpose.msra.mxu0 0.0
        %1208 = vmatprep.subr.mxu0 0.0
        %1209 = vmatpush1.xpose.msra.mxu0 0.0
        %1210 = vmatprep.subr.mxu0 0.0
        %1211 = vmatpush1.xpose.msra.mxu0 0.0
        %1212 = vmatprep.subr.mxu0 0.0
        %1213 = vmatpush1.xpose.msra.mxu0 0.0
        %1214 = vmatprep.mubr.f32.mxu0 0.0
        %1215 = vmatmul.mubr.f32.gmra.mrb[0].mxu0 %v1145
        %v1216 = vpop.f32.mrb[0].mxu0
        %v1217 = vadd.f32 0.0, %v1216
        %v1218 = vpop.f32.mrb[0].mxu0
        %1219 = vdwg.mxu0
        %v1221 = vsel %vm225, %v564, 0
        %v1224 = vsel %vm225, %v700, 0
        %1226 = vmatprep.subr.mxu0 0.0
        %1227 = vmatpush1.xpose.msra.mxu0 %v1224
        %1228 = vmatprep.subr.mxu0 0.0
        %1229 = vmatpush1.xpose.msra.mxu0 0.0
        %1230 = vmatprep.subr.mxu0 0.0
        %1231 = vmatpush1.xpose.msra.mxu0 0.0
        %1232 = vmatprep.subr.mxu0 0.0
        %1233 = vmatpush1.xpose.msra.mxu0 0.0
        %1234 = vmatprep.subr.mxu0 0.0
        %1235 = vmatpush1.xpose.msra.mxu0 0.0
        %1236 = vmatprep.subr.mxu0 0.0
        %1237 = vmatpush1.xpose.msra.mxu0 0.0
        %1238 = vmatprep.subr.mxu0 0.0
        %1239 = vmatpush1.xpose.msra.mxu0 0.0
        %1240 = vmatprep.subr.mxu0 0.0
        %1241 = vmatpush1.xpose.msra.mxu0 0.0
        %1242 = vmatprep.subr.mxu0 0.0
        %1243 = vmatpush1.xpose.msra.mxu0 0.0
        %1244 = vmatprep.subr.mxu0 0.0
        %1245 = vmatpush1.xpose.msra.mxu0 0.0
        %1246 = vmatprep.subr.mxu0 0.0
        %1247 = vmatpush1.xpose.msra.mxu0 0.0
        %1248 = vmatprep.subr.mxu0 0.0
        %1249 = vmatpush1.xpose.msra.mxu0 0.0
        %1250 = vmatprep.subr.mxu0 0.0
        %1251 = vmatpush1.xpose.msra.mxu0 0.0
        %1252 = vmatprep.subr.mxu0 0.0
        %1253 = vmatpush1.xpose.msra.mxu0 0.0
        %1254 = vmatprep.subr.mxu0 0.0
        %1255 = vmatpush1.xpose.msra.mxu0 0.0
        %1256 = vmatprep.subr.mxu0 0.0
        %1257 = vmatpush1.xpose.msra.mxu0 0.0
        %1258 = vmatprep.subr.mxu0 0.0
        %1259 = vmatpush1.xpose.msra.mxu0 0.0
        %1260 = vmatprep.subr.mxu0 0.0
        %1261 = vmatpush1.xpose.msra.mxu0 0.0
        %1262 = vmatprep.subr.mxu0 0.0
        %1263 = vmatpush1.xpose.msra.mxu0 0.0
        %1264 = vmatprep.subr.mxu0 0.0
        %1265 = vmatpush1.xpose.msra.mxu0 0.0
        %1266 = vmatprep.subr.mxu0 0.0
        %1267 = vmatpush1.xpose.msra.mxu0 0.0
        %1268 = vmatprep.subr.mxu0 0.0
        %1269 = vmatpush1.xpose.msra.mxu0 0.0
        %1270 = vmatprep.subr.mxu0 0.0
        %1271 = vmatpush1.xpose.msra.mxu0 0.0
        %1272 = vmatprep.subr.mxu0 0.0
        %1273 = vmatpush1.xpose.msra.mxu0 0.0
        %1274 = vmatprep.subr.mxu0 0.0
        %1275 = vmatpush1.xpose.msra.mxu0 0.0
        %1276 = vmatprep.subr.mxu0 0.0
        %1277 = vmatpush1.xpose.msra.mxu0 0.0
        %1278 = vmatprep.subr.mxu0 0.0
        %1279 = vmatpush1.xpose.msra.mxu0 0.0
        %1280 = vmatprep.subr.mxu0 0.0
        %1281 = vmatpush1.xpose.msra.mxu0 0.0
        %1282 = vmatprep.subr.mxu0 0.0
        %1283 = vmatpush1.xpose.msra.mxu0 0.0
        %1284 = vmatprep.subr.mxu0 0.0
        %1285 = vmatpush1.xpose.msra.mxu0 0.0
        %1286 = vmatprep.subr.mxu0 0.0
        %1287 = vmatpush1.xpose.msra.mxu0 0.0
        %1288 = vmatprep.subr.mxu0 0.0
        %1289 = vmatpush1.xpose.msra.mxu0 0.0
        %1290 = vmatprep.mubr.f32.mxu0 0.0
        %1291 = vmatmul.mubr.f32.gmra.mrb[0].mxu0 %v1221
        %v1292 = vpop.f32.mrb[0].mxu0
        %v1293 = vadd.f32 0.0, %v1292
        %v1294 = vpop.f32.mrb[0].mxu0
        %1295 = vdwg.mxu0
        %v1297 = vsel %vm225, %v574, 0
        %v1300 = vsel %vm225, %v710, 0
        %1302 = vmatprep.subr.mxu0 0.0
        %1303 = vmatpush1.xpose.msra.mxu0 %v1300
        %1304 = vmatprep.subr.mxu0 0.0
        %1305 = vmatpush1.xpose.msra.mxu0 0.0
        %1306 = vmatprep.subr.mxu0 0.0
        %1307 = vmatpush1.xpose.msra.mxu0 0.0
        %1308 = vmatprep.subr.mxu0 0.0
        %1309 = vmatpush1.xpose.msra.mxu0 0.0
        %1310 = vmatprep.subr.mxu0 0.0
        %1311 = vmatpush1.xpose.msra.mxu0 0.0
        %1312 = vmatprep.subr.mxu0 0.0
        %1313 = vmatpush1.xpose.msra.mxu0 0.0
        %1314 = vmatprep.subr.mxu0 0.0
        %1315 = vmatpush1.xpose.msra.mxu0 0.0
        %1316 = vmatprep.subr.mxu0 0.0
        %1317 = vmatpush1.xpose.msra.mxu0 0.0
        %1318 = vmatprep.subr.mxu0 0.0
        %1319 = vmatpush1.xpose.msra.mxu0 0.0
        %1320 = vmatprep.subr.mxu0 0.0
        %1321 = vmatpush1.xpose.msra.mxu0 0.0
        %1322 = vmatprep.subr.mxu0 0.0
        %1323 = vmatpush1.xpose.msra.mxu0 0.0
        %1324 = vmatprep.subr.mxu0 0.0
        %1325 = vmatpush1.xpose.msra.mxu0 0.0
        %1326 = vmatprep.subr.mxu0 0.0
        %1327 = vmatpush1.xpose.msra.mxu0 0.0
        %1328 = vmatprep.subr.mxu0 0.0
        %1329 = vmatpush1.xpose.msra.mxu0 0.0
        %1330 = vmatprep.subr.mxu0 0.0
        %1331 = vmatpush1.xpose.msra.mxu0 0.0
        %1332 = vmatprep.subr.mxu0 0.0
        %1333 = vmatpush1.xpose.msra.mxu0 0.0
        %1334 = vmatprep.subr.mxu0 0.0
        %1335 = vmatpush1.xpose.msra.mxu0 0.0
        %1336 = vmatprep.subr.mxu0 0.0
        %1337 = vmatpush1.xpose.msra.mxu0 0.0
        %1338 = vmatprep.subr.mxu0 0.0
        %1339 = vmatpush1.xpose.msra.mxu0 0.0
        %1340 = vmatprep.subr.mxu0 0.0
        %1341 = vmatpush1.xpose.msra.mxu0 0.0
        %1342 = vmatprep.subr.mxu0 0.0
        %1343 = vmatpush1.xpose.msra.mxu0 0.0
        %1344 = vmatprep.subr.mxu0 0.0
        %1345 = vmatpush1.xpose.msra.mxu0 0.0
        %1346 = vmatprep.subr.mxu0 0.0
        %1347 = vmatpush1.xpose.msra.mxu0 0.0
        %1348 = vmatprep.subr.mxu0 0.0
        %1349 = vmatpush1.xpose.msra.mxu0 0.0
        %1350 = vmatprep.subr.mxu0 0.0
        %1351 = vmatpush1.xpose.msra.mxu0 0.0
        %1352 = vmatprep.subr.mxu0 0.0
        %1353 = vmatpush1.xpose.msra.mxu0 0.0
        %1354 = vmatprep.subr.mxu0 0.0
        %1355 = vmatpush1.xpose.msra.mxu0 0.0
        %1356 = vmatprep.subr.mxu0 0.0
        %1357 = vmatpush1.xpose.msra.mxu0 0.0
        %1358 = vmatprep.subr.mxu0 0.0
        %1359 = vmatpush1.xpose.msra.mxu0 0.0
        %1360 = vmatprep.subr.mxu0 0.0
        %1361 = vmatpush1.xpose.msra.mxu0 0.0
        %1362 = vmatprep.subr.mxu0 0.0
        %1363 = vmatpush1.xpose.msra.mxu0 0.0
        %1364 = vmatprep.subr.mxu0 0.0
        %1365 = vmatpush1.xpose.msra.mxu0 0.0
        %1366 = vmatprep.mubr.f32.mxu0 0.0
        %1367 = vmatmul.mubr.f32.gmra.mrb[0].mxu0 %v1297
        %v1368 = vpop.f32.mrb[0].mxu0
        %v1369 = vadd.f32 0.0, %v1368
        %v1370 = vpop.f32.mrb[0].mxu0
        %1371 = vdwg.mxu0
        %v1373 = vsel %vm225, %v571, 0
        %v1376 = vsel %vm225, %v707, 0
        %1378 = vmatprep.subr.mxu0 0.0
        %1379 = vmatpush1.xpose.msra.mxu0 %v1376
        %1380 = vmatprep.subr.mxu0 0.0
        %1381 = vmatpush1.xpose.msra.mxu0 0.0
        %1382 = vmatprep.subr.mxu0 0.0
        %1383 = vmatpush1.xpose.msra.mxu0 0.0
        %1384 = vmatprep.subr.mxu0 0.0
        %1385 = vmatpush1.xpose.msra.mxu0 0.0
        %1386 = vmatprep.subr.mxu0 0.0
        %1387 = vmatpush1.xpose.msra.mxu0 0.0
        %1388 = vmatprep.subr.mxu0 0.0
        %1389 = vmatpush1.xpose.msra.mxu0 0.0
        %1390 = vmatprep.subr.mxu0 0.0
        %1391 = vmatpush1.xpose.msra.mxu0 0.0
        %1392 = vmatprep.subr.mxu0 0.0
        %1393 = vmatpush1.xpose.msra.mxu0 0.0
        %1394 = vmatprep.subr.mxu0 0.0
        %1395 = vmatpush1.xpose.msra.mxu0 0.0
        %1396 = vmatprep.subr.mxu0 0.0
        %1397 = vmatpush1.xpose.msra.mxu0 0.0
        %1398 = vmatprep.subr.mxu0 0.0
        %1399 = vmatpush1.xpose.msra.mxu0 0.0
        %1400 = vmatprep.subr.mxu0 0.0
        %1401 = vmatpush1.xpose.msra.mxu0 0.0
        %1402 = vmatprep.subr.mxu0 0.0
        %1403 = vmatpush1.xpose.msra.mxu0 0.0
        %1404 = vmatprep.subr.mxu0 0.0
        %1405 = vmatpush1.xpose.msra.mxu0 0.0
        %1406 = vmatprep.subr.mxu0 0.0
        %1407 = vmatpush1.xpose.msra.mxu0 0.0
        %1408 = vmatprep.subr.mxu0 0.0
        %1409 = vmatpush1.xpose.msra.mxu0 0.0
        %1410 = vmatprep.subr.mxu0 0.0
        %1411 = vmatpush1.xpose.msra.mxu0 0.0
        %1412 = vmatprep.subr.mxu0 0.0
        %1413 = vmatpush1.xpose.msra.mxu0 0.0
        %1414 = vmatprep.subr.mxu0 0.0
        %1415 = vmatpush1.xpose.msra.mxu0 0.0
        %1416 = vmatprep.subr.mxu0 0.0
        %1417 = vmatpush1.xpose.msra.mxu0 0.0
        %1418 = vmatprep.subr.mxu0 0.0
        %1419 = vmatpush1.xpose.msra.mxu0 0.0
        %1420 = vmatprep.subr.mxu0 0.0
        %1421 = vmatpush1.xpose.msra.mxu0 0.0
        %1422 = vmatprep.subr.mxu0 0.0
        %1423 = vmatpush1.xpose.msra.mxu0 0.0
        %1424 = vmatprep.subr.mxu0 0.0
        %1425 = vmatpush1.xpose.msra.mxu0 0.0
        %1426 = vmatprep.subr.mxu0 0.0
        %1427 = vmatpush1.xpose.msra.mxu0 0.0
        %1428 = vmatprep.subr.mxu0 0.0
        %1429 = vmatpush1.xpose.msra.mxu0 0.0
        %1430 = vmatprep.subr.mxu0 0.0
        %1431 = vmatpush1.xpose.msra.mxu0 0.0
        %1432 = vmatprep.subr.mxu0 0.0
        %1433 = vmatpush1.xpose.msra.mxu0 0.0
        %1434 = vmatprep.subr.mxu0 0.0
        %1435 = vmatpush1.xpose.msra.mxu0 0.0
        %1436 = vmatprep.subr.mxu0 0.0
        %1437 = vmatpush1.xpose.msra.mxu0 0.0
        %1438 = vmatprep.subr.mxu0 0.0
        %1439 = vmatpush1.xpose.msra.mxu0 0.0
        %1440 = vmatprep.subr.mxu0 0.0
        %1441 = vmatpush1.xpose.msra.mxu0 0.0
        %1442 = vmatprep.mubr.f32.mxu0 0.0
        %1443 = vmatmul.mubr.f32.gmra.mrb[0].mxu0 %v1373
        %v1444 = vpop.f32.mrb[0].mxu0
        %v1445 = vadd.f32 0.0, %v1444
        %v1446 = vpop.f32.mrb[0].mxu0
        %1447 = vdwg.mxu0
        %v1449 = vsel %vm225, %v575, 0
        %v1452 = vsel %vm225, %v711, 0
        %1454 = vmatprep.subr.mxu0 0.0
        %1455 = vmatpush1.xpose.msra.mxu0 %v1452
        %1456 = vmatprep.subr.mxu0 0.0
        %1457 = vmatpush1.xpose.msra.mxu0 0.0
        %1458 = vmatprep.subr.mxu0 0.0
        %1459 = vmatpush1.xpose.msra.mxu0 0.0
        %1460 = vmatprep.subr.mxu0 0.0
        %1461 = vmatpush1.xpose.msra.mxu0 0.0
        %1462 = vmatprep.subr.mxu0 0.0
        %1463 = vmatpush1.xpose.msra.mxu0 0.0
        %1464 = vmatprep.subr.mxu0 0.0
        %1465 = vmatpush1.xpose.msra.mxu0 0.0
        %1466 = vmatprep.subr.mxu0 0.0
        %1467 = vmatpush1.xpose.msra.mxu0 0.0
        %1468 = vmatprep.subr.mxu0 0.0
        %1469 = vmatpush1.xpose.msra.mxu0 0.0
        %1470 = vmatprep.subr.mxu0 0.0
        %1471 = vmatpush1.xpose.msra.mxu0 0.0
        %1472 = vmatprep.subr.mxu0 0.0
        %1473 = vmatpush1.xpose.msra.mxu0 0.0
        %1474 = vmatprep.subr.mxu0 0.0
        %1475 = vmatpush1.xpose.msra.mxu0 0.0
        %1476 = vmatprep.subr.mxu0 0.0
        %1477 = vmatpush1.xpose.msra.mxu0 0.0
        %1478 = vmatprep.subr.mxu0 0.0
        %1479 = vmatpush1.xpose.msra.mxu0 0.0
        %1480 = vmatprep.subr.mxu0 0.0
        %1481 = vmatpush1.xpose.msra.mxu0 0.0
        %1482 = vmatprep.subr.mxu0 0.0
        %1483 = vmatpush1.xpose.msra.mxu0 0.0
        %1484 = vmatprep.subr.mxu0 0.0
        %1485 = vmatpush1.xpose.msra.mxu0 0.0
        %1486 = vmatprep.subr.mxu0 0.0
        %1487 = vmatpush1.xpose.msra.mxu0 0.0
        %1488 = vmatprep.subr.mxu0 0.0
        %1489 = vmatpush1.xpose.msra.mxu0 0.0
        %1490 = vmatprep.subr.mxu0 0.0
        %1491 = vmatpush1.xpose.msra.mxu0 0.0
        %1492 = vmatprep.subr.mxu0 0.0
        %1493 = vmatpush1.xpose.msra.mxu0 0.0
        %1494 = vmatprep.subr.mxu0 0.0
        %1495 = vmatpush1.xpose.msra.mxu0 0.0
        %1496 = vmatprep.subr.mxu0 0.0
        %1497 = vmatpush1.xpose.msra.mxu0 0.0
        %1498 = vmatprep.subr.mxu0 0.0
        %1499 = vmatpush1.xpose.msra.mxu0 0.0
        %1500 = vmatprep.subr.mxu0 0.0
        %1501 = vmatpush1.xpose.msra.mxu0 0.0
        %1502 = vmatprep.subr.mxu0 0.0
        %1503 = vmatpush1.xpose.msra.mxu0 0.0
        %1504 = vmatprep.subr.mxu0 0.0
        %1505 = vmatpush1.xpose.msra.mxu0 0.0
        %1506 = vmatprep.subr.mxu0 0.0
        %1507 = vmatpush1.xpose.msra.mxu0 0.0
        %1508 = vmatprep.subr.mxu0 0.0
        %1509 = vmatpush1.xpose.msra.mxu0 0.0
        %1510 = vmatprep.subr.mxu0 0.0
        %1511 = vmatpush1.xpose.msra.mxu0 0.0
        %1512 = vmatprep.subr.mxu0 0.0
        %1513 = vmatpush1.xpose.msra.mxu0 0.0
        %1514 = vmatprep.subr.mxu0 0.0
        %1515 = vmatpush1.xpose.msra.mxu0 0.0
        %1516 = vmatprep.subr.mxu0 0.0
        %1517 = vmatpush1.xpose.msra.mxu0 0.0
        %1518 = vmatprep.mubr.f32.mxu0 0.0
        %1519 = vmatmul.mubr.f32.gmra.mrb[0].mxu0 %v1449
        %v1520 = vpop.f32.mrb[0].mxu0
        %v1521 = vadd.f32 0.0, %v1520
        %v1522 = vpop.f32.mrb[0].mxu0
        %1523 = vdwg.mxu0
        %v1525 = vsel %vm225, %v616, 0
        %v1528 = vsel %vm225, %v752, 0
        %1530 = vmatprep.subr.mxu0 0.0
        %1531 = vmatpush1.xpose.msra.mxu0 %v1528
        %1532 = vmatprep.subr.mxu0 0.0
        %1533 = vmatpush1.xpose.msra.mxu0 0.0
        %1534 = vmatprep.subr.mxu0 0.0
        %1535 = vmatpush1.xpose.msra.mxu0 0.0
        %1536 = vmatprep.subr.mxu0 0.0
        %1537 = vmatpush1.xpose.msra.mxu0 0.0
        %1538 = vmatprep.subr.mxu0 0.0
        %1539 = vmatpush1.xpose.msra.mxu0 0.0
        %1540 = vmatprep.subr.mxu0 0.0
        %1541 = vmatpush1.xpose.msra.mxu0 0.0
        %1542 = vmatprep.subr.mxu0 0.0
        %1543 = vmatpush1.xpose.msra.mxu0 0.0
        %1544 = vmatprep.subr.mxu0 0.0
        %1545 = vmatpush1.xpose.msra.mxu0 0.0
        %1546 = vmatprep.subr.mxu0 0.0
        %1547 = vmatpush1.xpose.msra.mxu0 0.0
        %1548 = vmatprep.subr.mxu0 0.0
        %1549 = vmatpush1.xpose.msra.mxu0 0.0
        %1550 = vmatprep.subr.mxu0 0.0
        %1551 = vmatpush1.xpose.msra.mxu0 0.0
        %1552 = vmatprep.subr.mxu0 0.0
        %1553 = vmatpush1.xpose.msra.mxu0 0.0
        %1554 = vmatprep.subr.mxu0 0.0
        %1555 = vmatpush1.xpose.msra.mxu0 0.0
        %1556 = vmatprep.subr.mxu0 0.0
        %1557 = vmatpush1.xpose.msra.mxu0 0.0
        %1558 = vmatprep.subr.mxu0 0.0
        %1559 = vmatpush1.xpose.msra.mxu0 0.0
        %1560 = vmatprep.subr.mxu0 0.0
        %1561 = vmatpush1.xpose.msra.mxu0 0.0
        %1562 = vmatprep.subr.mxu0 0.0
        %1563 = vmatpush1.xpose.msra.mxu0 0.0
        %1564 = vmatprep.subr.mxu0 0.0
        %1565 = vmatpush1.xpose.msra.mxu0 0.0
        %1566 = vmatprep.subr.mxu0 0.0
        %1567 = vmatpush1.xpose.msra.mxu0 0.0
        %1568 = vmatprep.subr.mxu0 0.0
        %1569 = vmatpush1.xpose.msra.mxu0 0.0
        %1570 = vmatprep.subr.mxu0 0.0
        %1571 = vmatpush1.xpose.msra.mxu0 0.0
        %1572 = vmatprep.subr.mxu0 0.0
        %1573 = vmatpush1.xpose.msra.mxu0 0.0
        %1574 = vmatprep.subr.mxu0 0.0
        %1575 = vmatpush1.xpose.msra.mxu0 0.0
        %1576 = vmatprep.subr.mxu0 0.0
        %1577 = vmatpush1.xpose.msra.mxu0 0.0
        %1578 = vmatprep.subr.mxu0 0.0
        %1579 = vmatpush1.xpose.msra.mxu0 0.0
        %1580 = vmatprep.subr.mxu0 0.0
        %1581 = vmatpush1.xpose.msra.mxu0 0.0
        %1582 = vmatprep.subr.mxu0 0.0
        %1583 = vmatpush1.xpose.msra.mxu0 0.0
        %1584 = vmatprep.subr.mxu0 0.0
        %1585 = vmatpush1.xpose.msra.mxu0 0.0
        %1586 = vmatprep.subr.mxu0 0.0
        %1587 = vmatpush1.xpose.msra.mxu0 0.0
        %1588 = vmatprep.subr.mxu0 0.0
        %1589 = vmatpush1.xpose.msra.mxu0 0.0
        %1590 = vmatprep.subr.mxu0 0.0
        %1591 = vmatpush1.xpose.msra.mxu0 0.0
        %1592 = vmatprep.subr.mxu0 0.0
        %1593 = vmatpush1.xpose.msra.mxu0 0.0
        %1594 = vmatprep.mubr.f32.mxu0 0.0
        %1595 = vmatmul.mubr.f32.gmra.mrb[0].mxu0 %v1525
        %v1596 = vpop.f32.mrb[0].mxu0
        %v1597 = vadd.f32 0.0, %v1596
        %v1598 = vpop.f32.mrb[0].mxu0
        %1599 = vdwg.mxu0
        %v1601 = vsel %vm225, %v640, 0
        %v1604 = vsel %vm225, %v776, 0
        %1606 = vmatprep.subr.mxu0 0.0
        %1607 = vmatpush1.xpose.msra.mxu0 %v1604
        %1608 = vmatprep.subr.mxu0 0.0
        %1609 = vmatpush1.xpose.msra.mxu0 0.0
        %1610 = vmatprep.subr.mxu0 0.0
        %1611 = vmatpush1.xpose.msra.mxu0 0.0
        %1612 = vmatprep.subr.mxu0 0.0
        %1613 = vmatpush1.xpose.msra.mxu0 0.0
        %1614 = vmatprep.subr.mxu0 0.0
        %1615 = vmatpush1.xpose.msra.mxu0 0.0
        %1616 = vmatprep.subr.mxu0 0.0
        %1617 = vmatpush1.xpose.msra.mxu0 0.0
        %1618 = vmatprep.subr.mxu0 0.0
        %1619 = vmatpush1.xpose.msra.mxu0 0.0
        %1620 = vmatprep.subr.mxu0 0.0
        %1621 = vmatpush1.xpose.msra.mxu0 0.0
        %1622 = vmatprep.subr.mxu0 0.0
        %1623 = vmatpush1.xpose.msra.mxu0 0.0
        %1624 = vmatprep.subr.mxu0 0.0
        %1625 = vmatpush1.xpose.msra.mxu0 0.0
        %1626 = vmatprep.subr.mxu0 0.0
        %1627 = vmatpush1.xpose.msra.mxu0 0.0
        %1628 = vmatprep.subr.mxu0 0.0
        %1629 = vmatpush1.xpose.msra.mxu0 0.0
        %1630 = vmatprep.subr.mxu0 0.0
        %1631 = vmatpush1.xpose.msra.mxu0 0.0
        %1632 = vmatprep.subr.mxu0 0.0
        %1633 = vmatpush1.xpose.msra.mxu0 0.0
        %1634 = vmatprep.subr.mxu0 0.0
        %1635 = vmatpush1.xpose.msra.mxu0 0.0
        %1636 = vmatprep.subr.mxu0 0.0
        %1637 = vmatpush1.xpose.msra.mxu0 0.0
        %1638 = vmatprep.subr.mxu0 0.0
        %1639 = vmatpush1.xpose.msra.mxu0 0.0
        %1640 = vmatprep.subr.mxu0 0.0
        %1641 = vmatpush1.xpose.msra.mxu0 0.0
        %1642 = vmatprep.subr.mxu0 0.0
        %1643 = vmatpush1.xpose.msra.mxu0 0.0
        %1644 = vmatprep.subr.mxu0 0.0
        %1645 = vmatpush1.xpose.msra.mxu0 0.0
        %1646 = vmatprep.subr.mxu0 0.0
        %1647 = vmatpush1.xpose.msra.mxu0 0.0
        %1648 = vmatprep.subr.mxu0 0.0
        %1649 = vmatpush1.xpose.msra.mxu0 0.0
        %1650 = vmatprep.subr.mxu0 0.0
        %1651 = vmatpush1.xpose.msra.mxu0 0.0
        %1652 = vmatprep.subr.mxu0 0.0
        %1653 = vmatpush1.xpose.msra.mxu0 0.0
        %1654 = vmatprep.subr.mxu0 0.0
        %1655 = vmatpush1.xpose.msra.mxu0 0.0
        %1656 = vmatprep.subr.mxu0 0.0
        %1657 = vmatpush1.xpose.msra.mxu0 0.0
        %1658 = vmatprep.subr.mxu0 0.0
        %1659 = vmatpush1.xpose.msra.mxu0 0.0
        %1660 = vmatprep.subr.mxu0 0.0
        %1661 = vmatpush1.xpose.msra.mxu0 0.0
        %1662 = vmatprep.subr.mxu0 0.0
        %1663 = vmatpush1.xpose.msra.mxu0 0.0
        %1664 = vmatprep.subr.mxu0 0.0
        %1665 = vmatpush1.xpose.msra.mxu0 0.0
        %1666 = vmatprep.subr.mxu0 0.0
        %1667 = vmatpush1.xpose.msra.mxu0 0.0
        %1668 = vmatprep.subr.mxu0 0.0
        %1669 = vmatpush1.xpose.msra.mxu0 0.0
        %1670 = vmatprep.mubr.f32.mxu0 0.0
        %1671 = vmatmul.mubr.f32.gmra.mrb[0].mxu0 %v1601
        %v1672 = vpop.f32.mrb[0].mxu0
        %v1673 = vadd.f32 0.0, %v1672
        %v1674 = vpop.f32.mrb[0].mxu0
        %1675 = vdwg.mxu0
        %v1677 = vsel %vm225, %v623, 0
        %v1680 = vsel %vm225, %v759, 0
        %1682 = vmatprep.subr.mxu0 0.0
        %1683 = vmatpush1.xpose.msra.mxu0 %v1680
        %1684 = vmatprep.subr.mxu0 0.0
        %1685 = vmatpush1.xpose.msra.mxu0 0.0
        %1686 = vmatprep.subr.mxu0 0.0
        %1687 = vmatpush1.xpose.msra.mxu0 0.0
        %1688 = vmatprep.subr.mxu0 0.0
        %1689 = vmatpush1.xpose.msra.mxu0 0.0
        %1690 = vmatprep.subr.mxu0 0.0
        %1691 = vmatpush1.xpose.msra.mxu0 0.0
        %1692 = vmatprep.subr.mxu0 0.0
        %1693 = vmatpush1.xpose.msra.mxu0 0.0
        %1694 = vmatprep.subr.mxu0 0.0
        %1695 = vmatpush1.xpose.msra.mxu0 0.0
        %1696 = vmatprep.subr.mxu0 0.0
        %1697 = vmatpush1.xpose.msra.mxu0 0.0
        %1698 = vmatprep.subr.mxu0 0.0
        %1699 = vmatpush1.xpose.msra.mxu0 0.0
        %1700 = vmatprep.subr.mxu0 0.0
        %1701 = vmatpush1.xpose.msra.mxu0 0.0
        %1702 = vmatprep.subr.mxu0 0.0
        %1703 = vmatpush1.xpose.msra.mxu0 0.0
        %1704 = vmatprep.subr.mxu0 0.0
        %1705 = vmatpush1.xpose.msra.mxu0 0.0
        %1706 = vmatprep.subr.mxu0 0.0
        %1707 = vmatpush1.xpose.msra.mxu0 0.0
        %1708 = vmatprep.subr.mxu0 0.0
        %1709 = vmatpush1.xpose.msra.mxu0 0.0
        %1710 = vmatprep.subr.mxu0 0.0
        %1711 = vmatpush1.xpose.msra.mxu0 0.0
        %1712 = vmatprep.subr.mxu0 0.0
        %1713 = vmatpush1.xpose.msra.mxu0 0.0
        %1714 = vmatprep.subr.mxu0 0.0
        %1715 = vmatpush1.xpose.msra.mxu0 0.0
        %1716 = vmatprep.subr.mxu0 0.0
        %1717 = vmatpush1.xpose.msra.mxu0 0.0
        %1718 = vmatprep.subr.mxu0 0.0
        %1719 = vmatpush1.xpose.msra.mxu0 0.0
        %1720 = vmatprep.subr.mxu0 0.0
        %1721 = vmatpush1.xpose.msra.mxu0 0.0
        %1722 = vmatprep.subr.mxu0 0.0
        %1723 = vmatpush1.xpose.msra.mxu0 0.0
        %1724 = vmatprep.subr.mxu0 0.0
        %1725 = vmatpush1.xpose.msra.mxu0 0.0
        %1726 = vmatprep.subr.mxu0 0.0
        %1727 = vmatpush1.xpose.msra.mxu0 0.0
        %1728 = vmatprep.subr.mxu0 0.0
        %1729 = vmatpush1.xpose.msra.mxu0 0.0
        %1730 = vmatprep.subr.mxu0 0.0
        %1731 = vmatpush1.xpose.msra.mxu0 0.0
        %1732 = vmatprep.subr.mxu0 0.0
        %1733 = vmatpush1.xpose.msra.mxu0 0.0
        %1734 = vmatprep.subr.mxu0 0.0
        %1735 = vmatpush1.xpose.msra.mxu0 0.0
        %1736 = vmatprep.subr.mxu0 0.0
        %1737 = vmatpush1.xpose.msra.mxu0 0.0
        %1738 = vmatprep.subr.mxu0 0.0
        %1739 = vmatpush1.xpose.msra.mxu0 0.0
        %1740 = vmatprep.subr.mxu0 0.0
        %1741 = vmatpush1.xpose.msra.mxu0 0.0
        %1742 = vmatprep.subr.mxu0 0.0
        %1743 = vmatpush1.xpose.msra.mxu0 0.0
        %1744 = vmatprep.subr.mxu0 0.0
        %1745 = vmatpush1.xpose.msra.mxu0 0.0
        %1746 = vmatprep.mubr.f32.mxu0 0.0
        %1747 = vmatmul.mubr.f32.gmra.mrb[0].mxu0 %v1677
        %v1748 = vpop.f32.mrb[0].mxu0
        %v1749 = vadd.f32 0.0, %v1748
        %v1750 = vpop.f32.mrb[0].mxu0
        %1751 = vdwg.mxu0
        %v1753 = vsel %vm225, %v641, 0
        %v1756 = vsel %vm225, %v777, 0
        %1758 = vmatprep.subr.mxu0 0.0
        %1759 = vmatpush1.xpose.msra.mxu0 %v1756
        %1760 = vmatprep.subr.mxu0 0.0
        %1761 = vmatpush1.xpose.msra.mxu0 0.0
        %1762 = vmatprep.subr.mxu0 0.0
        %1763 = vmatpush1.xpose.msra.mxu0 0.0
        %1764 = vmatprep.subr.mxu0 0.0
        %1765 = vmatpush1.xpose.msra.mxu0 0.0
        %1766 = vmatprep.subr.mxu0 0.0
        %1767 = vmatpush1.xpose.msra.mxu0 0.0
        %1768 = vmatprep.subr.mxu0 0.0
        %1769 = vmatpush1.xpose.msra.mxu0 0.0
        %1770 = vmatprep.subr.mxu0 0.0
        %1771 = vmatpush1.xpose.msra.mxu0 0.0
        %1772 = vmatprep.subr.mxu0 0.0
        %1773 = vmatpush1.xpose.msra.mxu0 0.0
        %1774 = vmatprep.subr.mxu0 0.0
        %1775 = vmatpush1.xpose.msra.mxu0 0.0
        %1776 = vmatprep.subr.mxu0 0.0
        %1777 = vmatpush1.xpose.msra.mxu0 0.0
        %1778 = vmatprep.subr.mxu0 0.0
        %1779 = vmatpush1.xpose.msra.mxu0 0.0
        %1780 = vmatprep.subr.mxu0 0.0
        %1781 = vmatpush1.xpose.msra.mxu0 0.0
        %1782 = vmatprep.subr.mxu0 0.0
        %1783 = vmatpush1.xpose.msra.mxu0 0.0
        %1784 = vmatprep.subr.mxu0 0.0
        %1785 = vmatpush1.xpose.msra.mxu0 0.0
        %1786 = vmatprep.subr.mxu0 0.0
        %1787 = vmatpush1.xpose.msra.mxu0 0.0
        %1788 = vmatprep.subr.mxu0 0.0
        %1789 = vmatpush1.xpose.msra.mxu0 0.0
        %1790 = vmatprep.subr.mxu0 0.0
        %1791 = vmatpush1.xpose.msra.mxu0 0.0
        %1792 = vmatprep.subr.mxu0 0.0
        %1793 = vmatpush1.xpose.msra.mxu0 0.0
        %1794 = vmatprep.subr.mxu0 0.0
        %1795 = vmatpush1.xpose.msra.mxu0 0.0
        %1796 = vmatprep.subr.mxu0 0.0
        %1797 = vmatpush1.xpose.msra.mxu0 0.0
        %1798 = vmatprep.subr.mxu0 0.0
        %1799 = vmatpush1.xpose.msra.mxu0 0.0
        %1800 = vmatprep.subr.mxu0 0.0
        %1801 = vmatpush1.xpose.msra.mxu0 0.0
        %1802 = vmatprep.subr.mxu0 0.0
        %1803 = vmatpush1.xpose.msra.mxu0 0.0
        %1804 = vmatprep.subr.mxu0 0.0
        %1805 = vmatpush1.xpose.msra.mxu0 0.0
        %1806 = vmatprep.subr.mxu0 0.0
        %1807 = vmatpush1.xpose.msra.mxu0 0.0
        %1808 = vmatprep.subr.mxu0 0.0
        %1809 = vmatpush1.xpose.msra.mxu0 0.0
        %1810 = vmatprep.subr.mxu0 0.0
        %1811 = vmatpush1.xpose.msra.mxu0 0.0
        %1812 = vmatprep.subr.mxu0 0.0
        %1813 = vmatpush1.xpose.msra.mxu0 0.0
        %1814 = vmatprep.subr.mxu0 0.0
        %1815 = vmatpush1.xpose.msra.mxu0 0.0
        %1816 = vmatprep.subr.mxu0 0.0
        %1817 = vmatpush1.xpose.msra.mxu0 0.0
        %1818 = vmatprep.subr.mxu0 0.0
        %1819 = vmatpush1.xpose.msra.mxu0 0.0
        %1820 = vmatprep.subr.mxu0 0.0
        %1821 = vmatpush1.xpose.msra.mxu0 0.0
        %1822 = vmatprep.mubr.f32.mxu0 0.0
        %1823 = vmatmul.mubr.f32.gmra.mrb[0].mxu0 %v1753
        %v1824 = vpop.f32.mrb[0].mxu0
        %v1825 = vadd.f32 0.0, %v1824
        %v1826 = vpop.f32.mrb[0].mxu0
        %1827 = vdwg.mxu0
        %v1829 = vsel %vm225, %v632, 0
        %v1832 = vsel %vm225, %v768, 0
        %1834 = vmatprep.subr.mxu0 0.0
        %1835 = vmatpush1.xpose.msra.mxu0 %v1832
        %1836 = vmatprep.subr.mxu0 0.0
        %1837 = vmatpush1.xpose.msra.mxu0 0.0
        %1838 = vmatprep.subr.mxu0 0.0
        %1839 = vmatpush1.xpose.msra.mxu0 0.0
        %1840 = vmatprep.subr.mxu0 0.0
        %1841 = vmatpush1.xpose.msra.mxu0 0.0
        %1842 = vmatprep.subr.mxu0 0.0
        %1843 = vmatpush1.xpose.msra.mxu0 0.0
        %1844 = vmatprep.subr.mxu0 0.0
        %1845 = vmatpush1.xpose.msra.mxu0 0.0
        %1846 = vmatprep.subr.mxu0 0.0
        %1847 = vmatpush1.xpose.msra.mxu0 0.0
        %1848 = vmatprep.subr.mxu0 0.0
        %1849 = vmatpush1.xpose.msra.mxu0 0.0
        %1850 = vmatprep.subr.mxu0 0.0
        %1851 = vmatpush1.xpose.msra.mxu0 0.0
        %1852 = vmatprep.subr.mxu0 0.0
        %1853 = vmatpush1.xpose.msra.mxu0 0.0
        %1854 = vmatprep.subr.mxu0 0.0
        %1855 = vmatpush1.xpose.msra.mxu0 0.0
        %1856 = vmatprep.subr.mxu0 0.0
        %1857 = vmatpush1.xpose.msra.mxu0 0.0
        %1858 = vmatprep.subr.mxu0 0.0
        %1859 = vmatpush1.xpose.msra.mxu0 0.0
        %1860 = vmatprep.subr.mxu0 0.0
        %1861 = vmatpush1.xpose.msra.mxu0 0.0
        %1862 = vmatprep.subr.mxu0 0.0
        %1863 = vmatpush1.xpose.msra.mxu0 0.0
        %1864 = vmatprep.subr.mxu0 0.0
        %1865 = vmatpush1.xpose.msra.mxu0 0.0
        %1866 = vmatprep.subr.mxu0 0.0
        %1867 = vmatpush1.xpose.msra.mxu0 0.0
        %1868 = vmatprep.subr.mxu0 0.0
        %1869 = vmatpush1.xpose.msra.mxu0 0.0
        %1870 = vmatprep.subr.mxu0 0.0
        %1871 = vmatpush1.xpose.msra.mxu0 0.0
        %1872 = vmatprep.subr.mxu0 0.0
        %1873 = vmatpush1.xpose.msra.mxu0 0.0
        %1874 = vmatprep.subr.mxu0 0.0
        %1875 = vmatpush1.xpose.msra.mxu0 0.0
        %1876 = vmatprep.subr.mxu0 0.0
        %1877 = vmatpush1.xpose.msra.mxu0 0.0
        %1878 = vmatprep.subr.mxu0 0.0
        %1879 = vmatpush1.xpose.msra.mxu0 0.0
        %1880 = vmatprep.subr.mxu0 0.0
        %1881 = vmatpush1.xpose.msra.mxu0 0.0
        %1882 = vmatprep.subr.mxu0 0.0
        %1883 = vmatpush1.xpose.msra.mxu0 0.0
        %1884 = vmatprep.subr.mxu0 0.0
        %1885 = vmatpush1.xpose.msra.mxu0 0.0
        %1886 = vmatprep.subr.mxu0 0.0
        %1887 = vmatpush1.xpose.msra.mxu0 0.0
        %1888 = vmatprep.subr.mxu0 0.0
        %1889 = vmatpush1.xpose.msra.mxu0 0.0
        %1890 = vmatprep.subr.mxu0 0.0
        %1891 = vmatpush1.xpose.msra.mxu0 0.0
        %1892 = vmatprep.subr.mxu0 0.0
        %1893 = vmatpush1.xpose.msra.mxu0 0.0
        %1894 = vmatprep.subr.mxu0 0.0
        %1895 = vmatpush1.xpose.msra.mxu0 0.0
        %1896 = vmatprep.subr.mxu0 0.0
        %1897 = vmatpush1.xpose.msra.mxu0 0.0
        %1898 = vmatprep.mubr.f32.mxu0 0.0
        %1899 = vmatmul.mubr.f32.gmra.mrb[0].mxu0 %v1829
        %v1900 = vpop.f32.mrb[0].mxu0
        %v1901 = vadd.f32 0.0, %v1900
        %v1902 = vpop.f32.mrb[0].mxu0
        %1903 = vdwg.mxu0
        %v1905 = vsel %vm225, %v642, 0
        %v1908 = vsel %vm225, %v778, 0
        %1910 = vmatprep.subr.mxu0 0.0
        %1911 = vmatpush1.xpose.msra.mxu0 %v1908
        %1912 = vmatprep.subr.mxu0 0.0
        %1913 = vmatpush1.xpose.msra.mxu0 0.0
        %1914 = vmatprep.subr.mxu0 0.0
        %1915 = vmatpush1.xpose.msra.mxu0 0.0
        %1916 = vmatprep.subr.mxu0 0.0
        %1917 = vmatpush1.xpose.msra.mxu0 0.0
        %1918 = vmatprep.subr.mxu0 0.0
        %1919 = vmatpush1.xpose.msra.mxu0 0.0
        %1920 = vmatprep.subr.mxu0 0.0
        %1921 = vmatpush1.xpose.msra.mxu0 0.0
        %1922 = vmatprep.subr.mxu0 0.0
        %1923 = vmatpush1.xpose.msra.mxu0 0.0
        %1924 = vmatprep.subr.mxu0 0.0
        %1925 = vmatpush1.xpose.msra.mxu0 0.0
        %1926 = vmatprep.subr.mxu0 0.0
        %1927 = vmatpush1.xpose.msra.mxu0 0.0
        %1928 = vmatprep.subr.mxu0 0.0
        %1929 = vmatpush1.xpose.msra.mxu0 0.0
        %1930 = vmatprep.subr.mxu0 0.0
        %1931 = vmatpush1.xpose.msra.mxu0 0.0
        %1932 = vmatprep.subr.mxu0 0.0
        %1933 = vmatpush1.xpose.msra.mxu0 0.0
        %1934 = vmatprep.subr.mxu0 0.0
        %1935 = vmatpush1.xpose.msra.mxu0 0.0
        %1936 = vmatprep.subr.mxu0 0.0
        %1937 = vmatpush1.xpose.msra.mxu0 0.0
        %1938 = vmatprep.subr.mxu0 0.0
        %1939 = vmatpush1.xpose.msra.mxu0 0.0
        %1940 = vmatprep.subr.mxu0 0.0
        %1941 = vmatpush1.xpose.msra.mxu0 0.0
        %1942 = vmatprep.subr.mxu0 0.0
        %1943 = vmatpush1.xpose.msra.mxu0 0.0
        %1944 = vmatprep.subr.mxu0 0.0
        %1945 = vmatpush1.xpose.msra.mxu0 0.0
        %1946 = vmatprep.subr.mxu0 0.0
        %1947 = vmatpush1.xpose.msra.mxu0 0.0
        %1948 = vmatprep.subr.mxu0 0.0
        %1949 = vmatpush1.xpose.msra.mxu0 0.0
        %1950 = vmatprep.subr.mxu0 0.0
        %1951 = vmatpush1.xpose.msra.mxu0 0.0
        %1952 = vmatprep.subr.mxu0 0.0
        %1953 = vmatpush1.xpose.msra.mxu0 0.0
        %1954 = vmatprep.subr.mxu0 0.0
        %1955 = vmatpush1.xpose.msra.mxu0 0.0
        %1956 = vmatprep.subr.mxu0 0.0
        %1957 = vmatpush1.xpose.msra.mxu0 0.0
        %1958 = vmatprep.subr.mxu0 0.0
        %1959 = vmatpush1.xpose.msra.mxu0 0.0
        %1960 = vmatprep.subr.mxu0 0.0
        %1961 = vmatpush1.xpose.msra.mxu0 0.0
        %1962 = vmatprep.subr.mxu0 0.0
        %1963 = vmatpush1.xpose.msra.mxu0 0.0
        %1964 = vmatprep.subr.mxu0 0.0
        %1965 = vmatpush1.xpose.msra.mxu0 0.0
        %1966 = vmatprep.subr.mxu0 0.0
        %1967 = vmatpush1.xpose.msra.mxu0 0.0
        %1968 = vmatprep.subr.mxu0 0.0
        %1969 = vmatpush1.xpose.msra.mxu0 0.0
        %1970 = vmatprep.subr.mxu0 0.0
        %1971 = vmatpush1.xpose.msra.mxu0 0.0
        %1972 = vmatprep.subr.mxu0 0.0
        %1973 = vmatpush1.xpose.msra.mxu0 0.0
        %1974 = vmatprep.mubr.f32.mxu0 0.0
        %1975 = vmatmul.mubr.f32.gmra.mrb[0].mxu0 %v1905
        %v1976 = vpop.f32.mrb[0].mxu0
        %v1977 = vadd.f32 0.0, %v1976
        %v1978 = vpop.f32.mrb[0].mxu0
        %1979 = vdwg.mxu0
        %v1981 = vsel %vm225, %v639, 0
        %v1984 = vsel %vm225, %v775, 0
        %1986 = vmatprep.subr.mxu0 0.0
        %1987 = vmatpush1.xpose.msra.mxu0 %v1984
        %1988 = vmatprep.subr.mxu0 0.0
        %1989 = vmatpush1.xpose.msra.mxu0 0.0
        %1990 = vmatprep.subr.mxu0 0.0
        %1991 = vmatpush1.xpose.msra.mxu0 0.0
        %1992 = vmatprep.subr.mxu0 0.0
        %1993 = vmatpush1.xpose.msra.mxu0 0.0
        %1994 = vmatprep.subr.mxu0 0.0
        %1995 = vmatpush1.xpose.msra.mxu0 0.0
        %1996 = vmatprep.subr.mxu0 0.0
        %1997 = vmatpush1.xpose.msra.mxu0 0.0
        %1998 = vmatprep.subr.mxu0 0.0
        %1999 = vmatpush1.xpose.msra.mxu0 0.0
        %2000 = vmatprep.subr.mxu0 0.0
        %2001 = vmatpush1.xpose.msra.mxu0 0.0
        %2002 = vmatprep.subr.mxu0 0.0
        %2003 = vmatpush1.xpose.msra.mxu0 0.0
        %2004 = vmatprep.subr.mxu0 0.0
        %2005 = vmatpush1.xpose.msra.mxu0 0.0
        %2006 = vmatprep.subr.mxu0 0.0
        %2007 = vmatpush1.xpose.msra.mxu0 0.0
        %2008 = vmatprep.subr.mxu0 0.0
        %2009 = vmatpush1.xpose.msra.mxu0 0.0
        %2010 = vmatprep.subr.mxu0 0.0
        %2011 = vmatpush1.xpose.msra.mxu0 0.0
        %2012 = vmatprep.subr.mxu0 0.0
        %2013 = vmatpush1.xpose.msra.mxu0 0.0
        %2014 = vmatprep.subr.mxu0 0.0
        %2015 = vmatpush1.xpose.msra.mxu0 0.0
        %2016 = vmatprep.subr.mxu0 0.0
        %2017 = vmatpush1.xpose.msra.mxu0 0.0
        %2018 = vmatprep.subr.mxu0 0.0
        %2019 = vmatpush1.xpose.msra.mxu0 0.0
        %2020 = vmatprep.subr.mxu0 0.0
        %2021 = vmatpush1.xpose.msra.mxu0 0.0
        %2022 = vmatprep.subr.mxu0 0.0
        %2023 = vmatpush1.xpose.msra.mxu0 0.0
        %2024 = vmatprep.subr.mxu0 0.0
        %2025 = vmatpush1.xpose.msra.mxu0 0.0
        %2026 = vmatprep.subr.mxu0 0.0
        %2027 = vmatpush1.xpose.msra.mxu0 0.0
        %2028 = vmatprep.subr.mxu0 0.0
        %2029 = vmatpush1.xpose.msra.mxu0 0.0
        %2030 = vmatprep.subr.mxu0 0.0
        %2031 = vmatpush1.xpose.msra.mxu0 0.0
        %2032 = vmatprep.subr.mxu0 0.0
        %2033 = vmatpush1.xpose.msra.mxu0 0.0
        %2034 = vmatprep.subr.mxu0 0.0
        %2035 = vmatpush1.xpose.msra.mxu0 0.0
        %2036 = vmatprep.subr.mxu0 0.0
        %2037 = vmatpush1.xpose.msra.mxu0 0.0
        %2038 = vmatprep.subr.mxu0 0.0
        %2039 = vmatpush1.xpose.msra.mxu0 0.0
        %2040 = vmatprep.subr.mxu0 0.0
        %2041 = vmatpush1.xpose.msra.mxu0 0.0
        %2042 = vmatprep.subr.mxu0 0.0
        %2043 = vmatpush1.xpose.msra.mxu0 0.0
        %2044 = vmatprep.subr.mxu0 0.0
        %2045 = vmatpush1.xpose.msra.mxu0 0.0
        %2046 = vmatprep.subr.mxu0 0.0
        %2047 = vmatpush1.xpose.msra.mxu0 0.0
        %2048 = vmatprep.subr.mxu0 0.0
        %2049 = vmatpush1.xpose.msra.mxu0 0.0
        %2050 = vmatprep.mubr.f32.mxu0 0.0
        %2051 = vmatmul.mubr.f32.gmra.mrb[0].mxu0 %v1981
        %v2052 = vpop.f32.mrb[0].mxu0
        %v2053 = vadd.f32 0.0, %v2052
        %v2054 = vpop.f32.mrb[0].mxu0
        %2055 = vdwg.mxu0
        %v2057 = vsel %vm225, %v643, 0
        %v2060 = vsel %vm225, %v779, 0
        %2062 = vmatprep.subr.mxu0 0.0
        %2063 = vmatpush1.xpose.msra.mxu0 %v2060
        %2064 = vmatprep.subr.mxu0 0.0
        %2065 = vmatpush1.xpose.msra.mxu0 0.0
        %2066 = vmatprep.subr.mxu0 0.0
        %2067 = vmatpush1.xpose.msra.mxu0 0.0
        %2068 = vmatprep.subr.mxu0 0.0
        %2069 = vmatpush1.xpose.msra.mxu0 0.0
        %2070 = vmatprep.subr.mxu0 0.0
        %2071 = vmatpush1.xpose.msra.mxu0 0.0
        %2072 = vmatprep.subr.mxu0 0.0
        %2073 = vmatpush1.xpose.msra.mxu0 0.0
        %2074 = vmatprep.subr.mxu0 0.0
        %2075 = vmatpush1.xpose.msra.mxu0 0.0
        %2076 = vmatprep.subr.mxu0 0.0
        %2077 = vmatpush1.xpose.msra.mxu0 0.0
        %2078 = vmatprep.subr.mxu0 0.0
        %2079 = vmatpush1.xpose.msra.mxu0 0.0
        %2080 = vmatprep.subr.mxu0 0.0
        %2081 = vmatpush1.xpose.msra.mxu0 0.0
        %2082 = vmatprep.subr.mxu0 0.0
        %2083 = vmatpush1.xpose.msra.mxu0 0.0
        %2084 = vmatprep.subr.mxu0 0.0
        %2085 = vmatpush1.xpose.msra.mxu0 0.0
        %2086 = vmatprep.subr.mxu0 0.0
        %2087 = vmatpush1.xpose.msra.mxu0 0.0
        %2088 = vmatprep.subr.mxu0 0.0
        %2089 = vmatpush1.xpose.msra.mxu0 0.0
        %2090 = vmatprep.subr.mxu0 0.0
        %2091 = vmatpush1.xpose.msra.mxu0 0.0
        %2092 = vmatprep.subr.mxu0 0.0
        %2093 = vmatpush1.xpose.msra.mxu0 0.0
        %2094 = vmatprep.subr.mxu0 0.0
        %2095 = vmatpush1.xpose.msra.mxu0 0.0
        %2096 = vmatprep.subr.mxu0 0.0
        %2097 = vmatpush1.xpose.msra.mxu0 0.0
        %2098 = vmatprep.subr.mxu0 0.0
        %2099 = vmatpush1.xpose.msra.mxu0 0.0
        %2100 = vmatprep.subr.mxu0 0.0
        %2101 = vmatpush1.xpose.msra.mxu0 0.0
        %2102 = vmatprep.subr.mxu0 0.0
        %2103 = vmatpush1.xpose.msra.mxu0 0.0
        %2104 = vmatprep.subr.mxu0 0.0
        %2105 = vmatpush1.xpose.msra.mxu0 0.0
        %2106 = vmatprep.subr.mxu0 0.0
        %2107 = vmatpush1.xpose.msra.mxu0 0.0
        %2108 = vmatprep.subr.mxu0 0.0
        %2109 = vmatpush1.xpose.msra.mxu0 0.0
        %2110 = vmatprep.subr.mxu0 0.0
        %2111 = vmatpush1.xpose.msra.mxu0 0.0
        %2112 = vmatprep.subr.mxu0 0.0
        %2113 = vmatpush1.xpose.msra.mxu0 0.0
        %2114 = vmatprep.subr.mxu0 0.0
        %2115 = vmatpush1.xpose.msra.mxu0 0.0
        %2116 = vmatprep.subr.mxu0 0.0
        %2117 = vmatpush1.xpose.msra.mxu0 0.0
        %2118 = vmatprep.subr.mxu0 0.0
        %2119 = vmatpush1.xpose.msra.mxu0 0.0
        %2120 = vmatprep.subr.mxu0 0.0
        %2121 = vmatpush1.xpose.msra.mxu0 0.0
        %2122 = vmatprep.subr.mxu0 0.0
        %2123 = vmatpush1.xpose.msra.mxu0 0.0
        %2124 = vmatprep.subr.mxu0 0.0
        %2125 = vmatpush1.xpose.msra.mxu0 0.0
        %2126 = vmatprep.mubr.f32.mxu0 0.0
        %2127 = vmatmul.mubr.f32.gmra.mrb[0].mxu0 %v2057
        %v2128 = vpop.f32.mrb[0].mxu0
        %v2129 = vadd.f32 0.0, %v2128
        %v2130 = vpop.f32.mrb[0].mxu0
        %2131 = vdwg.mxu0
        %v2132 = vlaneseq
        %v2133 = vshrl.u32 %v2132, 7
        %v2134 = vsub.s32 0, %v2133
        %v2135 = vrot.slane %v197, %v2134
        %v2136 = vmul.f32 %v548, %v2135
        %v2137 = vmul.f32 %v572, %v2135
        %v2138 = vmul.f32 %v555, %v2135
        %v2139 = vmul.f32 %v573, %v2135
        %v2140 = vmul.f32 %v564, %v2135
        %v2141 = vmul.f32 %v574, %v2135
        %v2142 = vmul.f32 %v571, %v2135
        %v2143 = vmul.f32 %v575, %v2135
        %v2144 = vmul.f32 %v616, %v2135
        %v2145 = vmul.f32 %v640, %v2135
        %v2146 = vmul.f32 %v623, %v2135
        %v2147 = vmul.f32 %v641, %v2135
        %v2148 = vmul.f32 %v632, %v2135
        %v2149 = vmul.f32 %v642, %v2135
        %v2150 = vmul.f32 %v639, %v2135
        %v2151 = vmul.f32 %v643, %v2135
        %vm2152 = vcmask 60416
        %v2153 = vsel %vm2152, %v2136, 0.0
        %2154 = vadd.xlane.f32.xlu0 %v2153
        %v2155 = vpop.xlane.xlu0 %2154
        %v2156 = vsel %vm2152, %v2137, 0.0
        %2157 = vadd.xlane.f32.xlu0 %v2156
        %v2158 = vpop.xlane.xlu0 %2157
        %v2159 = vsel %vm2152, %v2138, 0.0
        %2160 = vadd.xlane.f32.xlu0 %v2159
        %v2161 = vpop.xlane.xlu0 %2160
        %v2162 = vsel %vm2152, %v2139, 0.0
        %2163 = vadd.xlane.f32.xlu0 %v2162
        %v2164 = vpop.xlane.xlu0 %2163
        %v2165 = vsel %vm2152, %v2140, 0.0
        %2166 = vadd.xlane.f32.xlu0 %v2165
        %v2167 = vpop.xlane.xlu0 %2166
        %v2168 = vsel %vm2152, %v2141, 0.0
        %2169 = vadd.xlane.f32.xlu0 %v2168
        %v2170 = vpop.xlane.xlu0 %2169
        %v2171 = vsel %vm2152, %v2142, 0.0
        %2172 = vadd.xlane.f32.xlu0 %v2171
        %v2173 = vpop.xlane.xlu0 %2172
        %v2174 = vsel %vm2152, %v2143, 0.0
        %2175 = vadd.xlane.f32.xlu0 %v2174
        %v2176 = vpop.xlane.xlu0 %2175
        %v2177 = vsel %vm2152, %v2144, 0.0
        %2178 = vadd.xlane.f32.xlu0 %v2177
        %v2179 = vpop.xlane.xlu0 %2178
        %v2180 = vsel %vm2152, %v2145, 0.0
        %2181 = vadd.xlane.f32.xlu0 %v2180
        %v2182 = vpop.xlane.xlu0 %2181
        %v2183 = vsel %vm2152, %v2146, 0.0
        %2184 = vadd.xlane.f32.xlu0 %v2183
        %v2185 = vpop.xlane.xlu0 %2184
        %v2186 = vsel %vm2152, %v2147, 0.0
        %2187 = vadd.xlane.f32.xlu0 %v2186
        %v2188 = vpop.xlane.xlu0 %2187
        %v2189 = vsel %vm2152, %v2148, 0.0
        %2190 = vadd.xlane.f32.xlu0 %v2189
        %v2191 = vpop.xlane.xlu0 %2190
        %v2192 = vsel %vm2152, %v2149, 0.0
        %2193 = vadd.xlane.f32.xlu0 %v2192
        %v2194 = vpop.xlane.xlu0 %2193
        %v2195 = vsel %vm2152, %v2150, 0.0
        %2196 = vadd.xlane.f32.xlu0 %v2195
        %v2197 = vpop.xlane.xlu0 %2196
        %v2198 = vsel %vm2152, %v2151, 0.0
        %2199 = vadd.xlane.f32.xlu0 %v2198
        %v2200 = vpop.xlane.xlu0 %2199
        %vm2201 = vcmask 27648
        %v2202 = vsel %vm2201, %v989, -inf
        %2203 = vmax.xlane.f32.xlu0 %v2202
        %v2204 = vpop.xlane.xlu0 %2203
        %v2205 = vsel %vm2201, %v1065, -inf
        %2206 = vmax.xlane.f32.xlu0 %v2205
        %v2207 = vpop.xlane.xlu0 %2206
        %v2208 = vsel %vm2201, %v1141, -inf
        %2209 = vmax.xlane.f32.xlu0 %v2208
        %v2210 = vpop.xlane.xlu0 %2209
        %v2211 = vsel %vm2201, %v1217, -inf
        %2212 = vmax.xlane.f32.xlu0 %v2211
        %v2213 = vpop.xlane.xlu0 %2212
        %v2214 = vsel %vm2201, %v1293, -inf
        %2215 = vmax.xlane.f32.xlu0 %v2214
        %v2216 = vpop.xlane.xlu0 %2215
        %v2217 = vsel %vm2201, %v1369, -inf
        %2218 = vmax.xlane.f32.xlu0 %v2217
        %v2219 = vpop.xlane.xlu0 %2218
        %v2220 = vsel %vm2201, %v1445, -inf
        %2221 = vmax.xlane.f32.xlu0 %v2220
        %v2222 = vpop.xlane.xlu0 %2221
        %v2223 = vsel %vm2201, %v1521, -inf
        %2224 = vmax.xlane.f32.xlu0 %v2223
        %v2225 = vpop.xlane.xlu0 %2224
        %v2226 = vsel %vm2201, %v1597, -inf
        %2227 = vmax.xlane.f32.xlu0 %v2226
        %v2228 = vpop.xlane.xlu0 %2227
        %v2229 = vsel %vm2201, %v1673, -inf
        %2230 = vmax.xlane.f32.xlu0 %v2229
        %v2231 = vpop.xlane.xlu0 %2230
        %v2232 = vsel %vm2201, %v1749, -inf
        %2233 = vmax.xlane.f32.xlu0 %v2232
        %v2234 = vpop.xlane.xlu0 %2233
        %v2235 = vsel %vm2201, %v1825, -inf
        %2236 = vmax.xlane.f32.xlu0 %v2235
        %v2237 = vpop.xlane.xlu0 %2236
        %v2238 = vsel %vm2201, %v1901, -inf
        %2239 = vmax.xlane.f32.xlu0 %v2238
        %v2240 = vpop.xlane.xlu0 %2239
        %v2241 = vsel %vm2201, %v1977, -inf
        %2242 = vmax.xlane.f32.xlu0 %v2241
        %v2243 = vpop.xlane.xlu0 %2242
        %v2244 = vsel %vm2201, %v2053, -inf
        %2245 = vmax.xlane.f32.xlu0 %v2244
        %v2246 = vpop.xlane.xlu0 %2245
        %v2247 = vsel %vm2201, %v2129, -inf
        %2248 = vmax.xlane.f32.xlu0 %v2247
        %v2249 = vpop.xlane.xlu0 %2248
        %v2250 = vmax.f32 %v2204, %v2155
        %v2251 = vmax.f32 %v2207, %v2158
        %v2252 = vmax.f32 %v2210, %v2161
        %v2253 = vmax.f32 %v2213, %v2164
        %v2254 = vmax.f32 %v2216, %v2167
        %v2255 = vmax.f32 %v2219, %v2170
        %v2256 = vmax.f32 %v2222, %v2173
        %v2257 = vmax.f32 %v2225, %v2176
        %v2258 = vmax.f32 %v2228, %v2179
        %v2259 = vmax.f32 %v2231, %v2182
        %v2260 = vmax.f32 %v2234, %v2185
        %v2261 = vmax.f32 %v2237, %v2188
        %v2262 = vmax.f32 %v2240, %v2191
        %v2263 = vmax.f32 %v2243, %v2194
        %v2264 = vmax.f32 %v2246, %v2197
        %v2265 = vmax.f32 %v2249, %v2200
        %v2266 = vsub.f32 %v989, %v2250
        %v2267 = vsub.f32 %v1065, %v2251
        %v2268 = vsub.f32 %v1141, %v2252
        %v2269 = vsub.f32 %v1217, %v2253
        %v2270 = vsub.f32 %v1293, %v2254
        %v2271 = vsub.f32 %v1369, %v2255
        %v2272 = vsub.f32 %v1445, %v2256
        %v2273 = vsub.f32 %v1521, %v2257
        %v2274 = vsub.f32 %v1597, %v2258
        %v2275 = vsub.f32 %v1673, %v2259
        %v2276 = vsub.f32 %v1749, %v2260
        %v2277 = vsub.f32 %v1825, %v2261
        %v2278 = vsub.f32 %v1901, %v2262
        %v2279 = vsub.f32 %v1977, %v2263
        %v2280 = vsub.f32 %v2053, %v2264
        %v2281 = vsub.f32 %v2129, %v2265
        %v2282 = vmul.f32 %v2266, 1.442695
        %v2283 = vpow.pop %v2282
        %v2284 = vmul.f32 %v2267, 1.442695
        %v2285 = vpow.pop %v2284
        %v2286 = vmul.f32 %v2268, 1.442695
        %v2287 = vpow.pop %v2286
        %v2288 = vmul.f32 %v2269, 1.442695
        %v2289 = vpow.pop %v2288
        %v2290 = vmul.f32 %v2270, 1.442695
        %v2291 = vpow.pop %v2290
        %v2292 = vmul.f32 %v2271, 1.442695
        %v2293 = vpow.pop %v2292
        %v2294 = vmul.f32 %v2272, 1.442695
        %v2295 = vpow.pop %v2294
        %v2296 = vmul.f32 %v2273, 1.442695
        %v2297 = vpow.pop %v2296
        %v2298 = vmul.f32 %v2274, 1.442695
        %v2299 = vpow.pop %v2298
        %v2300 = vmul.f32 %v2275, 1.442695
        %v2301 = vpow.pop %v2300
        %v2302 = vmul.f32 %v2276, 1.442695
        %v2303 = vpow.pop %v2302
        %v2304 = vmul.f32 %v2277, 1.442695
        %v2305 = vpow.pop %v2304
        %v2306 = vmul.f32 %v2278, 1.442695
        %v2307 = vpow.pop %v2306
        %v2308 = vmul.f32 %v2279, 1.442695
        %v2309 = vpow.pop %v2308
        %v2310 = vmul.f32 %v2280, 1.442695
        %v2311 = vpow.pop %v2310
        %v2312 = vmul.f32 %v2281, 1.442695
        %v2313 = vpow.pop %v2312
        %v2314 = vsub.f32 %v2155, %v2250
        %v2315 = vsub.f32 %v2158, %v2251
        %v2316 = vsub.f32 %v2161, %v2252
        %v2317 = vsub.f32 %v2164, %v2253
        %v2318 = vsub.f32 %v2167, %v2254
        %v2319 = vsub.f32 %v2170, %v2255
        %v2320 = vsub.f32 %v2173, %v2256
        %v2321 = vsub.f32 %v2176, %v2257
        %v2322 = vsub.f32 %v2179, %v2258
        %v2323 = vsub.f32 %v2182, %v2259
        %v2324 = vsub.f32 %v2185, %v2260
        %v2325 = vsub.f32 %v2188, %v2261
        %v2326 = vsub.f32 %v2191, %v2262
        %v2327 = vsub.f32 %v2194, %v2263
        %v2328 = vsub.f32 %v2197, %v2264
        %v2329 = vsub.f32 %v2200, %v2265
        %v2330 = vmul.f32 %v2314, 1.442695
        %v2331 = vpow.pop %v2330
        %v2332 = vmul.f32 %v2315, 1.442695
        %v2333 = vpow.pop %v2332
        %v2334 = vmul.f32 %v2316, 1.442695
        %v2335 = vpow.pop %v2334
        %v2336 = vmul.f32 %v2317, 1.442695
        %v2337 = vpow.pop %v2336
        %v2338 = vmul.f32 %v2318, 1.442695
        %v2339 = vpow.pop %v2338
        %v2340 = vmul.f32 %v2319, 1.442695
        %v2341 = vpow.pop %v2340
        %v2342 = vmul.f32 %v2320, 1.442695
        %v2343 = vpow.pop %v2342
        %v2344 = vmul.f32 %v2321, 1.442695
        %v2345 = vpow.pop %v2344
        %v2346 = vmul.f32 %v2322, 1.442695
        %v2347 = vpow.pop %v2346
        %v2348 = vmul.f32 %v2323, 1.442695
        %v2349 = vpow.pop %v2348
        %v2350 = vmul.f32 %v2324, 1.442695
        %v2351 = vpow.pop %v2350
        %v2352 = vmul.f32 %v2325, 1.442695
        %v2353 = vpow.pop %v2352
        %v2354 = vmul.f32 %v2326, 1.442695
        %v2355 = vpow.pop %v2354
        %v2356 = vmul.f32 %v2327, 1.442695
        %v2357 = vpow.pop %v2356
        %v2358 = vmul.f32 %v2328, 1.442695
        %v2359 = vpow.pop %v2358
        %v2360 = vmul.f32 %v2329, 1.442695
        %v2361 = vpow.pop %v2360
        %v2362 = vlaneseq
        %v2363 = vshrl.u32 %v2362, 7
        %v2364 = vsub.s32 0, %v2363
        %v2365 = vrot.slane %v216, %v2364
        %v2366 = vmul.f32 %v2331, %v2365
        %v2367 = vmul.f32 %v2333, %v2365
        %v2368 = vmul.f32 %v2335, %v2365
        %v2369 = vmul.f32 %v2337, %v2365
        %v2370 = vmul.f32 %v2339, %v2365
        %v2371 = vmul.f32 %v2341, %v2365
        %v2372 = vmul.f32 %v2343, %v2365
        %v2373 = vmul.f32 %v2345, %v2365
        %v2374 = vmul.f32 %v2347, %v2365
        %v2375 = vmul.f32 %v2349, %v2365
        %v2376 = vmul.f32 %v2351, %v2365
        %v2377 = vmul.f32 %v2353, %v2365
        %v2378 = vmul.f32 %v2355, %v2365
        %v2379 = vmul.f32 %v2357, %v2365
        %v2380 = vmul.f32 %v2359, %v2365
        %v2381 = vmul.f32 %v2361, %v2365
        %vm2382 = vcmask 31744
        %v2384 = vsel %vm2382, %v2283, 0
        %vm2386 = vcmask 1043456
        %v2388 = vsel %vm2386, %v820, 0
        %2390 = vmatprep.subr.mxu0 0.0
        %2391 = vmatpush1.msra.mxu0 %v2388
        %2392 = vmatprep.subr.mxu0 0.0
        %2393 = vmatpush1.msra.mxu0 0.0
        %2394 = vmatprep.subr.mxu0 0.0
        %2395 = vmatpush1.msra.mxu0 0.0
        %2396 = vmatprep.subr.mxu0 0.0
        %2397 = vmatpush1.msra.mxu0 0.0
        %2398 = vmatprep.subr.mxu0 0.0
        %2399 = vmatpush1.msra.mxu0 0.0
        %2400 = vmatprep.subr.mxu0 0.0
        %2401 = vmatpush1.msra.mxu0 0.0
        %2402 = vmatprep.subr.mxu0 0.0
        %2403 = vmatpush1.msra.mxu0 0.0
        %2404 = vmatprep.subr.mxu0 0.0
        %2405 = vmatpush1.msra.mxu0 0.0
        %2406 = vmatprep.subr.mxu0 0.0
        %2407 = vmatpush1.msra.mxu0 0.0
        %2408 = vmatprep.subr.mxu0 0.0
        %2409 = vmatpush1.msra.mxu0 0.0
        %2410 = vmatprep.subr.mxu0 0.0
        %2411 = vmatpush1.msra.mxu0 0.0
        %2412 = vmatprep.subr.mxu0 0.0
        %2413 = vmatpush1.msra.mxu0 0.0
        %2414 = vmatprep.subr.mxu0 0.0
        %2415 = vmatpush1.msra.mxu0 0.0
        %2416 = vmatprep.subr.mxu0 0.0
        %2417 = vmatpush1.msra.mxu0 0.0
        %2418 = vmatprep.subr.mxu0 0.0
        %2419 = vmatpush1.msra.mxu0 0.0
        %2420 = vmatprep.subr.mxu0 0.0
        %2421 = vmatpush1.msra.mxu0 0.0
        %2422 = vmatprep.subr.mxu0 0.0
        %2423 = vmatpush1.msra.mxu0 0.0
        %2424 = vmatprep.subr.mxu0 0.0
        %2425 = vmatpush1.msra.mxu0 0.0
        %2426 = vmatprep.subr.mxu0 0.0
        %2427 = vmatpush1.msra.mxu0 0.0
        %2428 = vmatprep.subr.mxu0 0.0
        %2429 = vmatpush1.msra.mxu0 0.0
        %2430 = vmatprep.subr.mxu0 0.0
        %2431 = vmatpush1.msra.mxu0 0.0
        %2432 = vmatprep.subr.mxu0 0.0
        %2433 = vmatpush1.msra.mxu0 0.0
        %2434 = vmatprep.subr.mxu0 0.0
        %2435 = vmatpush1.msra.mxu0 0.0
        %2436 = vmatprep.subr.mxu0 0.0
        %2437 = vmatpush1.msra.mxu0 0.0
        %2438 = vmatprep.subr.mxu0 0.0
        %2439 = vmatpush1.msra.mxu0 0.0
        %2440 = vmatprep.subr.mxu0 0.0
        %2441 = vmatpush1.msra.mxu0 0.0
        %2442 = vmatprep.subr.mxu0 0.0
        %2443 = vmatpush1.msra.mxu0 0.0
        %2444 = vmatprep.subr.mxu0 0.0
        %2445 = vmatpush1.msra.mxu0 0.0
        %2446 = vmatprep.subr.mxu0 0.0
        %2447 = vmatpush1.msra.mxu0 0.0
        %2448 = vmatprep.subr.mxu0 0.0
        %2449 = vmatpush1.msra.mxu0 0.0
        %2450 = vmatprep.subr.mxu0 0.0
        %2451 = vmatpush1.msra.mxu0 0.0
        %2452 = vmatprep.subr.mxu0 0.0
        %2453 = vmatpush1.msra.mxu0 0.0
        %2454 = vmatprep.mubr.f32.mxu0 0.0
        %2455 = vmatmul.mubr.f32.gmra.mrb[0].mxu0 %v2384
        %v2456 = vpop.f32.mrb[0].mxu0
        %v2457 = vadd.f32 %v2366, %v2456
        %v2458 = vpop.f32.mrb[0].mxu0
        %2459 = vdwg.mxu0
        %v2461 = vsel %vm2382, %v2285, 0
        %v2464 = vsel %vm2386, %v844, 0
        %2466 = vmatprep.subr.mxu0 0.0
        %2467 = vmatpush1.msra.mxu0 %v2464
        %2468 = vmatprep.subr.mxu0 0.0
        %2469 = vmatpush1.msra.mxu0 0.0
        %2470 = vmatprep.subr.mxu0 0.0
        %2471 = vmatpush1.msra.mxu0 0.0
        %2472 = vmatprep.subr.mxu0 0.0
        %2473 = vmatpush1.msra.mxu0 0.0
        %2474 = vmatprep.subr.mxu0 0.0
        %2475 = vmatpush1.msra.mxu0 0.0
        %2476 = vmatprep.subr.mxu0 0.0
        %2477 = vmatpush1.msra.mxu0 0.0
        %2478 = vmatprep.subr.mxu0 0.0
        %2479 = vmatpush1.msra.mxu0 0.0
        %2480 = vmatprep.subr.mxu0 0.0
        %2481 = vmatpush1.msra.mxu0 0.0
        %2482 = vmatprep.subr.mxu0 0.0
        %2483 = vmatpush1.msra.mxu0 0.0
        %2484 = vmatprep.subr.mxu0 0.0
        %2485 = vmatpush1.msra.mxu0 0.0
        %2486 = vmatprep.subr.mxu0 0.0
        %2487 = vmatpush1.msra.mxu0 0.0
        %2488 = vmatprep.subr.mxu0 0.0
        %2489 = vmatpush1.msra.mxu0 0.0
        %2490 = vmatprep.subr.mxu0 0.0
        %2491 = vmatpush1.msra.mxu0 0.0
        %2492 = vmatprep.subr.mxu0 0.0
        %2493 = vmatpush1.msra.mxu0 0.0
        %2494 = vmatprep.subr.mxu0 0.0
        %2495 = vmatpush1.msra.mxu0 0.0
        %2496 = vmatprep.subr.mxu0 0.0
        %2497 = vmatpush1.msra.mxu0 0.0
        %2498 = vmatprep.subr.mxu0 0.0
        %2499 = vmatpush1.msra.mxu0 0.0
        %2500 = vmatprep.subr.mxu0 0.0
        %2501 = vmatpush1.msra.mxu0 0.0
        %2502 = vmatprep.subr.mxu0 0.0
        %2503 = vmatpush1.msra.mxu0 0.0
        %2504 = vmatprep.subr.mxu0 0.0
        %2505 = vmatpush1.msra.mxu0 0.0
        %2506 = vmatprep.subr.mxu0 0.0
        %2507 = vmatpush1.msra.mxu0 0.0
        %2508 = vmatprep.subr.mxu0 0.0
        %2509 = vmatpush1.msra.mxu0 0.0
        %2510 = vmatprep.subr.mxu0 0.0
        %2511 = vmatpush1.msra.mxu0 0.0
        %2512 = vmatprep.subr.mxu0 0.0
        %2513 = vmatpush1.msra.mxu0 0.0
        %2514 = vmatprep.subr.mxu0 0.0
        %2515 = vmatpush1.msra.mxu0 0.0
        %2516 = vmatprep.subr.mxu0 0.0
        %2517 = vmatpush1.msra.mxu0 0.0
        %2518 = vmatprep.subr.mxu0 0.0
        %2519 = vmatpush1.msra.mxu0 0.0
        %2520 = vmatprep.subr.mxu0 0.0
        %2521 = vmatpush1.msra.mxu0 0.0
        %2522 = vmatprep.subr.mxu0 0.0
        %2523 = vmatpush1.msra.mxu0 0.0
        %2524 = vmatprep.subr.mxu0 0.0
        %2525 = vmatpush1.msra.mxu0 0.0
        %2526 = vmatprep.subr.mxu0 0.0
        %2527 = vmatpush1.msra.mxu0 0.0
        %2528 = vmatprep.subr.mxu0 0.0
        %2529 = vmatpush1.msra.mxu0 0.0
        %2530 = vmatprep.mubr.f32.mxu0 0.0
        %2531 = vmatmul.mubr.f32.gmra.mrb[0].mxu0 %v2461
        %v2532 = vpop.f32.mrb[0].mxu0
        %v2533 = vadd.f32 %v2367, %v2532
        %v2534 = vpop.f32.mrb[0].mxu0
        %2535 = vdwg.mxu0
        %v2537 = vsel %vm2382, %v2287, 0
        %v2540 = vsel %vm2386, %v827, 0
        %2542 = vmatprep.subr.mxu0 0.0
        %2543 = vmatpush1.msra.mxu0 %v2540
        %2544 = vmatprep.subr.mxu0 0.0
        %2545 = vmatpush1.msra.mxu0 0.0
        %2546 = vmatprep.subr.mxu0 0.0
        %2547 = vmatpush1.msra.mxu0 0.0
        %2548 = vmatprep.subr.mxu0 0.0
        %2549 = vmatpush1.msra.mxu0 0.0
        %2550 = vmatprep.subr.mxu0 0.0
        %2551 = vmatpush1.msra.mxu0 0.0
        %2552 = vmatprep.subr.mxu0 0.0
        %2553 = vmatpush1.msra.mxu0 0.0
        %2554 = vmatprep.subr.mxu0 0.0
        %2555 = vmatpush1.msra.mxu0 0.0
        %2556 = vmatprep.subr.mxu0 0.0
        %2557 = vmatpush1.msra.mxu0 0.0
        %2558 = vmatprep.subr.mxu0 0.0
        %2559 = vmatpush1.msra.mxu0 0.0
        %2560 = vmatprep.subr.mxu0 0.0
        %2561 = vmatpush1.msra.mxu0 0.0
        %2562 = vmatprep.subr.mxu0 0.0
        %2563 = vmatpush1.msra.mxu0 0.0
        %2564 = vmatprep.subr.mxu0 0.0
        %2565 = vmatpush1.msra.mxu0 0.0
        %2566 = vmatprep.subr.mxu0 0.0
        %2567 = vmatpush1.msra.mxu0 0.0
        %2568 = vmatprep.subr.mxu0 0.0
        %2569 = vmatpush1.msra.mxu0 0.0
        %2570 = vmatprep.subr.mxu0 0.0
        %2571 = vmatpush1.msra.mxu0 0.0
        %2572 = vmatprep.subr.mxu0 0.0
        %2573 = vmatpush1.msra.mxu0 0.0
        %2574 = vmatprep.subr.mxu0 0.0
        %2575 = vmatpush1.msra.mxu0 0.0
        %2576 = vmatprep.subr.mxu0 0.0
        %2577 = vmatpush1.msra.mxu0 0.0
        %2578 = vmatprep.subr.mxu0 0.0
        %2579 = vmatpush1.msra.mxu0 0.0
        %2580 = vmatprep.subr.mxu0 0.0
        %2581 = vmatpush1.msra.mxu0 0.0
        %2582 = vmatprep.subr.mxu0 0.0
        %2583 = vmatpush1.msra.mxu0 0.0
        %2584 = vmatprep.subr.mxu0 0.0
        %2585 = vmatpush1.msra.mxu0 0.0
        %2586 = vmatprep.subr.mxu0 0.0
        %2587 = vmatpush1.msra.mxu0 0.0
        %2588 = vmatprep.subr.mxu0 0.0
        %2589 = vmatpush1.msra.mxu0 0.0
        %2590 = vmatprep.subr.mxu0 0.0
        %2591 = vmatpush1.msra.mxu0 0.0
        %2592 = vmatprep.subr.mxu0 0.0
        %2593 = vmatpush1.msra.mxu0 0.0
        %2594 = vmatprep.subr.mxu0 0.0
        %2595 = vmatpush1.msra.mxu0 0.0
        %2596 = vmatprep.subr.mxu0 0.0
        %2597 = vmatpush1.msra.mxu0 0.0
        %2598 = vmatprep.subr.mxu0 0.0
        %2599 = vmatpush1.msra.mxu0 0.0
        %2600 = vmatprep.subr.mxu0 0.0
        %2601 = vmatpush1.msra.mxu0 0.0
        %2602 = vmatprep.subr.mxu0 0.0
        %2603 = vmatpush1.msra.mxu0 0.0
        %2604 = vmatprep.subr.mxu0 0.0
        %2605 = vmatpush1.msra.mxu0 0.0
        %2606 = vmatprep.mubr.f32.mxu0 0.0
        %2607 = vmatmul.mubr.f32.gmra.mrb[0].mxu0 %v2537
        %v2608 = vpop.f32.mrb[0].mxu0
        %v2609 = vadd.f32 %v2368, %v2608
        %v2610 = vpop.f32.mrb[0].mxu0
        %2611 = vdwg.mxu0
        %v2613 = vsel %vm2382, %v2289, 0
        %v2616 = vsel %vm2386, %v845, 0
        %2618 = vmatprep.subr.mxu0 0.0
        %2619 = vmatpush1.msra.mxu0 %v2616
        %2620 = vmatprep.subr.mxu0 0.0
        %2621 = vmatpush1.msra.mxu0 0.0
        %2622 = vmatprep.subr.mxu0 0.0
        %2623 = vmatpush1.msra.mxu0 0.0
        %2624 = vmatprep.subr.mxu0 0.0
        %2625 = vmatpush1.msra.mxu0 0.0
        %2626 = vmatprep.subr.mxu0 0.0
        %2627 = vmatpush1.msra.mxu0 0.0
        %2628 = vmatprep.subr.mxu0 0.0
        %2629 = vmatpush1.msra.mxu0 0.0
        %2630 = vmatprep.subr.mxu0 0.0
        %2631 = vmatpush1.msra.mxu0 0.0
        %2632 = vmatprep.subr.mxu0 0.0
        %2633 = vmatpush1.msra.mxu0 0.0
        %2634 = vmatprep.subr.mxu0 0.0
        %2635 = vmatpush1.msra.mxu0 0.0
        %2636 = vmatprep.subr.mxu0 0.0
        %2637 = vmatpush1.msra.mxu0 0.0
        %2638 = vmatprep.subr.mxu0 0.0
        %2639 = vmatpush1.msra.mxu0 0.0
        %2640 = vmatprep.subr.mxu0 0.0
        %2641 = vmatpush1.msra.mxu0 0.0
        %2642 = vmatprep.subr.mxu0 0.0
        %2643 = vmatpush1.msra.mxu0 0.0
        %2644 = vmatprep.subr.mxu0 0.0
        %2645 = vmatpush1.msra.mxu0 0.0
        %2646 = vmatprep.subr.mxu0 0.0
        %2647 = vmatpush1.msra.mxu0 0.0
        %2648 = vmatprep.subr.mxu0 0.0
        %2649 = vmatpush1.msra.mxu0 0.0
        %2650 = vmatprep.subr.mxu0 0.0
        %2651 = vmatpush1.msra.mxu0 0.0
        %2652 = vmatprep.subr.mxu0 0.0
        %2653 = vmatpush1.msra.mxu0 0.0
        %2654 = vmatprep.subr.mxu0 0.0
        %2655 = vmatpush1.msra.mxu0 0.0
        %2656 = vmatprep.subr.mxu0 0.0
        %2657 = vmatpush1.msra.mxu0 0.0
        %2658 = vmatprep.subr.mxu0 0.0
        %2659 = vmatpush1.msra.mxu0 0.0
        %2660 = vmatprep.subr.mxu0 0.0
        %2661 = vmatpush1.msra.mxu0 0.0
        %2662 = vmatprep.subr.mxu0 0.0
        %2663 = vmatpush1.msra.mxu0 0.0
        %2664 = vmatprep.subr.mxu0 0.0
        %2665 = vmatpush1.msra.mxu0 0.0
        %2666 = vmatprep.subr.mxu0 0.0
        %2667 = vmatpush1.msra.mxu0 0.0
        %2668 = vmatprep.subr.mxu0 0.0
        %2669 = vmatpush1.msra.mxu0 0.0
        %2670 = vmatprep.subr.mxu0 0.0
        %2671 = vmatpush1.msra.mxu0 0.0
        %2672 = vmatprep.subr.mxu0 0.0
        %2673 = vmatpush1.msra.mxu0 0.0
        %2674 = vmatprep.subr.mxu0 0.0
        %2675 = vmatpush1.msra.mxu0 0.0
        %2676 = vmatprep.subr.mxu0 0.0
        %2677 = vmatpush1.msra.mxu0 0.0
        %2678 = vmatprep.subr.mxu0 0.0
        %2679 = vmatpush1.msra.mxu0 0.0
        %2680 = vmatprep.subr.mxu0 0.0
        %2681 = vmatpush1.msra.mxu0 0.0
        %2682 = vmatprep.mubr.f32.mxu0 0.0
        %2683 = vmatmul.mubr.f32.gmra.mrb[0].mxu0 %v2613
        %v2684 = vpop.f32.mrb[0].mxu0
        %v2685 = vadd.f32 %v2369, %v2684
        %v2686 = vpop.f32.mrb[0].mxu0
        %2687 = vdwg.mxu0
        %v2689 = vsel %vm2382, %v2291, 0
        %v2692 = vsel %vm2386, %v836, 0
        %2694 = vmatprep.subr.mxu0 0.0
        %2695 = vmatpush1.msra.mxu0 %v2692
        %2696 = vmatprep.subr.mxu0 0.0
        %2697 = vmatpush1.msra.mxu0 0.0
        %2698 = vmatprep.subr.mxu0 0.0
        %2699 = vmatpush1.msra.mxu0 0.0
        %2700 = vmatprep.subr.mxu0 0.0
        %2701 = vmatpush1.msra.mxu0 0.0
        %2702 = vmatprep.subr.mxu0 0.0
        %2703 = vmatpush1.msra.mxu0 0.0
        %2704 = vmatprep.subr.mxu0 0.0
        %2705 = vmatpush1.msra.mxu0 0.0
        %2706 = vmatprep.subr.mxu0 0.0
        %2707 = vmatpush1.msra.mxu0 0.0
        %2708 = vmatprep.subr.mxu0 0.0
        %2709 = vmatpush1.msra.mxu0 0.0
        %2710 = vmatprep.subr.mxu0 0.0
        %2711 = vmatpush1.msra.mxu0 0.0
        %2712 = vmatprep.subr.mxu0 0.0
        %2713 = vmatpush1.msra.mxu0 0.0
        %2714 = vmatprep.subr.mxu0 0.0
        %2715 = vmatpush1.msra.mxu0 0.0
        %2716 = vmatprep.subr.mxu0 0.0
        %2717 = vmatpush1.msra.mxu0 0.0
        %2718 = vmatprep.subr.mxu0 0.0
        %2719 = vmatpush1.msra.mxu0 0.0
        %2720 = vmatprep.subr.mxu0 0.0
        %2721 = vmatpush1.msra.mxu0 0.0
        %2722 = vmatprep.subr.mxu0 0.0
        %2723 = vmatpush1.msra.mxu0 0.0
        %2724 = vmatprep.subr.mxu0 0.0
        %2725 = vmatpush1.msra.mxu0 0.0
        %2726 = vmatprep.subr.mxu0 0.0
        %2727 = vmatpush1.msra.mxu0 0.0
        %2728 = vmatprep.subr.mxu0 0.0
        %2729 = vmatpush1.msra.mxu0 0.0
        %2730 = vmatprep.subr.mxu0 0.0
        %2731 = vmatpush1.msra.mxu0 0.0
        %2732 = vmatprep.subr.mxu0 0.0
        %2733 = vmatpush1.msra.mxu0 0.0
        %2734 = vmatprep.subr.mxu0 0.0
        %2735 = vmatpush1.msra.mxu0 0.0
        %2736 = vmatprep.subr.mxu0 0.0
        %2737 = vmatpush1.msra.mxu0 0.0
        %2738 = vmatprep.subr.mxu0 0.0
        %2739 = vmatpush1.msra.mxu0 0.0
        %2740 = vmatprep.subr.mxu0 0.0
        %2741 = vmatpush1.msra.mxu0 0.0
        %2742 = vmatprep.subr.mxu0 0.0
        %2743 = vmatpush1.msra.mxu0 0.0
        %2744 = vmatprep.subr.mxu0 0.0
        %2745 = vmatpush1.msra.mxu0 0.0
        %2746 = vmatprep.subr.mxu0 0.0
        %2747 = vmatpush1.msra.mxu0 0.0
        %2748 = vmatprep.subr.mxu0 0.0
        %2749 = vmatpush1.msra.mxu0 0.0
        %2750 = vmatprep.subr.mxu0 0.0
        %2751 = vmatpush1.msra.mxu0 0.0
        %2752 = vmatprep.subr.mxu0 0.0
        %2753 = vmatpush1.msra.mxu0 0.0
        %2754 = vmatprep.subr.mxu0 0.0
        %2755 = vmatpush1.msra.mxu0 0.0
        %2756 = vmatprep.subr.mxu0 0.0
        %2757 = vmatpush1.msra.mxu0 0.0
        %2758 = vmatprep.mubr.f32.mxu0 0.0
        %2759 = vmatmul.mubr.f32.gmra.mrb[0].mxu0 %v2689
        %v2760 = vpop.f32.mrb[0].mxu0
        %v2761 = vadd.f32 %v2370, %v2760
        %v2762 = vpop.f32.mrb[0].mxu0
        %2763 = vdwg.mxu0
        %v2765 = vsel %vm2382, %v2293, 0
        %v2768 = vsel %vm2386, %v846, 0
        %2770 = vmatprep.subr.mxu0 0.0
        %2771 = vmatpush1.msra.mxu0 %v2768
        %2772 = vmatprep.subr.mxu0 0.0
        %2773 = vmatpush1.msra.mxu0 0.0
        %2774 = vmatprep.subr.mxu0 0.0
        %2775 = vmatpush1.msra.mxu0 0.0
        %2776 = vmatprep.subr.mxu0 0.0
        %2777 = vmatpush1.msra.mxu0 0.0
        %2778 = vmatprep.subr.mxu0 0.0
        %2779 = vmatpush1.msra.mxu0 0.0
        %2780 = vmatprep.subr.mxu0 0.0
        %2781 = vmatpush1.msra.mxu0 0.0
        %2782 = vmatprep.subr.mxu0 0.0
        %2783 = vmatpush1.msra.mxu0 0.0
        %2784 = vmatprep.subr.mxu0 0.0
        %2785 = vmatpush1.msra.mxu0 0.0
        %2786 = vmatprep.subr.mxu0 0.0
        %2787 = vmatpush1.msra.mxu0 0.0
        %2788 = vmatprep.subr.mxu0 0.0
        %2789 = vmatpush1.msra.mxu0 0.0
        %2790 = vmatprep.subr.mxu0 0.0
        %2791 = vmatpush1.msra.mxu0 0.0
        %2792 = vmatprep.subr.mxu0 0.0
        %2793 = vmatpush1.msra.mxu0 0.0
        %2794 = vmatprep.subr.mxu0 0.0
        %2795 = vmatpush1.msra.mxu0 0.0
        %2796 = vmatprep.subr.mxu0 0.0
        %2797 = vmatpush1.msra.mxu0 0.0
        %2798 = vmatprep.subr.mxu0 0.0
        %2799 = vmatpush1.msra.mxu0 0.0
        %2800 = vmatprep.subr.mxu0 0.0
        %2801 = vmatpush1.msra.mxu0 0.0
        %2802 = vmatprep.subr.mxu0 0.0
        %2803 = vmatpush1.msra.mxu0 0.0
        %2804 = vmatprep.subr.mxu0 0.0
        %2805 = vmatpush1.msra.mxu0 0.0
        %2806 = vmatprep.subr.mxu0 0.0
        %2807 = vmatpush1.msra.mxu0 0.0
        %2808 = vmatprep.subr.mxu0 0.0
        %2809 = vmatpush1.msra.mxu0 0.0
        %2810 = vmatprep.subr.mxu0 0.0
        %2811 = vmatpush1.msra.mxu0 0.0
        %2812 = vmatprep.subr.mxu0 0.0
        %2813 = vmatpush1.msra.mxu0 0.0
        %2814 = vmatprep.subr.mxu0 0.0
        %2815 = vmatpush1.msra.mxu0 0.0
        %2816 = vmatprep.subr.mxu0 0.0
        %2817 = vmatpush1.msra.mxu0 0.0
        %2818 = vmatprep.subr.mxu0 0.0
        %2819 = vmatpush1.msra.mxu0 0.0
        %2820 = vmatprep.subr.mxu0 0.0
        %2821 = vmatpush1.msra.mxu0 0.0
        %2822 = vmatprep.subr.mxu0 0.0
        %2823 = vmatpush1.msra.mxu0 0.0
        %2824 = vmatprep.subr.mxu0 0.0
        %2825 = vmatpush1.msra.mxu0 0.0
        %2826 = vmatprep.subr.mxu0 0.0
        %2827 = vmatpush1.msra.mxu0 0.0
        %2828 = vmatprep.subr.mxu0 0.0
        %2829 = vmatpush1.msra.mxu0 0.0
        %2830 = vmatprep.subr.mxu0 0.0
        %2831 = vmatpush1.msra.mxu0 0.0
        %2832 = vmatprep.subr.mxu0 0.0
        %2833 = vmatpush1.msra.mxu0 0.0
        %2834 = vmatprep.mubr.f32.mxu0 0.0
        %2835 = vmatmul.mubr.f32.gmra.mrb[0].mxu0 %v2765
        %v2836 = vpop.f32.mrb[0].mxu0
        %v2837 = vadd.f32 %v2371, %v2836
        %v2838 = vpop.f32.mrb[0].mxu0
        %2839 = vdwg.mxu0
        %v2841 = vsel %vm2382, %v2295, 0
        %v2844 = vsel %vm2386, %v843, 0
        %2846 = vmatprep.subr.mxu0 0.0
        %2847 = vmatpush1.msra.mxu0 %v2844
        %2848 = vmatprep.subr.mxu0 0.0
        %2849 = vmatpush1.msra.mxu0 0.0
        %2850 = vmatprep.subr.mxu0 0.0
        %2851 = vmatpush1.msra.mxu0 0.0
        %2852 = vmatprep.subr.mxu0 0.0
        %2853 = vmatpush1.msra.mxu0 0.0
        %2854 = vmatprep.subr.mxu0 0.0
        %2855 = vmatpush1.msra.mxu0 0.0
        %2856 = vmatprep.subr.mxu0 0.0
        %2857 = vmatpush1.msra.mxu0 0.0
        %2858 = vmatprep.subr.mxu0 0.0
        %2859 = vmatpush1.msra.mxu0 0.0
        %2860 = vmatprep.subr.mxu0 0.0
        %2861 = vmatpush1.msra.mxu0 0.0
        %2862 = vmatprep.subr.mxu0 0.0
        %2863 = vmatpush1.msra.mxu0 0.0
        %2864 = vmatprep.subr.mxu0 0.0
        %2865 = vmatpush1.msra.mxu0 0.0
        %2866 = vmatprep.subr.mxu0 0.0
        %2867 = vmatpush1.msra.mxu0 0.0
        %2868 = vmatprep.subr.mxu0 0.0
        %2869 = vmatpush1.msra.mxu0 0.0
        %2870 = vmatprep.subr.mxu0 0.0
        %2871 = vmatpush1.msra.mxu0 0.0
        %2872 = vmatprep.subr.mxu0 0.0
        %2873 = vmatpush1.msra.mxu0 0.0
        %2874 = vmatprep.subr.mxu0 0.0
        %2875 = vmatpush1.msra.mxu0 0.0
        %2876 = vmatprep.subr.mxu0 0.0
        %2877 = vmatpush1.msra.mxu0 0.0
        %2878 = vmatprep.subr.mxu0 0.0
        %2879 = vmatpush1.msra.mxu0 0.0
        %2880 = vmatprep.subr.mxu0 0.0
        %2881 = vmatpush1.msra.mxu0 0.0
        %2882 = vmatprep.subr.mxu0 0.0
        %2883 = vmatpush1.msra.mxu0 0.0
        %2884 = vmatprep.subr.mxu0 0.0
        %2885 = vmatpush1.msra.mxu0 0.0
        %2886 = vmatprep.subr.mxu0 0.0
        %2887 = vmatpush1.msra.mxu0 0.0
        %2888 = vmatprep.subr.mxu0 0.0
        %2889 = vmatpush1.msra.mxu0 0.0
        %2890 = vmatprep.subr.mxu0 0.0
        %2891 = vmatpush1.msra.mxu0 0.0
        %2892 = vmatprep.subr.mxu0 0.0
        %2893 = vmatpush1.msra.mxu0 0.0
        %2894 = vmatprep.subr.mxu0 0.0
        %2895 = vmatpush1.msra.mxu0 0.0
        %2896 = vmatprep.subr.mxu0 0.0
        %2897 = vmatpush1.msra.mxu0 0.0
        %2898 = vmatprep.subr.mxu0 0.0
        %2899 = vmatpush1.msra.mxu0 0.0
        %2900 = vmatprep.subr.mxu0 0.0
        %2901 = vmatpush1.msra.mxu0 0.0
        %2902 = vmatprep.subr.mxu0 0.0
        %2903 = vmatpush1.msra.mxu0 0.0
        %2904 = vmatprep.subr.mxu0 0.0
        %2905 = vmatpush1.msra.mxu0 0.0
        %2906 = vmatprep.subr.mxu0 0.0
        %2907 = vmatpush1.msra.mxu0 0.0
        %2908 = vmatprep.subr.mxu0 0.0
        %2909 = vmatpush1.msra.mxu0 0.0
        %2910 = vmatprep.mubr.f32.mxu0 0.0
        %2911 = vmatmul.mubr.f32.gmra.mrb[0].mxu0 %v2841
        %v2912 = vpop.f32.mrb[0].mxu0
        %v2913 = vadd.f32 %v2372, %v2912
        %v2914 = vpop.f32.mrb[0].mxu0
        %2915 = vdwg.mxu0
        %v2917 = vsel %vm2382, %v2297, 0
        %v2920 = vsel %vm2386, %v847, 0
        %2922 = vmatprep.subr.mxu0 0.0
        %2923 = vmatpush1.msra.mxu0 %v2920
        %2924 = vmatprep.subr.mxu0 0.0
        %2925 = vmatpush1.msra.mxu0 0.0
        %2926 = vmatprep.subr.mxu0 0.0
        %2927 = vmatpush1.msra.mxu0 0.0
        %2928 = vmatprep.subr.mxu0 0.0
        %2929 = vmatpush1.msra.mxu0 0.0
        %2930 = vmatprep.subr.mxu0 0.0
        %2931 = vmatpush1.msra.mxu0 0.0
        %2932 = vmatprep.subr.mxu0 0.0
        %2933 = vmatpush1.msra.mxu0 0.0
        %2934 = vmatprep.subr.mxu0 0.0
        %2935 = vmatpush1.msra.mxu0 0.0
        %2936 = vmatprep.subr.mxu0 0.0
        %2937 = vmatpush1.msra.mxu0 0.0
        %2938 = vmatprep.subr.mxu0 0.0
        %2939 = vmatpush1.msra.mxu0 0.0
        %2940 = vmatprep.subr.mxu0 0.0
        %2941 = vmatpush1.msra.mxu0 0.0
        %2942 = vmatprep.subr.mxu0 0.0
        %2943 = vmatpush1.msra.mxu0 0.0
        %2944 = vmatprep.subr.mxu0 0.0
        %2945 = vmatpush1.msra.mxu0 0.0
        %2946 = vmatprep.subr.mxu0 0.0
        %2947 = vmatpush1.msra.mxu0 0.0
        %2948 = vmatprep.subr.mxu0 0.0
        %2949 = vmatpush1.msra.mxu0 0.0
        %2950 = vmatprep.subr.mxu0 0.0
        %2951 = vmatpush1.msra.mxu0 0.0
        %2952 = vmatprep.subr.mxu0 0.0
        %2953 = vmatpush1.msra.mxu0 0.0
        %2954 = vmatprep.subr.mxu0 0.0
        %2955 = vmatpush1.msra.mxu0 0.0
        %2956 = vmatprep.subr.mxu0 0.0
        %2957 = vmatpush1.msra.mxu0 0.0
        %2958 = vmatprep.subr.mxu0 0.0
        %2959 = vmatpush1.msra.mxu0 0.0
        %2960 = vmatprep.subr.mxu0 0.0
        %2961 = vmatpush1.msra.mxu0 0.0
        %2962 = vmatprep.subr.mxu0 0.0
        %2963 = vmatpush1.msra.mxu0 0.0
        %2964 = vmatprep.subr.mxu0 0.0
        %2965 = vmatpush1.msra.mxu0 0.0
        %2966 = vmatprep.subr.mxu0 0.0
        %2967 = vmatpush1.msra.mxu0 0.0
        %2968 = vmatprep.subr.mxu0 0.0
        %2969 = vmatpush1.msra.mxu0 0.0
        %2970 = vmatprep.subr.mxu0 0.0
        %2971 = vmatpush1.msra.mxu0 0.0
        %2972 = vmatprep.subr.mxu0 0.0
        %2973 = vmatpush1.msra.mxu0 0.0
        %2974 = vmatprep.subr.mxu0 0.0
        %2975 = vmatpush1.msra.mxu0 0.0
        %2976 = vmatprep.subr.mxu0 0.0
        %2977 = vmatpush1.msra.mxu0 0.0
        %2978 = vmatprep.subr.mxu0 0.0
        %2979 = vmatpush1.msra.mxu0 0.0
        %2980 = vmatprep.subr.mxu0 0.0
        %2981 = vmatpush1.msra.mxu0 0.0
        %2982 = vmatprep.subr.mxu0 0.0
        %2983 = vmatpush1.msra.mxu0 0.0
        %2984 = vmatprep.subr.mxu0 0.0
        %2985 = vmatpush1.msra.mxu0 0.0
        %2986 = vmatprep.mubr.f32.mxu0 0.0
        %2987 = vmatmul.mubr.f32.gmra.mrb[0].mxu0 %v2917
        %v2988 = vpop.f32.mrb[0].mxu0
        %v2989 = vadd.f32 %v2373, %v2988
        %v2990 = vpop.f32.mrb[0].mxu0
        %2991 = vdwg.mxu0
        %v2993 = vsel %vm2382, %v2299, 0
        %v2996 = vsel %vm2386, %v888, 0
        %2998 = vmatprep.subr.mxu0 0.0
        %2999 = vmatpush1.msra.mxu0 %v2996
        %3000 = vmatprep.subr.mxu0 0.0
        %3001 = vmatpush1.msra.mxu0 0.0
        %3002 = vmatprep.subr.mxu0 0.0
        %3003 = vmatpush1.msra.mxu0 0.0
        %3004 = vmatprep.subr.mxu0 0.0
        %3005 = vmatpush1.msra.mxu0 0.0
        %3006 = vmatprep.subr.mxu0 0.0
        %3007 = vmatpush1.msra.mxu0 0.0
        %3008 = vmatprep.subr.mxu0 0.0
        %3009 = vmatpush1.msra.mxu0 0.0
        %3010 = vmatprep.subr.mxu0 0.0
        %3011 = vmatpush1.msra.mxu0 0.0
        %3012 = vmatprep.subr.mxu0 0.0
        %3013 = vmatpush1.msra.mxu0 0.0
        %3014 = vmatprep.subr.mxu0 0.0
        %3015 = vmatpush1.msra.mxu0 0.0
        %3016 = vmatprep.subr.mxu0 0.0
        %3017 = vmatpush1.msra.mxu0 0.0
        %3018 = vmatprep.subr.mxu0 0.0
        %3019 = vmatpush1.msra.mxu0 0.0
        %3020 = vmatprep.subr.mxu0 0.0
        %3021 = vmatpush1.msra.mxu0 0.0
        %3022 = vmatprep.subr.mxu0 0.0
        %3023 = vmatpush1.msra.mxu0 0.0
        %3024 = vmatprep.subr.mxu0 0.0
        %3025 = vmatpush1.msra.mxu0 0.0
        %3026 = vmatprep.subr.mxu0 0.0
        %3027 = vmatpush1.msra.mxu0 0.0
        %3028 = vmatprep.subr.mxu0 0.0
        %3029 = vmatpush1.msra.mxu0 0.0
        %3030 = vmatprep.subr.mxu0 0.0
        %3031 = vmatpush1.msra.mxu0 0.0
        %3032 = vmatprep.subr.mxu0 0.0
        %3033 = vmatpush1.msra.mxu0 0.0
        %3034 = vmatprep.subr.mxu0 0.0
        %3035 = vmatpush1.msra.mxu0 0.0
        %3036 = vmatprep.subr.mxu0 0.0
        %3037 = vmatpush1.msra.mxu0 0.0
        %3038 = vmatprep.subr.mxu0 0.0
        %3039 = vmatpush1.msra.mxu0 0.0
        %3040 = vmatprep.subr.mxu0 0.0
        %3041 = vmatpush1.msra.mxu0 0.0
        %3042 = vmatprep.subr.mxu0 0.0
        %3043 = vmatpush1.msra.mxu0 0.0
        %3044 = vmatprep.subr.mxu0 0.0
        %3045 = vmatpush1.msra.mxu0 0.0
        %3046 = vmatprep.subr.mxu0 0.0
        %3047 = vmatpush1.msra.mxu0 0.0
        %3048 = vmatprep.subr.mxu0 0.0
        %3049 = vmatpush1.msra.mxu0 0.0
        %3050 = vmatprep.subr.mxu0 0.0
        %3051 = vmatpush1.msra.mxu0 0.0
        %3052 = vmatprep.subr.mxu0 0.0
        %3053 = vmatpush1.msra.mxu0 0.0
        %3054 = vmatprep.subr.mxu0 0.0
        %3055 = vmatpush1.msra.mxu0 0.0
        %3056 = vmatprep.subr.mxu0 0.0
        %3057 = vmatpush1.msra.mxu0 0.0
        %3058 = vmatprep.subr.mxu0 0.0
        %3059 = vmatpush1.msra.mxu0 0.0
        %3060 = vmatprep.subr.mxu0 0.0
        %3061 = vmatpush1.msra.mxu0 0.0
        %3062 = vmatprep.mubr.f32.mxu0 0.0
        %3063 = vmatmul.mubr.f32.gmra.mrb[0].mxu0 %v2993
        %v3064 = vpop.f32.mrb[0].mxu0
        %v3065 = vadd.f32 %v2374, %v3064
        %v3066 = vpop.f32.mrb[0].mxu0
        %3067 = vdwg.mxu0
        %v3069 = vsel %vm2382, %v2301, 0
        %v3072 = vsel %vm2386, %v912, 0
        %3074 = vmatprep.subr.mxu0 0.0
        %3075 = vmatpush1.msra.mxu0 %v3072
        %3076 = vmatprep.subr.mxu0 0.0
        %3077 = vmatpush1.msra.mxu0 0.0
        %3078 = vmatprep.subr.mxu0 0.0
        %3079 = vmatpush1.msra.mxu0 0.0
        %3080 = vmatprep.subr.mxu0 0.0
        %3081 = vmatpush1.msra.mxu0 0.0
        %3082 = vmatprep.subr.mxu0 0.0
        %3083 = vmatpush1.msra.mxu0 0.0
        %3084 = vmatprep.subr.mxu0 0.0
        %3085 = vmatpush1.msra.mxu0 0.0
        %3086 = vmatprep.subr.mxu0 0.0
        %3087 = vmatpush1.msra.mxu0 0.0
        %3088 = vmatprep.subr.mxu0 0.0
        %3089 = vmatpush1.msra.mxu0 0.0
        %3090 = vmatprep.subr.mxu0 0.0
        %3091 = vmatpush1.msra.mxu0 0.0
        %3092 = vmatprep.subr.mxu0 0.0
        %3093 = vmatpush1.msra.mxu0 0.0
        %3094 = vmatprep.subr.mxu0 0.0
        %3095 = vmatpush1.msra.mxu0 0.0
        %3096 = vmatprep.subr.mxu0 0.0
        %3097 = vmatpush1.msra.mxu0 0.0
        %3098 = vmatprep.subr.mxu0 0.0
        %3099 = vmatpush1.msra.mxu0 0.0
        %3100 = vmatprep.subr.mxu0 0.0
        %3101 = vmatpush1.msra.mxu0 0.0
        %3102 = vmatprep.subr.mxu0 0.0
        %3103 = vmatpush1.msra.mxu0 0.0
        %3104 = vmatprep.subr.mxu0 0.0
        %3105 = vmatpush1.msra.mxu0 0.0
        %3106 = vmatprep.subr.mxu0 0.0
        %3107 = vmatpush1.msra.mxu0 0.0
        %3108 = vmatprep.subr.mxu0 0.0
        %3109 = vmatpush1.msra.mxu0 0.0
        %3110 = vmatprep.subr.mxu0 0.0
        %3111 = vmatpush1.msra.mxu0 0.0
        %3112 = vmatprep.subr.mxu0 0.0
        %3113 = vmatpush1.msra.mxu0 0.0
        %3114 = vmatprep.subr.mxu0 0.0
        %3115 = vmatpush1.msra.mxu0 0.0
        %3116 = vmatprep.subr.mxu0 0.0
        %3117 = vmatpush1.msra.mxu0 0.0
        %3118 = vmatprep.subr.mxu0 0.0
        %3119 = vmatpush1.msra.mxu0 0.0
        %3120 = vmatprep.subr.mxu0 0.0
        %3121 = vmatpush1.msra.mxu0 0.0
        %3122 = vmatprep.subr.mxu0 0.0
        %3123 = vmatpush1.msra.mxu0 0.0
        %3124 = vmatprep.subr.mxu0 0.0
        %3125 = vmatpush1.msra.mxu0 0.0
        %3126 = vmatprep.subr.mxu0 0.0
        %3127 = vmatpush1.msra.mxu0 0.0
        %3128 = vmatprep.subr.mxu0 0.0
        %3129 = vmatpush1.msra.mxu0 0.0
        %3130 = vmatprep.subr.mxu0 0.0
        %3131 = vmatpush1.msra.mxu0 0.0
        %3132 = vmatprep.subr.mxu0 0.0
        %3133 = vmatpush1.msra.mxu0 0.0
        %3134 = vmatprep.subr.mxu0 0.0
        %3135 = vmatpush1.msra.mxu0 0.0
        %3136 = vmatprep.subr.mxu0 0.0
        %3137 = vmatpush1.msra.mxu0 0.0
        %3138 = vmatprep.mubr.f32.mxu0 0.0
        %3139 = vmatmul.mubr.f32.gmra.mrb[0].mxu0 %v3069
        %v3140 = vpop.f32.mrb[0].mxu0
        %v3141 = vadd.f32 %v2375, %v3140
        %v3142 = vpop.f32.mrb[0].mxu0
        %3143 = vdwg.mxu0
        %v3145 = vsel %vm2382, %v2303, 0
        %v3148 = vsel %vm2386, %v895, 0
        %3150 = vmatprep.subr.mxu0 0.0
        %3151 = vmatpush1.msra.mxu0 %v3148
        %3152 = vmatprep.subr.mxu0 0.0
        %3153 = vmatpush1.msra.mxu0 0.0
        %3154 = vmatprep.subr.mxu0 0.0
        %3155 = vmatpush1.msra.mxu0 0.0
        %3156 = vmatprep.subr.mxu0 0.0
        %3157 = vmatpush1.msra.mxu0 0.0
        %3158 = vmatprep.subr.mxu0 0.0
        %3159 = vmatpush1.msra.mxu0 0.0
        %3160 = vmatprep.subr.mxu0 0.0
        %3161 = vmatpush1.msra.mxu0 0.0
        %3162 = vmatprep.subr.mxu0 0.0
        %3163 = vmatpush1.msra.mxu0 0.0
        %3164 = vmatprep.subr.mxu0 0.0
        %3165 = vmatpush1.msra.mxu0 0.0
        %3166 = vmatprep.subr.mxu0 0.0
        %3167 = vmatpush1.msra.mxu0 0.0
        %3168 = vmatprep.subr.mxu0 0.0
        %3169 = vmatpush1.msra.mxu0 0.0
        %3170 = vmatprep.subr.mxu0 0.0
        %3171 = vmatpush1.msra.mxu0 0.0
        %3172 = vmatprep.subr.mxu0 0.0
        %3173 = vmatpush1.msra.mxu0 0.0
        %3174 = vmatprep.subr.mxu0 0.0
        %3175 = vmatpush1.msra.mxu0 0.0
        %3176 = vmatprep.subr.mxu0 0.0
        %3177 = vmatpush1.msra.mxu0 0.0
        %3178 = vmatprep.subr.mxu0 0.0
        %3179 = vmatpush1.msra.mxu0 0.0
        %3180 = vmatprep.subr.mxu0 0.0
        %3181 = vmatpush1.msra.mxu0 0.0
        %3182 = vmatprep.subr.mxu0 0.0
        %3183 = vmatpush1.msra.mxu0 0.0
        %3184 = vmatprep.subr.mxu0 0.0
        %3185 = vmatpush1.msra.mxu0 0.0
        %3186 = vmatprep.subr.mxu0 0.0
        %3187 = vmatpush1.msra.mxu0 0.0
        %3188 = vmatprep.subr.mxu0 0.0
        %3189 = vmatpush1.msra.mxu0 0.0
        %3190 = vmatprep.subr.mxu0 0.0
        %3191 = vmatpush1.msra.mxu0 0.0
        %3192 = vmatprep.subr.mxu0 0.0
        %3193 = vmatpush1.msra.mxu0 0.0
        %3194 = vmatprep.subr.mxu0 0.0
        %3195 = vmatpush1.msra.mxu0 0.0
        %3196 = vmatprep.subr.mxu0 0.0
        %3197 = vmatpush1.msra.mxu0 0.0
        %3198 = vmatprep.subr.mxu0 0.0
        %3199 = vmatpush1.msra.mxu0 0.0
        %3200 = vmatprep.subr.mxu0 0.0
        %3201 = vmatpush1.msra.mxu0 0.0
        %3202 = vmatprep.subr.mxu0 0.0
        %3203 = vmatpush1.msra.mxu0 0.0
        %3204 = vmatprep.subr.mxu0 0.0
        %3205 = vmatpush1.msra.mxu0 0.0
        %3206 = vmatprep.subr.mxu0 0.0
        %3207 = vmatpush1.msra.mxu0 0.0
        %3208 = vmatprep.subr.mxu0 0.0
        %3209 = vmatpush1.msra.mxu0 0.0
        %3210 = vmatprep.subr.mxu0 0.0
        %3211 = vmatpush1.msra.mxu0 0.0
        %3212 = vmatprep.subr.mxu0 0.0
        %3213 = vmatpush1.msra.mxu0 0.0
        %3214 = vmatprep.mubr.f32.mxu0 0.0
        %3215 = vmatmul.mubr.f32.gmra.mrb[0].mxu0 %v3145
        %v3216 = vpop.f32.mrb[0].mxu0
        %v3217 = vadd.f32 %v2376, %v3216
        %v3218 = vpop.f32.mrb[0].mxu0
        %3219 = vdwg.mxu0
        %v3221 = vsel %vm2382, %v2305, 0
        %v3224 = vsel %vm2386, %v913, 0
        %3226 = vmatprep.subr.mxu0 0.0
        %3227 = vmatpush1.msra.mxu0 %v3224
        %3228 = vmatprep.subr.mxu0 0.0
        %3229 = vmatpush1.msra.mxu0 0.0
        %3230 = vmatprep.subr.mxu0 0.0
        %3231 = vmatpush1.msra.mxu0 0.0
        %3232 = vmatprep.subr.mxu0 0.0
        %3233 = vmatpush1.msra.mxu0 0.0
        %3234 = vmatprep.subr.mxu0 0.0
        %3235 = vmatpush1.msra.mxu0 0.0
        %3236 = vmatprep.subr.mxu0 0.0
        %3237 = vmatpush1.msra.mxu0 0.0
        %3238 = vmatprep.subr.mxu0 0.0
        %3239 = vmatpush1.msra.mxu0 0.0
        %3240 = vmatprep.subr.mxu0 0.0
        %3241 = vmatpush1.msra.mxu0 0.0
        %3242 = vmatprep.subr.mxu0 0.0
        %3243 = vmatpush1.msra.mxu0 0.0
        %3244 = vmatprep.subr.mxu0 0.0
        %3245 = vmatpush1.msra.mxu0 0.0
        %3246 = vmatprep.subr.mxu0 0.0
        %3247 = vmatpush1.msra.mxu0 0.0
        %3248 = vmatprep.subr.mxu0 0.0
        %3249 = vmatpush1.msra.mxu0 0.0
        %3250 = vmatprep.subr.mxu0 0.0
        %3251 = vmatpush1.msra.mxu0 0.0
        %3252 = vmatprep.subr.mxu0 0.0
        %3253 = vmatpush1.msra.mxu0 0.0
        %3254 = vmatprep.subr.mxu0 0.0
        %3255 = vmatpush1.msra.mxu0 0.0
        %3256 = vmatprep.subr.mxu0 0.0
        %3257 = vmatpush1.msra.mxu0 0.0
        %3258 = vmatprep.subr.mxu0 0.0
        %3259 = vmatpush1.msra.mxu0 0.0
        %3260 = vmatprep.subr.mxu0 0.0
        %3261 = vmatpush1.msra.mxu0 0.0
        %3262 = vmatprep.subr.mxu0 0.0
        %3263 = vmatpush1.msra.mxu0 0.0
        %3264 = vmatprep.subr.mxu0 0.0
        %3265 = vmatpush1.msra.mxu0 0.0
        %3266 = vmatprep.subr.mxu0 0.0
        %3267 = vmatpush1.msra.mxu0 0.0
        %3268 = vmatprep.subr.mxu0 0.0
        %3269 = vmatpush1.msra.mxu0 0.0
        %3270 = vmatprep.subr.mxu0 0.0
        %3271 = vmatpush1.msra.mxu0 0.0
        %3272 = vmatprep.subr.mxu0 0.0
        %3273 = vmatpush1.msra.mxu0 0.0
        %3274 = vmatprep.subr.mxu0 0.0
        %3275 = vmatpush1.msra.mxu0 0.0
        %3276 = vmatprep.subr.mxu0 0.0
        %3277 = vmatpush1.msra.mxu0 0.0
        %3278 = vmatprep.subr.mxu0 0.0
        %3279 = vmatpush1.msra.mxu0 0.0
        %3280 = vmatprep.subr.mxu0 0.0
        %3281 = vmatpush1.msra.mxu0 0.0
        %3282 = vmatprep.subr.mxu0 0.0
        %3283 = vmatpush1.msra.mxu0 0.0
        %3284 = vmatprep.subr.mxu0 0.0
        %3285 = vmatpush1.msra.mxu0 0.0
        %3286 = vmatprep.subr.mxu0 0.0
        %3287 = vmatpush1.msra.mxu0 0.0
        %3288 = vmatprep.subr.mxu0 0.0
        %3289 = vmatpush1.msra.mxu0 0.0
        %3290 = vmatprep.mubr.f32.mxu0 0.0
        %3291 = vmatmul.mubr.f32.gmra.mrb[0].mxu0 %v3221
        %v3292 = vpop.f32.mrb[0].mxu0
        %v3293 = vadd.f32 %v2377, %v3292
        %v3294 = vpop.f32.mrb[0].mxu0
        %3295 = vdwg.mxu0
        %v3297 = vsel %vm2382, %v2307, 0
        %v3300 = vsel %vm2386, %v904, 0
        %3302 = vmatprep.subr.mxu0 0.0
        %3303 = vmatpush1.msra.mxu0 %v3300
        %3304 = vmatprep.subr.mxu0 0.0
        %3305 = vmatpush1.msra.mxu0 0.0
        %3306 = vmatprep.subr.mxu0 0.0
        %3307 = vmatpush1.msra.mxu0 0.0
        %3308 = vmatprep.subr.mxu0 0.0
        %3309 = vmatpush1.msra.mxu0 0.0
        %3310 = vmatprep.subr.mxu0 0.0
        %3311 = vmatpush1.msra.mxu0 0.0
        %3312 = vmatprep.subr.mxu0 0.0
        %3313 = vmatpush1.msra.mxu0 0.0
        %3314 = vmatprep.subr.mxu0 0.0
        %3315 = vmatpush1.msra.mxu0 0.0
        %3316 = vmatprep.subr.mxu0 0.0
        %3317 = vmatpush1.msra.mxu0 0.0
        %3318 = vmatprep.subr.mxu0 0.0
        %3319 = vmatpush1.msra.mxu0 0.0
        %3320 = vmatprep.subr.mxu0 0.0
        %3321 = vmatpush1.msra.mxu0 0.0
        %3322 = vmatprep.subr.mxu0 0.0
        %3323 = vmatpush1.msra.mxu0 0.0
        %3324 = vmatprep.subr.mxu0 0.0
        %3325 = vmatpush1.msra.mxu0 0.0
        %3326 = vmatprep.subr.mxu0 0.0
        %3327 = vmatpush1.msra.mxu0 0.0
        %3328 = vmatprep.subr.mxu0 0.0
        %3329 = vmatpush1.msra.mxu0 0.0
        %3330 = vmatprep.subr.mxu0 0.0
        %3331 = vmatpush1.msra.mxu0 0.0
        %3332 = vmatprep.subr.mxu0 0.0
        %3333 = vmatpush1.msra.mxu0 0.0
        %3334 = vmatprep.subr.mxu0 0.0
        %3335 = vmatpush1.msra.mxu0 0.0
        %3336 = vmatprep.subr.mxu0 0.0
        %3337 = vmatpush1.msra.mxu0 0.0
        %3338 = vmatprep.subr.mxu0 0.0
        %3339 = vmatpush1.msra.mxu0 0.0
        %3340 = vmatprep.subr.mxu0 0.0
        %3341 = vmatpush1.msra.mxu0 0.0
        %3342 = vmatprep.subr.mxu0 0.0
        %3343 = vmatpush1.msra.mxu0 0.0
        %3344 = vmatprep.subr.mxu0 0.0
        %3345 = vmatpush1.msra.mxu0 0.0
        %3346 = vmatprep.subr.mxu0 0.0
        %3347 = vmatpush1.msra.mxu0 0.0
        %3348 = vmatprep.subr.mxu0 0.0
        %3349 = vmatpush1.msra.mxu0 0.0
        %3350 = vmatprep.subr.mxu0 0.0
        %3351 = vmatpush1.msra.mxu0 0.0
        %3352 = vmatprep.subr.mxu0 0.0
        %3353 = vmatpush1.msra.mxu0 0.0
        %3354 = vmatprep.subr.mxu0 0.0
        %3355 = vmatpush1.msra.mxu0 0.0
        %3356 = vmatprep.subr.mxu0 0.0
        %3357 = vmatpush1.msra.mxu0 0.0
        %3358 = vmatprep.subr.mxu0 0.0
        %3359 = vmatpush1.msra.mxu0 0.0
        %3360 = vmatprep.subr.mxu0 0.0
        %3361 = vmatpush1.msra.mxu0 0.0
        %3362 = vmatprep.subr.mxu0 0.0
        %3363 = vmatpush1.msra.mxu0 0.0
        %3364 = vmatprep.subr.mxu0 0.0
        %3365 = vmatpush1.msra.mxu0 0.0
        %3366 = vmatprep.mubr.f32.mxu0 0.0
        %3367 = vmatmul.mubr.f32.gmra.mrb[0].mxu0 %v3297
        %v3368 = vpop.f32.mrb[0].mxu0
        %v3369 = vadd.f32 %v2378, %v3368
        %v3370 = vpop.f32.mrb[0].mxu0
        %3371 = vdwg.mxu0
        %v3373 = vsel %vm2382, %v2309, 0
        %v3376 = vsel %vm2386, %v914, 0
        %3378 = vmatprep.subr.mxu0 0.0
        %3379 = vmatpush1.msra.mxu0 %v3376
        %3380 = vmatprep.subr.mxu0 0.0
        %3381 = vmatpush1.msra.mxu0 0.0
        %3382 = vmatprep.subr.mxu0 0.0
        %3383 = vmatpush1.msra.mxu0 0.0
        %3384 = vmatprep.subr.mxu0 0.0
        %3385 = vmatpush1.msra.mxu0 0.0
        %3386 = vmatprep.subr.mxu0 0.0
        %3387 = vmatpush1.msra.mxu0 0.0
        %3388 = vmatprep.subr.mxu0 0.0
        %3389 = vmatpush1.msra.mxu0 0.0
        %3390 = vmatprep.subr.mxu0 0.0
        %3391 = vmatpush1.msra.mxu0 0.0
        %3392 = vmatprep.subr.mxu0 0.0
        %3393 = vmatpush1.msra.mxu0 0.0
        %3394 = vmatprep.subr.mxu0 0.0
        %3395 = vmatpush1.msra.mxu0 0.0
        %3396 = vmatprep.subr.mxu0 0.0
        %3397 = vmatpush1.msra.mxu0 0.0
        %3398 = vmatprep.subr.mxu0 0.0
        %3399 = vmatpush1.msra.mxu0 0.0
        %3400 = vmatprep.subr.mxu0 0.0
        %3401 = vmatpush1.msra.mxu0 0.0
        %3402 = vmatprep.subr.mxu0 0.0
        %3403 = vmatpush1.msra.mxu0 0.0
        %3404 = vmatprep.subr.mxu0 0.0
        %3405 = vmatpush1.msra.mxu0 0.0
        %3406 = vmatprep.subr.mxu0 0.0
        %3407 = vmatpush1.msra.mxu0 0.0
        %3408 = vmatprep.subr.mxu0 0.0
        %3409 = vmatpush1.msra.mxu0 0.0
        %3410 = vmatprep.subr.mxu0 0.0
        %3411 = vmatpush1.msra.mxu0 0.0
        %3412 = vmatprep.subr.mxu0 0.0
        %3413 = vmatpush1.msra.mxu0 0.0
        %3414 = vmatprep.subr.mxu0 0.0
        %3415 = vmatpush1.msra.mxu0 0.0
        %3416 = vmatprep.subr.mxu0 0.0
        %3417 = vmatpush1.msra.mxu0 0.0
        %3418 = vmatprep.subr.mxu0 0.0
        %3419 = vmatpush1.msra.mxu0 0.0
        %3420 = vmatprep.subr.mxu0 0.0
        %3421 = vmatpush1.msra.mxu0 0.0
        %3422 = vmatprep.subr.mxu0 0.0
        %3423 = vmatpush1.msra.mxu0 0.0
        %3424 = vmatprep.subr.mxu0 0.0
        %3425 = vmatpush1.msra.mxu0 0.0
        %3426 = vmatprep.subr.mxu0 0.0
        %3427 = vmatpush1.msra.mxu0 0.0
        %3428 = vmatprep.subr.mxu0 0.0
        %3429 = vmatpush1.msra.mxu0 0.0
        %3430 = vmatprep.subr.mxu0 0.0
        %3431 = vmatpush1.msra.mxu0 0.0
        %3432 = vmatprep.subr.mxu0 0.0
        %3433 = vmatpush1.msra.mxu0 0.0
        %3434 = vmatprep.subr.mxu0 0.0
        %3435 = vmatpush1.msra.mxu0 0.0
        %3436 = vmatprep.subr.mxu0 0.0
        %3437 = vmatpush1.msra.mxu0 0.0
        %3438 = vmatprep.subr.mxu0 0.0
        %3439 = vmatpush1.msra.mxu0 0.0
        %3440 = vmatprep.subr.mxu0 0.0
        %3441 = vmatpush1.msra.mxu0 0.0
        %3442 = vmatprep.mubr.f32.mxu0 0.0
        %3443 = vmatmul.mubr.f32.gmra.mrb[0].mxu0 %v3373
        %v3444 = vpop.f32.mrb[0].mxu0
        %v3445 = vadd.f32 %v2379, %v3444
        %v3446 = vpop.f32.mrb[0].mxu0
        %3447 = vdwg.mxu0
        %v3449 = vsel %vm2382, %v2311, 0
        %v3452 = vsel %vm2386, %v911, 0
        %3454 = vmatprep.subr.mxu0 0.0
        %3455 = vmatpush1.msra.mxu0 %v3452
        %3456 = vmatprep.subr.mxu0 0.0
        %3457 = vmatpush1.msra.mxu0 0.0
        %3458 = vmatprep.subr.mxu0 0.0
        %3459 = vmatpush1.msra.mxu0 0.0
        %3460 = vmatprep.subr.mxu0 0.0
        %3461 = vmatpush1.msra.mxu0 0.0
        %3462 = vmatprep.subr.mxu0 0.0
        %3463 = vmatpush1.msra.mxu0 0.0
        %3464 = vmatprep.subr.mxu0 0.0
        %3465 = vmatpush1.msra.mxu0 0.0
        %3466 = vmatprep.subr.mxu0 0.0
        %3467 = vmatpush1.msra.mxu0 0.0
        %3468 = vmatprep.subr.mxu0 0.0
        %3469 = vmatpush1.msra.mxu0 0.0
        %3470 = vmatprep.subr.mxu0 0.0
        %3471 = vmatpush1.msra.mxu0 0.0
        %3472 = vmatprep.subr.mxu0 0.0
        %3473 = vmatpush1.msra.mxu0 0.0
        %3474 = vmatprep.subr.mxu0 0.0
        %3475 = vmatpush1.msra.mxu0 0.0
        %3476 = vmatprep.subr.mxu0 0.0
        %3477 = vmatpush1.msra.mxu0 0.0
        %3478 = vmatprep.subr.mxu0 0.0
        %3479 = vmatpush1.msra.mxu0 0.0
        %3480 = vmatprep.subr.mxu0 0.0
        %3481 = vmatpush1.msra.mxu0 0.0
        %3482 = vmatprep.subr.mxu0 0.0
        %3483 = vmatpush1.msra.mxu0 0.0
        %3484 = vmatprep.subr.mxu0 0.0
        %3485 = vmatpush1.msra.mxu0 0.0
        %3486 = vmatprep.subr.mxu0 0.0
        %3487 = vmatpush1.msra.mxu0 0.0
        %3488 = vmatprep.subr.mxu0 0.0
        %3489 = vmatpush1.msra.mxu0 0.0
        %3490 = vmatprep.subr.mxu0 0.0
        %3491 = vmatpush1.msra.mxu0 0.0
        %3492 = vmatprep.subr.mxu0 0.0
        %3493 = vmatpush1.msra.mxu0 0.0
        %3494 = vmatprep.subr.mxu0 0.0
        %3495 = vmatpush1.msra.mxu0 0.0
        %3496 = vmatprep.subr.mxu0 0.0
        %3497 = vmatpush1.msra.mxu0 0.0
        %3498 = vmatprep.subr.mxu0 0.0
        %3499 = vmatpush1.msra.mxu0 0.0
        %3500 = vmatprep.subr.mxu0 0.0
        %3501 = vmatpush1.msra.mxu0 0.0
        %3502 = vmatprep.subr.mxu0 0.0
        %3503 = vmatpush1.msra.mxu0 0.0
        %3504 = vmatprep.subr.mxu0 0.0
        %3505 = vmatpush1.msra.mxu0 0.0
        %3506 = vmatprep.subr.mxu0 0.0
        %3507 = vmatpush1.msra.mxu0 0.0
        %3508 = vmatprep.subr.mxu0 0.0
        %3509 = vmatpush1.msra.mxu0 0.0
        %3510 = vmatprep.subr.mxu0 0.0
        %3511 = vmatpush1.msra.mxu0 0.0
        %3512 = vmatprep.subr.mxu0 0.0
        %3513 = vmatpush1.msra.mxu0 0.0
        %3514 = vmatprep.subr.mxu0 0.0
        %3515 = vmatpush1.msra.mxu0 0.0
        %3516 = vmatprep.subr.mxu0 0.0
        %3517 = vmatpush1.msra.mxu0 0.0
        %3518 = vmatprep.mubr.f32.mxu0 0.0
        %3519 = vmatmul.mubr.f32.gmra.mrb[0].mxu0 %v3449
        %v3520 = vpop.f32.mrb[0].mxu0
        %v3521 = vadd.f32 %v2380, %v3520
        %v3522 = vpop.f32.mrb[0].mxu0
        %3523 = vdwg.mxu0
        %v3525 = vsel %vm2382, %v2313, 0
        %v3528 = vsel %vm2386, %v915, 0
        %3530 = vmatprep.subr.mxu0 0.0
        %3531 = vmatpush1.msra.mxu0 %v3528
        %3532 = vmatprep.subr.mxu0 0.0
        %3533 = vmatpush1.msra.mxu0 0.0
        %3534 = vmatprep.subr.mxu0 0.0
        %3535 = vmatpush1.msra.mxu0 0.0
        %3536 = vmatprep.subr.mxu0 0.0
        %3537 = vmatpush1.msra.mxu0 0.0
        %3538 = vmatprep.subr.mxu0 0.0
        %3539 = vmatpush1.msra.mxu0 0.0
        %3540 = vmatprep.subr.mxu0 0.0
        %3541 = vmatpush1.msra.mxu0 0.0
        %3542 = vmatprep.subr.mxu0 0.0
        %3543 = vmatpush1.msra.mxu0 0.0
        %3544 = vmatprep.subr.mxu0 0.0
        %3545 = vmatpush1.msra.mxu0 0.0
        %3546 = vmatprep.subr.mxu0 0.0
        %3547 = vmatpush1.msra.mxu0 0.0
        %3548 = vmatprep.subr.mxu0 0.0
        %3549 = vmatpush1.msra.mxu0 0.0
        %3550 = vmatprep.subr.mxu0 0.0
        %3551 = vmatpush1.msra.mxu0 0.0
        %3552 = vmatprep.subr.mxu0 0.0
        %3553 = vmatpush1.msra.mxu0 0.0
        %3554 = vmatprep.subr.mxu0 0.0
        %3555 = vmatpush1.msra.mxu0 0.0
        %3556 = vmatprep.subr.mxu0 0.0
        %3557 = vmatpush1.msra.mxu0 0.0
        %3558 = vmatprep.subr.mxu0 0.0
        %3559 = vmatpush1.msra.mxu0 0.0
        %3560 = vmatprep.subr.mxu0 0.0
        %3561 = vmatpush1.msra.mxu0 0.0
        %3562 = vmatprep.subr.mxu0 0.0
        %3563 = vmatpush1.msra.mxu0 0.0
        %3564 = vmatprep.subr.mxu0 0.0
        %3565 = vmatpush1.msra.mxu0 0.0
        %3566 = vmatprep.subr.mxu0 0.0
        %3567 = vmatpush1.msra.mxu0 0.0
        %3568 = vmatprep.subr.mxu0 0.0
        %3569 = vmatpush1.msra.mxu0 0.0
        %3570 = vmatprep.subr.mxu0 0.0
        %3571 = vmatpush1.msra.mxu0 0.0
        %3572 = vmatprep.subr.mxu0 0.0
        %3573 = vmatpush1.msra.mxu0 0.0
        %3574 = vmatprep.subr.mxu0 0.0
        %3575 = vmatpush1.msra.mxu0 0.0
        %3576 = vmatprep.subr.mxu0 0.0
        %3577 = vmatpush1.msra.mxu0 0.0
        %3578 = vmatprep.subr.mxu0 0.0
        %3579 = vmatpush1.msra.mxu0 0.0
        %3580 = vmatprep.subr.mxu0 0.0
        %3581 = vmatpush1.msra.mxu0 0.0
        %3582 = vmatprep.subr.mxu0 0.0
        %3583 = vmatpush1.msra.mxu0 0.0
        %3584 = vmatprep.subr.mxu0 0.0
        %3585 = vmatpush1.msra.mxu0 0.0
        %3586 = vmatprep.subr.mxu0 0.0
        %3587 = vmatpush1.msra.mxu0 0.0
        %3588 = vmatprep.subr.mxu0 0.0
        %3589 = vmatpush1.msra.mxu0 0.0
        %3590 = vmatprep.subr.mxu0 0.0
        %3591 = vmatpush1.msra.mxu0 0.0
        %3592 = vmatprep.subr.mxu0 0.0
        %3593 = vmatpush1.msra.mxu0 0.0
        %3594 = vmatprep.mubr.f32.mxu0 0.0
        %3595 = vmatmul.mubr.f32.gmra.mrb[0].mxu0 %v3525
        %v3596 = vpop.f32.mrb[0].mxu0
        %v3597 = vadd.f32 %v2381, %v3596
        %v3598 = vpop.f32.mrb[0].mxu0
        %3599 = vdwg.mxu0
        %v3600 = vsel %vm2201, %v2283, 0.0
        %3601 = vadd.xlane.f32.xlu0 %v3600
        %v3602 = vpop.xlane.xlu0 %3601
        %v3603 = vsel %vm2201, %v2285, 0.0
        %3604 = vadd.xlane.f32.xlu0 %v3603
        %v3605 = vpop.xlane.xlu0 %3604
        %v3606 = vsel %vm2201, %v2287, 0.0
        %3607 = vadd.xlane.f32.xlu0 %v3606
        %v3608 = vpop.xlane.xlu0 %3607
        %v3609 = vsel %vm2201, %v2289, 0.0
        %3610 = vadd.xlane.f32.xlu0 %v3609
        %v3611 = vpop.xlane.xlu0 %3610
        %v3612 = vsel %vm2201, %v2291, 0.0
        %3613 = vadd.xlane.f32.xlu0 %v3612
        %v3614 = vpop.xlane.xlu0 %3613
        %v3615 = vsel %vm2201, %v2293, 0.0
        %3616 = vadd.xlane.f32.xlu0 %v3615
        %v3617 = vpop.xlane.xlu0 %3616
        %v3618 = vsel %vm2201, %v2295, 0.0
        %3619 = vadd.xlane.f32.xlu0 %v3618
        %v3620 = vpop.xlane.xlu0 %3619
        %v3621 = vsel %vm2201, %v2297, 0.0
        %3622 = vadd.xlane.f32.xlu0 %v3621
        %v3623 = vpop.xlane.xlu0 %3622
        %v3624 = vsel %vm2201, %v2299, 0.0
        %3625 = vadd.xlane.f32.xlu0 %v3624
        %v3626 = vpop.xlane.xlu0 %3625
        %v3627 = vsel %vm2201, %v2301, 0.0
        %3628 = vadd.xlane.f32.xlu0 %v3627
        %v3629 = vpop.xlane.xlu0 %3628
        %v3630 = vsel %vm2201, %v2303, 0.0
        %3631 = vadd.xlane.f32.xlu0 %v3630
        %v3632 = vpop.xlane.xlu0 %3631
        %v3633 = vsel %vm2201, %v2305, 0.0
        %3634 = vadd.xlane.f32.xlu0 %v3633
        %v3635 = vpop.xlane.xlu0 %3634
        %v3636 = vsel %vm2201, %v2307, 0.0
        %3637 = vadd.xlane.f32.xlu0 %v3636
        %v3638 = vpop.xlane.xlu0 %3637
        %v3639 = vsel %vm2201, %v2309, 0.0
        %3640 = vadd.xlane.f32.xlu0 %v3639
        %v3641 = vpop.xlane.xlu0 %3640
        %v3642 = vsel %vm2201, %v2311, 0.0
        %3643 = vadd.xlane.f32.xlu0 %v3642
        %v3644 = vpop.xlane.xlu0 %3643
        %v3645 = vsel %vm2201, %v2313, 0.0
        %3646 = vadd.xlane.f32.xlu0 %v3645
        %v3647 = vpop.xlane.xlu0 %3646
        %v3648 = vadd.f32 %v3602, %v2331
        %v3649 = vadd.f32 %v3605, %v2333
        %v3650 = vadd.f32 %v3608, %v2335
        %v3651 = vadd.f32 %v3611, %v2337
        %v3652 = vadd.f32 %v3614, %v2339
        %v3653 = vadd.f32 %v3617, %v2341
        %v3654 = vadd.f32 %v3620, %v2343
        %v3655 = vadd.f32 %v3623, %v2345
        %v3656 = vadd.f32 %v3626, %v2347
        %v3657 = vadd.f32 %v3629, %v2349
        %v3658 = vadd.f32 %v3632, %v2351
        %v3659 = vadd.f32 %v3635, %v2353
        %v3660 = vadd.f32 %v3638, %v2355
        %v3661 = vadd.f32 %v3641, %v2357
        %v3662 = vadd.f32 %v3644, %v2359
        %v3663 = vadd.f32 %v3647, %v2361
        %v3664 = vrcp.pop %v3648
        %v3665 = vmul.f32 %v2457, %v3664
        %v3666 = vrcp.pop %v3649
        %v3667 = vmul.f32 %v2533, %v3666
        %v3668 = vrcp.pop %v3650
        %v3669 = vmul.f32 %v2609, %v3668
        %v3670 = vrcp.pop %v3651
        %v3671 = vmul.f32 %v2685, %v3670
        %v3672 = vrcp.pop %v3652
        %v3673 = vmul.f32 %v2761, %v3672
        %v3674 = vrcp.pop %v3653
        %v3675 = vmul.f32 %v2837, %v3674
        %v3676 = vrcp.pop %v3654
        %v3677 = vmul.f32 %v2913, %v3676
        %v3678 = vrcp.pop %v3655
        %v3679 = vmul.f32 %v2989, %v3678
        %v3680 = vrcp.pop %v3656
        %v3681 = vmul.f32 %v3065, %v3680
        %v3682 = vrcp.pop %v3657
        %v3683 = vmul.f32 %v3141, %v3682
        %v3684 = vrcp.pop %v3658
        %v3685 = vmul.f32 %v3217, %v3684
        %v3686 = vrcp.pop %v3659
        %v3687 = vmul.f32 %v3293, %v3686
        %v3688 = vrcp.pop %v3660
        %v3689 = vmul.f32 %v3369, %v3688
        %v3690 = vrcp.pop %v3661
        %v3691 = vmul.f32 %v3445, %v3690
        %v3692 = vrcp.pop %v3662
        %v3693 = vmul.f32 %v3521, %v3692
        %v3694 = vrcp.pop %v3663
        %v3695 = vmul.f32 %v3597, %v3694
        %v3696 = vcombine.low %v3665, %v3669
        %v3698 = vunpack.c.l.s4 1983009808
        %v3699 = vunpack.c.0.s8 %v3698
        %v3700 = vlaneseq
        %v3701 = vshrl.u32 %v3700, 7
        %v3702 = vsub.s32 %v3699, %v3701
        %v3703 = vrot.slane %v3696, %v3702
        %v3704 = vcombine.low %v3667, %v3671
        %v3706 = vunpack.c.l.s4 1983009808
        %v3707 = vunpack.c.0.s8 %v3706
        %v3708 = vlaneseq
        %v3709 = vshrl.u32 %v3708, 7
        %v3710 = vsub.s32 %v3707, %v3709
        %v3711 = vrot.slane %v3704, %v3710
        %v3712 = vcombine.low %v3673, %v3677
        %v3714 = vunpack.c.l.s4 1983009808
        %v3715 = vunpack.c.0.s8 %v3714
        %v3716 = vlaneseq
        %v3717 = vshrl.u32 %v3716, 7
        %v3718 = vsub.s32 %v3715, %v3717
        %v3719 = vrot.slane %v3712, %v3718
        %v3720 = vcombine.low %v3675, %v3679
        %v3722 = vunpack.c.l.s4 1983009808
        %v3723 = vunpack.c.0.s8 %v3722
        %v3724 = vlaneseq
        %v3725 = vshrl.u32 %v3724, 7
        %v3726 = vsub.s32 %v3723, %v3725
        %v3727 = vrot.slane %v3720, %v3726
        %v3728 = vcombine.low %v3703, %v3711
        %v3729 = vcombine.high %v3703, %v3711
        %v3731 = vunpack.c.l.s4 1934713408
        %v3732 = vunpack.c.0.s8 %v3731
        %v3733 = vlaneseq
        %v3734 = vshrl.u32 %v3733, 7
        %v3735 = vsub.s32 %v3732, %v3734
        %v3736 = vrot.slane %v3728, %v3735
        %v3738 = vunpack.c.l.s4 1934713408
        %v3739 = vunpack.c.0.s8 %v3738
        %v3740 = vlaneseq
        %v3741 = vshrl.u32 %v3740, 7
        %v3742 = vsub.s32 %v3739, %v3741
        %v3743 = vrot.slane %v3729, %v3742
        %v3744 = vcombine.low %v3719, %v3727
        %v3745 = vcombine.high %v3719, %v3727
        %v3747 = vunpack.c.l.s4 1934713408
        %v3748 = vunpack.c.0.s8 %v3747
        %v3749 = vlaneseq
        %v3750 = vshrl.u32 %v3749, 7
        %v3751 = vsub.s32 %v3748, %v3750
        %v3752 = vrot.slane %v3744, %v3751
        %v3754 = vunpack.c.l.s4 1934713408
        %v3755 = vunpack.c.0.s8 %v3754
        %v3756 = vlaneseq
        %v3757 = vshrl.u32 %v3756, 7
        %v3758 = vsub.s32 %v3755, %v3757
        %v3759 = vrot.slane %v3745, %v3758
        %v3760 = vcombine.low %v3736, %v3752
        %v3761 = vcombine.high %v3736, %v3752
        %v3762 = vcombine.low %v3743, %v3759
        %v3763 = vcombine.high %v3743, %v3759
        %v3764 = vcombine.low %v3681, %v3685
        %v3766 = vunpack.c.l.s4 1983009808
        %v3767 = vunpack.c.0.s8 %v3766
        %v3768 = vlaneseq
        %v3769 = vshrl.u32 %v3768, 7
        %v3770 = vsub.s32 %v3767, %v3769
        %v3771 = vrot.slane %v3764, %v3770
        %v3772 = vcombine.low %v3683, %v3687
        %v3774 = vunpack.c.l.s4 1983009808
        %v3775 = vunpack.c.0.s8 %v3774
        %v3776 = vlaneseq
        %v3777 = vshrl.u32 %v3776, 7
        %v3778 = vsub.s32 %v3775, %v3777
        %v3779 = vrot.slane %v3772, %v3778
        %v3780 = vcombine.low %v3689, %v3693
        %v3782 = vunpack.c.l.s4 1983009808
        %v3783 = vunpack.c.0.s8 %v3782
        %v3784 = vlaneseq
        %v3785 = vshrl.u32 %v3784, 7
        %v3786 = vsub.s32 %v3783, %v3785
        %v3787 = vrot.slane %v3780, %v3786
        %v3788 = vcombine.low %v3691, %v3695
        %v3790 = vunpack.c.l.s4 1983009808
        %v3791 = vunpack.c.0.s8 %v3790
        %v3792 = vlaneseq
        %v3793 = vshrl.u32 %v3792, 7
        %v3794 = vsub.s32 %v3791, %v3793
        %v3795 = vrot.slane %v3788, %v3794
        %v3796 = vcombine.low %v3771, %v3779
        %v3797 = vcombine.high %v3771, %v3779
        %v3799 = vunpack.c.l.s4 1934713408
        %v3800 = vunpack.c.0.s8 %v3799
        %v3801 = vlaneseq
        %v3802 = vshrl.u32 %v3801, 7
        %v3803 = vsub.s32 %v3800, %v3802
        %v3804 = vrot.slane %v3796, %v3803
        %v3806 = vunpack.c.l.s4 1934713408
        %v3807 = vunpack.c.0.s8 %v3806
        %v3808 = vlaneseq
        %v3809 = vshrl.u32 %v3808, 7
        %v3810 = vsub.s32 %v3807, %v3809
        %v3811 = vrot.slane %v3797, %v3810
        %v3812 = vcombine.low %v3787, %v3795
        %v3813 = vcombine.high %v3787, %v3795
        %v3815 = vunpack.c.l.s4 1934713408
        %v3816 = vunpack.c.0.s8 %v3815
        %v3817 = vlaneseq
        %v3818 = vshrl.u32 %v3817, 7
        %v3819 = vsub.s32 %v3816, %v3818
        %v3820 = vrot.slane %v3812, %v3819
        %v3822 = vunpack.c.l.s4 1934713408
        %v3823 = vunpack.c.0.s8 %v3822
        %v3824 = vlaneseq
        %v3825 = vshrl.u32 %v3824, 7
        %v3826 = vsub.s32 %v3823, %v3825
        %v3827 = vrot.slane %v3813, %v3826
        %v3828 = vcombine.low %v3804, %v3820
        %v3829 = vcombine.high %v3804, %v3820
        %v3830 = vcombine.low %v3811, %v3827
        %v3831 = vcombine.high %v3811, %v3827
        %v3840 = vrot.slane %v3760, 7
        %v3841 = vrot.slane %v3828, 7
        %v3842 = vsel %vm342, %v3840, %v3841
        %v3843 = vrot.slane %v3761, 7
        %v3844 = vsel %vm342, %v3841, %v3843
        %v3845 = vrot.slane %v3829, 7
        %v3846 = vsel %vm342, %v3843, %v3845
        %v3847 = vrot.slane %v3762, 7
        %v3848 = vsel %vm342, %v3845, %v3847
        %v3849 = vrot.slane %v3830, 7
        %v3850 = vsel %vm342, %v3847, %v3849
        %v3851 = vrot.slane %v3763, 7
        %v3852 = vsel %vm342, %v3849, %v3851
        %v3853 = vrot.slane %v3831, 7
        %v3854 = vsel %vm342, %v3851, %v3853
        %v3864 = vsel %vm342, %v413, %v3840
        %v3865 = vpack.c.bf16 %v3842, %v3864
        %v3866 = vpack.c.bf16 %v3846, %v3844
        %v3867 = vpack.c.bf16 %v3850, %v3848
        %v3868 = vpack.c.bf16 %v3854, %v3852
        %v3869 = vpack.c.bf16 %v3853, %v3853
        %v3875 = vunpack.c.l.b16 %v3865
        %v3876 = vunpack.c.h.b16 %v3865
        %v3877 = vunpack.c.l.b16 %v3866
        %v3878 = vunpack.c.h.b16 %v3866
        %v3879 = vunpack.c.l.b16 %v3867
        %v3880 = vunpack.c.h.b16 %v3867
        %v3881 = vunpack.c.l.b16 %v3868
        %v3882 = vunpack.c.h.b16 %v3868
        %v3883 = vunpack.c.l.b16 %v3869
        %v3884 = vpack.c.b16 %v3875, %v3875
        %v3885 = vpack.c.b16 %v3876, %v3876
        %v3886 = vpack.c.b16 %v3877, %v3877
        %v3887 = vpack.c.b16 %v3878, %v3878
        %v3888 = vpack.c.b16 %v3879, %v3879
        %v3889 = vpack.c.b16 %v3880, %v3880
        %v3890 = vpack.c.b16 %v3881, %v3881
        %v3891 = vpack.c.b16 %v3882, %v3882
        %v3892 = vpack.c.b16 %v3883, %v3883
        %3902 = vst.msk [vmem:[%s159] sm:$0xf] %vm2152, %v3884
        %3903 = vst.msk [vmem:[%s159 + $0x4] sm:$0xf] %vm2152, %v3885
        %3904 = vst.msk [vmem:[%s159 + $0x8] sm:$0xf] %vm2152, %v3886
        %3905 = vst.msk [vmem:[%s159 + $0xc] sm:$0xf] %vm2152, %v3887
        %3906 = vst.msk [vmem:[%s159 + $0x10] sm:$0xf] %vm2152, %v3888
        %3907 = vst.msk [vmem:[%s159 + $0x14] sm:$0xf] %vm2152, %v3889
        %3908 = vst.msk [vmem:[%s159 + $0x18] sm:$0xf] %vm2152, %v3890
        %3909 = vst.msk [vmem:[%s159 + $0x1c] sm:$0xf] %vm2152, %v3891
        %vm3910 = vcmask 57344
        %vm3911 = vsmask.f32 256
        %vm3912 = vmand %vm3910, %vm3911
        %v3913 = vld [vmem:[%s159 + $0x20] sm:$0x1]
        %v3914 = vsel %vm3912, %v3892, %v3913
        %3915 = vst [vmem:[%s159 + $0x20] sm:$0x1] %v3914
        %s3916 = sand.u32 %s52, 1
        %s3917 = scalar_lea.sflag [#allocation4], %s3916
        %s3918 = sand.u32 %s52, 1
        %s3919 = smul.addr %s3918, 36
        %s3920 = scalar_lea.vmem [#allocation5], %s3919
        // Predicated region
        $region29: #{timesformer_layer.8} parent=23 // pred_check
          %p3921 = pneg %p62
        $region30: #{timesformer_layer.8} parent=23 // pred_check_branch
          %3923 = sbr.rel (%p3921) target = $region32
        $region31: #{timesformer_layer.8} parent=23 // pred_region
          %s3925 = ssub.s32 576, 576
          %3926 = vsyncadd %s3917, %s3925
          %s3927 = smul.addr %s18, 9
          %s3928 = smul.addr %s3927, 64
          %s3929 = scalar_lea.hbm %s1, %s3928
          %s3930 = sshll.u32 %s3920, 4
          %s3931 = int_to_ptr.vmem [resolvable:$true] %s3930
          %3936 = dma.vmem_to_hbm [thread:$0]  %s3931, 576, %s3929, %s3917, 64, 64, 4
        $region32: #{timesformer_layer.8} parent=23 // pred_fallthru
          _
      $region24: #{timesformer_layer.8} parent=5 // pred_fallthru
        _
      %p3937 = scmp.le.s32.totalorder 2, %s13
      // Predicated region
      $region33: #{timesformer_layer.8} parent=5 // pred_check
        %p3938 = pneg %p3937
      $region34: #{timesformer_layer.8} parent=5 // pred_check_branch
        %3940 = sbr.rel (%p3938) target = $region36
      $region35: #{timesformer_layer.8} parent=5 // pred_region
        %s3941 = ssub.s32 %s13, 2
        // Predicated region
        $region37: #{timesformer_layer.8} parent=35 // pred_check
          %p3942 = pneg %p68
        $region38: #{timesformer_layer.8} parent=35 // pred_check_branch
          %3944 = sbr.rel (%p3942) target = $region40
        $region39: #{timesformer_layer.8} parent=35 // pred_region
          %s3945 = sand.u32 %s53, 1
          %s3946 = scalar_lea.sflag [#allocation4], %s3945
          %s3947 = sand.u32 %s53, 1
          %s3948 = smul.addr %s3947, 36
          %s3949 = scalar_lea.vmem [#allocation5], %s3948
          %3950 = dma.done %s3946, 576
        $region40: #{timesformer_layer.8} parent=35 // pred_fallthru
          _
      $region36: #{timesformer_layer.8} parent=5 // pred_fallthru
        _
    $region6: #{timesformer_layer.8} parent=1 // loop_footer
      %s17 = sadd.s32 1, %s13
    $region7: #{timesformer_layer.8} parent=1 // loop_footer_branch
      %12 = sbr.rel target = $region3
    $region8: #{timesformer_layer.8} parent=1 // loop_exit
      _
    %3951 = vsyncpa [#allocation3], 1
    %s3952 = scalar_lea.sflag [#allocation3], 1
    %3953 = vsyncpa %s3952, 1
    %3954 = vsyncpa [#allocation4], 1
    %s3955 = scalar_lea.sflag [#allocation4], 1
    %3956 = vsyncpa %s3955, 1

// kernel: timesformer_layer.13
$region0: #{timesformer_layer.13}
  #allocation0 [shape = 'u32[]', space=smem, size = 0x4, offset = 0x4, fixed_abs, tag = 'smem constant byte address 0x4 - core index']
  #allocation1 [shape = 'u32[144,128]{1,0:T(1,128)}', space=vmem, size = 0x12000, scoped, tag = 'internal scratch']
  %s0 = inlined_call_operand.hbm [shape: f32[130,32], index: 0, kind: input, shape index: {}]
  %s1 = inlined_call_operand.hbm [shape: f32[1,32], index: 1, kind: input, shape index: {}]
  %s2 = inlined_call_operand.hbm [shape: f32[1,32], index: 2, kind: input, shape index: {}]
  %s3 = inlined_call_operand.hbm [shape: bf16[32,128], index: 3, kind: input, shape index: {}]
  %s4 = inlined_call_operand.hbm [shape: f32[1,128], index: 4, kind: input, shape index: {}]
  %s5 = inlined_call_operand.hbm [shape: bf16[128,32], index: 5, kind: input, shape index: {}]
  %s6 = inlined_call_operand.hbm [shape: f32[1,32], index: 6, kind: input, shape index: {}]
  %s7 = inlined_call_operand.hbm [shape: f32[130,32], index: 7, kind: output, shape index: {}]
  %s8 = sld [smem:[#allocation0]]
  $region89: #{timesformer_layer.13} parent=0
    _
  %s10 = ssub.s32 1, %s8
  %s11 = scalar_select 0, %s10, %s8
  $region1: #{timesformer_layer.13} parent=0
    #allocation2 [shape = 'u8[73728]{0}', space=vmem, size = 0x12000, scoped, tag = 'input window, operand 0']
    #allocation3 [shape = 's32[2]{0}', space=sflag, size = 0x8, scoped, tag = 'scoped memory for timesformer_layer.13']
    #allocation4 [shape = 's32[2]{0}', space=sflag, size = 0x8, scoped, tag = 'scoped memory for timesformer_layer.13']
    #allocation5 [shape = 'u8[512]{0}', space=vmem, size = 0x400, scoped, tag = 'input window, operand 1, single buffered']
    #allocation6 [shape = 's32[1]{0}', space=sflag, size = 0x4, scoped, tag = 'scoped memory for timesformer_layer.13']
    #allocation7 [shape = 'u8[512]{0}', space=vmem, size = 0x400, scoped, tag = 'input window, operand 2, single buffered']
    #allocation8 [shape = 'u8[8192]{0}', space=vmem, size = 0x2000, scoped, tag = 'input window, operand 3, single buffered']
    #allocation9 [shape = 's32[1]{0}', space=sflag, size = 0x4, scoped, tag = 'scoped memory for timesformer_layer.13']
    #allocation10 [shape = 'u8[512]{0}', space=vmem, size = 0x400, scoped, tag = 'input window, operand 4, single buffered']
    #allocation11 [shape = 'u8[32768]{0}', space=vmem, size = 0x8000, scoped, tag = 'input window, operand 5, single buffered']
    #allocation12 [shape = 's32[1]{0}', space=sflag, size = 0x4, scoped, tag = 'scoped memory for timesformer_layer.13']
    #allocation13 [shape = 'u8[512]{0}', space=vmem, size = 0x400, scoped, tag = 'input window, operand 6, single buffered']
    #allocation14 [shape = 'u8[73728]{0}', space=vmem, size = 0x12000, scoped, tag = 'output window, operand 0']
    %12 = vsyncpa [#allocation3], 0
    %s13 = scalar_lea.sflag [#allocation3], 1
    %14 = vsyncpa %s13, 0
    %15 = vsyncpa [#allocation6], 0
    %16 = vsyncpa [#allocation9], 0
    %17 = vsyncpa [#allocation12], 0
    %18 = vsyncpa [#allocation4], 0
    %s19 = scalar_lea.sflag [#allocation4], 1
    %20 = vsyncpa %s19, 0
    loop: start=0, step=1, limit=4
    $region2: #{timesformer_layer.13} parent=1 // loop_pre_header
      _
    $region3: #{timesformer_layer.13} parent=1 // loop_header
      %s22 = sphi 0, %s26
      %p23 = scmp.ge.s32.totalorder %s22, 4
      %s32 = sphi 0, %s34
      %s35 = sphi 0, %s32
      %s36 = sphi 0, %s35
      %s52 = sphi 0, %s36
      %s56 = sphi 0, %s56
      %s58 = sphi 0, %s56
      %s59 = sphi 0, %s58
      %s73 = sphi 0, %s59
      %s77 = sphi 0, %s77
      %s79 = sphi 0, %s77
      %s80 = sphi 0, %s79
      %s94 = sphi 0, %s80
      %s98 = sphi 0, %s98
      %s100 = sphi 0, %s98
      %s101 = sphi 0, %s100
      %s115 = sphi 0, %s101
      %s119 = sphi 0, %s119
      %s121 = sphi 0, %s119
      %s122 = sphi 0, %s121
      %s136 = sphi 0, %s122
      %s140 = sphi 0, %s140
      %s142 = sphi 0, %s140
      %s143 = sphi 0, %s142
      %s157 = sphi 0, %s143
      %s161 = sphi 0, %s161
      %s163 = sphi 0, %s161
      %s164 = sphi 0, %s163
      %s178 = sphi 0, %s164
      %s184 = sphi 0, %s186
      %s187 = sphi 0, %s184
      %s188 = sphi 0, %s187
      %s204 = sphi 0, %s188
    $region4: #{timesformer_layer.13} parent=1 // loop_header_branch
      %25 = sbr.rel (%p23) target = $region8
    $region5: #{timesformer_layer.13} parent=1 // loop_body
      %s27 = ssub.s32 %s22, 1
      %s28 = ssub.s32 %s22, 2
      %s29 = sadd.s32 %s22, 1
      %s30 = ssub.s32 %s22, %s29
      %p31 = scmp.eq.s32.totalorder %s30, 0
      %s33 = sadd.s32 %s32, 1
      %s34 = scalar_select %p31, %s32, %s33
      %p37 = pneg %p31
      %p38 = scmp.eq.s32.totalorder %s22, 1
      %p39 = por %p37, %p38
      %p40 = scmp.ne.s32.totalorder %s32, %s35
      %p41 = scmp.eq.s32.totalorder %s22, 0
      %p42 = por %p40, %p41
      %p43 = scmp.ne.s32.totalorder %s32, %s35
      %p44 = scmp.eq.s32.totalorder %s27, 1
      %p45 = por %p43, %p44
      %p46 = scmp.ne.s32.totalorder %s35, %s36
      %p47 = scmp.eq.s32.totalorder %s27, 0
      %p48 = por %p46, %p47
      %p49 = scmp.ne.s32.totalorder %s35, %s36
      %p50 = scmp.eq.s32.totalorder %s28, 1
      %p51 = por %p49, %p50
      %p53 = scmp.ne.s32.totalorder %s36, %s52
      %p54 = scmp.eq.s32.totalorder %s28, 0
      %p55 = por %p53, %p54
      %s57 = sadd.s32 %s56, 1
      %p60 = scmp.eq.s32.totalorder %s22, 1
      %p61 = scmp.ne.s32.totalorder %s56, %s58
      %p62 = scmp.eq.s32.totalorder %s22, 0
      %p63 = por %p61, %p62
      %p64 = scmp.ne.s32.totalorder %s56, %s58
      %p65 = scmp.eq.s32.totalorder %s27, 1
      %p66 = por %p64, %p65
      %p67 = scmp.ne.s32.totalorder %s58, %s59
      %p68 = scmp.eq.s32.totalorder %s27, 0
      %p69 = por %p67, %p68
      %p70 = scmp.ne.s32.totalorder %s58, %s59
      %p71 = scmp.eq.s32.totalorder %s28, 1
      %p72 = por %p70, %p71
      %p74 = scmp.ne.s32.totalorder %s59, %s73
      %p75 = scmp.eq.s32.totalorder %s28, 0
      %p76 = por %p74, %p75
      %s78 = sadd.s32 %s77, 1
      %p81 = scmp.eq.s32.totalorder %s22, 1
      %p82 = scmp.ne.s32.totalorder %s77, %s79
      %p83 = scmp.eq.s32.totalorder %s22, 0
      %p84 = por %p82, %p83
      %p85 = scmp.ne.s32.totalorder %s77, %s79
      %p86 = scmp.eq.s32.totalorder %s27, 1
      %p87 = por %p85, %p86
      %p88 = scmp.ne.s32.totalorder %s79, %s80
      %p89 = scmp.eq.s32.totalorder %s27, 0
      %p90 = por %p88, %p89
      %p91 = scmp.ne.s32.totalorder %s79, %s80
      %p92 = scmp.eq.s32.totalorder %s28, 1
      %p93 = por %p91, %p92
      %p95 = scmp.ne.s32.totalorder %s80, %s94
      %p96 = scmp.eq.s32.totalorder %s28, 0
      %p97 = por %p95, %p96
      %s99 = sadd.s32 %s98, 1
      %p102 = scmp.eq.s32.totalorder %s22, 1
      %p103 = scmp.ne.s32.totalorder %s98, %s100
      %p104 = scmp.eq.s32.totalorder %s22, 0
      %p105 = por %p103, %p104
      %p106 = scmp.ne.s32.totalorder %s98, %s100
      %p107 = scmp.eq.s32.totalorder %s27, 1
      %p108 = por %p106, %p107
      %p109 = scmp.ne.s32.totalorder %s100, %s101
      %p110 = scmp.eq.s32.totalorder %s27, 0
      %p111 = por %p109, %p110
      %p112 = scmp.ne.s32.totalorder %s100, %s101
      %p113 = scmp.eq.s32.totalorder %s28, 1
      %p114 = por %p112, %p113
      %p116 = scmp.ne.s32.totalorder %s101, %s115
      %p117 = scmp.eq.s32.totalorder %s28, 0
      %p118 = por %p116, %p117
      %s120 = sadd.s32 %s119, 1
      %p123 = scmp.eq.s32.totalorder %s22, 1
      %p124 = scmp.ne.s32.totalorder %s119, %s121
      %p125 = scmp.eq.s32.totalorder %s22, 0
      %p126 = por %p124, %p125
      %p127 = scmp.ne.s32.totalorder %s119, %s121
      %p128 = scmp.eq.s32.totalorder %s27, 1
      %p129 = por %p127, %p128
      %p130 = scmp.ne.s32.totalorder %s121, %s122
      %p131 = scmp.eq.s32.totalorder %s27, 0
      %p132 = por %p130, %p131
      %p133 = scmp.ne.s32.totalorder %s121, %s122
      %p134 = scmp.eq.s32.totalorder %s28, 1
      %p135 = por %p133, %p134
      %p137 = scmp.ne.s32.totalorder %s122, %s136
      %p138 = scmp.eq.s32.totalorder %s28, 0
      %p139 = por %p137, %p138
      %s141 = sadd.s32 %s140, 1
      %p144 = scmp.eq.s32.totalorder %s22, 1
      %p145 = scmp.ne.s32.totalorder %s140, %s142
      %p146 = scmp.eq.s32.totalorder %s22, 0
      %p147 = por %p145, %p146
      %p148 = scmp.ne.s32.totalorder %s140, %s142
      %p149 = scmp.eq.s32.totalorder %s27, 1
      %p150 = por %p148, %p149
      %p151 = scmp.ne.s32.totalorder %s142, %s143
      %p152 = scmp.eq.s32.totalorder %s27, 0
      %p153 = por %p151, %p152
      %p154 = scmp.ne.s32.totalorder %s142, %s143
      %p155 = scmp.eq.s32.totalorder %s28, 1
      %p156 = por %p154, %p155
      %p158 = scmp.ne.s32.totalorder %s143, %s157
      %p159 = scmp.eq.s32.totalorder %s28, 0
      %p160 = por %p158, %p159
      %s162 = sadd.s32 %s161, 1
      %p165 = scmp.eq.s32.totalorder %s22, 1
      %p166 = scmp.ne.s32.totalorder %s161, %s163
      %p167 = scmp.eq.s32.totalorder %s22, 0
      %p168 = por %p166, %p167
      %p169 = scmp.ne.s32.totalorder %s161, %s163
      %p170 = scmp.eq.s32.totalorder %s27, 1
      %p171 = por %p169, %p170
      %p172 = scmp.ne.s32.totalorder %s163, %s164
      %p173 = scmp.eq.s32.totalorder %s27, 0
      %p174 = por %p172, %p173
      %p175 = scmp.ne.s32.totalorder %s163, %s164
      %p176 = scmp.eq.s32.totalorder %s28, 1
      %p177 = por %p175, %p176
      %p179 = scmp.ne.s32.totalorder %s164, %s178
      %p180 = scmp.eq.s32.totalorder %s28, 0
      %p181 = por %p179, %p180
      %s182 = ssub.s32 %s22, %s29
      %p183 = scmp.eq.s32.totalorder %s182, 0
      %s185 = sadd.s32 %s184, 1
      %s186 = scalar_select %p183, %s184, %s185
      %p189 = pneg %p183
      %p190 = scmp.eq.s32.totalorder %s22, 1
      %p191 = por %p189, %p190
      %p192 = scmp.ne.s32.totalorder %s184, %s187
      %p193 = scmp.eq.s32.totalorder %s22, 0
      %p194 = por %p192, %p193
      %p195 = scmp.ne.s32.totalorder %s184, %s187
      %p196 = scmp.eq.s32.totalorder %s27, 1
      %p197 = por %p195, %p196
      %p198 = scmp.ne.s32.totalorder %s187, %s188
      %p199 = scmp.eq.s32.totalorder %s27, 0
      %p200 = por %p198, %p199
      %p201 = scmp.ne.s32.totalorder %s187, %s188
      %p202 = scmp.eq.s32.totalorder %s28, 1
      %p203 = por %p201, %p202
      %p205 = scmp.ne.s32.totalorder %s188, %s204
      %p206 = scmp.eq.s32.totalorder %s28, 0
      %p207 = por %p205, %p206
      %p208 = scmp.le.s32.totalorder 1, %s22
      %p209 = scmp.lt.s32.totalorder %s22, 3
      %p210 = pnand %p208, %p209
      %p211 = pneg %p210
      // Predicated region
      $region9: #{timesformer_layer.13} parent=5 // pred_check
        _
      $region10: #{timesformer_layer.13} parent=5 // pred_check_branch
        %213 = sbr.rel (%p210) target = $region12
      $region11: #{timesformer_layer.13} parent=5 // pred_region
        %s214 = ssub.s32 %s22, 1
        // Predicated region
        $region13: #{timesformer_layer.13} parent=11 // pred_check
          %p215 = pneg %p69
        $region14: #{timesformer_layer.13} parent=11 // pred_check_branch
          %217 = sbr.rel (%p215) target = $region16
        $region15: #{timesformer_layer.13} parent=11 // pred_region
          %s219 = ssub.s32 16, 16
          %220 = vsyncadd [#allocation6], %s219
          %s222 = sshll.u32 [#allocation5], 4
          %s223 = int_to_ptr.vmem [resolvable:$true] %s222
          %225 = dma.hbm_to_vmem [thread:$0]  %s1, 16, %s223, [#allocation6]
        $region16: #{timesformer_layer.13} parent=11 // pred_fallthru
          _
        // Predicated region
        $region17: #{timesformer_layer.13} parent=11 // pred_check
          %p226 = pneg %p90
        $region18: #{timesformer_layer.13} parent=11 // pred_check_branch
          %228 = sbr.rel (%p226) target = $region20
        $region19: #{timesformer_layer.13} parent=11 // pred_region
          %s230 = ssub.s32 16, 16
          %231 = vsyncadd [#allocation6], %s230
          %s233 = sshll.u32 [#allocation7], 4
          %s234 = int_to_ptr.vmem [resolvable:$true] %s233
          %236 = dma.hbm_to_vmem [thread:$0]  %s2, 16, %s234, [#allocation6]
        $region20: #{timesformer_layer.13} parent=11 // pred_fallthru
          _
        // Predicated region
        $region21: #{timesformer_layer.13} parent=11 // pred_check
          %p237 = pneg %p111
        $region22: #{timesformer_layer.13} parent=11 // pred_check_branch
          %239 = sbr.rel (%p237) target = $region24
        $region23: #{timesformer_layer.13} parent=11 // pred_region
          %s241 = ssub.s32 256, 256
          %242 = vsyncadd [#allocation9], %s241
          %s243 = sshll.u32 [#allocation8], 4
          %s244 = int_to_ptr.vmem [resolvable:$true] %s243
          %249 = dma.hbm_to_vmem [thread:$0]  %s3, 256, %s244, [#allocation9], 64, 64, 4
        $region24: #{timesformer_layer.13} parent=11 // pred_fallthru
          _
        // Predicated region
        $region25: #{timesformer_layer.13} parent=11 // pred_check
          %p250 = pneg %p132
        $region26: #{timesformer_layer.13} parent=11 // pred_check_branch
          %252 = sbr.rel (%p250) target = $region28
        $region27: #{timesformer_layer.13} parent=11 // pred_region
          %s254 = ssub.s32 16, 16
          %255 = vsyncadd [#allocation9], %s254
          %s257 = sshll.u32 [#allocation10], 4
          %s258 = int_to_ptr.vmem [resolvable:$true] %s257
          %260 = dma.hbm_to_vmem [thread:$0]  %s4, 16, %s258, [#allocation9]
        $region28: #{timesformer_layer.13} parent=11 // pred_fallthru
          _
        // Predicated region
        $region29: #{timesformer_layer.13} parent=11 // pred_check
          %p261 = pneg %p153
        $region30: #{timesformer_layer.13} parent=11 // pred_check_branch
          %263 = sbr.rel (%p261) target = $region32
        $region31: #{timesformer_layer.13} parent=11 // pred_region
          %s265 = ssub.s32 1024, 1024
          %266 = vsyncadd [#allocation12], %s265
          %s267 = sshll.u32 [#allocation11], 4
          %s268 = int_to_ptr.vmem [resolvable:$true] %s267
          %273 = dma.hbm_to_vmem [thread:$0]  %s5, 1024, %s268, [#allocation12], 64, 64, 4
        $region32: #{timesformer_layer.13} parent=11 // pred_fallthru
          _
        // Predicated region
        $region33: #{timesformer_layer.13} parent=11 // pred_check
          %p274 = pneg %p174
        $region34: #{timesformer_layer.13} parent=11 // pred_check_branch
          %276 = sbr.rel (%p274) target = $region36
        $region35: #{timesformer_layer.13} parent=11 // pred_region
          %s278 = ssub.s32 16, 16
          %279 = vsyncadd [#allocation12], %s278
          %s281 = sshll.u32 [#allocation13], 4
          %s282 = int_to_ptr.vmem [resolvable:$true] %s281
          %284 = dma.hbm_to_vmem [thread:$0]  %s6, 16, %s282, [#allocation12]
        $region36: #{timesformer_layer.13} parent=11 // pred_fallthru
          _
      $region12: #{timesformer_layer.13} parent=5 // pred_fallthru
        _
      %p285 = scmp.lt.s32.totalorder %s22, 2
      // Predicated region
      $region37: #{timesformer_layer.13} parent=5 // pred_check
        %p286 = pneg %p285
      $region38: #{timesformer_layer.13} parent=5 // pred_check_branch
        %288 = sbr.rel (%p286) target = $region40
      $region39: #{timesformer_layer.13} parent=5 // pred_region
        // Predicated region
        $region41: #{timesformer_layer.13} parent=39 // pred_check
          %p289 = pneg %p42
        $region42: #{timesformer_layer.13} parent=39 // pred_check_branch
          %291 = sbr.rel (%p289) target = $region44
        $region43: #{timesformer_layer.13} parent=39 // pred_region
          %s292 = sand.u32 %s32, 1
          %s293 = scalar_lea.sflag [#allocation3], %s292
          %s294 = sand.u32 %s32, 1
          %s295 = smul.addr %s294, 72
          %s296 = scalar_lea.vmem [#allocation2], %s295
          %s297 = smul.u32 9, %s22
          %s298 = ssub.s32 17, %s297
          %p299 = scmp.lt.s32.totalorder %s298, 9
          %s300 = scalar_select %p299, %s298, 9
          %s301 = smul.u32 128, %s300
          %s303 = ssub.s32 1152, %s301
          %304 = vsyncadd %s293, %s303
          %p305 = scmp.ne.s32.totalorder 0, %s301
          %s306 = smul.addr %s297, 128
          %s307 = scalar_lea.hbm %s0, %s306
          %s308 = smul.u32 8, %s300
          %s309 = sshll.u32 %s296, 4
          %s310 = int_to_ptr.vmem [resolvable:$true] %s309
          %s311 = sshll.u32 %s308, 4
          %315 = dma.hbm_to_vmem [thread:$0]  (%p305), %s307, %s311, %s310, %s293, 128, 128, 8
        $region44: #{timesformer_layer.13} parent=39 // pred_fallthru
          _
      $region40: #{timesformer_layer.13} parent=5 // pred_fallthru
        _
      %p316 = scmp.le.s32.totalorder 1, %s22
      %p317 = scmp.lt.s32.totalorder %s22, 3
      %p318 = pnand %p316, %p317
      %p319 = pneg %p318
      // Predicated region
      $region45: #{timesformer_layer.13} parent=5 // pred_check
        _
      $region46: #{timesformer_layer.13} parent=5 // pred_check_branch
        %321 = sbr.rel (%p318) target = $region48
      $region47: #{timesformer_layer.13} parent=5 // pred_region
        %s322 = ssub.s32 %s22, 1
        %s323 = sand.u32 %s35, 1
        %s324 = scalar_lea.sflag [#allocation3], %s323
        %s325 = sand.u32 %s35, 1
        %s326 = smul.addr %s325, 72
        %s327 = scalar_lea.vmem [#allocation2], %s326
        // Predicated region
        $region49: #{timesformer_layer.13} parent=47 // pred_check
          %p328 = pneg %p48
        $region50: #{timesformer_layer.13} parent=47 // pred_check_branch
          %330 = sbr.rel (%p328) target = $region52
        $region51: #{timesformer_layer.13} parent=47 // pred_region
          %331 = dma.done %s324, 1152
        $region52: #{timesformer_layer.13} parent=47 // pred_fallthru
          _
        // Predicated region
        $region53: #{timesformer_layer.13} parent=47 // pred_check
          %p332 = pneg %p69
        $region54: #{timesformer_layer.13} parent=47 // pred_check_branch
          %334 = sbr.rel (%p332) target = $region56
        $region55: #{timesformer_layer.13} parent=47 // pred_region
          %335 = dma.done [#allocation6], 16
        $region56: #{timesformer_layer.13} parent=47 // pred_fallthru
          _
        // Predicated region
        $region57: #{timesformer_layer.13} parent=47 // pred_check
          %p336 = pneg %p90
        $region58: #{timesformer_layer.13} parent=47 // pred_check_branch
          %338 = sbr.rel (%p336) target = $region60
        $region59: #{timesformer_layer.13} parent=47 // pred_region
          %339 = dma.done [#allocation6], 16
        $region60: #{timesformer_layer.13} parent=47 // pred_fallthru
          _
        // Predicated region
        $region61: #{timesformer_layer.13} parent=47 // pred_check
          %p340 = pneg %p111
        $region62: #{timesformer_layer.13} parent=47 // pred_check_branch
          %342 = sbr.rel (%p340) target = $region64
        $region63: #{timesformer_layer.13} parent=47 // pred_region
          %343 = dma.done [#allocation9], 256
        $region64: #{timesformer_layer.13} parent=47 // pred_fallthru
          _
        // Predicated region
        $region65: #{timesformer_layer.13} parent=47 // pred_check
          %p344 = pneg %p132
        $region66: #{timesformer_layer.13} parent=47 // pred_check_branch
          %346 = sbr.rel (%p344) target = $region68
        $region67: #{timesformer_layer.13} parent=47 // pred_region
          %347 = dma.done [#allocation9], 16
        $region68: #{timesformer_layer.13} parent=47 // pred_fallthru
          _
        // Predicated region
        $region69: #{timesformer_layer.13} parent=47 // pred_check
          %p348 = pneg %p153
        $region70: #{timesformer_layer.13} parent=47 // pred_check_branch
          %350 = sbr.rel (%p348) target = $region72
        $region71: #{timesformer_layer.13} parent=47 // pred_region
          %351 = dma.done [#allocation12], 1024
        $region72: #{timesformer_layer.13} parent=47 // pred_fallthru
          _
        // Predicated region
        $region73: #{timesformer_layer.13} parent=47 // pred_check
          %p352 = pneg %p174
        $region74: #{timesformer_layer.13} parent=47 // pred_check_branch
          %354 = sbr.rel (%p352) target = $region76
        $region75: #{timesformer_layer.13} parent=47 // pred_region
          %355 = dma.done [#allocation12], 16
        $region76: #{timesformer_layer.13} parent=47 // pred_fallthru
          _
        %s356 = sand.u32 %s35, 1
        %s357 = scalar_lea.sflag [#allocation3], %s356
        %s358 = sand.u32 %s35, 1
        %s359 = smul.addr %s358, 72
        %s360 = scalar_lea.vmem [#allocation2], %s359
        %p361 = pneg %p48
        %p362 = pneg %p45
        %p363 = pneg %p69
        %p364 = pneg %p66
        %p365 = pneg %p90
        %p366 = pneg %p87
        %p367 = pneg %p111
        %p368 = pneg %p108
        %p369 = pneg %p132
        %p370 = pneg %p129
        %p371 = pneg %p153
        %p372 = pneg %p150
        %p373 = pneg %p174
        %p374 = pneg %p171
        %p375 = pneg %p200
        %p376 = pneg %p197
        %s377 = sand.u32 %s187, 1
        %s378 = scalar_lea.sflag [#allocation4], %s377
        %s379 = sand.u32 %s187, 1
        %s380 = smul.addr %s379, 72
        %s381 = scalar_lea.vmem [#allocation14], %s380
        %s382 = smul.u32 9, %s27
        %s383 = ssub.s32 17, %s382
        %p384 = scmp.lt.s32.totalorder %s383, 9
        %s385 = scalar_select %p384, %s383, 9
        %s386 = smul.u32 128, %s385
        %s387 = smul.u32 9, %s27
        %s388 = ssub.s32 17, %s387
        %p389 = scmp.lt.s32.totalorder %s388, 9
        %s390 = scalar_select %p389, %s388, 9
        %s391 = smul.u32 128, %s390
        %v393 = vld [vmem:[%s327] sm:$0xff]
        %v394 = vld [vmem:[%s327 + $0x8] sm:$0xff]
        %v395 = vld [vmem:[%s327 + $0x10] sm:$0xff]
        %v396 = vld [vmem:[%s327 + $0x18] sm:$0xff]
        %v397 = vld [vmem:[%s327 + $0x20] sm:$0xff]
        %v398 = vld [vmem:[%s327 + $0x28] sm:$0xff]
        %v399 = vld [vmem:[%s327 + $0x30] sm:$0xff]
        %v400 = vld [vmem:[%s327 + $0x38] sm:$0xff]
        %v401 = vld [vmem:[%s327 + $0x40] sm:$0xff]
        %vm402 = vcmask 261120
        %v403 = vsel %vm402, %v393, 0.0
        %404 = vadd.xlane.f32.xlu0 %v403
        %v405 = vpop.xlane.xlu0 %404
        %v406 = vsel %vm402, %v394, 0.0
        %407 = vadd.xlane.f32.xlu0 %v406
        %v408 = vpop.xlane.xlu0 %407
        %v409 = vsel %vm402, %v395, 0.0
        %410 = vadd.xlane.f32.xlu0 %v409
        %v411 = vpop.xlane.xlu0 %410
        %v412 = vsel %vm402, %v396, 0.0
        %413 = vadd.xlane.f32.xlu0 %v412
        %v414 = vpop.xlane.xlu0 %413
        %v415 = vsel %vm402, %v397, 0.0
        %416 = vadd.xlane.f32.xlu0 %v415
        %v417 = vpop.xlane.xlu0 %416
        %v418 = vsel %vm402, %v398, 0.0
        %419 = vadd.xlane.f32.xlu0 %v418
        %v420 = vpop.xlane.xlu0 %419
        %v421 = vsel %vm402, %v399, 0.0
        %422 = vadd.xlane.f32.xlu0 %v421
        %v423 = vpop.xlane.xlu0 %422
        %v424 = vsel %vm402, %v400, 0.0
        %425 = vadd.xlane.f32.xlu0 %v424
        %v426 = vpop.xlane.xlu0 %425
        %v427 = vsel %vm402, %v401, 0.0
        %428 = vadd.xlane.f32.xlu0 %v427
        %v429 = vpop.xlane.xlu0 %428
        %v430 = vrcp.pop 32.0
        %v431 = vmul.f32 %v405, %v430
        %v432 = vmul.f32 %v408, %v430
        %v433 = vmul.f32 %v411, %v430
        %v434 = vmul.f32 %v414, %v430
        %v435 = vmul.f32 %v417, %v430
        %v436 = vmul.f32 %v420, %v430
        %v437 = vmul.f32 %v423, %v430
        %v438 = vmul.f32 %v426, %v430
        %v439 = vmul.f32 %v429, %v430
        %v440 = vsub.f32 %v393, %v431
        %v441 = vsub.f32 %v394, %v432
        %v442 = vsub.f32 %v395, %v433
        %v443 = vsub.f32 %v396, %v434
        %v444 = vsub.f32 %v397, %v435
        %v445 = vsub.f32 %v398, %v436
        %v446 = vsub.f32 %v399, %v437
        %v447 = vsub.f32 %v400, %v438
        %v448 = vsub.f32 %v401, %v439
        %v449 = vmul.f32 %v440, %v440
        %v450 = vmul.f32 %v441, %v441
        %v451 = vmul.f32 %v442, %v442
        %v452 = vmul.f32 %v443, %v443
        %v453 = vmul.f32 %v444, %v444
        %v454 = vmul.f32 %v445, %v445
        %v455 = vmul.f32 %v446, %v446
        %v456 = vmul.f32 %v447, %v447
        %v457 = vmul.f32 %v448, %v448
        %v458 = vsel %vm402, %v449, 0.0
        %459 = vadd.xlane.f32.xlu0 %v458
        %v460 = vpop.xlane.xlu0 %459
        %v461 = vsel %vm402, %v450, 0.0
        %462 = vadd.xlane.f32.xlu0 %v461
        %v463 = vpop.xlane.xlu0 %462
        %v464 = vsel %vm402, %v451, 0.0
        %465 = vadd.xlane.f32.xlu0 %v464
        %v466 = vpop.xlane.xlu0 %465
        %v467 = vsel %vm402, %v452, 0.0
        %468 = vadd.xlane.f32.xlu0 %v467
        %v469 = vpop.xlane.xlu0 %468
        %v470 = vsel %vm402, %v453, 0.0
        %471 = vadd.xlane.f32.xlu0 %v470
        %v472 = vpop.xlane.xlu0 %471
        %v473 = vsel %vm402, %v454, 0.0
        %474 = vadd.xlane.f32.xlu0 %v473
        %v475 = vpop.xlane.xlu0 %474
        %v476 = vsel %vm402, %v455, 0.0
        %477 = vadd.xlane.f32.xlu0 %v476
        %v478 = vpop.xlane.xlu0 %477
        %v479 = vsel %vm402, %v456, 0.0
        %480 = vadd.xlane.f32.xlu0 %v479
        %v481 = vpop.xlane.xlu0 %480
        %v482 = vsel %vm402, %v457, 0.0
        %483 = vadd.xlane.f32.xlu0 %v482
        %v484 = vpop.xlane.xlu0 %483
        %v485 = vmul.f32 %v460, %v430
        %v486 = vmul.f32 %v463, %v430
        %v487 = vmul.f32 %v466, %v430
        %v488 = vmul.f32 %v469, %v430
        %v489 = vmul.f32 %v472, %v430
        %v490 = vmul.f32 %v475, %v430
        %v491 = vmul.f32 %v478, %v430
        %v492 = vmul.f32 %v481, %v430
        %v493 = vmul.f32 %v484, %v430
        %v494 = vadd.f32 %v485, 1e-06
        %v495 = vadd.f32 %v486, 1e-06
        %v496 = vadd.f32 %v487, 1e-06
        %v497 = vadd.f32 %v488, 1e-06
        %v498 = vadd.f32 %v489, 1e-06
        %v499 = vadd.f32 %v490, 1e-06
        %v500 = vadd.f32 %v491, 1e-06
        %v501 = vadd.f32 %v492, 1e-06
        %v502 = vadd.f32 %v493, 1e-06
        %v503 = vrsqrt.pop %v494
        %v504 = vrsqrt.pop %v495
        %v505 = vrsqrt.pop %v496
        %v506 = vrsqrt.pop %v497
        %v507 = vrsqrt.pop %v498
        %v508 = vrsqrt.pop %v499
        %v509 = vrsqrt.pop %v500
        %v510 = vrsqrt.pop %v501
        %v511 = vrsqrt.pop %v502
        %v512 = vmul.f32 %v440, %v503
        %v513 = vmul.f32 %v441, %v504
        %v514 = vmul.f32 %v442, %v505
        %v515 = vmul.f32 %v443, %v506
        %v516 = vmul.f32 %v444, %v507
        %v517 = vmul.f32 %v445, %v508
        %v518 = vmul.f32 %v446, %v509
        %v519 = vmul.f32 %v447, %v510
        %v520 = vmul.f32 %v448, %v511
        %v521 = vld [vmem:[#allocation5] sm:$0x1]
        %v523 = vlaneseq
        %v524 = vshrl.u32 %v523, 7
        %v525 = vsub.s32 0, %v524
        %v526 = vrot.slane %v521, %v525
        %v528 = vmul.f32 %v512, %v526
        %v529 = vmul.f32 %v513, %v526
        %v530 = vmul.f32 %v514, %v526
        %v531 = vmul.f32 %v515, %v526
        %v532 = vmul.f32 %v516, %v526
        %v533 = vmul.f32 %v517, %v526
        %v534 = vmul.f32 %v518, %v526
        %v535 = vmul.f32 %v519, %v526
        %v536 = vmul.f32 %v520, %v526
        %v537 = vld [vmem:[#allocation7] sm:$0x1]
        %v539 = vlaneseq
        %v540 = vshrl.u32 %v539, 7
        %v541 = vsub.s32 0, %v540
        %v542 = vrot.slane %v537, %v541
        %v544 = vadd.f32 %v528, %v542
        %v545 = vadd.f32 %v529, %v542
        %v546 = vadd.f32 %v530, %v542
        %v547 = vadd.f32 %v531, %v542
        %v548 = vadd.f32 %v532, %v542
        %v549 = vadd.f32 %v533, %v542
        %v550 = vadd.f32 %v534, %v542
        %v551 = vadd.f32 %v535, %v542
        %v552 = vadd.f32 %v536, %v542
        %v553 = vpack.c.bf16 %v545, %v544
        %v554 = vpack.c.bf16 %v547, %v546
        %v555 = vpack.c.bf16 %v549, %v548
        %v556 = vpack.c.bf16 %v551, %v550
        %v557 = vpack.c.bf16 %v552, %v552
        %v558 = vld [vmem:[#allocation8] sm:$0xf]
        %v559 = vld [vmem:[#allocation8 + $0x4] sm:$0xf]
        %v560 = vld [vmem:[#allocation8 + $0x8] sm:$0xf]
        %v561 = vld [vmem:[#allocation8 + $0xc] sm:$0xf]
        %v562 = vld [vmem:[#allocation10] sm:$0x1]
        %v564 = vlaneseq
        %v565 = vshrl.u32 %v564, 7
        %v566 = vsub.s32 0, %v565
        %v567 = vrot.slane %v562, %v566
        %v573 = vunpack.c.l.b16 %v558
        %v574 = vunpack.c.l.b16 %v559
        %v575 = vunpack.c.l.b16 %v560
        %v576 = vunpack.c.l.b16 %v561
        %v577 = vpack.c.b16 %v574, %v573
        %v578 = vpack.c.b16 %v576, %v575
        %v582 = vsel %vm402, %v553, 0
        %v585 = vsel %vm402, %v554, 0
        %v588 = vsel %vm402, %v555, 0
        %v591 = vsel %vm402, %v556, 0
        %v594 = vsel %vm402, %v557, 0
        %596 = vmatprep.subr.bf16.mxu0 0
        %597 = vmatpush1.bf16.msra.mxu0 %v577
        %598 = vmatprep.subr.bf16.mxu0 0
        %599 = vmatpush1.bf16.msra.mxu0 %v578
        %600 = vmatprep.subr.bf16.mxu0 0
        %601 = vmatpush1.bf16.msra.mxu0 0
        %602 = vmatprep.subr.bf16.mxu0 0
        %603 = vmatpush1.bf16.msra.mxu0 0
        %604 = vmatprep.subr.bf16.mxu0 0
        %605 = vmatpush1.bf16.msra.mxu0 0
        %606 = vmatprep.subr.bf16.mxu0 0
        %607 = vmatpush1.bf16.msra.mxu0 0
        %608 = vmatprep.subr.bf16.mxu0 0
        %609 = vmatpush1.bf16.msra.mxu0 0
        %610 = vmatprep.subr.bf16.mxu0 0
        %611 = vmatpush1.bf16.msra.mxu0 0
        %612 = vmatprep.subr.bf16.mxu0 0
        %613 = vmatpush1.bf16.msra.mxu0 0
        %614 = vmatprep.subr.bf16.mxu0 0
        %615 = vmatpush1.bf16.msra.mxu0 0
        %616 = vmatprep.subr.bf16.mxu0 0
        %617 = vmatpush1.bf16.msra.mxu0 0
        %618 = vmatprep.subr.bf16.mxu0 0
        %619 = vmatpush1.bf16.msra.mxu0 0
        %620 = vmatprep.subr.bf16.mxu0 0
        %621 = vmatpush1.bf16.msra.mxu0 0
        %622 = vmatprep.subr.bf16.mxu0 0
        %623 = vmatpush1.bf16.msra.mxu0 0
        %624 = vmatprep.subr.bf16.mxu0 0
        %625 = vmatpush1.bf16.msra.mxu0 0
        %626 = vmatprep.subr.bf16.mxu0 0
        %627 = vmatpush1.bf16.msra.mxu0 0
        %628 = vmatprep.mubr.bf16.mxu0 0
        %629 = vmatmul.mubr.bf16.gmra.mrb[0].mxu0 %v582
        %v630 = vpop.f32.mrb[0].mxu0
        %v631 = vadd.f32 %v567, %v630
        %v632 = vpop.f32.mrb[0].mxu0
        %v633 = vpop.f32.mrb[0].mxu0
        %v634 = vadd.f32 %v567, %v633
        %v635 = vpop.f32.mrb[0].mxu0
        %636 = vmatprep.mubr.bf16.mxu0 0
        %637 = vmatmul.mubr.bf16.gmra.mrb[0].mxu0 %v585
        %v638 = vpop.f32.mrb[0].mxu0
        %v639 = vadd.f32 %v567, %v638
        %v640 = vpop.f32.mrb[0].mxu0
        %v641 = vpop.f32.mrb[0].mxu0
        %v642 = vadd.f32 %v567, %v641
        %v643 = vpop.f32.mrb[0].mxu0
        %644 = vmatprep.mubr.bf16.mxu0 0
        %645 = vmatmul.mubr.bf16.gmra.mrb[0].mxu0 %v588
        %v646 = vpop.f32.mrb[0].mxu0
        %v647 = vadd.f32 %v567, %v646
        %v648 = vpop.f32.mrb[0].mxu0
        %v649 = vpop.f32.mrb[0].mxu0
        %v650 = vadd.f32 %v567, %v649
        %v651 = vpop.f32.mrb[0].mxu0
        %652 = vmatprep.mubr.bf16.mxu0 0
        %653 = vmatmul.mubr.bf16.gmra.mrb[0].mxu0 %v591
        %v654 = vpop.f32.mrb[0].mxu0
        %v655 = vadd.f32 %v567, %v654
        %v656 = vpop.f32.mrb[0].mxu0
        %v657 = vpop.f32.mrb[0].mxu0
        %v658 = vadd.f32 %v567, %v657
        %v659 = vpop.f32.mrb[0].mxu0
        %660 = vmatprep.mubr.bf16.mxu0 0
        %661 = vmatmul.mubr.bf16.gmra.mrb[0].mxu0 %v594
        %v662 = vpop.f32.mrb[0].mxu0
        %v663 = vadd.f32 %v567, %v662
        %v664 = vpop.f32.mrb[0].mxu0
        %v665 = vpop.f32.mrb[0].mxu0
        %v666 = vpop.f32.mrb[0].mxu0
        %667 = vdwg.mxu0
        %v668 = vmul.f32 %v631, 0.5
        %v669 = vmul.f32 %v634, 0.5
        %v670 = vmul.f32 %v639, 0.5
        %v671 = vmul.f32 %v642, 0.5
        %v672 = vmul.f32 %v647, 0.5
        %v673 = vmul.f32 %v650, 0.5
        %v674 = vmul.f32 %v655, 0.5
        %v675 = vmul.f32 %v658, 0.5
        %v676 = vmul.f32 %v663, 0.5
        %v677 = vmul.f32 %v631, 0.70710677
        %v678 = vmul.f32 %v634, 0.70710677
        %v679 = vmul.f32 %v639, 0.70710677
        %v680 = vmul.f32 %v642, 0.70710677
        %v681 = vmul.f32 %v647, 0.70710677
        %v682 = vmul.f32 %v650, 0.70710677
        %v683 = vmul.f32 %v655, 0.70710677
        %v684 = vmul.f32 %v658, 0.70710677
        %v685 = vmul.f32 %v663, 0.70710677
        %v686 = verf.f32.pop %v677
        %v687 = verf.f32.pop %v678
        %v688 = verf.f32.pop %v679
        %v689 = verf.f32.pop %v680
        %v690 = verf.f32.pop %v681
        %v691 = verf.f32.pop %v682
        %v692 = verf.f32.pop %v683
        %v693 = verf.f32.pop %v684
        %v694 = verf.f32.pop %v685
        %v695 = vadd.f32 %v686, 1.0
        %v696 = vadd.f32 %v687, 1.0
        %v697 = vadd.f32 %v688, 1.0
        %v698 = vadd.f32 %v689, 1.0
        %v699 = vadd.f32 %v690, 1.0
        %v700 = vadd.f32 %v691, 1.0
        %v701 = vadd.f32 %v692, 1.0
        %v702 = vadd.f32 %v693, 1.0
        %v703 = vadd.f32 %v694, 1.0
        %v704 = vmul.f32 %v668, %v695
        %v705 = vmul.f32 %v669, %v696
        %v706 = vmul.f32 %v670, %v697
        %v707 = vmul.f32 %v671, %v698
        %v708 = vmul.f32 %v672, %v699
        %v709 = vmul.f32 %v673, %v700
        %v710 = vmul.f32 %v674, %v701
        %v711 = vmul.f32 %v675, %v702
        %v712 = vmul.f32 %v676, %v703
        %v713 = vpack.c.bf16 %v705, %v704
        %v714 = vpack.c.bf16 %v707, %v706
        %v715 = vpack.c.bf16 %v709, %v708
        %v716 = vpack.c.bf16 %v711, %v710
        %v717 = vpack.c.bf16 %v712, %v712
        %v718 = vld [vmem:[#allocation11] sm:$0xf]
        %v719 = vld [vmem:[#allocation11 + $0x4] sm:$0xf]
        %v720 = vld [vmem:[#allocation11 + $0x8] sm:$0xf]
        %v721 = vld [vmem:[#allocation11 + $0xc] sm:$0xf]
        %v722 = vld [vmem:[#allocation11 + $0x10] sm:$0xf]
        %v723 = vld [vmem:[#allocation11 + $0x14] sm:$0xf]
        %v724 = vld [vmem:[#allocation11 + $0x18] sm:$0xf]
        %v725 = vld [vmem:[#allocation11 + $0x1c] sm:$0xf]
        %v726 = vld [vmem:[#allocation11 + $0x20] sm:$0xf]
        %v727 = vld [vmem:[#allocation11 + $0x24] sm:$0xf]
        %v728 = vld [vmem:[#allocation11 + $0x28] sm:$0xf]
        %v729 = vld [vmem:[#allocation11 + $0x2c] sm:$0xf]
        %v730 = vld [vmem:[#allocation11 + $0x30] sm:$0xf]
        %v731 = vld [vmem:[#allocation11 + $0x34] sm:$0xf]
        %v732 = vld [vmem:[#allocation11 + $0x38] sm:$0xf]
        %v733 = vld [vmem:[#allocation11 + $0x3c] sm:$0xf]
        %v734 = vld [vmem:[#allocation13] sm:$0x1]
        %v736 = vlaneseq
        %v737 = vshrl.u32 %v736, 7
        %v738 = vsub.s32 0, %v737
        %v739 = vrot.slane %v734, %v738
        %v757 = vunpack.c.l.b16 %v718
        %v758 = vunpack.c.l.b16 %v719
        %v759 = vunpack.c.l.b16 %v720
        %v760 = vunpack.c.l.b16 %v721
        %v761 = vunpack.c.l.b16 %v722
        %v762 = vunpack.c.l.b16 %v723
        %v763 = vunpack.c.l.b16 %v724
        %v764 = vunpack.c.l.b16 %v725
        %v765 = vunpack.c.l.b16 %v726
        %v766 = vunpack.c.l.b16 %v727
        %v767 = vunpack.c.l.b16 %v728
        %v768 = vunpack.c.l.b16 %v729
        %v769 = vunpack.c.l.b16 %v730
        %v770 = vunpack.c.l.b16 %v731
        %v771 = vunpack.c.l.b16 %v732
        %v772 = vunpack.c.l.b16 %v733
        %v773 = vpack.c.b16 %v758, %v757
        %v774 = vpack.c.b16 %v760, %v759
        %v775 = vpack.c.b16 %v762, %v761
        %v776 = vpack.c.b16 %v764, %v763
        %v777 = vpack.c.b16 %v766, %v765
        %v778 = vpack.c.b16 %v768, %v767
        %v779 = vpack.c.b16 %v770, %v769
        %v780 = vpack.c.b16 %v772, %v771
        %789 = vmatprep.subr.bf16.mxu0 0
        %790 = vmatpush1.bf16.msra.mxu0 %v773
        %791 = vmatprep.subr.bf16.mxu0 0
        %792 = vmatpush1.bf16.msra.mxu0 %v774
        %793 = vmatprep.subr.bf16.mxu0 0
        %794 = vmatpush1.bf16.msra.mxu0 %v775
        %795 = vmatprep.subr.bf16.mxu0 0
        %796 = vmatpush1.bf16.msra.mxu0 %v776
        %797 = vmatprep.subr.bf16.mxu0 0
        %798 = vmatpush1.bf16.msra.mxu0 %v777
        %799 = vmatprep.subr.bf16.mxu0 0
        %800 = vmatpush1.bf16.msra.mxu0 %v778
        %801 = vmatprep.subr.bf16.mxu0 0
        %802 = vmatpush1.bf16.msra.mxu0 %v779
        %803 = vmatprep.subr.bf16.mxu0 0
        %804 = vmatpush1.bf16.msra.mxu0 %v780
        %805 = vmatprep.subr.bf16.mxu0 0
        %806 = vmatpush1.bf16.msra.mxu0 0
        %807 = vmatprep.subr.bf16.mxu0 0
        %808 = vmatpush1.bf16.msra.mxu0 0
        %809 = vmatprep.subr.bf16.mxu0 0
        %810 = vmatpush1.bf16.msra.mxu0 0
        %811 = vmatprep.subr.bf16.mxu0 0
        %812 = vmatpush1.bf16.msra.mxu0 0
        %813 = vmatprep.subr.bf16.mxu0 0
        %814 = vmatpush1.bf16.msra.mxu0 0
        %815 = vmatprep.subr.bf16.mxu0 0
        %816 = vmatpush1.bf16.msra.mxu0 0
        %817 = vmatprep.subr.bf16.mxu0 0
        %818 = vmatpush1.bf16.msra.mxu0 0
        %819 = vmatprep.subr.bf16.mxu0 0
        %820 = vmatpush1.bf16.msra.mxu0 0
        %821 = vmatprep.mubr.bf16.mxu0 0
        %822 = vmatmul.mubr.bf16.gmra.mrb[0].mxu0 %v713
        %v823 = vpop.f32.mrb[0].mxu0
        %v824 = vadd.f32 %v739, %v823
        %v825 = vpop.f32.mrb[0].mxu0
        %v826 = vpop.f32.mrb[0].mxu0
        %v827 = vadd.f32 %v739, %v826
        %v828 = vpop.f32.mrb[0].mxu0
        %829 = vmatprep.mubr.bf16.mxu0 0
        %830 = vmatmul.mubr.bf16.gmra.mrb[0].mxu0 %v714
        %v831 = vpop.f32.mrb[0].mxu0
        %v832 = vadd.f32 %v739, %v831
        %v833 = vpop.f32.mrb[0].mxu0
        %v834 = vpop.f32.mrb[0].mxu0
        %v835 = vadd.f32 %v739, %v834
        %v836 = vpop.f32.mrb[0].mxu0
        %837 = vmatprep.mubr.bf16.mxu0 0
        %838 = vmatmul.mubr.bf16.gmra.mrb[0].mxu0 %v715
        %v839 = vpop.f32.mrb[0].mxu0
        %v840 = vadd.f32 %v739, %v839
        %v841 = vpop.f32.mrb[0].mxu0
        %v842 = vpop.f32.mrb[0].mxu0
        %v843 = vadd.f32 %v739, %v842
        %v844 = vpop.f32.mrb[0].mxu0
        %845 = vmatprep.mubr.bf16.mxu0 0
        %846 = vmatmul.mubr.bf16.gmra.mrb[0].mxu0 %v716
        %v847 = vpop.f32.mrb[0].mxu0
        %v848 = vadd.f32 %v739, %v847
        %v849 = vpop.f32.mrb[0].mxu0
        %v850 = vpop.f32.mrb[0].mxu0
        %v851 = vadd.f32 %v739, %v850
        %v852 = vpop.f32.mrb[0].mxu0
        %853 = vmatprep.mubr.bf16.mxu0 0
        %854 = vmatmul.mubr.bf16.gmra.mrb[0].mxu0 %v717
        %v855 = vpop.f32.mrb[0].mxu0
        %v856 = vadd.f32 %v739, %v855
        %v857 = vpop.f32.mrb[0].mxu0
        %v858 = vpop.f32.mrb[0].mxu0
        %v859 = vpop.f32.mrb[0].mxu0
        %860 = vdwg.mxu0
        %v861 = vadd.f32 %v393, %v824
        %v862 = vadd.f32 %v394, %v827
        %v863 = vadd.f32 %v395, %v832
        %v864 = vadd.f32 %v396, %v835
        %v865 = vadd.f32 %v397, %v840
        %v866 = vadd.f32 %v398, %v843
        %v867 = vadd.f32 %v399, %v848
        %v868 = vadd.f32 %v400, %v851
        %v869 = vadd.f32 %v401, %v856
        %870 = vst.msk [vmem:[%s381] sm:$0xff] %vm402, %v861
        %871 = vst.msk [vmem:[%s381 + $0x8] sm:$0xff] %vm402, %v862
        %872 = vst.msk [vmem:[%s381 + $0x10] sm:$0xff] %vm402, %v863
        %873 = vst.msk [vmem:[%s381 + $0x18] sm:$0xff] %vm402, %v864
        %874 = vst.msk [vmem:[%s381 + $0x20] sm:$0xff] %vm402, %v865
        %875 = vst.msk [vmem:[%s381 + $0x28] sm:$0xff] %vm402, %v866
        %876 = vst.msk [vmem:[%s381 + $0x30] sm:$0xff] %vm402, %v867
        %877 = vst.msk [vmem:[%s381 + $0x38] sm:$0xff] %vm402, %v868
        %878 = vst.msk [vmem:[%s381 + $0x40] sm:$0xff] %vm402, %v869
        %s879 = sand.u32 %s187, 1
        %s880 = scalar_lea.sflag [#allocation4], %s879
        %s881 = sand.u32 %s187, 1
        %s882 = smul.addr %s881, 72
        %s883 = scalar_lea.vmem [#allocation14], %s882
        // Predicated region
        $region77: #{timesformer_layer.13} parent=47 // pred_check
          %p884 = pneg %p197
        $region78: #{timesformer_layer.13} parent=47 // pred_check_branch
          %886 = sbr.rel (%p884) target = $region80
        $region79: #{timesformer_layer.13} parent=47 // pred_region
          %s887 = smul.u32 9, %s27
          %s888 = ssub.s32 17, %s887
          %p889 = scmp.lt.s32.totalorder %s888, 9
          %s890 = scalar_select %p889, %s888, 9
          %s891 = smul.u32 128, %s890
          %s893 = ssub.s32 1152, %s891
          %894 = vsyncadd %s880, %s893
          %p895 = scmp.ne.s32.totalorder 0, %s891
          %s896 = smul.addr %s887, 128
          %s897 = scalar_lea.hbm %s7, %s896
          %s898 = smul.u32 8, %s890
          %s899 = sshll.u32 %s883, 4
          %s900 = int_to_ptr.vmem [resolvable:$true] %s899
          %s901 = sshll.u32 %s898, 4
          %905 = dma.vmem_to_hbm [thread:$0]  (%p895), %s900, %s901, %s897, %s880, 128, 128, 8
        $region80: #{timesformer_layer.13} parent=47 // pred_fallthru
          _
      $region48: #{timesformer_layer.13} parent=5 // pred_fallthru
        _
      %p906 = scmp.le.s32.totalorder 2, %s22
      // Predicated region
      $region81: #{timesformer_layer.13} parent=5 // pred_check
        %p907 = pneg %p906
      $region82: #{timesformer_layer.13} parent=5 // pred_check_branch
        %909 = sbr.rel (%p907) target = $region84
      $region83: #{timesformer_layer.13} parent=5 // pred_region
        %s910 = ssub.s32 %s22, 2
        // Predicated region
        $region85: #{timesformer_layer.13} parent=83 // pred_check
          %p911 = pneg %p203
        $region86: #{timesformer_layer.13} parent=83 // pred_check_branch
          %913 = sbr.rel (%p911) target = $region88
        $region87: #{timesformer_layer.13} parent=83 // pred_region
          %s914 = sand.u32 %s188, 1
          %s915 = scalar_lea.sflag [#allocation4], %s914
          %s916 = sand.u32 %s188, 1
          %s917 = smul.addr %s916, 72
          %s918 = scalar_lea.vmem [#allocation14], %s917
          %919 = dma.done %s915, 1152
        $region88: #{timesformer_layer.13} parent=83 // pred_fallthru
          _
      $region84: #{timesformer_layer.13} parent=5 // pred_fallthru
        _
    $region6: #{timesformer_layer.13} parent=1 // loop_footer
      %s26 = sadd.s32 1, %s22
    $region7: #{timesformer_layer.13} parent=1 // loop_footer_branch
      %21 = sbr.rel target = $region3
    $region8: #{timesformer_layer.13} parent=1 // loop_exit
      _
    %920 = vsyncpa [#allocation3], 1
    %s921 = scalar_lea.sflag [#allocation3], 1
    %922 = vsyncpa %s921, 1
    %923 = vsyncpa [#allocation6], 1
    %924 = vsyncpa [#allocation9], 1
    %925 = vsyncpa [#allocation12], 1
    %926 = vsyncpa [#allocation4], 1
    %s927 = scalar_lea.sflag [#allocation4], 1
    %928 = vsyncpa %s927, 1

// kernel: timesformer_layer.11
$region0: #{timesformer_layer.11}
  #allocation0 [shape = 'u32[]', space=smem, size = 0x4, offset = 0x4, fixed_abs, tag = 'smem constant byte address 0x4 - core index']
  #allocation1 [shape = 'u32[144,128]{1,0:T(1,128)}', space=vmem, size = 0x12000, scoped, tag = 'internal scratch']
  #allocation6 [shape = 's32[]', space=sflag, size = 0x4, offset = 0, fixed_abs, tag = 'sflag constant byte address 0x0 - dummy sync flag']
  %s0 = inlined_call_operand.hbm [shape: bf16[3,8,65,8], index: 0, kind: input, shape index: {}]
  %s1 = inlined_call_operand.hbm [shape: bf16[8,65,8], index: 1, kind: output, shape index: {}]
  %s2 = sld [smem:[#allocation0]]
  $region41: #{timesformer_layer.11} parent=0
    _
  %s4 = ssub.s32 1, %s2
  %s5 = scalar_select 0, %s4, %s2
  $region1: #{timesformer_layer.11} parent=0
    #allocation2 [shape = 'u8[110592]{0}', space=vmem, size = 0x1b000, scoped, tag = 'input window, operand 0']
    #allocation3 [shape = 's32[2]{0}', space=sflag, size = 0x8, scoped, tag = 'scoped memory for timesformer_layer.11']
    #allocation4 [shape = 's32[2]{0}', space=sflag, size = 0x8, scoped, tag = 'scoped memory for timesformer_layer.11']
    #allocation5 [shape = 'u8[36864]{0}', space=vmem, size = 0x9000, scoped, tag = 'output window, operand 0']
    %6 = vsyncpa [#allocation3], 0
    %s7 = scalar_lea.sflag [#allocation3], 1
    %8 = vsyncpa %s7, 0
    %9 = vsyncpa [#allocation4], 0
    %s10 = scalar_lea.sflag [#allocation4], 1
    %11 = vsyncpa %s10, 0
    loop: start=0, step=1, limit=10
    $region2: #{timesformer_layer.11} parent=1 // loop_pre_header
      _
    $region3: #{timesformer_layer.11} parent=1 // loop_header
      %s13 = sphi 0, %s17
      %p14 = scmp.ge.s32.totalorder %s13, 10
      %s23 = sphi 0, %s25
      %s26 = sphi 0, %s23
      %s27 = sphi 0, %s26
      %s43 = sphi 0, %s27
      %s49 = sphi 0, %s51
      %s52 = sphi 0, %s49
      %s53 = sphi 0, %s52
      %s69 = sphi 0, %s53
    $region4: #{timesformer_layer.11} parent=1 // loop_header_branch
      %16 = sbr.rel (%p14) target = $region8
    $region5: #{timesformer_layer.11} parent=1 // loop_body
      %s18 = ssub.s32 %s13, 1
      %s19 = ssub.s32 %s13, 2
      %s20 = sadd.s32 %s13, 1
      %s21 = ssub.s32 %s13, %s20
      %p22 = scmp.eq.s32.totalorder %s21, 0
      %s24 = sadd.s32 %s23, 1
      %s25 = scalar_select %p22, %s23, %s24
      %p28 = pneg %p22
      %p29 = scmp.eq.s32.totalorder %s13, 7
      %p30 = por %p28, %p29
      %p31 = scmp.ne.s32.totalorder %s23, %s26
      %p32 = scmp.eq.s32.totalorder %s13, 0
      %p33 = por %p31, %p32
      %p34 = scmp.ne.s32.totalorder %s23, %s26
      %p35 = scmp.eq.s32.totalorder %s18, 7
      %p36 = por %p34, %p35
      %p37 = scmp.ne.s32.totalorder %s26, %s27
      %p38 = scmp.eq.s32.totalorder %s18, 0
      %p39 = por %p37, %p38
      %p40 = scmp.ne.s32.totalorder %s26, %s27
      %p41 = scmp.eq.s32.totalorder %s19, 7
      %p42 = por %p40, %p41
      %p44 = scmp.ne.s32.totalorder %s27, %s43
      %p45 = scmp.eq.s32.totalorder %s19, 0
      %p46 = por %p44, %p45
      %s47 = ssub.s32 %s13, %s20
      %p48 = scmp.eq.s32.totalorder %s47, 0
      %s50 = sadd.s32 %s49, 1
      %s51 = scalar_select %p48, %s49, %s50
      %p54 = pneg %p48
      %p55 = scmp.eq.s32.totalorder %s13, 7
      %p56 = por %p54, %p55
      %p57 = scmp.ne.s32.totalorder %s49, %s52
      %p58 = scmp.eq.s32.totalorder %s13, 0
      %p59 = por %p57, %p58
      %p60 = scmp.ne.s32.totalorder %s49, %s52
      %p61 = scmp.eq.s32.totalorder %s18, 7
      %p62 = por %p60, %p61
      %p63 = scmp.ne.s32.totalorder %s52, %s53
      %p64 = scmp.eq.s32.totalorder %s18, 0
      %p65 = por %p63, %p64
      %p66 = scmp.ne.s32.totalorder %s52, %s53
      %p67 = scmp.eq.s32.totalorder %s19, 7
      %p68 = por %p66, %p67
      %p70 = scmp.ne.s32.totalorder %s53, %s69
      %p71 = scmp.eq.s32.totalorder %s19, 0
      %p72 = por %p70, %p71
      %p73 = scmp.le.s32.totalorder 1, %s13
      %p74 = scmp.lt.s32.totalorder %s13, 9
      %p75 = pnand %p73, %p74
      %p76 = pneg %p75
      // Predicated region
      $region9: #{timesformer_layer.11} parent=5 // pred_check
        _
      $region10: #{timesformer_layer.11} parent=5 // pred_check_branch
        %78 = sbr.rel (%p75) target = $region12
      $region11: #{timesformer_layer.11} parent=5 // pred_region
        %s79 = ssub.s32 %s13, 1
      $region12: #{timesformer_layer.11} parent=5 // pred_fallthru
        _
      %p80 = scmp.lt.s32.totalorder %s13, 8
      // Predicated region
      $region13: #{timesformer_layer.11} parent=5 // pred_check
        %p81 = pneg %p80
      $region14: #{timesformer_layer.11} parent=5 // pred_check_branch
        %83 = sbr.rel (%p81) target = $region16
      $region15: #{timesformer_layer.11} parent=5 // pred_region
        // Predicated region
        $region17: #{timesformer_layer.11} parent=15 // pred_check
          %p84 = pneg %p33
        $region18: #{timesformer_layer.11} parent=15 // pred_check_branch
          %86 = sbr.rel (%p84) target = $region20
        $region19: #{timesformer_layer.11} parent=15 // pred_region
          #allocation7 [shape = 'u32[6]{0}', space=smem, size = 0x18, scoped, tag = 'DMA stride descriptor']
          %s87 = sand.u32 %s23, 1
          %s88 = scalar_lea.sflag [#allocation3], %s87
          %s89 = sand.u32 %s23, 1
          %s90 = smul.addr %s89, 108
          %s91 = scalar_lea.vmem [#allocation2], %s90
          %s93 = ssub.s32 1728, 1728
          %94 = vsyncadd %s88, %s93
          %s95 = smul.addr %s13, 9
          %s96 = smul.addr %s95, 64
          %s97 = scalar_lea.hbm %s0, %s96
          %s99 = sshll.u32 1, 14
          %s100 = sxor.u32 4294967295, %s99
          %s102 = sld [smem:[#allocation0]]
          %s103 = sadd.s32 2, %s102
          %s105 = sshll.u32 7, 26
          %s106 = sxor.u32 4294967295, %s105
          %s107 = sand.u32 0, %s106
          %s108 = sshll.u32 %s103, 26
          %s109 = sor.u32 %s107, %s108
          %s110 = sshll.u32 %s91, 4
          %s111 = int_to_ptr.vmem [resolvable:$true] %s110
          %117 = sst [smem:[#allocation7]] 4608
          %s118 = scalar_lea.smem [#allocation7], 1
          %119 = sst [smem:[%s118]] 576
          %s120 = scalar_lea.smem [#allocation7], 2
          %121 = sst [smem:[%s120]] 9
          %s122 = scalar_lea.smem [#allocation7], 3
          %123 = sst [smem:[%s122]] 64
          %s124 = scalar_lea.smem [#allocation7], 4
          %125 = sst [smem:[%s124]] 64
          %s126 = scalar_lea.smem [#allocation7], 5
          %127 = sst [smem:[%s126]] 4
          %129 = dma.general %s97, 1728, %s111, %s88, [#allocation6], [#allocation7], %s109, 0
        $region20: #{timesformer_layer.11} parent=15 // pred_fallthru
          _
      $region16: #{timesformer_layer.11} parent=5 // pred_fallthru
        _
      %p130 = scmp.le.s32.totalorder 1, %s13
      %p131 = scmp.lt.s32.totalorder %s13, 9
      %p132 = pnand %p130, %p131
      %p133 = pneg %p132
      // Predicated region
      $region21: #{timesformer_layer.11} parent=5 // pred_check
        _
      $region22: #{timesformer_layer.11} parent=5 // pred_check_branch
        %135 = sbr.rel (%p132) target = $region24
      $region23: #{timesformer_layer.11} parent=5 // pred_region
        %s136 = ssub.s32 %s13, 1
        %s137 = sand.u32 %s26, 1
        %s138 = scalar_lea.sflag [#allocation3], %s137
        %s139 = sand.u32 %s26, 1
        %s140 = smul.addr %s139, 108
        %s141 = scalar_lea.vmem [#allocation2], %s140
        // Predicated region
        $region25: #{timesformer_layer.11} parent=23 // pred_check
          %p142 = pneg %p39
        $region26: #{timesformer_layer.11} parent=23 // pred_check_branch
          %144 = sbr.rel (%p142) target = $region28
        $region27: #{timesformer_layer.11} parent=23 // pred_region
          %145 = dma.done %s138, 1728
        $region28: #{timesformer_layer.11} parent=23 // pred_fallthru
          _
        %s146 = sand.u32 %s26, 1
        %s147 = scalar_lea.sflag [#allocation3], %s146
        %s148 = sand.u32 %s26, 1
        %s149 = smul.addr %s148, 108
        %s150 = scalar_lea.vmem [#allocation2], %s149
        %p151 = pneg %p39
        %p152 = pneg %p36
        %p153 = pneg %p65
        %p154 = pneg %p62
        %s155 = sand.u32 %s52, 1
        %s156 = scalar_lea.sflag [#allocation4], %s155
        %s157 = sand.u32 %s52, 1
        %s158 = smul.addr %s157, 36
        %s159 = scalar_lea.vmem [#allocation5], %s158
        %v160 = vld [vmem:[%s141] sm:$0xf]
        %v161 = vld [vmem:[%s141 + $0x4] sm:$0xf]
        %v162 = vld [vmem:[%s141 + $0x8] sm:$0xf]
        %v163 = vld [vmem:[%s141 + $0xc] sm:$0xf]
        %v164 = vld [vmem:[%s141 + $0x10] sm:$0xf]
        %v165 = vld [vmem:[%s141 + $0x14] sm:$0xf]
        %v166 = vld [vmem:[%s141 + $0x18] sm:$0xf]
        %v167 = vld [vmem:[%s141 + $0x1c] sm:$0xf]
        %v168 = vld [vmem:[%s141 + $0x20] sm:$0x1]
        %v169 = vunpack.c.l.bf16 %v160
        %v170 = vunpack.c.l.bf16 %v161
        %v171 = vunpack.c.l.bf16 %v162
        %v172 = vunpack.c.l.bf16 %v163
        %v173 = vunpack.c.l.bf16 %v164
        %v174 = vunpack.c.l.bf16 %v165
        %v175 = vunpack.c.l.bf16 %v166
        %v176 = vunpack.c.l.bf16 %v167
        %v177 = vunpack.c.l.bf16 %v168
        %v178 = vmul.f32 %v169, 0.35355338
        %v179 = vmul.f32 %v170, 0.35355338
        %v180 = vmul.f32 %v171, 0.35355338
        %v181 = vmul.f32 %v172, 0.35355338
        %v182 = vmul.f32 %v173, 0.35355338
        %v183 = vmul.f32 %v174, 0.35355338
        %v184 = vmul.f32 %v175, 0.35355338
        %v185 = vmul.f32 %v176, 0.35355338
        %v186 = vmul.f32 %v177, 0.35355338
        %s187 = scalar_lea.vmem %s141, 36 [#allocation2]
        %v188 = vld [vmem:[%s187] sm:$0xf]
        %v189 = vld [vmem:[%s187 + $0x4] sm:$0xf]
        %v190 = vld [vmem:[%s187 + $0x8] sm:$0xf]
        %v191 = vld [vmem:[%s187 + $0xc] sm:$0xf]
        %v192 = vld [vmem:[%s187 + $0x10] sm:$0xf]
        %v193 = vld [vmem:[%s187 + $0x14] sm:$0xf]
        %v194 = vld [vmem:[%s187 + $0x18] sm:$0xf]
        %v195 = vld [vmem:[%s187 + $0x1c] sm:$0xf]
        %v196 = vld [vmem:[%s187 + $0x20] sm:$0x1]
        %v197 = vunpack.c.l.bf16 %v188
        %v198 = vunpack.c.l.bf16 %v189
        %v199 = vunpack.c.l.bf16 %v190
        %v200 = vunpack.c.l.bf16 %v191
        %v201 = vunpack.c.l.bf16 %v192
        %v202 = vunpack.c.l.bf16 %v193
        %v203 = vunpack.c.l.bf16 %v194
        %v204 = vunpack.c.l.bf16 %v195
        %v205 = vunpack.c.l.bf16 %v196
        %s206 = scalar_lea.vmem %s141, 72 [#allocation2]
        %v207 = vld [vmem:[%s206] sm:$0xf]
        %v208 = vld [vmem:[%s206 + $0x4] sm:$0xf]
        %v209 = vld [vmem:[%s206 + $0x8] sm:$0xf]
        %v210 = vld [vmem:[%s206 + $0xc] sm:$0xf]
        %v211 = vld [vmem:[%s206 + $0x10] sm:$0xf]
        %v212 = vld [vmem:[%s206 + $0x14] sm:$0xf]
        %v213 = vld [vmem:[%s206 + $0x18] sm:$0xf]
        %v214 = vld [vmem:[%s206 + $0x1c] sm:$0xf]
        %v215 = vld [vmem:[%s206 + $0x20] sm:$0x1]
        %v216 = vunpack.c.l.bf16 %v207
        %v217 = vunpack.c.l.bf16 %v208
        %v218 = vunpack.c.l.bf16 %v209
        %v219 = vunpack.c.l.bf16 %v210
        %v220 = vunpack.c.l.bf16 %v211
        %v221 = vunpack.c.l.bf16 %v212
        %v222 = vunpack.c.l.bf16 %v213
        %v223 = vunpack.c.l.bf16 %v214
        %v224 = vunpack.c.l.bf16 %v215
        %vm225 = vcmask 64512
        %v227 = vsel %vm225, %v178, 0
        %v230 = vsel %vm225, %v197, 0
        %v233 = vsel %vm225, %v198, 0
        %v236 = vsel %vm225, %v199, 0
        %v239 = vsel %vm225, %v200, 0
        %v242 = vsel %vm225, %v201, 0
        %v245 = vsel %vm225, %v202, 0
        %v248 = vsel %vm225, %v203, 0
        %v251 = vsel %vm225, %v204, 0
        %v254 = vsel %vm225, %v205, 0
        %256 = vmatprep.subr.mxu0 0.0
        %257 = vmatpush1.xpose.msra.mxu0 %v230
        %258 = vmatprep.subr.mxu0 0.0
        %259 = vmatpush1.xpose.msra.mxu0 %v233
        %260 = vmatprep.subr.mxu0 0.0
        %261 = vmatpush1.xpose.msra.mxu0 %v236
        %262 = vmatprep.subr.mxu0 0.0
        %263 = vmatpush1.xpose.msra.mxu0 %v239
        %264 = vmatprep.subr.mxu0 0.0
        %265 = vmatpush1.xpose.msra.mxu0 %v242
        %266 = vmatprep.subr.mxu0 0.0
        %267 = vmatpush1.xpose.msra.mxu0 %v245
        %268 = vmatprep.subr.mxu0 0.0
        %269 = vmatpush1.xpose.msra.mxu0 %v248
        %270 = vmatprep.subr.mxu0 0.0
        %271 = vmatpush1.xpose.msra.mxu0 %v251
        %272 = vmatprep.subr.mxu0 0.0
        %273 = vmatpush1.xpose.msra.mxu0 %v254
        %274 = vmatprep.subr.mxu0 0.0
        %275 = vmatpush1.xpose.msra.mxu0 0.0
        %276 = vmatprep.subr.mxu0 0.0
        %277 = vmatpush1.xpose.msra.mxu0 0.0
        %278 = vmatprep.subr.mxu0 0.0
        %279 = vmatpush1.xpose.msra.mxu0 0.0
        %280 = vmatprep.subr.mxu0 0.0
        %281 = vmatpush1.xpose.msra.mxu0 0.0
        %282 = vmatprep.subr.mxu0 0.0
        %283 = vmatpush1.xpose.msra.mxu0 0.0
        %284 = vmatprep.subr.mxu0 0.0
        %285 = vmatpush1.xpose.msra.mxu0 0.0
        %286 = vmatprep.subr.mxu0 0.0
        %287 = vmatpush1.xpose.msra.mxu0 0.0
        %288 = vmatprep.subr.mxu0 0.0
        %289 = vmatpush1.xpose.msra.mxu0 0.0
        %290 = vmatprep.subr.mxu0 0.0
        %291 = vmatpush1.xpose.msra.mxu0 0.0
        %292 = vmatprep.subr.mxu0 0.0
        %293 = vmatpush1.xpose.msra.mxu0 0.0
        %294 = vmatprep.subr.mxu0 0.0
        %295 = vmatpush1.xpose.msra.mxu0 0.0
        %296 = vmatprep.subr.mxu0 0.0
        %297 = vmatpush1.xpose.msra.mxu0 0.0
        %298 = vmatprep.subr.mxu0 0.0
        %299 = vmatpush1.xpose.msra.mxu0 0.0
        %300 = vmatprep.subr.mxu0 0.0
        %301 = vmatpush1.xpose.msra.mxu0 0.0
        %302 = vmatprep.subr.mxu0 0.0
        %303 = vmatpush1.xpose.msra.mxu0 0.0
        %304 = vmatprep.subr.mxu0 0.0
        %305 = vmatpush1.xpose.msra.mxu0 0.0
        %306 = vmatprep.subr.mxu0 0.0
        %307 = vmatpush1.xpose.msra.mxu0 0.0
        %308 = vmatprep.subr.mxu0 0.0
        %309 = vmatpush1.xpose.msra.mxu0 0.0
        %310 = vmatprep.subr.mxu0 0.0
        %311 = vmatpush1.xpose.msra.mxu0 0.0
        %312 = vmatprep.subr.mxu0 0.0
        %313 = vmatpush1.xpose.msra.mxu0 0.0
        %314 = vmatprep.subr.mxu0 0.0
        %315 = vmatpush1.xpose.msra.mxu0 0.0
        %316 = vmatprep.subr.mxu0 0.0
        %317 = vmatpush1.xpose.msra.mxu0 0.0
        %318 = vmatprep.subr.mxu0 0.0
        %319 = vmatpush1.xpose.msra.mxu0 0.0
        %320 = vmatprep.mubr.f32.mxu0 0.0
        %321 = vmatmul.mubr.f32.gmra.mrb[0].mxu0 %v227
        %v322 = vpop.f32.mrb[0].mxu0
        %v323 = vadd.f32 0.0, %v322
        %v324 = vpop.f32.mrb[0].mxu0
        %325 = vdwg.mxu0
        %vm326 = vcmask 524288
        %v327 = vsel %vm326, %v323, -inf
        %328 = vmax.xlane.f32.xlu0 %v327
        %v329 = vpop.xlane.xlu0 %328
        %v330 = vsub.f32 %v323, %v329
        %v331 = vmul.f32 %v330, 1.442695
        %v332 = vpow.pop %v331
        %v333 = vsel %vm326, %v332, 0.0
        %334 = vadd.xlane.f32.xlu0 %v333
        %v335 = vpop.xlane.xlu0 %334
        %v336 = vrcp.pop %v335
        %v337 = vmul.f32 %v332, %v336
        %vm338 = vcmask 531456
        %v340 = vsel %vm338, %v337, 0
        %vm342 = vcmask 1040384
        %v344 = vsel %vm342, %v224, 0
        %346 = vmatprep.subr.mxu0 0.0
        %347 = vmatpush1.msra.mxu0 %v216
        %348 = vmatprep.subr.mxu0 0.0
        %349 = vmatpush1.msra.mxu0 %v217
        %350 = vmatprep.subr.mxu0 0.0
        %351 = vmatpush1.msra.mxu0 %v218
        %352 = vmatprep.subr.mxu0 0.0
        %353 = vmatpush1.msra.mxu0 %v219
        %354 = vmatprep.subr.mxu0 0.0
        %355 = vmatpush1.msra.mxu0 %v220
        %356 = vmatprep.subr.mxu0 0.0
        %357 = vmatpush1.msra.mxu0 %v221
        %358 = vmatprep.subr.mxu0 0.0
        %359 = vmatpush1.msra.mxu0 %v222
        %360 = vmatprep.subr.mxu0 0.0
        %361 = vmatpush1.msra.mxu0 %v223
        %362 = vmatprep.subr.mxu0 0.0
        %363 = vmatpush1.msra.mxu0 %v344
        %364 = vmatprep.subr.mxu0 0.0
        %365 = vmatpush1.msra.mxu0 0.0
        %366 = vmatprep.subr.mxu0 0.0
        %367 = vmatpush1.msra.mxu0 0.0
        %368 = vmatprep.subr.mxu0 0.0
        %369 = vmatpush1.msra.mxu0 0.0
        %370 = vmatprep.subr.mxu0 0.0
        %371 = vmatpush1.msra.mxu0 0.0
        %372 = vmatprep.subr.mxu0 0.0
        %373 = vmatpush1.msra.mxu0 0.0
        %374 = vmatprep.subr.mxu0 0.0
        %375 = vmatpush1.msra.mxu0 0.0
        %376 = vmatprep.subr.mxu0 0.0
        %377 = vmatpush1.msra.mxu0 0.0
        %378 = vmatprep.subr.mxu0 0.0
        %379 = vmatpush1.msra.mxu0 0.0
        %380 = vmatprep.subr.mxu0 0.0
        %381 = vmatpush1.msra.mxu0 0.0
        %382 = vmatprep.subr.mxu0 0.0
        %383 = vmatpush1.msra.mxu0 0.0
        %384 = vmatprep.subr.mxu0 0.0
        %385 = vmatpush1.msra.mxu0 0.0
        %386 = vmatprep.subr.mxu0 0.0
        %387 = vmatpush1.msra.mxu0 0.0
        %388 = vmatprep.subr.mxu0 0.0
        %389 = vmatpush1.msra.mxu0 0.0
        %390 = vmatprep.subr.mxu0 0.0
        %391 = vmatpush1.msra.mxu0 0.0
        %392 = vmatprep.subr.mxu0 0.0
        %393 = vmatpush1.msra.mxu0 0.0
        %394 = vmatprep.subr.mxu0 0.0
        %395 = vmatpush1.msra.mxu0 0.0
        %396 = vmatprep.subr.mxu0 0.0
        %397 = vmatpush1.msra.mxu0 0.0
        %398 = vmatprep.subr.mxu0 0.0
        %399 = vmatpush1.msra.mxu0 0.0
        %400 = vmatprep.subr.mxu0 0.0
        %401 = vmatpush1.msra.mxu0 0.0
        %402 = vmatprep.subr.mxu0 0.0
        %403 = vmatpush1.msra.mxu0 0.0
        %404 = vmatprep.subr.mxu0 0.0
        %405 = vmatpush1.msra.mxu0 0.0
        %406 = vmatprep.subr.mxu0 0.0
        %407 = vmatpush1.msra.mxu0 0.0
        %408 = vmatprep.subr.mxu0 0.0
        %409 = vmatpush1.msra.mxu0 0.0
        %410 = vmatprep.mubr.f32.mxu0 0.0
        %411 = vmatmul.mubr.f32.gmra.mrb[0].mxu0 %v340
        %v412 = vpop.f32.mrb[0].mxu0
        %v413 = vadd.f32 0.0, %v412
        %v414 = vpop.f32.mrb[0].mxu0
        %415 = vdwg.mxu0
        %vm424 = vcmask 1046528
        %v425 = vrot.slane %v178, 1
        %v426 = vrot.slane %v179, 1
        %v427 = vsel %vm424, %v425, %v426
        %v428 = vrot.slane %v180, 1
        %v429 = vsel %vm424, %v426, %v428
        %v430 = vrot.slane %v181, 1
        %v431 = vsel %vm424, %v428, %v430
        %v432 = vrot.slane %v182, 1
        %v433 = vsel %vm424, %v430, %v432
        %v434 = vrot.slane %v183, 1
        %v435 = vsel %vm424, %v432, %v434
        %v436 = vrot.slane %v184, 1
        %v437 = vsel %vm424, %v434, %v436
        %v438 = vrot.slane %v185, 1
        %v439 = vsel %vm424, %v436, %v438
        %v440 = vrot.slane %v186, 1
        %v441 = vsel %vm424, %v438, %v440
        %v450 = vrot.slane %v197, 1
        %v451 = vrot.slane %v198, 1
        %v452 = vsel %vm424, %v450, %v451
        %v453 = vrot.slane %v199, 1
        %v454 = vsel %vm424, %v451, %v453
        %v455 = vrot.slane %v200, 1
        %v456 = vsel %vm424, %v453, %v455
        %v457 = vrot.slane %v201, 1
        %v458 = vsel %vm424, %v455, %v457
        %v459 = vrot.slane %v202, 1
        %v460 = vsel %vm424, %v457, %v459
        %v461 = vrot.slane %v203, 1
        %v462 = vsel %vm424, %v459, %v461
        %v463 = vrot.slane %v204, 1
        %v464 = vsel %vm424, %v461, %v463
        %v465 = vrot.slane %v205, 1
        %v466 = vsel %vm424, %v463, %v465
        %v475 = vrot.slane %v216, 1
        %v476 = vrot.slane %v217, 1
        %v477 = vsel %vm424, %v475, %v476
        %v478 = vrot.slane %v218, 1
        %v479 = vsel %vm424, %v476, %v478
        %v480 = vrot.slane %v219, 1
        %v481 = vsel %vm424, %v478, %v480
        %v482 = vrot.slane %v220, 1
        %v483 = vsel %vm424, %v480, %v482
        %v484 = vrot.slane %v221, 1
        %v485 = vsel %vm424, %v482, %v484
        %v486 = vrot.slane %v222, 1
        %v487 = vsel %vm424, %v484, %v486
        %v488 = vrot.slane %v223, 1
        %v489 = vsel %vm424, %v486, %v488
        %v490 = vrot.slane %v224, 1
        %v491 = vsel %vm424, %v488, %v490
        %v500 = vsel %vm225, %v427, 0
        %v502 = vsel %vm225, %v429, 0
        %v504 = vsel %vm225, %v452, 0
        %v506 = vsel %vm225, %v454, 0
        %508 = vmatprep.subr.mxu0 0.0
        %509 = vmatpush1.xpose.msra.mxu0 %v504
        %510 = vmatprep.subr.mxu0 0.0
        %511 = vmatpush1.xpose.msra.mxu0 %v506
        %512 = vmatprep.subr.mxu0 0.0
        %513 = vmatpush1.xpose.msra.mxu0 0.0
        %514 = vmatprep.subr.mxu0 0.0
        %515 = vmatpush1.xpose.msra.mxu0 0.0
        %516 = vmatprep.subr.mxu0 0.0
        %517 = vmatpush1.xpose.msra.mxu0 0.0
        %518 = vmatprep.subr.mxu0 0.0
        %519 = vmatpush1.xpose.msra.mxu0 0.0
        %520 = vmatprep.subr.mxu0 0.0
        %521 = vmatpush1.xpose.msra.mxu0 0.0
        %522 = vmatprep.subr.mxu0 0.0
        %523 = vmatpush1.xpose.msra.mxu0 0.0
        %524 = vmatprep.subr.mxu0 0.0
        %525 = vmatpush1.xpose.msra.mxu0 0.0
        %526 = vmatprep.subr.mxu0 0.0
        %527 = vmatpush1.xpose.msra.mxu0 0.0
        %528 = vmatprep.subr.mxu0 0.0
        %529 = vmatpush1.xpose.msra.mxu0 0.0
        %530 = vmatprep.subr.mxu0 0.0
        %531 = vmatpush1.xpose.msra.mxu0 0.0
        %532 = vmatprep.subr.mxu0 0.0
        %533 = vmatpush1.xpose.msra.mxu0 0.0
        %534 = vmatprep.subr.mxu0 0.0
        %535 = vmatpush1.xpose.msra.mxu0 0.0
        %536 = vmatprep.subr.mxu0 0.0
        %537 = vmatpush1.xpose.msra.mxu0 0.0
        %538 = vmatprep.subr.mxu0 0.0
        %539 = vmatpush1.xpose.msra.mxu0 0.0
        %540 = vmatprep.subr.mxu0 0.0
        %541 = vmatpush1.xpose.msra.mxu0 0.0
        %542 = vmatprep.subr.mxu0 0.0
        %543 = vmatpush1.xpose.msra.mxu0 0.0
        %544 = vmatprep.subr.mxu0 0.0
        %545 = vmatpush1.xpose.msra.mxu0 0.0
        %546 = vmatprep.subr.mxu0 0.0
        %547 = vmatpush1.xpose.msra.mxu0 0.0
        %548 = vmatprep.subr.mxu0 0.0
        %549 = vmatpush1.xpose.msra.mxu0 0.0
        %550 = vmatprep.subr.mxu0 0.0
        %551 = vmatpush1.xpose.msra.mxu0 0.0
        %552 = vmatprep.subr.mxu0 0.0
        %553 = vmatpush1.xpose.msra.mxu0 0.0
        %554 = vmatprep.subr.mxu0 0.0
        %555 = vmatpush1.xpose.msra.mxu0 0.0
        %556 = vmatprep.subr.mxu0 0.0
        %557 = vmatpush1.xpose.msra.mxu0 0.0
        %558 = vmatprep.subr.mxu0 0.0
        %559 = vmatpush1.xpose.msra.mxu0 0.0
        %560 = vmatprep.subr.mxu0 0.0
        %561 = vmatpush1.xpose.msra.mxu0 0.0
        %562 = vmatprep.subr.mxu0 0.0
        %563 = vmatpush1.xpose.msra.mxu0 0.0
        %564 = vmatprep.subr.mxu0 0.0
        %565 = vmatpush1.xpose.msra.mxu0 0.0
        %566 = vmatprep.subr.mxu0 0.0
        %567 = vmatpush1.xpose.msra.mxu0 0.0
        %568 = vmatprep.subr.mxu0 0.0
        %569 = vmatpush1.xpose.msra.mxu0 0.0
        %570 = vmatprep.subr.mxu0 0.0
        %571 = vmatpush1.xpose.msra.mxu0 0.0
        %572 = vmatprep.mubr.f32.mxu0 0.0
        %573 = vmatmul.mubr.f32.gmra.mrb[0].mxu0 %v500
        %v574 = vpop.f32.mrb[0].mxu0
        %v575 = vadd.f32 0.0, %v574
        %v576 = vpop.f32.mrb[0].mxu0
        %577 = vmatprep.mubr.f32.mxu0 0.0
        %578 = vmatmul.mubr.f32.gmra.mrb[0].mxu0 %v502
        %v579 = vpop.f32.mrb[0].mxu0
        %v580 = vadd.f32 0.0, %v579
        %v581 = vpop.f32.mrb[0].mxu0
        %582 = vdwg.mxu0
        %v583 = vsel %vm225, %v431, 0
        %v585 = vsel %vm225, %v433, 0
        %v587 = vsel %vm225, %v456, 0
        %v589 = vsel %vm225, %v458, 0
        %591 = vmatprep.subr.mxu0 0.0
        %592 = vmatpush1.xpose.msra.mxu0 %v587
        %593 = vmatprep.subr.mxu0 0.0
        %594 = vmatpush1.xpose.msra.mxu0 %v589
        %595 = vmatprep.subr.mxu0 0.0
        %596 = vmatpush1.xpose.msra.mxu0 0.0
        %597 = vmatprep.subr.mxu0 0.0
        %598 = vmatpush1.xpose.msra.mxu0 0.0
        %599 = vmatprep.subr.mxu0 0.0
        %600 = vmatpush1.xpose.msra.mxu0 0.0
        %601 = vmatprep.subr.mxu0 0.0
        %602 = vmatpush1.xpose.msra.mxu0 0.0
        %603 = vmatprep.subr.mxu0 0.0
        %604 = vmatpush1.xpose.msra.mxu0 0.0
        %605 = vmatprep.subr.mxu0 0.0
        %606 = vmatpush1.xpose.msra.mxu0 0.0
        %607 = vmatprep.subr.mxu0 0.0
        %608 = vmatpush1.xpose.msra.mxu0 0.0
        %609 = vmatprep.subr.mxu0 0.0
        %610 = vmatpush1.xpose.msra.mxu0 0.0
        %611 = vmatprep.subr.mxu0 0.0
        %612 = vmatpush1.xpose.msra.mxu0 0.0
        %613 = vmatprep.subr.mxu0 0.0
        %614 = vmatpush1.xpose.msra.mxu0 0.0
        %615 = vmatprep.subr.mxu0 0.0
        %616 = vmatpush1.xpose.msra.mxu0 0.0
        %617 = vmatprep.subr.mxu0 0.0
        %618 = vmatpush1.xpose.msra.mxu0 0.0
        %619 = vmatprep.subr.mxu0 0.0
        %620 = vmatpush1.xpose.msra.mxu0 0.0
        %621 = vmatprep.subr.mxu0 0.0
        %622 = vmatpush1.xpose.msra.mxu0 0.0
        %623 = vmatprep.subr.mxu0 0.0
        %624 = vmatpush1.xpose.msra.mxu0 0.0
        %625 = vmatprep.subr.mxu0 0.0
        %626 = vmatpush1.xpose.msra.mxu0 0.0
        %627 = vmatprep.subr.mxu0 0.0
        %628 = vmatpush1.xpose.msra.mxu0 0.0
        %629 = vmatprep.subr.mxu0 0.0
        %630 = vmatpush1.xpose.msra.mxu0 0.0
        %631 = vmatprep.subr.mxu0 0.0
        %632 = vmatpush1.xpose.msra.mxu0 0.0
        %633 = vmatprep.subr.mxu0 0.0
        %634 = vmatpush1.xpose.msra.mxu0 0.0
        %635 = vmatprep.subr.mxu0 0.0
        %636 = vmatpush1.xpose.msra.mxu0 0.0
        %637 = vmatprep.subr.mxu0 0.0
        %638 = vmatpush1.xpose.msra.mxu0 0.0
        %639 = vmatprep.subr.mxu0 0.0
        %640 = vmatpush1.xpose.msra.mxu0 0.0
        %641 = vmatprep.subr.mxu0 0.0
        %642 = vmatpush1.xpose.msra.mxu0 0.0
        %643 = vmatprep.subr.mxu0 0.0
        %644 = vmatpush1.xpose.msra.mxu0 0.0
        %645 = vmatprep.subr.mxu0 0.0
        %646 = vmatpush1.xpose.msra.mxu0 0.0
        %647 = vmatprep.subr.mxu0 0.0
        %648 = vmatpush1.xpose.msra.mxu0 0.0
        %649 = vmatprep.subr.mxu0 0.0
        %650 = vmatpush1.xpose.msra.mxu0 0.0
        %651 = vmatprep.subr.mxu0 0.0
        %652 = vmatpush1.xpose.msra.mxu0 0.0
        %653 = vmatprep.subr.mxu0 0.0
        %654 = vmatpush1.xpose.msra.mxu0 0.0
        %655 = vmatprep.mubr.f32.mxu0 0.0
        %656 = vmatmul.mubr.f32.gmra.mrb[0].mxu0 %v583
        %v657 = vpop.f32.mrb[0].mxu0
        %v658 = vadd.f32 0.0, %v657
        %v659 = vpop.f32.mrb[0].mxu0
        %660 = vmatprep.mubr.f32.mxu0 0.0
        %661 = vmatmul.mubr.f32.gmra.mrb[0].mxu0 %v585
        %v662 = vpop.f32.mrb[0].mxu0
        %v663 = vadd.f32 0.0, %v662
        %v664 = vpop.f32.mrb[0].mxu0
        %665 = vdwg.mxu0
        %v666 = vsel %vm225, %v435, 0
        %v668 = vsel %vm225, %v437, 0
        %v670 = vsel %vm225, %v460, 0
        %v672 = vsel %vm225, %v462, 0
        %674 = vmatprep.subr.mxu0 0.0
        %675 = vmatpush1.xpose.msra.mxu0 %v670
        %676 = vmatprep.subr.mxu0 0.0
        %677 = vmatpush1.xpose.msra.mxu0 %v672
        %678 = vmatprep.subr.mxu0 0.0
        %679 = vmatpush1.xpose.msra.mxu0 0.0
        %680 = vmatprep.subr.mxu0 0.0
        %681 = vmatpush1.xpose.msra.mxu0 0.0
        %682 = vmatprep.subr.mxu0 0.0
        %683 = vmatpush1.xpose.msra.mxu0 0.0
        %684 = vmatprep.subr.mxu0 0.0
        %685 = vmatpush1.xpose.msra.mxu0 0.0
        %686 = vmatprep.subr.mxu0 0.0
        %687 = vmatpush1.xpose.msra.mxu0 0.0
        %688 = vmatprep.subr.mxu0 0.0
        %689 = vmatpush1.xpose.msra.mxu0 0.0
        %690 = vmatprep.subr.mxu0 0.0
        %691 = vmatpush1.xpose.msra.mxu0 0.0
        %692 = vmatprep.subr.mxu0 0.0
        %693 = vmatpush1.xpose.msra.mxu0 0.0
        %694 = vmatprep.subr.mxu0 0.0
        %695 = vmatpush1.xpose.msra.mxu0 0.0
        %696 = vmatprep.subr.mxu0 0.0
        %697 = vmatpush1.xpose.msra.mxu0 0.0
        %698 = vmatprep.subr.mxu0 0.0
        %699 = vmatpush1.xpose.msra.mxu0 0.0
        %700 = vmatprep.subr.mxu0 0.0
        %701 = vmatpush1.xpose.msra.mxu0 0.0
        %702 = vmatprep.subr.mxu0 0.0
        %703 = vmatpush1.xpose.msra.mxu0 0.0
        %704 = vmatprep.subr.mxu0 0.0
        %705 = vmatpush1.xpose.msra.mxu0 0.0
        %706 = vmatprep.subr.mxu0 0.0
        %707 = vmatpush1.xpose.msra.mxu0 0.0
        %708 = vmatprep.subr.mxu0 0.0
        %709 = vmatpush1.xpose.msra.mxu0 0.0
        %710 = vmatprep.subr.mxu0 0.0
        %711 = vmatpush1.xpose.msra.mxu0 0.0
        %712 = vmatprep.subr.mxu0 0.0
        %713 = vmatpush1.xpose.msra.mxu0 0.0
        %714 = vmatprep.subr.mxu0 0.0
        %715 = vmatpush1.xpose.msra.mxu0 0.0
        %716 = vmatprep.subr.mxu0 0.0
        %717 = vmatpush1.xpose.msra.mxu0 0.0
        %718 = vmatprep.subr.mxu0 0.0
        %719 = vmatpush1.xpose.msra.mxu0 0.0
        %720 = vmatprep.subr.mxu0 0.0
        %721 = vmatpush1.xpose.msra.mxu0 0.0
        %722 = vmatprep.subr.mxu0 0.0
        %723 = vmatpush1.xpose.msra.mxu0 0.0
        %724 = vmatprep.subr.mxu0 0.0
        %725 = vmatpush1.xpose.msra.mxu0 0.0
        %726 = vmatprep.subr.mxu0 0.0
        %727 = vmatpush1.xpose.msra.mxu0 0.0
        %728 = vmatprep.subr.mxu0 0.0
        %729 = vmatpush1.xpose.msra.mxu0 0.0
        %730 = vmatprep.subr.mxu0 0.0
        %731 = vmatpush1.xpose.msra.mxu0 0.0
        %732 = vmatprep.subr.mxu0 0.0
        %733 = vmatpush1.xpose.msra.mxu0 0.0
        %734 = vmatprep.subr.mxu0 0.0
        %735 = vmatpush1.xpose.msra.mxu0 0.0
        %736 = vmatprep.subr.mxu0 0.0
        %737 = vmatpush1.xpose.msra.mxu0 0.0
        %738 = vmatprep.mubr.f32.mxu0 0.0
        %739 = vmatmul.mubr.f32.gmra.mrb[0].mxu0 %v666
        %v740 = vpop.f32.mrb[0].mxu0
        %v741 = vadd.f32 0.0, %v740
        %v742 = vpop.f32.mrb[0].mxu0
        %743 = vmatprep.mubr.f32.mxu0 0.0
        %744 = vmatmul.mubr.f32.gmra.mrb[0].mxu0 %v668
        %v745 = vpop.f32.mrb[0].mxu0
        %v746 = vadd.f32 0.0, %v745
        %v747 = vpop.f32.mrb[0].mxu0
        %748 = vdwg.mxu0
        %v749 = vsel %vm225, %v439, 0
        %v751 = vsel %vm225, %v441, 0
        %v753 = vsel %vm225, %v464, 0
        %v755 = vsel %vm225, %v466, 0
        %757 = vmatprep.subr.mxu0 0.0
        %758 = vmatpush1.xpose.msra.mxu0 %v753
        %759 = vmatprep.subr.mxu0 0.0
        %760 = vmatpush1.xpose.msra.mxu0 %v755
        %761 = vmatprep.subr.mxu0 0.0
        %762 = vmatpush1.xpose.msra.mxu0 0.0
        %763 = vmatprep.subr.mxu0 0.0
        %764 = vmatpush1.xpose.msra.mxu0 0.0
        %765 = vmatprep.subr.mxu0 0.0
        %766 = vmatpush1.xpose.msra.mxu0 0.0
        %767 = vmatprep.subr.mxu0 0.0
        %768 = vmatpush1.xpose.msra.mxu0 0.0
        %769 = vmatprep.subr.mxu0 0.0
        %770 = vmatpush1.xpose.msra.mxu0 0.0
        %771 = vmatprep.subr.mxu0 0.0
        %772 = vmatpush1.xpose.msra.mxu0 0.0
        %773 = vmatprep.subr.mxu0 0.0
        %774 = vmatpush1.xpose.msra.mxu0 0.0
        %775 = vmatprep.subr.mxu0 0.0
        %776 = vmatpush1.xpose.msra.mxu0 0.0
        %777 = vmatprep.subr.mxu0 0.0
        %778 = vmatpush1.xpose.msra.mxu0 0.0
        %779 = vmatprep.subr.mxu0 0.0
        %780 = vmatpush1.xpose.msra.mxu0 0.0
        %781 = vmatprep.subr.mxu0 0.0
        %782 = vmatpush1.xpose.msra.mxu0 0.0
        %783 = vmatprep.subr.mxu0 0.0
        %784 = vmatpush1.xpose.msra.mxu0 0.0
        %785 = vmatprep.subr.mxu0 0.0
        %786 = vmatpush1.xpose.msra.mxu0 0.0
        %787 = vmatprep.subr.mxu0 0.0
        %788 = vmatpush1.xpose.msra.mxu0 0.0
        %789 = vmatprep.subr.mxu0 0.0
        %790 = vmatpush1.xpose.msra.mxu0 0.0
        %791 = vmatprep.subr.mxu0 0.0
        %792 = vmatpush1.xpose.msra.mxu0 0.0
        %793 = vmatprep.subr.mxu0 0.0
        %794 = vmatpush1.xpose.msra.mxu0 0.0
        %795 = vmatprep.subr.mxu0 0.0
        %796 = vmatpush1.xpose.msra.mxu0 0.0
        %797 = vmatprep.subr.mxu0 0.0
        %798 = vmatpush1.xpose.msra.mxu0 0.0
        %799 = vmatprep.subr.mxu0 0.0
        %800 = vmatpush1.xpose.msra.mxu0 0.0
        %801 = vmatprep.subr.mxu0 0.0
        %802 = vmatpush1.xpose.msra.mxu0 0.0
        %803 = vmatprep.subr.mxu0 0.0
        %804 = vmatpush1.xpose.msra.mxu0 0.0
        %805 = vmatprep.subr.mxu0 0.0
        %806 = vmatpush1.xpose.msra.mxu0 0.0
        %807 = vmatprep.subr.mxu0 0.0
        %808 = vmatpush1.xpose.msra.mxu0 0.0
        %809 = vmatprep.subr.mxu0 0.0
        %810 = vmatpush1.xpose.msra.mxu0 0.0
        %811 = vmatprep.subr.mxu0 0.0
        %812 = vmatpush1.xpose.msra.mxu0 0.0
        %813 = vmatprep.subr.mxu0 0.0
        %814 = vmatpush1.xpose.msra.mxu0 0.0
        %815 = vmatprep.subr.mxu0 0.0
        %816 = vmatpush1.xpose.msra.mxu0 0.0
        %817 = vmatprep.subr.mxu0 0.0
        %818 = vmatpush1.xpose.msra.mxu0 0.0
        %819 = vmatprep.subr.mxu0 0.0
        %820 = vmatpush1.xpose.msra.mxu0 0.0
        %821 = vmatprep.mubr.f32.mxu0 0.0
        %822 = vmatmul.mubr.f32.gmra.mrb[0].mxu0 %v749
        %v823 = vpop.f32.mrb[0].mxu0
        %v824 = vadd.f32 0.0, %v823
        %v825 = vpop.f32.mrb[0].mxu0
        %826 = vmatprep.mubr.f32.mxu0 0.0
        %827 = vmatmul.mubr.f32.gmra.mrb[0].mxu0 %v751
        %v828 = vpop.f32.mrb[0].mxu0
        %v829 = vadd.f32 0.0, %v828
        %v830 = vpop.f32.mrb[0].mxu0
        %831 = vdwg.mxu0
        %v832 = vlaneseq
        %v833 = vshrl.u32 %v832, 7
        %v834 = vsub.s32 0, %v833
        %v835 = vrot.slane %v197, %v834
        %v836 = vmul.f32 %v427, %v835
        %v837 = vmul.f32 %v429, %v835
        %v838 = vmul.f32 %v431, %v835
        %v839 = vmul.f32 %v433, %v835
        %v840 = vmul.f32 %v435, %v835
        %v841 = vmul.f32 %v437, %v835
        %v842 = vmul.f32 %v439, %v835
        %v843 = vmul.f32 %v441, %v835
        %v844 = vsel %vm225, %v836, 0.0
        %845 = vadd.xlane.f32.xlu0 %v844
        %v846 = vpop.xlane.xlu0 %845
        %v847 = vsel %vm225, %v837, 0.0
        %848 = vadd.xlane.f32.xlu0 %v847
        %v849 = vpop.xlane.xlu0 %848
        %v850 = vsel %vm225, %v838, 0.0
        %851 = vadd.xlane.f32.xlu0 %v850
        %v852 = vpop.xlane.xlu0 %851
        %v853 = vsel %vm225, %v839, 0.0
        %854 = vadd.xlane.f32.xlu0 %v853
        %v855 = vpop.xlane.xlu0 %854
        %v856 = vsel %vm225, %v840, 0.0
        %857 = vadd.xlane.f32.xlu0 %v856
        %v858 = vpop.xlane.xlu0 %857
        %v859 = vsel %vm225, %v841, 0.0
        %860 = vadd.xlane.f32.xlu0 %v859
        %v861 = vpop.xlane.xlu0 %860
        %v862 = vsel %vm225, %v842, 0.0
        %863 = vadd.xlane.f32.xlu0 %v862
        %v864 = vpop.xlane.xlu0 %863
        %v865 = vsel %vm225, %v843, 0.0
        %866 = vadd.xlane.f32.xlu0 %v865
        %v867 = vpop.xlane.xlu0 %866
        %vm868 = vcmask 130048
        %v869 = vsel %vm868, %v575, -inf
        %870 = vmax.xlane.f32.xlu0 %v869
        %v871 = vpop.xlane.xlu0 %870
        %v872 = vsel %vm868, %v580, -inf
        %873 = vmax.xlane.f32.xlu0 %v872
        %v874 = vpop.xlane.xlu0 %873
        %v875 = vsel %vm868, %v658, -inf
        %876 = vmax.xlane.f32.xlu0 %v875
        %v877 = vpop.xlane.xlu0 %876
        %v878 = vsel %vm868, %v663, -inf
        %879 = vmax.xlane.f32.xlu0 %v878
        %v880 = vpop.xlane.xlu0 %879
        %v881 = vsel %vm868, %v741, -inf
        %882 = vmax.xlane.f32.xlu0 %v881
        %v883 = vpop.xlane.xlu0 %882
        %v884 = vsel %vm868, %v746, -inf
        %885 = vmax.xlane.f32.xlu0 %v884
        %v886 = vpop.xlane.xlu0 %885
        %v887 = vsel %vm868, %v824, -inf
        %888 = vmax.xlane.f32.xlu0 %v887
        %v889 = vpop.xlane.xlu0 %888
        %v890 = vsel %vm868, %v829, -inf
        %891 = vmax.xlane.f32.xlu0 %v890
        %v892 = vpop.xlane.xlu0 %891
        %v893 = vmax.f32 %v871, %v846
        %v894 = vmax.f32 %v874, %v849
        %v895 = vmax.f32 %v877, %v852
        %v896 = vmax.f32 %v880, %v855
        %v897 = vmax.f32 %v883, %v858
        %v898 = vmax.f32 %v886, %v861
        %v899 = vmax.f32 %v889, %v864
        %v900 = vmax.f32 %v892, %v867
        %v901 = vsub.f32 %v575, %v893
        %v902 = vsub.f32 %v580, %v894
        %v903 = vsub.f32 %v658, %v895
        %v904 = vsub.f32 %v663, %v896
        %v905 = vsub.f32 %v741, %v897
        %v906 = vsub.f32 %v746, %v898
        %v907 = vsub.f32 %v824, %v899
        %v908 = vsub.f32 %v829, %v900
        %v909 = vmul.f32 %v901, 1.442695
        %v910 = vpow.pop %v909
        %v911 = vmul.f32 %v902, 1.442695
        %v912 = vpow.pop %v911
        %v913 = vmul.f32 %v903, 1.442695
        %v914 = vpow.pop %v913
        %v915 = vmul.f32 %v904, 1.442695
        %v916 = vpow.pop %v915
        %v917 = vmul.f32 %v905, 1.442695
        %v918 = vpow.pop %v917
        %v919 = vmul.f32 %v906, 1.442695
        %v920 = vpow.pop %v919
        %v921 = vmul.f32 %v907, 1.442695
        %v922 = vpow.pop %v921
        %v923 = vmul.f32 %v908, 1.442695
        %v924 = vpow.pop %v923
        %v925 = vsub.f32 %v846, %v893
        %v926 = vsub.f32 %v849, %v894
        %v927 = vsub.f32 %v852, %v895
        %v928 = vsub.f32 %v855, %v896
        %v929 = vsub.f32 %v858, %v897
        %v930 = vsub.f32 %v861, %v898
        %v931 = vsub.f32 %v864, %v899
        %v932 = vsub.f32 %v867, %v900
        %v933 = vmul.f32 %v925, 1.442695
        %v934 = vpow.pop %v933
        %v935 = vmul.f32 %v926, 1.442695
        %v936 = vpow.pop %v935
        %v937 = vmul.f32 %v927, 1.442695
        %v938 = vpow.pop %v937
        %v939 = vmul.f32 %v928, 1.442695
        %v940 = vpow.pop %v939
        %v941 = vmul.f32 %v929, 1.442695
        %v942 = vpow.pop %v941
        %v943 = vmul.f32 %v930, 1.442695
        %v944 = vpow.pop %v943
        %v945 = vmul.f32 %v931, 1.442695
        %v946 = vpow.pop %v945
        %v947 = vmul.f32 %v932, 1.442695
        %v948 = vpow.pop %v947
        %v949 = vlaneseq
        %v950 = vshrl.u32 %v949, 7
        %v951 = vsub.s32 0, %v950
        %v952 = vrot.slane %v216, %v951
        %v953 = vmul.f32 %v934, %v952
        %v954 = vmul.f32 %v936, %v952
        %v955 = vmul.f32 %v938, %v952
        %v956 = vmul.f32 %v940, %v952
        %v957 = vmul.f32 %v942, %v952
        %v958 = vmul.f32 %v944, %v952
        %v959 = vmul.f32 %v946, %v952
        %v960 = vmul.f32 %v948, %v952
        %v962 = vsel %vm868, %v910, 0
        %v965 = vsel %vm868, %v912, 0
        %967 = vmatprep.subr.mxu0 0.0
        %968 = vmatpush1.msra.mxu0 %v477
        %969 = vmatprep.subr.mxu0 0.0
        %970 = vmatpush1.msra.mxu0 %v479
        %971 = vmatprep.subr.mxu0 0.0
        %972 = vmatpush1.msra.mxu0 0.0
        %973 = vmatprep.subr.mxu0 0.0
        %974 = vmatpush1.msra.mxu0 0.0
        %975 = vmatprep.subr.mxu0 0.0
        %976 = vmatpush1.msra.mxu0 0.0
        %977 = vmatprep.subr.mxu0 0.0
        %978 = vmatpush1.msra.mxu0 0.0
        %979 = vmatprep.subr.mxu0 0.0
        %980 = vmatpush1.msra.mxu0 0.0
        %981 = vmatprep.subr.mxu0 0.0
        %982 = vmatpush1.msra.mxu0 0.0
        %983 = vmatprep.subr.mxu0 0.0
        %984 = vmatpush1.msra.mxu0 0.0
        %985 = vmatprep.subr.mxu0 0.0
        %986 = vmatpush1.msra.mxu0 0.0
        %987 = vmatprep.subr.mxu0 0.0
        %988 = vmatpush1.msra.mxu0 0.0
        %989 = vmatprep.subr.mxu0 0.0
        %990 = vmatpush1.msra.mxu0 0.0
        %991 = vmatprep.subr.mxu0 0.0
        %992 = vmatpush1.msra.mxu0 0.0
        %993 = vmatprep.subr.mxu0 0.0
        %994 = vmatpush1.msra.mxu0 0.0
        %995 = vmatprep.subr.mxu0 0.0
        %996 = vmatpush1.msra.mxu0 0.0
        %997 = vmatprep.subr.mxu0 0.0
        %998 = vmatpush1.msra.mxu0 0.0
        %999 = vmatprep.subr.mxu0 0.0
        %1000 = vmatpush1.msra.mxu0 0.0
        %1001 = vmatprep.subr.mxu0 0.0
        %1002 = vmatpush1.msra.mxu0 0.0
        %1003 = vmatprep.subr.mxu0 0.0
        %1004 = vmatpush1.msra.mxu0 0.0
        %1005 = vmatprep.subr.mxu0 0.0
        %1006 = vmatpush1.msra.mxu0 0.0
        %1007 = vmatprep.subr.mxu0 0.0
        %1008 = vmatpush1.msra.mxu0 0.0
        %1009 = vmatprep.subr.mxu0 0.0
        %1010 = vmatpush1.msra.mxu0 0.0
        %1011 = vmatprep.subr.mxu0 0.0
        %1012 = vmatpush1.msra.mxu0 0.0
        %1013 = vmatprep.subr.mxu0 0.0
        %1014 = vmatpush1.msra.mxu0 0.0
        %1015 = vmatprep.subr.mxu0 0.0
        %1016 = vmatpush1.msra.mxu0 0.0
        %1017 = vmatprep.subr.mxu0 0.0
        %1018 = vmatpush1.msra.mxu0 0.0
        %1019 = vmatprep.subr.mxu0 0.0
        %1020 = vmatpush1.msra.mxu0 0.0
        %1021 = vmatprep.subr.mxu0 0.0
        %1022 = vmatpush1.msra.mxu0 0.0
        %1023 = vmatprep.subr.mxu0 0.0
        %1024 = vmatpush1.msra.mxu0 0.0
        %1025 = vmatprep.subr.mxu0 0.0
        %1026 = vmatpush1.msra.mxu0 0.0
        %1027 = vmatprep.subr.mxu0 0.0
        %1028 = vmatpush1.msra.mxu0 0.0
        %1029 = vmatprep.subr.mxu0 0.0
        %1030 = vmatpush1.msra.mxu0 0.0
        %1031 = vmatprep.mubr.f32.mxu0 0.0
        %1032 = vmatmul.mubr.f32.gmra.mrb[0].mxu0 %v962
        %v1033 = vpop.f32.mrb[0].mxu0
        %v1034 = vadd.f32 %v953, %v1033
        %v1035 = vpop.f32.mrb[0].mxu0
        %1036 = vmatprep.mubr.f32.mxu0 0.0
        %1037 = vmatmul.mubr.f32.gmra.mrb[0].mxu0 %v965
        %v1038 = vpop.f32.mrb[0].mxu0
        %v1039 = vadd.f32 %v954, %v1038
        %v1040 = vpop.f32.mrb[0].mxu0
        %1041 = vdwg.mxu0
        %v1043 = vsel %vm868, %v914, 0
        %v1046 = vsel %vm868, %v916, 0
        %1048 = vmatprep.subr.mxu0 0.0
        %1049 = vmatpush1.msra.mxu0 %v481
        %1050 = vmatprep.subr.mxu0 0.0
        %1051 = vmatpush1.msra.mxu0 %v483
        %1052 = vmatprep.subr.mxu0 0.0
        %1053 = vmatpush1.msra.mxu0 0.0
        %1054 = vmatprep.subr.mxu0 0.0
        %1055 = vmatpush1.msra.mxu0 0.0
        %1056 = vmatprep.subr.mxu0 0.0
        %1057 = vmatpush1.msra.mxu0 0.0
        %1058 = vmatprep.subr.mxu0 0.0
        %1059 = vmatpush1.msra.mxu0 0.0
        %1060 = vmatprep.subr.mxu0 0.0
        %1061 = vmatpush1.msra.mxu0 0.0
        %1062 = vmatprep.subr.mxu0 0.0
        %1063 = vmatpush1.msra.mxu0 0.0
        %1064 = vmatprep.subr.mxu0 0.0
        %1065 = vmatpush1.msra.mxu0 0.0
        %1066 = vmatprep.subr.mxu0 0.0
        %1067 = vmatpush1.msra.mxu0 0.0
        %1068 = vmatprep.subr.mxu0 0.0
        %1069 = vmatpush1.msra.mxu0 0.0
        %1070 = vmatprep.subr.mxu0 0.0
        %1071 = vmatpush1.msra.mxu0 0.0
        %1072 = vmatprep.subr.mxu0 0.0
        %1073 = vmatpush1.msra.mxu0 0.0
        %1074 = vmatprep.subr.mxu0 0.0
        %1075 = vmatpush1.msra.mxu0 0.0
        %1076 = vmatprep.subr.mxu0 0.0
        %1077 = vmatpush1.msra.mxu0 0.0
        %1078 = vmatprep.subr.mxu0 0.0
        %1079 = vmatpush1.msra.mxu0 0.0
        %1080 = vmatprep.subr.mxu0 0.0
        %1081 = vmatpush1.msra.mxu0 0.0
        %1082 = vmatprep.subr.mxu0 0.0
        %1083 = vmatpush1.msra.mxu0 0.0
        %1084 = vmatprep.subr.mxu0 0.0
        %1085 = vmatpush1.msra.mxu0 0.0
        %1086 = vmatprep.subr.mxu0 0.0
        %1087 = vmatpush1.msra.mxu0 0.0
        %1088 = vmatprep.subr.mxu0 0.0
        %1089 = vmatpush1.msra.mxu0 0.0
        %1090 = vmatprep.subr.mxu0 0.0
        %1091 = vmatpush1.msra.mxu0 0.0
        %1092 = vmatprep.subr.mxu0 0.0
        %1093 = vmatpush1.msra.mxu0 0.0
        %1094 = vmatprep.subr.mxu0 0.0
        %1095 = vmatpush1.msra.mxu0 0.0
        %1096 = vmatprep.subr.mxu0 0.0
        %1097 = vmatpush1.msra.mxu0 0.0
        %1098 = vmatprep.subr.mxu0 0.0
        %1099 = vmatpush1.msra.mxu0 0.0
        %1100 = vmatprep.subr.mxu0 0.0
        %1101 = vmatpush1.msra.mxu0 0.0
        %1102 = vmatprep.subr.mxu0 0.0
        %1103 = vmatpush1.msra.mxu0 0.0
        %1104 = vmatprep.subr.mxu0 0.0
        %1105 = vmatpush1.msra.mxu0 0.0
        %1106 = vmatprep.subr.mxu0 0.0
        %1107 = vmatpush1.msra.mxu0 0.0
        %1108 = vmatprep.subr.mxu0 0.0
        %1109 = vmatpush1.msra.mxu0 0.0
        %1110 = vmatprep.subr.mxu0 0.0
        %1111 = vmatpush1.msra.mxu0 0.0
        %1112 = vmatprep.mubr.f32.mxu0 0.0
        %1113 = vmatmul.mubr.f32.gmra.mrb[0].mxu0 %v1043
        %v1114 = vpop.f32.mrb[0].mxu0
        %v1115 = vadd.f32 %v955, %v1114
        %v1116 = vpop.f32.mrb[0].mxu0
        %1117 = vmatprep.mubr.f32.mxu0 0.0
        %1118 = vmatmul.mubr.f32.gmra.mrb[0].mxu0 %v1046
        %v1119 = vpop.f32.mrb[0].mxu0
        %v1120 = vadd.f32 %v956, %v1119
        %v1121 = vpop.f32.mrb[0].mxu0
        %1122 = vdwg.mxu0
        %v1124 = vsel %vm868, %v918, 0
        %v1127 = vsel %vm868, %v920, 0
        %1129 = vmatprep.subr.mxu0 0.0
        %1130 = vmatpush1.msra.mxu0 %v485
        %1131 = vmatprep.subr.mxu0 0.0
        %1132 = vmatpush1.msra.mxu0 %v487
        %1133 = vmatprep.subr.mxu0 0.0
        %1134 = vmatpush1.msra.mxu0 0.0
        %1135 = vmatprep.subr.mxu0 0.0
        %1136 = vmatpush1.msra.mxu0 0.0
        %1137 = vmatprep.subr.mxu0 0.0
        %1138 = vmatpush1.msra.mxu0 0.0
        %1139 = vmatprep.subr.mxu0 0.0
        %1140 = vmatpush1.msra.mxu0 0.0
        %1141 = vmatprep.subr.mxu0 0.0
        %1142 = vmatpush1.msra.mxu0 0.0
        %1143 = vmatprep.subr.mxu0 0.0
        %1144 = vmatpush1.msra.mxu0 0.0
        %1145 = vmatprep.subr.mxu0 0.0
        %1146 = vmatpush1.msra.mxu0 0.0
        %1147 = vmatprep.subr.mxu0 0.0
        %1148 = vmatpush1.msra.mxu0 0.0
        %1149 = vmatprep.subr.mxu0 0.0
        %1150 = vmatpush1.msra.mxu0 0.0
        %1151 = vmatprep.subr.mxu0 0.0
        %1152 = vmatpush1.msra.mxu0 0.0
        %1153 = vmatprep.subr.mxu0 0.0
        %1154 = vmatpush1.msra.mxu0 0.0
        %1155 = vmatprep.subr.mxu0 0.0
        %1156 = vmatpush1.msra.mxu0 0.0
        %1157 = vmatprep.subr.mxu0 0.0
        %1158 = vmatpush1.msra.mxu0 0.0
        %1159 = vmatprep.subr.mxu0 0.0
        %1160 = vmatpush1.msra.mxu0 0.0
        %1161 = vmatprep.subr.mxu0 0.0
        %1162 = vmatpush1.msra.mxu0 0.0
        %1163 = vmatprep.subr.mxu0 0.0
        %1164 = vmatpush1.msra.mxu0 0.0
        %1165 = vmatprep.subr.mxu0 0.0
        %1166 = vmatpush1.msra.mxu0 0.0
        %1167 = vmatprep.subr.mxu0 0.0
        %1168 = vmatpush1.msra.mxu0 0.0
        %1169 = vmatprep.subr.mxu0 0.0
        %1170 = vmatpush1.msra.mxu0 0.0
        %1171 = vmatprep.subr.mxu0 0.0
        %1172 = vmatpush1.msra.mxu0 0.0
        %1173 = vmatprep.subr.mxu0 0.0
        %1174 = vmatpush1.msra.mxu0 0.0
        %1175 = vmatprep.subr.mxu0 0.0
        %1176 = vmatpush1.msra.mxu0 0.0
        %1177 = vmatprep.subr.mxu0 0.0
        %1178 = vmatpush1.msra.mxu0 0.0
        %1179 = vmatprep.subr.mxu0 0.0
        %1180 = vmatpush1.msra.mxu0 0.0
        %1181 = vmatprep.subr.mxu0 0.0
        %1182 = vmatpush1.msra.mxu0 0.0
        %1183 = vmatprep.subr.mxu0 0.0
        %1184 = vmatpush1.msra.mxu0 0.0
        %1185 = vmatprep.subr.mxu0 0.0
        %1186 = vmatpush1.msra.mxu0 0.0
        %1187 = vmatprep.subr.mxu0 0.0
        %1188 = vmatpush1.msra.mxu0 0.0
        %1189 = vmatprep.subr.mxu0 0.0
        %1190 = vmatpush1.msra.mxu0 0.0
        %1191 = vmatprep.subr.mxu0 0.0
        %1192 = vmatpush1.msra.mxu0 0.0
        %1193 = vmatprep.mubr.f32.mxu0 0.0
        %1194 = vmatmul.mubr.f32.gmra.mrb[0].mxu0 %v1124
        %v1195 = vpop.f32.mrb[0].mxu0
        %v1196 = vadd.f32 %v957, %v1195
        %v1197 = vpop.f32.mrb[0].mxu0
        %1198 = vmatprep.mubr.f32.mxu0 0.0
        %1199 = vmatmul.mubr.f32.gmra.mrb[0].mxu0 %v1127
        %v1200 = vpop.f32.mrb[0].mxu0
        %v1201 = vadd.f32 %v958, %v1200
        %v1202 = vpop.f32.mrb[0].mxu0
        %1203 = vdwg.mxu0
        %v1205 = vsel %vm868, %v922, 0
        %v1208 = vsel %vm868, %v924, 0
        %1210 = vmatprep.subr.mxu0 0.0
        %1211 = vmatpush1.msra.mxu0 %v489
        %1212 = vmatprep.subr.mxu0 0.0
        %1213 = vmatpush1.msra.mxu0 %v491
        %1214 = vmatprep.subr.mxu0 0.0
        %1215 = vmatpush1.msra.mxu0 0.0
        %1216 = vmatprep.subr.mxu0 0.0
        %1217 = vmatpush1.msra.mxu0 0.0
        %1218 = vmatprep.subr.mxu0 0.0
        %1219 = vmatpush1.msra.mxu0 0.0
        %1220 = vmatprep.subr.mxu0 0.0
        %1221 = vmatpush1.msra.mxu0 0.0
        %1222 = vmatprep.subr.mxu0 0.0
        %1223 = vmatpush1.msra.mxu0 0.0
        %1224 = vmatprep.subr.mxu0 0.0
        %1225 = vmatpush1.msra.mxu0 0.0
        %1226 = vmatprep.subr.mxu0 0.0
        %1227 = vmatpush1.msra.mxu0 0.0
        %1228 = vmatprep.subr.mxu0 0.0
        %1229 = vmatpush1.msra.mxu0 0.0
        %1230 = vmatprep.subr.mxu0 0.0
        %1231 = vmatpush1.msra.mxu0 0.0
        %1232 = vmatprep.subr.mxu0 0.0
        %1233 = vmatpush1.msra.mxu0 0.0
        %1234 = vmatprep.subr.mxu0 0.0
        %1235 = vmatpush1.msra.mxu0 0.0
        %1236 = vmatprep.subr.mxu0 0.0
        %1237 = vmatpush1.msra.mxu0 0.0
        %1238 = vmatprep.subr.mxu0 0.0
        %1239 = vmatpush1.msra.mxu0 0.0
        %1240 = vmatprep.subr.mxu0 0.0
        %1241 = vmatpush1.msra.mxu0 0.0
        %1242 = vmatprep.subr.mxu0 0.0
        %1243 = vmatpush1.msra.mxu0 0.0
        %1244 = vmatprep.subr.mxu0 0.0
        %1245 = vmatpush1.msra.mxu0 0.0
        %1246 = vmatprep.subr.mxu0 0.0
        %1247 = vmatpush1.msra.mxu0 0.0
        %1248 = vmatprep.subr.mxu0 0.0
        %1249 = vmatpush1.msra.mxu0 0.0
        %1250 = vmatprep.subr.mxu0 0.0
        %1251 = vmatpush1.msra.mxu0 0.0
        %1252 = vmatprep.subr.mxu0 0.0
        %1253 = vmatpush1.msra.mxu0 0.0
        %1254 = vmatprep.subr.mxu0 0.0
        %1255 = vmatpush1.msra.mxu0 0.0
        %1256 = vmatprep.subr.mxu0 0.0
        %1257 = vmatpush1.msra.mxu0 0.0
        %1258 = vmatprep.subr.mxu0 0.0
        %1259 = vmatpush1.msra.mxu0 0.0
        %1260 = vmatprep.subr.mxu0 0.0
        %1261 = vmatpush1.msra.mxu0 0.0
        %1262 = vmatprep.subr.mxu0 0.0
        %1263 = vmatpush1.msra.mxu0 0.0
        %1264 = vmatprep.subr.mxu0 0.0
        %1265 = vmatpush1.msra.mxu0 0.0
        %1266 = vmatprep.subr.mxu0 0.0
        %1267 = vmatpush1.msra.mxu0 0.0
        %1268 = vmatprep.subr.mxu0 0.0
        %1269 = vmatpush1.msra.mxu0 0.0
        %1270 = vmatprep.subr.mxu0 0.0
        %1271 = vmatpush1.msra.mxu0 0.0
        %1272 = vmatprep.subr.mxu0 0.0
        %1273 = vmatpush1.msra.mxu0 0.0
        %1274 = vmatprep.mubr.f32.mxu0 0.0
        %1275 = vmatmul.mubr.f32.gmra.mrb[0].mxu0 %v1205
        %v1276 = vpop.f32.mrb[0].mxu0
        %v1277 = vadd.f32 %v959, %v1276
        %v1278 = vpop.f32.mrb[0].mxu0
        %1279 = vmatprep.mubr.f32.mxu0 0.0
        %1280 = vmatmul.mubr.f32.gmra.mrb[0].mxu0 %v1208
        %v1281 = vpop.f32.mrb[0].mxu0
        %v1282 = vadd.f32 %v960, %v1281
        %v1283 = vpop.f32.mrb[0].mxu0
        %1284 = vdwg.mxu0
        %v1285 = vsel %vm868, %v910, 0.0
        %1286 = vadd.xlane.f32.xlu0 %v1285
        %v1287 = vpop.xlane.xlu0 %1286
        %v1288 = vsel %vm868, %v912, 0.0
        %1289 = vadd.xlane.f32.xlu0 %v1288
        %v1290 = vpop.xlane.xlu0 %1289
        %v1291 = vsel %vm868, %v914, 0.0
        %1292 = vadd.xlane.f32.xlu0 %v1291
        %v1293 = vpop.xlane.xlu0 %1292
        %v1294 = vsel %vm868, %v916, 0.0
        %1295 = vadd.xlane.f32.xlu0 %v1294
        %v1296 = vpop.xlane.xlu0 %1295
        %v1297 = vsel %vm868, %v918, 0.0
        %1298 = vadd.xlane.f32.xlu0 %v1297
        %v1299 = vpop.xlane.xlu0 %1298
        %v1300 = vsel %vm868, %v920, 0.0
        %1301 = vadd.xlane.f32.xlu0 %v1300
        %v1302 = vpop.xlane.xlu0 %1301
        %v1303 = vsel %vm868, %v922, 0.0
        %1304 = vadd.xlane.f32.xlu0 %v1303
        %v1305 = vpop.xlane.xlu0 %1304
        %v1306 = vsel %vm868, %v924, 0.0
        %1307 = vadd.xlane.f32.xlu0 %v1306
        %v1308 = vpop.xlane.xlu0 %1307
        %v1309 = vadd.f32 %v1287, %v934
        %v1310 = vadd.f32 %v1290, %v936
        %v1311 = vadd.f32 %v1293, %v938
        %v1312 = vadd.f32 %v1296, %v940
        %v1313 = vadd.f32 %v1299, %v942
        %v1314 = vadd.f32 %v1302, %v944
        %v1315 = vadd.f32 %v1305, %v946
        %v1316 = vadd.f32 %v1308, %v948
        %v1317 = vrcp.pop %v1309
        %v1318 = vmul.f32 %v1034, %v1317
        %v1319 = vrcp.pop %v1310
        %v1320 = vmul.f32 %v1039, %v1319
        %v1321 = vrcp.pop %v1311
        %v1322 = vmul.f32 %v1115, %v1321
        %v1323 = vrcp.pop %v1312
        %v1324 = vmul.f32 %v1120, %v1323
        %v1325 = vrcp.pop %v1313
        %v1326 = vmul.f32 %v1196, %v1325
        %v1327 = vrcp.pop %v1314
        %v1328 = vmul.f32 %v1201, %v1327
        %v1329 = vrcp.pop %v1315
        %v1330 = vmul.f32 %v1277, %v1329
        %v1331 = vrcp.pop %v1316
        %v1332 = vmul.f32 %v1282, %v1331
        %v1341 = vrot.slane %v1318, 7
        %v1342 = vrot.slane %v1320, 7
        %v1343 = vsel %vm342, %v1341, %v1342
        %v1344 = vrot.slane %v1322, 7
        %v1345 = vsel %vm342, %v1342, %v1344
        %v1346 = vrot.slane %v1324, 7
        %v1347 = vsel %vm342, %v1344, %v1346
        %v1348 = vrot.slane %v1326, 7
        %v1349 = vsel %vm342, %v1346, %v1348
        %v1350 = vrot.slane %v1328, 7
        %v1351 = vsel %vm342, %v1348, %v1350
        %v1352 = vrot.slane %v1330, 7
        %v1353 = vsel %vm342, %v1350, %v1352
        %v1354 = vrot.slane %v1332, 7
        %v1355 = vsel %vm342, %v1352, %v1354
        %v1365 = vsel %vm342, %v413, %v1341
        %v1366 = vpack.c.bf16 %v1343, %v1365
        %v1367 = vpack.c.bf16 %v1347, %v1345
        %v1368 = vpack.c.bf16 %v1351, %v1349
        %v1369 = vpack.c.bf16 %v1355, %v1353
        %v1370 = vpack.c.bf16 %v1354, %v1354
        %v1376 = vunpack.c.l.b16 %v1366
        %v1377 = vunpack.c.h.b16 %v1366
        %v1378 = vunpack.c.l.b16 %v1367
        %v1379 = vunpack.c.h.b16 %v1367
        %v1380 = vunpack.c.l.b16 %v1368
        %v1381 = vunpack.c.h.b16 %v1368
        %v1382 = vunpack.c.l.b16 %v1369
        %v1383 = vunpack.c.h.b16 %v1369
        %v1384 = vunpack.c.l.b16 %v1370
        %v1385 = vpack.c.b16 %v1376, %v1376
        %v1386 = vpack.c.b16 %v1377, %v1377
        %v1387 = vpack.c.b16 %v1378, %v1378
        %v1388 = vpack.c.b16 %v1379, %v1379
        %v1389 = vpack.c.b16 %v1380, %v1380
        %v1390 = vpack.c.b16 %v1381, %v1381
        %v1391 = vpack.c.b16 %v1382, %v1382
        %v1392 = vpack.c.b16 %v1383, %v1383
        %v1393 = vpack.c.b16 %v1384, %v1384
        %vm1403 = vcmask 60416
        %1404 = vst.msk [vmem:[%s159] sm:$0xf] %vm1403, %v1385
        %1405 = vst.msk [vmem:[%s159 + $0x4] sm:$0xf] %vm1403, %v1386
        %1406 = vst.msk [vmem:[%s159 + $0x8] sm:$0xf] %vm1403, %v1387
        %1407 = vst.msk [vmem:[%s159 + $0xc] sm:$0xf] %vm1403, %v1388
        %1408 = vst.msk [vmem:[%s159 + $0x10] sm:$0xf] %vm1403, %v1389
        %1409 = vst.msk [vmem:[%s159 + $0x14] sm:$0xf] %vm1403, %v1390
        %1410 = vst.msk [vmem:[%s159 + $0x18] sm:$0xf] %vm1403, %v1391
        %1411 = vst.msk [vmem:[%s159 + $0x1c] sm:$0xf] %vm1403, %v1392
        %vm1412 = vcmask 57344
        %vm1413 = vsmask.f32 256
        %vm1414 = vmand %vm1412, %vm1413
        %v1415 = vld [vmem:[%s159 + $0x20] sm:$0x1]
        %v1416 = vsel %vm1414, %v1393, %v1415
        %1417 = vst [vmem:[%s159 + $0x20] sm:$0x1] %v1416
        %s1418 = sand.u32 %s52, 1
        %s1419 = scalar_lea.sflag [#allocation4], %s1418
        %s1420 = sand.u32 %s52, 1
        %s1421 = smul.addr %s1420, 36
        %s1422 = scalar_lea.vmem [#allocation5], %s1421
        // Predicated region
        $region29: #{timesformer_layer.11} parent=23 // pred_check
          %p1423 = pneg %p62
        $region30: #{timesformer_layer.11} parent=23 // pred_check_branch
          %1425 = sbr.rel (%p1423) target = $region32
        $region31: #{timesformer_layer.11} parent=23 // pred_region
          %s1427 = ssub.s32 576, 576
          %1428 = vsyncadd %s1419, %s1427
          %s1429 = smul.addr %s18, 9
          %s1430 = smul.addr %s1429, 64
          %s1431 = scalar_lea.hbm %s1, %s1430
          %s1432 = sshll.u32 %s1422, 4
          %s1433 = int_to_ptr.vmem [resolvable:$true] %s1432
          %1438 = dma.vmem_to_hbm [thread:$0]  %s1433, 576, %s1431, %s1419, 64, 64, 4
        $region32: #{timesformer_layer.11} parent=23 // pred_fallthru
          _
      $region24: #{timesformer_layer.11} parent=5 // pred_fallthru
        _
      %p1439 = scmp.le.s32.totalorder 2, %s13
      // Predicated region
      $region33: #{timesformer_layer.11} parent=5 // pred_check
        %p1440 = pneg %p1439
      $region34: #{timesformer_layer.11} parent=5 // pred_check_branch
        %1442 = sbr.rel (%p1440) target = $region36
      $region35: #{timesformer_layer.11} parent=5 // pred_region
        %s1443 = ssub.s32 %s13, 2
        // Predicated region
        $region37: #{timesformer_layer.11} parent=35 // pred_check
          %p1444 = pneg %p68
        $region38: #{timesformer_layer.11} parent=35 // pred_check_branch
          %1446 = sbr.rel (%p1444) target = $region40
        $region39: #{timesformer_layer.11} parent=35 // pred_region
          %s1447 = sand.u32 %s53, 1
          %s1448 = scalar_lea.sflag [#allocation4], %s1447
          %s1449 = sand.u32 %s53, 1
          %s1450 = smul.addr %s1449, 36
          %s1451 = scalar_lea.vmem [#allocation5], %s1450
          %1452 = dma.done %s1448, 576
        $region40: #{timesformer_layer.11} parent=35 // pred_fallthru
          _
      $region36: #{timesformer_layer.11} parent=5 // pred_fallthru
        _
    $region6: #{timesformer_layer.11} parent=1 // loop_footer
      %s17 = sadd.s32 1, %s13
    $region7: #{timesformer_layer.11} parent=1 // loop_footer_branch
      %12 = sbr.rel target = $region3
    $region8: #{timesformer_layer.11} parent=1 // loop_exit
      _
    %1453 = vsyncpa [#allocation3], 1
    %s1454 = scalar_lea.sflag [#allocation3], 1
    %1455 = vsyncpa %s1454, 1
    %1456 = vsyncpa [#allocation4], 1
    %s1457 = scalar_lea.sflag [#allocation4], 1
    %1458 = vsyncpa %s1457, 1

</llo_original>
